<compile_context>
chip_gen: v6e
topology: v6e:2x2x1
jax: 0.10.0
libtpu: 0.0.40
codegen_flags: <defaults>
</compile_context>

<pallas_src>
import functools

import numpy as np
import jax
import jax.numpy as jnp
from jax.experimental import pallas as pl
from jax.experimental.pallas import tpu as pltpu

NEG_SLOPE = -0.76766074

# conv1..conv4 of the PyTorch Model.
LAYERS = [
    dict(cin=43, cout=78, k=3, stride=1, padding=1, output_padding=1, dilation=1),
    dict(cin=78, cout=16, k=2, stride=2, padding=1, output_padding=0, dilation=2),
    dict(cin=16, cout=12, k=3, stride=3, padding=2, output_padding=1, dilation=1),
    dict(cin=12, cout=82, k=1, stride=1, padding=0, output_padding=0, dilation=1),
]


def _round_up(x, m):
    return (x + m - 1) // m * m


# --------------------------- fused Pallas kernel ----------------------------
def _fused_kernel(x_ref, w1_ref, b1_ref, w2_ref, b2_ref, tc_ref,
                  w3_ref, b3_ref, w4_ref, b4_ref,
                  o_ref, a1_ref, a2_ref, *, cfg):
    V1, V2, M_CORE, M_PH = cfg
    f32, bf16 = jnp.float32, jnp.bfloat16

    def leaky(v):
        return jnp.where(v > 0, v, v * NEG_SLOPE)

    # ---- conv1: single folded-tap GEMM (K = 9*cin) on host-built im2col ----
    a1 = jnp.dot(x_ref[0, :, :], w1_ref[...], preferred_element_type=f32)
    a1_ref[...] = leaky(a1 + b1_ref[...]).astype(bf16)

    # ---- conv2 (stride-2 / dilation-2 parity structure) ----
    # Only odd/odd output pixels carry conv terms; they form a 2x2 valid conv
    # on a1.  Compute that core (pre-bias), then scatter it into a zero
    # background with an exact 0/1 matrix; bias + leaky give leaky(b2) at all
    # data-free positions for free.
    core = jnp.zeros((M_CORE, w2_ref.shape[2]), f32)
    for t, off in enumerate((0, 1, V1, V1 + 1)):
        core += jnp.dot(a1_ref[pl.ds(off, M_CORE), :], w2_ref[t],
                        preferred_element_type=f32)
    a2 = jnp.dot(tc_ref[...], core.astype(bf16), preferred_element_type=f32)
    a2_ref[...] = leaky(a2 + b2_ref[...]).astype(bf16)

    # ---- conv3 + conv4: stride-3 phase decomposition (9 phases) ----
    # Each conv3 output pixel sees exactly one non-zero tap of the
    # zero-inserted input, so each phase is a 1x1 GEMM on a shifted a2 slab;
    # conv4 (1x1) fuses in.  Output is written phase-major.
    # TODO(synk): output stores use 82 of 128 lanes (masked vst); a
    # channel-major store layout would be denser on v5e but adds transposes.
    dmap = (0, 1, 1)
    w4 = w4_ref[...]
    b3 = b3_ref[...]
    b4 = b4_ref[...]
    for ph in range(9):
        rh, rw = divmod(ph, 3)
        base = dmap[rh] * V2 + dmap[rw]
        slab = a2_ref[pl.ds(base, M_PH), :]
        p3 = leaky(jnp.dot(slab, w3_ref[ph], preferred_element_type=f32) + b3)
        p4 = jnp.dot(p3.astype(bf16), w4, preferred_element_type=f32) + b4
        o_ref[0, ph, :, :] = leaky(p4)


# ------------------------------- host helpers --------------------------------
def _eff_weight(w_pt):
    # PyTorch ConvTranspose2d weight (Cin, Cout, K, K) -> effective forward-conv
    # taps (spatially flipped), HWIO layout (K, K, Cin, Cout).
    return jnp.transpose(w_pt[:, :, ::-1, ::-1], (2, 3, 0, 1))


def _core_scatter_matrix(h0, w0, v1, v2, n_rows):
    # Exact 0/1 matrix T[dst, src] placing the conv2 core (flat row width v1,
    # valid cols < w0) onto the odd/odd positions of the flat a2 buffer
    # (row width v2).  Exact in bfloat16.
    t = np.zeros((n_rows, h0 * v1), np.float32)
    for qh in range(h0):
        for qw in range(w0):
            dst = (1 + 2 * qh) * v2 + (1 + 2 * qw)
            t[dst, qh * v1 + qw] = 1.0
    return t


@jax.jit
def model_forward(x_nchw, params):
    n, c0, h0, w0 = x_nchw.shape
    s1, s2, s3, s4 = LAYERS
    c1, c2, c3, c4 = s1["cout"], s2["cout"], s3["cout"], s4["cout"]
    assert c0 == s1["cin"]
    # Structural assumptions behind the decompositions below.
    assert (s1["k"], s1["stride"], s1["padding"], s1["output_padding"],
            s1["dilation"]) == (3, 1, 1, 1, 1)
    assert (s2["k"], s2["stride"], s2["padding"], s2["output_padding"],
            s2["dilation"]) == (2, 2, 1, 0, 2)
    assert (s3["k"], s3["stride"], s3["padding"], s3["output_padding"],
            s3["dilation"]) == (3, 3, 2, 1, 1)
    assert (s4["k"], s4["stride"], s4["padding"]) == (1, 1, 0)

    # ---- geometry ----
    V1 = w0 + 3                              # conv1 padded width == a1 row width
    V2 = 2 * w0 + 1                          # a2 row width (== conv2 out width)
    QH, QW = 2 * h0, 2 * w0                  # conv3 per-phase output grid
    H3, W3 = 3 * QH, 3 * QW                  # final spatial size
    M_CORE = h0 * V1                         # conv2-core flat rows
    M1 = _round_up((h0 + 1) * V1 + 1, 16)    # a1 rows (covers all core tap reads)
    M_PH = QH * V2                           # per-phase out rows (junk cols >= QW)
    NP2A = _round_up((V2 + 1) + M_PH, 16)    # a2 rows (covers all phase slab reads)

    # ---- conv1 input: host-side im2col (layout plumbing only), bf16 ----
    x = jnp.transpose(x_nchw, (0, 2, 3, 1)).astype(jnp.float32)   # NHWC
    RH = -(-M1 // V1)                                             # ceil(M1 / V1)
    xp = jnp.pad(x, ((0, 0), (1, RH + 1 - h0), (1, V1 + 1 - w0), (0, 0)))
    taps = []
    for kh in range(3):
        for kw in range(3):
            s = xp[:, kh:kh + RH, kw:kw + V1, :]
            taps.append(s.reshape(n, RH * V1, c0)[:, :M1])
    x_im2col = jnp.concatenate(taps, axis=-1).astype(jnp.bfloat16)  # (n, M1, 9*c0)

    # ---- weights / biases / scatter matrix ----
    (w1, b1), (w2, b2), (w3, b3), (w4, b4) = params
    w1e = _eff_weight(w1).reshape(9 * c0, c1).astype(jnp.bfloat16)       # (387, 78)
    w2e = _eff_weight(w2).reshape(4, c1, c2).astype(jnp.bfloat16)        # (4, 78, 16)
    kmap = jnp.array([0, 2, 1])              # phase r -> kernel tap index
    w3_eff = _eff_weight(w3)                                             # (3,3,16,12)
    w3e = w3_eff[kmap][:, kmap].reshape(9, c2, c3).astype(jnp.bfloat16)  # (9, 16, 12)
    w4e = w4[:, :, 0, 0].astype(jnp.bfloat16)                            # (12, 82)
    b1r = b1.reshape(1, c1).astype(jnp.float32)
    b2r = b2.reshape(1, c2).astype(jnp.float32)
    b3r = b3.reshape(1, c3).astype(jnp.float32)
    b4r = b4.reshape(1, c4).astype(jnp.float32)
    tcore = jnp.asarray(_core_scatter_matrix(h0, w0, V1, V2, NP2A),
                        dtype=jnp.bfloat16)                              # (304, 88)

    cfg = (V1, V2, M_CORE, M_PH)
    kernel = functools.partial(_fused_kernel, cfg=cfg)

    out_ph = pl.pallas_call(
        kernel,
        out_shape=jax.ShapeDtypeStruct((n, 9, M_PH, c4), jnp.float32),
        grid=(n,),
        in_specs=[
            pl.BlockSpec((1, M1, 9 * c0), lambda i: (i, 0, 0)),  # conv1 im2col
            pl.BlockSpec((9 * c0, c1), lambda i: (0, 0)),        # w1 folded taps
            pl.BlockSpec((1, c1), lambda i: (0, 0)),             # b1
            pl.BlockSpec((4, c1, c2), lambda i: (0, 0, 0)),      # w2 taps
            pl.BlockSpec((1, c2), lambda i: (0, 0)),             # b2
            pl.BlockSpec((NP2A, M_CORE), lambda i: (0, 0)),      # core->a2 scatter
            pl.BlockSpec((9, c2, c3), lambda i: (0, 0, 0)),      # w3 phase weights
            pl.BlockSpec((1, c3), lambda i: (0, 0)),             # b3
            pl.BlockSpec((c3, c4), lambda i: (0, 0)),            # w4 (1x1)
            pl.BlockSpec((1, c4), lambda i: (0, 0)),             # b4
        ],
        out_specs=pl.BlockSpec((1, 9, M_PH, c4), lambda i: (i, 0, 0, 0)),
        scratch_shapes=[
            pltpu.VMEM((M1, c1), jnp.bfloat16),     # a1 (conv1 output, flat)
            pltpu.VMEM((NP2A, c2), jnp.bfloat16),   # a2 (conv2 output, flat)
        ],
        compiler_params=pltpu.CompilerParams(
            dimension_semantics=("parallel",),      # batch across TCs on v7x
            vmem_limit_bytes=32 * 1024 * 1024,
        ),
    )(x_im2col, w1e, b1r, w2e, b2r, tcore, w3e, b3r, w4e, b4r)

    # de-interleave the 9 conv3 phases: (n, rh, rw, qh, qw(+junk), c) -> NCHW
    out = out_ph.reshape(n, 3, 3, QH, V2, c4)[:, :, :, :, :QW, :]
    out = jnp.transpose(out, (0, 5, 3, 1, 4, 2)).reshape(n, c4, H3, W3)
    return out


# ---------------- pure-JAX reference (for correctness check) ----------------
def _ref_layer(x_nhwc, w_pt, b, spec, slope=NEG_SLOPE):
    k, s, p, op, d = (spec["k"], spec["stride"], spec["padding"],
                      spec["output_padding"], spec["dilation"])
    cout = w_pt.shape[1]
    w_eff = jnp.transpose(w_pt[:, :, ::-1, ::-1], (2, 3, 0, 1))
    pad_lo = d * (k - 1) - p
    pad_hi = pad_lo + op
    y = jax.lax.conv_general_dilated(
        x_nhwc, w_eff, window_strides=(1, 1),
        padding=[(pad_lo, pad_hi), (pad_lo, pad_hi)],
        lhs_dilation=(s, s), rhs_dilation=(d, d),
        dimension_numbers=("NHWC", "HWIO", "NHWC"),
        precision=jax.lax.Precision.HIGHEST)
    y = y + b.reshape(1, 1, 1, cout)
    return jnp.where(y > 0, y, y * slope)


def ref_forward(x_nchw, params):
    x = jnp.transpose(x_nchw, (0, 2, 3, 1))
    for (w, b), spec in zip(params, LAYERS):
        x = _ref_layer(x, w, b, spec)
    return jnp.transpose(x, (0, 3, 1, 2))


if __name__ == "__main__":
    key = jax.random.PRNGKey(0)
    kx, *wkeys = jax.random.split(key, 1 + len(LAYERS))

    N, H, W = 2, 8, 8
    x = jax.random.normal(kx, (N, LAYERS[0]["cin"], H, W), jnp.float32)

    params = []
    for kk, spec in zip(wkeys, LAYERS):
        kw_key, kb_key = jax.random.split(kk)
        ci, co, k = spec["cin"], spec["cout"], spec["k"]
        scale = 1.0 / (ci * k * k) ** 0.5
        wgt = jax.random.normal(kw_key, (ci, co, k, k), jnp.float32) * scale
        bias = jax.random.normal(kb_key, (co,), jnp.float32) * 0.05
        params.append((wgt, bias))

    out = jax.block_until_ready(model_forward(x, params))
    ref = ref_forward(x, params)

    assert out.shape == (N, LAYERS[-1]["cout"], 6 * H, 6 * W), out.shape
    max_err = float(jnp.max(jnp.abs(out - ref)))
    assert jnp.allclose(out, ref, rtol=5e-2, atol=5e-2), max_err

    print("KERNEL_OK")
</pallas_src>

<mosaic_0001>
module attributes {stable_mosaic.version = 11 : i64} {
  func.func @_fused_kernel(%arg0: i32, %arg1: memref<1x112x387xbf16, #tpu.memory_space<vmem>>, %arg2: memref<387x78xbf16, #tpu.memory_space<vmem>>, %arg3: memref<1x78xf32, #tpu.memory_space<vmem>>, %arg4: memref<4x78x16xbf16, #tpu.memory_space<vmem>>, %arg5: memref<1x16xf32, #tpu.memory_space<vmem>>, %arg6: memref<304x88xbf16, #tpu.memory_space<vmem>>, %arg7: memref<9x16x12xbf16, #tpu.memory_space<vmem>>, %arg8: memref<1x12xf32, #tpu.memory_space<vmem>>, %arg9: memref<12x82xbf16, #tpu.memory_space<vmem>>, %arg10: memref<1x82xf32, #tpu.memory_space<vmem>>, %arg11: memref<1x9x272x82xf32, #tpu.memory_space<vmem>>, %arg12: memref<112x78xbf16, #tpu.memory_space<vmem>>, %arg13: memref<304x16xbf16, #tpu.memory_space<vmem>>) attributes {dimension_semantics = [#tpu.dimension_semantics<parallel>], iteration_bounds = array<i64: 2>, scalar_prefetch = 0 : i64, scratch_operands = 2 : i64, tpu.core_type = #tpu.core_type<tc>, window_params = [{transform_indices = @transform_0, window_bounds = array<i64: 1, 112, 387>}, {pipeline_mode = #tpu.pipeline_mode<synchronous>, transform_indices = @transform_1, window_bounds = array<i64: 387, 78>}, {pipeline_mode = #tpu.pipeline_mode<synchronous>, transform_indices = @transform_2, window_bounds = array<i64: 1, 78>}, {pipeline_mode = #tpu.pipeline_mode<synchronous>, transform_indices = @transform_3, window_bounds = array<i64: 4, 78, 16>}, {pipeline_mode = #tpu.pipeline_mode<synchronous>, transform_indices = @transform_4, window_bounds = array<i64: 1, 16>}, {pipeline_mode = #tpu.pipeline_mode<synchronous>, transform_indices = @transform_5, window_bounds = array<i64: 304, 88>}, {pipeline_mode = #tpu.pipeline_mode<synchronous>, transform_indices = @transform_6, window_bounds = array<i64: 9, 16, 12>}, {pipeline_mode = #tpu.pipeline_mode<synchronous>, transform_indices = @transform_7, window_bounds = array<i64: 1, 12>}, {pipeline_mode = #tpu.pipeline_mode<synchronous>, transform_indices = @transform_8, window_bounds = array<i64: 12, 82>}, {pipeline_mode = #tpu.pipeline_mode<synchronous>, transform_indices = @transform_9, window_bounds = array<i64: 1, 82>}, {transform_indices = @transform_10, window_bounds = array<i64: 1, 9, 272, 82>}]} {
    %c0 = arith.constant 0 : index
    %c0_0 = arith.constant 0 : index
    %c0_1 = arith.constant 0 : index
    %0 = vector.load %arg1[%c0, %c0_0, %c0_1] : memref<1x112x387xbf16, #tpu.memory_space<vmem>>, vector<1x112x387xbf16>
    %1 = vector.shape_cast %0 : vector<1x112x387xbf16> to vector<112x387xbf16>
    %c0_2 = arith.constant 0 : index
    %c0_3 = arith.constant 0 : index
    %2 = vector.load %arg2[%c0_2, %c0_3] : memref<387x78xbf16, #tpu.memory_space<vmem>>, vector<387x78xbf16>
    %cst = arith.constant dense<0.000000e+00> : vector<112x78xf32>
    %3 = tpu.matmul %1, %2, %cst {dimension_numbers = #tpu.dot_dimension_numbers<[1], [0], [0], [1], [0, 0, 1, 1], [], []>} : vector<112x387xbf16>, vector<387x78xbf16>, vector<112x78xf32> -> vector<112x78xf32>
    %c0_4 = arith.constant 0 : index
    %c0_5 = arith.constant 0 : index
    %4 = vector.load %arg3[%c0_4, %c0_5] : memref<1x78xf32, #tpu.memory_space<vmem>>, vector<1x78xf32>
    %5 = vector.broadcast %4 : vector<1x78xf32> to vector<112x78xf32>
    %6 = arith.addf %3, %5 : vector<112x78xf32>
    %cst_6 = arith.constant 0.000000e+00 : f32
    %7 = vector.broadcast %cst_6 : f32 to vector<112x78xf32>
    %8 = arith.cmpf ogt, %6, %7 : vector<112x78xf32>
    %cst_7 = arith.constant -0.767660737 : f32
    %9 = vector.broadcast %cst_7 : f32 to vector<112x78xf32>
    %10 = arith.mulf %6, %9 : vector<112x78xf32>
    %11 = arith.select %8, %6, %10 : vector<112x78xi1>, vector<112x78xf32>
    %12 = arith.truncf %11 : vector<112x78xf32> to vector<112x78xbf16>
    %c0_8 = arith.constant 0 : index
    %c0_9 = arith.constant 0 : index
    %13 = vector.load %arg12[%c0_8, %c0_9] : memref<112x78xbf16, #tpu.memory_space<vmem>>, vector<112x78xbf16>
    tpu.vector_store %arg12[%c0_8, %c0_9], %12 {strides = array<i32>} : memref<112x78xbf16, #tpu.memory_space<vmem>>, vector<112x78xbf16>,
    %cst_10 = arith.constant 0.000000e+00 : f32
    %14 = vector.broadcast %cst_10 : f32 to vector<88x16xf32>
    %c0_11 = arith.constant 0 : index
    %c0_12 = arith.constant 0 : index
    %15 = vector.load %arg12[%c0_11, %c0_12] : memref<112x78xbf16, #tpu.memory_space<vmem>>, vector<88x78xbf16>
    %c0_13 = arith.constant 0 : index
    %c0_14 = arith.constant 0 : index
    %c0_15 = arith.constant 0 : index
    %16 = vector.load %arg4[%c0_13, %c0_14, %c0_15] : memref<4x78x16xbf16, #tpu.memory_space<vmem>>, vector<1x78x16xbf16>
    %17 = vector.shape_cast %16 : vector<1x78x16xbf16> to vector<78x16xbf16>
    %cst_16 = arith.constant dense<0.000000e+00> : vector<88x16xf32>
    %18 = tpu.matmul %15, %17, %cst_16 {dimension_numbers = #tpu.dot_dimension_numbers<[1], [0], [0], [1], [0, 0, 1, 1], [], []>} : vector<88x78xbf16>, vector<78x16xbf16>, vector<88x16xf32> -> vector<88x16xf32>
    %19 = arith.addf %14, %18 : vector<88x16xf32>
    %c1 = arith.constant 1 : index
    %c0_17 = arith.constant 0 : index
    %20 = vector.load %arg12[%c1, %c0_17] : memref<112x78xbf16, #tpu.memory_space<vmem>>, vector<88x78xbf16>
    %c1_18 = arith.constant 1 : index
    %c0_19 = arith.constant 0 : index
    %c0_20 = arith.constant 0 : index
    %21 = vector.load %arg4[%c1_18, %c0_19, %c0_20] : memref<4x78x16xbf16, #tpu.memory_space<vmem>>, vector<1x78x16xbf16>
    %22 = vector.shape_cast %21 : vector<1x78x16xbf16> to vector<78x16xbf16>
    %cst_21 = arith.constant dense<0.000000e+00> : vector<88x16xf32>
    %23 = tpu.matmul %20, %22, %cst_21 {dimension_numbers = #tpu.dot_dimension_numbers<[1], [0], [0], [1], [0, 0, 1, 1], [], []>} : vector<88x78xbf16>, vector<78x16xbf16>, vector<88x16xf32> -> vector<88x16xf32>
    %24 = arith.addf %19, %23 : vector<88x16xf32>
    %c11 = arith.constant 11 : index
    %c0_22 = arith.constant 0 : index
    %25 = vector.load %arg12[%c11, %c0_22] : memref<112x78xbf16, #tpu.memory_space<vmem>>, vector<88x78xbf16>
    %c2 = arith.constant 2 : index
    %c0_23 = arith.constant 0 : index
    %c0_24 = arith.constant 0 : index
    %26 = vector.load %arg4[%c2, %c0_23, %c0_24] : memref<4x78x16xbf16, #tpu.memory_space<vmem>>, vector<1x78x16xbf16>
    %27 = vector.shape_cast %26 : vector<1x78x16xbf16> to vector<78x16xbf16>
    %cst_25 = arith.constant dense<0.000000e+00> : vector<88x16xf32>
    %28 = tpu.matmul %25, %27, %cst_25 {dimension_numbers = #tpu.dot_dimension_numbers<[1], [0], [0], [1], [0, 0, 1, 1], [], []>} : vector<88x78xbf16>, vector<78x16xbf16>, vector<88x16xf32> -> vector<88x16xf32>
    %29 = arith.addf %24, %28 : vector<88x16xf32>
    %c12 = arith.constant 12 : index
    %c0_26 = arith.constant 0 : index
    %30 = vector.load %arg12[%c12, %c0_26] : memref<112x78xbf16, #tpu.memory_space<vmem>>, vector<88x78xbf16>
    %c3 = arith.constant 3 : index
    %c0_27 = arith.constant 0 : index
    %c0_28 = arith.constant 0 : index
    %31 = vector.load %arg4[%c3, %c0_27, %c0_28] : memref<4x78x16xbf16, #tpu.memory_space<vmem>>, vector<1x78x16xbf16>
    %32 = vector.shape_cast %31 : vector<1x78x16xbf16> to vector<78x16xbf16>
    %cst_29 = arith.constant dense<0.000000e+00> : vector<88x16xf32>
    %33 = tpu.matmul %30, %32, %cst_29 {dimension_numbers = #tpu.dot_dimension_numbers<[1], [0], [0], [1], [0, 0, 1, 1], [], []>} : vector<88x78xbf16>, vector<78x16xbf16>, vector<88x16xf32> -> vector<88x16xf32>
    %34 = arith.addf %29, %33 : vector<88x16xf32>
    %c0_30 = arith.constant 0 : index
    %c0_31 = arith.constant 0 : index
    %35 = vector.load %arg6[%c0_30, %c0_31] : memref<304x88xbf16, #tpu.memory_space<vmem>>, vector<304x88xbf16>
    %36 = arith.truncf %34 : vector<88x16xf32> to vector<88x16xbf16>
    %cst_32 = arith.constant dense<0.000000e+00> : vector<304x16xf32>
    %37 = tpu.matmul %35, %36, %cst_32 {dimension_numbers = #tpu.dot_dimension_numbers<[1], [0], [0], [1], [0, 0, 1, 1], [], []>} : vector<304x88xbf16>, vector<88x16xbf16>, vector<304x16xf32> -> vector<304x16xf32>
    %c0_33 = arith.constant 0 : index
    %c0_34 = arith.constant 0 : index
    %38 = vector.load %arg5[%c0_33, %c0_34] : memref<1x16xf32, #tpu.memory_space<vmem>>, vector<1x16xf32>
    %39 = vector.broadcast %38 : vector<1x16xf32> to vector<304x16xf32>
    %40 = arith.addf %37, %39 : vector<304x16xf32>
    %cst_35 = arith.constant 0.000000e+00 : f32
    %41 = vector.broadcast %cst_35 : f32 to vector<304x16xf32>
    %42 = arith.cmpf ogt, %40, %41 : vector<304x16xf32>
    %cst_36 = arith.constant -0.767660737 : f32
    %43 = vector.broadcast %cst_36 : f32 to vector<304x16xf32>
    %44 = arith.mulf %40, %43 : vector<304x16xf32>
    %45 = arith.select %42, %40, %44 : vector<304x16xi1>, vector<304x16xf32>
    %46 = arith.truncf %45 : vector<304x16xf32> to vector<304x16xbf16>
    %c0_37 = arith.constant 0 : index
    %c0_38 = arith.constant 0 : index
    %47 = vector.load %arg13[%c0_37, %c0_38] : memref<304x16xbf16, #tpu.memory_space<vmem>>, vector<304x16xbf16>
    tpu.vector_store %arg13[%c0_37, %c0_38], %46 {strides = array<i32>} : memref<304x16xbf16, #tpu.memory_space<vmem>>, vector<304x16xbf16>,
    %c0_39 = arith.constant 0 : index
    %c0_40 = arith.constant 0 : index
    %48 = vector.load %arg9[%c0_39, %c0_40] : memref<12x82xbf16, #tpu.memory_space<vmem>>, vector<12x82xbf16>
    %c0_41 = arith.constant 0 : index
    %c0_42 = arith.constant 0 : index
    %49 = vector.load %arg8[%c0_41, %c0_42] : memref<1x12xf32, #tpu.memory_space<vmem>>, vector<1x12xf32>
    %c0_43 = arith.constant 0 : index
    %c0_44 = arith.constant 0 : index
    %50 = vector.load %arg10[%c0_43, %c0_44] : memref<1x82xf32, #tpu.memory_space<vmem>>, vector<1x82xf32>
    %c0_45 = arith.constant 0 : index
    %c0_46 = arith.constant 0 : index
    %51 = vector.load %arg13[%c0_45, %c0_46] : memref<304x16xbf16, #tpu.memory_space<vmem>>, vector<272x16xbf16>
    %c0_47 = arith.constant 0 : index
    %c0_48 = arith.constant 0 : index
    %c0_49 = arith.constant 0 : index
    %52 = vector.load %arg7[%c0_47, %c0_48, %c0_49] : memref<9x16x12xbf16, #tpu.memory_space<vmem>>, vector<1x16x12xbf16>
    %53 = vector.shape_cast %52 : vector<1x16x12xbf16> to vector<16x12xbf16>
    %cst_50 = arith.constant dense<0.000000e+00> : vector<272x12xf32>
    %54 = tpu.matmul %51, %53, %cst_50 {dimension_numbers = #tpu.dot_dimension_numbers<[1], [0], [0], [1], [0, 0, 1, 1], [], []>} : vector<272x16xbf16>, vector<16x12xbf16>, vector<272x12xf32> -> vector<272x12xf32>
    %55 = vector.broadcast %49 : vector<1x12xf32> to vector<272x12xf32>
    %56 = arith.addf %54, %55 : vector<272x12xf32>
    %cst_51 = arith.constant 0.000000e+00 : f32
    %57 = vector.broadcast %cst_51 : f32 to vector<272x12xf32>
    %58 = arith.cmpf ogt, %56, %57 : vector<272x12xf32>
    %cst_52 = arith.constant -0.767660737 : f32
    %59 = vector.broadcast %cst_52 : f32 to vector<272x12xf32>
    %60 = arith.mulf %56, %59 : vector<272x12xf32>
    %61 = arith.select %58, %56, %60 : vector<272x12xi1>, vector<272x12xf32>
    %62 = arith.truncf %61 : vector<272x12xf32> to vector<272x12xbf16>
    %cst_53 = arith.constant dense<0.000000e+00> : vector<272x82xf32>
    %63 = tpu.matmul %62, %48, %cst_53 {dimension_numbers = #tpu.dot_dimension_numbers<[1], [0], [0], [1], [0, 0, 1, 1], [], []>} : vector<272x12xbf16>, vector<12x82xbf16>, vector<272x82xf32> -> vector<272x82xf32>
    %64 = vector.broadcast %50 : vector<1x82xf32> to vector<272x82xf32>
    %65 = arith.addf %63, %64 : vector<272x82xf32>
    %cst_54 = arith.constant 0.000000e+00 : f32
    %66 = vector.broadcast %cst_54 : f32 to vector<272x82xf32>
    %67 = arith.cmpf ogt, %65, %66 : vector<272x82xf32>
    %cst_55 = arith.constant -0.767660737 : f32
    %68 = vector.broadcast %cst_55 : f32 to vector<272x82xf32>
    %69 = arith.mulf %65, %68 : vector<272x82xf32>
    %70 = arith.select %67, %65, %69 : vector<272x82xi1>, vector<272x82xf32>
    %c0_56 = arith.constant 0 : index
    %c0_57 = arith.constant 0 : index
    %c0_58 = arith.constant 0 : index
    %c0_59 = arith.constant 0 : index
    %71 = vector.load %arg11[%c0_56, %c0_57, %c0_58, %c0_59] : memref<1x9x272x82xf32, #tpu.memory_space<vmem>>, vector<1x1x272x82xf32>
    %72 = vector.shape_cast %71 : vector<1x1x272x82xf32> to vector<272x82xf32>
    %73 = vector.shape_cast %70 : vector<272x82xf32> to vector<1x1x272x82xf32>
    tpu.vector_store %arg11[%c0_56, %c0_57, %c0_58, %c0_59], %73 {strides = array<i32>} : memref<1x9x272x82xf32, #tpu.memory_space<vmem>>, vector<1x1x272x82xf32>,
    %c1_60 = arith.constant 1 : index
    %c0_61 = arith.constant 0 : index
    %74 = vector.load %arg13[%c1_60, %c0_61] : memref<304x16xbf16, #tpu.memory_space<vmem>>, vector<272x16xbf16>
    %c1_62 = arith.constant 1 : index
    %c0_63 = arith.constant 0 : index
    %c0_64 = arith.constant 0 : index
    %75 = vector.load %arg7[%c1_62, %c0_63, %c0_64] : memref<9x16x12xbf16, #tpu.memory_space<vmem>>, vector<1x16x12xbf16>
    %76 = vector.shape_cast %75 : vector<1x16x12xbf16> to vector<16x12xbf16>
    %cst_65 = arith.constant dense<0.000000e+00> : vector<272x12xf32>
    %77 = tpu.matmul %74, %76, %cst_65 {dimension_numbers = #tpu.dot_dimension_numbers<[1], [0], [0], [1], [0, 0, 1, 1], [], []>} : vector<272x16xbf16>, vector<16x12xbf16>, vector<272x12xf32> -> vector<272x12xf32>
    %78 = vector.broadcast %49 : vector<1x12xf32> to vector<272x12xf32>
    %79 = arith.addf %77, %78 : vector<272x12xf32>
    %cst_66 = arith.constant 0.000000e+00 : f32
    %80 = vector.broadcast %cst_66 : f32 to vector<272x12xf32>
    %81 = arith.cmpf ogt, %79, %80 : vector<272x12xf32>
    %cst_67 = arith.constant -0.767660737 : f32
    %82 = vector.broadcast %cst_67 : f32 to vector<272x12xf32>
    %83 = arith.mulf %79, %82 : vector<272x12xf32>
    %84 = arith.select %81, %79, %83 : vector<272x12xi1>, vector<272x12xf32>
    %85 = arith.truncf %84 : vector<272x12xf32> to vector<272x12xbf16>
    %cst_68 = arith.constant dense<0.000000e+00> : vector<272x82xf32>
    %86 = tpu.matmul %85, %48, %cst_68 {dimension_numbers = #tpu.dot_dimension_numbers<[1], [0], [0], [1], [0, 0, 1, 1], [], []>} : vector<272x12xbf16>, vector<12x82xbf16>, vector<272x82xf32> -> vector<272x82xf32>
    %87 = vector.broadcast %50 : vector<1x82xf32> to vector<272x82xf32>
    %88 = arith.addf %86, %87 : vector<272x82xf32>
    %cst_69 = arith.constant 0.000000e+00 : f32
    %89 = vector.broadcast %cst_69 : f32 to vector<272x82xf32>
    %90 = arith.cmpf ogt, %88, %89 : vector<272x82xf32>
    %cst_70 = arith.constant -0.767660737 : f32
    %91 = vector.broadcast %cst_70 : f32 to vector<272x82xf32>
    %92 = arith.mulf %88, %91 : vector<272x82xf32>
    %93 = arith.select %90, %88, %92 : vector<272x82xi1>, vector<272x82xf32>
    %c0_71 = arith.constant 0 : index
    %c1_72 = arith.constant 1 : index
    %c0_73 = arith.constant 0 : index
    %c0_74 = arith.constant 0 : index
    %94 = vector.load %arg11[%c0_71, %c1_72, %c0_73, %c0_74] : memref<1x9x272x82xf32, #tpu.memory_space<vmem>>, vector<1x1x272x82xf32>
    %95 = vector.shape_cast %94 : vector<1x1x272x82xf32> to vector<272x82xf32>
    %96 = vector.shape_cast %93 : vector<272x82xf32> to vector<1x1x272x82xf32>
    tpu.vector_store %arg11[%c0_71, %c1_72, %c0_73, %c0_74], %96 {strides = array<i32>} : memref<1x9x272x82xf32, #tpu.memory_space<vmem>>, vector<1x1x272x82xf32>,
    %c1_75 = arith.constant 1 : index
    %c0_76 = arith.constant 0 : index
    %97 = vector.load %arg13[%c1_75, %c0_76] : memref<304x16xbf16, #tpu.memory_space<vmem>>, vector<272x16xbf16>
    %c2_77 = arith.constant 2 : index
    %c0_78 = arith.constant 0 : index
    %c0_79 = arith.constant 0 : index
    %98 = vector.load %arg7[%c2_77, %c0_78, %c0_79] : memref<9x16x12xbf16, #tpu.memory_space<vmem>>, vector<1x16x12xbf16>
    %99 = vector.shape_cast %98 : vector<1x16x12xbf16> to vector<16x12xbf16>
    %cst_80 = arith.constant dense<0.000000e+00> : vector<272x12xf32>
    %100 = tpu.matmul %97, %99, %cst_80 {dimension_numbers = #tpu.dot_dimension_numbers<[1], [0], [0], [1], [0, 0, 1, 1], [], []>} : vector<272x16xbf16>, vector<16x12xbf16>, vector<272x12xf32> -> vector<272x12xf32>
    %101 = vector.broadcast %49 : vector<1x12xf32> to vector<272x12xf32>
    %102 = arith.addf %100, %101 : vector<272x12xf32>
    %cst_81 = arith.constant 0.000000e+00 : f32
    %103 = vector.broadcast %cst_81 : f32 to vector<272x12xf32>
    %104 = arith.cmpf ogt, %102, %103 : vector<272x12xf32>
    %cst_82 = arith.constant -0.767660737 : f32
    %105 = vector.broadcast %cst_82 : f32 to vector<272x12xf32>
    %106 = arith.mulf %102, %105 : vector<272x12xf32>
    %107 = arith.select %104, %102, %106 : vector<272x12xi1>, vector<272x12xf32>
    %108 = arith.truncf %107 : vector<272x12xf32> to vector<272x12xbf16>
    %cst_83 = arith.constant dense<0.000000e+00> : vector<272x82xf32>
    %109 = tpu.matmul %108, %48, %cst_83 {dimension_numbers = #tpu.dot_dimension_numbers<[1], [0], [0], [1], [0, 0, 1, 1], [], []>} : vector<272x12xbf16>, vector<12x82xbf16>, vector<272x82xf32> -> vector<272x82xf32>
    %110 = vector.broadcast %50 : vector<1x82xf32> to vector<272x82xf32>
    %111 = arith.addf %109, %110 : vector<272x82xf32>
    %cst_84 = arith.constant 0.000000e+00 : f32
    %112 = vector.broadcast %cst_84 : f32 to vector<272x82xf32>
    %113 = arith.cmpf ogt, %111, %112 : vector<272x82xf32>
    %cst_85 = arith.constant -0.767660737 : f32
    %114 = vector.broadcast %cst_85 : f32 to vector<272x82xf32>
    %115 = arith.mulf %111, %114 : vector<272x82xf32>
    %116 = arith.select %113, %111, %115 : vector<272x82xi1>, vector<272x82xf32>
    %c0_86 = arith.constant 0 : index
    %c2_87 = arith.constant 2 : index
    %c0_88 = arith.constant 0 : index
    %c0_89 = arith.constant 0 : index
    %117 = vector.load %arg11[%c0_86, %c2_87, %c0_88, %c0_89] : memref<1x9x272x82xf32, #tpu.memory_space<vmem>>, vector<1x1x272x82xf32>
    %118 = vector.shape_cast %117 : vector<1x1x272x82xf32> to vector<272x82xf32>
    %119 = vector.shape_cast %116 : vector<272x82xf32> to vector<1x1x272x82xf32>
    tpu.vector_store %arg11[%c0_86, %c2_87, %c0_88, %c0_89], %119 {strides = array<i32>} : memref<1x9x272x82xf32, #tpu.memory_space<vmem>>, vector<1x1x272x82xf32>,
    %c17 = arith.constant 17 : index
    %c0_90 = arith.constant 0 : index
    %120 = vector.load %arg13[%c17, %c0_90] : memref<304x16xbf16, #tpu.memory_space<vmem>>, vector<272x16xbf16>
    %c3_91 = arith.constant 3 : index
    %c0_92 = arith.constant 0 : index
    %c0_93 = arith.constant 0 : index
    %121 = vector.load %arg7[%c3_91, %c0_92, %c0_93] : memref<9x16x12xbf16, #tpu.memory_space<vmem>>, vector<1x16x12xbf16>
    %122 = vector.shape_cast %121 : vector<1x16x12xbf16> to vector<16x12xbf16>
    %cst_94 = arith.constant dense<0.000000e+00> : vector<272x12xf32>
    %123 = tpu.matmul %120, %122, %cst_94 {dimension_numbers = #tpu.dot_dimension_numbers<[1], [0], [0], [1], [0, 0, 1, 1], [], []>} : vector<272x16xbf16>, vector<16x12xbf16>, vector<272x12xf32> -> vector<272x12xf32>
    %124 = vector.broadcast %49 : vector<1x12xf32> to vector<272x12xf32>
    %125 = arith.addf %123, %124 : vector<272x12xf32>
    %cst_95 = arith.constant 0.000000e+00 : f32
    %126 = vector.broadcast %cst_95 : f32 to vector<272x12xf32>
    %127 = arith.cmpf ogt, %125, %126 : vector<272x12xf32>
    %cst_96 = arith.constant -0.767660737 : f32
    %128 = vector.broadcast %cst_96 : f32 to vector<272x12xf32>
    %129 = arith.mulf %125, %128 : vector<272x12xf32>
    %130 = arith.select %127, %125, %129 : vector<272x12xi1>, vector<272x12xf32>
    %131 = arith.truncf %130 : vector<272x12xf32> to vector<272x12xbf16>
    %cst_97 = arith.constant dense<0.000000e+00> : vector<272x82xf32>
    %132 = tpu.matmul %131, %48, %cst_97 {dimension_numbers = #tpu.dot_dimension_numbers<[1], [0], [0], [1], [0, 0, 1, 1], [], []>} : vector<272x12xbf16>, vector<12x82xbf16>, vector<272x82xf32> -> vector<272x82xf32>
    %133 = vector.broadcast %50 : vector<1x82xf32> to vector<272x82xf32>
    %134 = arith.addf %132, %133 : vector<272x82xf32>
    %cst_98 = arith.constant 0.000000e+00 : f32
    %135 = vector.broadcast %cst_98 : f32 to vector<272x82xf32>
    %136 = arith.cmpf ogt, %134, %135 : vector<272x82xf32>
    %cst_99 = arith.constant -0.767660737 : f32
    %137 = vector.broadcast %cst_99 : f32 to vector<272x82xf32>
    %138 = arith.mulf %134, %137 : vector<272x82xf32>
    %139 = arith.select %136, %134, %138 : vector<272x82xi1>, vector<272x82xf32>
    %c0_100 = arith.constant 0 : index
    %c3_101 = arith.constant 3 : index
    %c0_102 = arith.constant 0 : index
    %c0_103 = arith.constant 0 : index
    %140 = vector.load %arg11[%c0_100, %c3_101, %c0_102, %c0_103] : memref<1x9x272x82xf32, #tpu.memory_space<vmem>>, vector<1x1x272x82xf32>
    %141 = vector.shape_cast %140 : vector<1x1x272x82xf32> to vector<272x82xf32>
    %142 = vector.shape_cast %139 : vector<272x82xf32> to vector<1x1x272x82xf32>
    tpu.vector_store %arg11[%c0_100, %c3_101, %c0_102, %c0_103], %142 {strides = array<i32>} : memref<1x9x272x82xf32, #tpu.memory_space<vmem>>, vector<1x1x272x82xf32>,
    %c18 = arith.constant 18 : index
    %c0_104 = arith.constant 0 : index
    %143 = vector.load %arg13[%c18, %c0_104] : memref<304x16xbf16, #tpu.memory_space<vmem>>, vector<272x16xbf16>
    %c4 = arith.constant 4 : index
    %c0_105 = arith.constant 0 : index
    %c0_106 = arith.constant 0 : index
    %144 = vector.load %arg7[%c4, %c0_105, %c0_106] : memref<9x16x12xbf16, #tpu.memory_space<vmem>>, vector<1x16x12xbf16>
    %145 = vector.shape_cast %144 : vector<1x16x12xbf16> to vector<16x12xbf16>
    %cst_107 = arith.constant dense<0.000000e+00> : vector<272x12xf32>
    %146 = tpu.matmul %143, %145, %cst_107 {dimension_numbers = #tpu.dot_dimension_numbers<[1], [0], [0], [1], [0, 0, 1, 1], [], []>} : vector<272x16xbf16>, vector<16x12xbf16>, vector<272x12xf32> -> vector<272x12xf32>
    %147 = vector.broadcast %49 : vector<1x12xf32> to vector<272x12xf32>
    %148 = arith.addf %146, %147 : vector<272x12xf32>
    %cst_108 = arith.constant 0.000000e+00 : f32
    %149 = vector.broadcast %cst_108 : f32 to vector<272x12xf32>
    %150 = arith.cmpf ogt, %148, %149 : vector<272x12xf32>
    %cst_109 = arith.constant -0.767660737 : f32
    %151 = vector.broadcast %cst_109 : f32 to vector<272x12xf32>
    %152 = arith.mulf %148, %151 : vector<272x12xf32>
    %153 = arith.select %150, %148, %152 : vector<272x12xi1>, vector<272x12xf32>
    %154 = arith.truncf %153 : vector<272x12xf32> to vector<272x12xbf16>
    %cst_110 = arith.constant dense<0.000000e+00> : vector<272x82xf32>
    %155 = tpu.matmul %154, %48, %cst_110 {dimension_numbers = #tpu.dot_dimension_numbers<[1], [0], [0], [1], [0, 0, 1, 1], [], []>} : vector<272x12xbf16>, vector<12x82xbf16>, vector<272x82xf32> -> vector<272x82xf32>
    %156 = vector.broadcast %50 : vector<1x82xf32> to vector<272x82xf32>
    %157 = arith.addf %155, %156 : vector<272x82xf32>
    %cst_111 = arith.constant 0.000000e+00 : f32
    %158 = vector.broadcast %cst_111 : f32 to vector<272x82xf32>
    %159 = arith.cmpf ogt, %157, %158 : vector<272x82xf32>
    %cst_112 = arith.constant -0.767660737 : f32
    %160 = vector.broadcast %cst_112 : f32 to vector<272x82xf32>
    %161 = arith.mulf %157, %160 : vector<272x82xf32>
    %162 = arith.select %159, %157, %161 : vector<272x82xi1>, vector<272x82xf32>
    %c0_113 = arith.constant 0 : index
    %c4_114 = arith.constant 4 : index
    %c0_115 = arith.constant 0 : index
    %c0_116 = arith.constant 0 : index
    %163 = vector.load %arg11[%c0_113, %c4_114, %c0_115, %c0_116] : memref<1x9x272x82xf32, #tpu.memory_space<vmem>>, vector<1x1x272x82xf32>
    %164 = vector.shape_cast %163 : vector<1x1x272x82xf32> to vector<272x82xf32>
    %165 = vector.shape_cast %162 : vector<272x82xf32> to vector<1x1x272x82xf32>
    tpu.vector_store %arg11[%c0_113, %c4_114, %c0_115, %c0_116], %165 {strides = array<i32>} : memref<1x9x272x82xf32, #tpu.memory_space<vmem>>, vector<1x1x272x82xf32>,
    %c18_117 = arith.constant 18 : index
    %c0_118 = arith.constant 0 : index
    %166 = vector.load %arg13[%c18_117, %c0_118] : memref<304x16xbf16, #tpu.memory_space<vmem>>, vector<272x16xbf16>
    %c5 = arith.constant 5 : index
    %c0_119 = arith.constant 0 : index
    %c0_120 = arith.constant 0 : index
    %167 = vector.load %arg7[%c5, %c0_119, %c0_120] : memref<9x16x12xbf16, #tpu.memory_space<vmem>>, vector<1x16x12xbf16>
    %168 = vector.shape_cast %167 : vector<1x16x12xbf16> to vector<16x12xbf16>
    %cst_121 = arith.constant dense<0.000000e+00> : vector<272x12xf32>
    %169 = tpu.matmul %166, %168, %cst_121 {dimension_numbers = #tpu.dot_dimension_numbers<[1], [0], [0], [1], [0, 0, 1, 1], [], []>} : vector<272x16xbf16>, vector<16x12xbf16>, vector<272x12xf32> -> vector<272x12xf32>
    %170 = vector.broadcast %49 : vector<1x12xf32> to vector<272x12xf32>
    %171 = arith.addf %169, %170 : vector<272x12xf32>
    %cst_122 = arith.constant 0.000000e+00 : f32
    %172 = vector.broadcast %cst_122 : f32 to vector<272x12xf32>
    %173 = arith.cmpf ogt, %171, %172 : vector<272x12xf32>
    %cst_123 = arith.constant -0.767660737 : f32
    %174 = vector.broadcast %cst_123 : f32 to vector<272x12xf32>
    %175 = arith.mulf %171, %174 : vector<272x12xf32>
    %176 = arith.select %173, %171, %175 : vector<272x12xi1>, vector<272x12xf32>
    %177 = arith.truncf %176 : vector<272x12xf32> to vector<272x12xbf16>
    %cst_124 = arith.constant dense<0.000000e+00> : vector<272x82xf32>
    %178 = tpu.matmul %177, %48, %cst_124 {dimension_numbers = #tpu.dot_dimension_numbers<[1], [0], [0], [1], [0, 0, 1, 1], [], []>} : vector<272x12xbf16>, vector<12x82xbf16>, vector<272x82xf32> -> vector<272x82xf32>
    %179 = vector.broadcast %50 : vector<1x82xf32> to vector<272x82xf32>
    %180 = arith.addf %178, %179 : vector<272x82xf32>
    %cst_125 = arith.constant 0.000000e+00 : f32
    %181 = vector.broadcast %cst_125 : f32 to vector<272x82xf32>
    %182 = arith.cmpf ogt, %180, %181 : vector<272x82xf32>
    %cst_126 = arith.constant -0.767660737 : f32
    %183 = vector.broadcast %cst_126 : f32 to vector<272x82xf32>
    %184 = arith.mulf %180, %183 : vector<272x82xf32>
    %185 = arith.select %182, %180, %184 : vector<272x82xi1>, vector<272x82xf32>
    %c0_127 = arith.constant 0 : index
    %c5_128 = arith.constant 5 : index
    %c0_129 = arith.constant 0 : index
    %c0_130 = arith.constant 0 : index
    %186 = vector.load %arg11[%c0_127, %c5_128, %c0_129, %c0_130] : memref<1x9x272x82xf32, #tpu.memory_space<vmem>>, vector<1x1x272x82xf32>
    %187 = vector.shape_cast %186 : vector<1x1x272x82xf32> to vector<272x82xf32>
    %188 = vector.shape_cast %185 : vector<272x82xf32> to vector<1x1x272x82xf32>
    tpu.vector_store %arg11[%c0_127, %c5_128, %c0_129, %c0_130], %188 {strides = array<i32>} : memref<1x9x272x82xf32, #tpu.memory_space<vmem>>, vector<1x1x272x82xf32>,
    %c17_131 = arith.constant 17 : index
    %c0_132 = arith.constant 0 : index
    %189 = vector.load %arg13[%c17_131, %c0_132] : memref<304x16xbf16, #tpu.memory_space<vmem>>, vector<272x16xbf16>
    %c6 = arith.constant 6 : index
    %c0_133 = arith.constant 0 : index
    %c0_134 = arith.constant 0 : index
    %190 = vector.load %arg7[%c6, %c0_133, %c0_134] : memref<9x16x12xbf16, #tpu.memory_space<vmem>>, vector<1x16x12xbf16>
    %191 = vector.shape_cast %190 : vector<1x16x12xbf16> to vector<16x12xbf16>
    %cst_135 = arith.constant dense<0.000000e+00> : vector<272x12xf32>
    %192 = tpu.matmul %189, %191, %cst_135 {dimension_numbers = #tpu.dot_dimension_numbers<[1], [0], [0], [1], [0, 0, 1, 1], [], []>} : vector<272x16xbf16>, vector<16x12xbf16>, vector<272x12xf32> -> vector<272x12xf32>
    %193 = vector.broadcast %49 : vector<1x12xf32> to vector<272x12xf32>
    %194 = arith.addf %192, %193 : vector<272x12xf32>
    %cst_136 = arith.constant 0.000000e+00 : f32
    %195 = vector.broadcast %cst_136 : f32 to vector<272x12xf32>
    %196 = arith.cmpf ogt, %194, %195 : vector<272x12xf32>
    %cst_137 = arith.constant -0.767660737 : f32
    %197 = vector.broadcast %cst_137 : f32 to vector<272x12xf32>
    %198 = arith.mulf %194, %197 : vector<272x12xf32>
    %199 = arith.select %196, %194, %198 : vector<272x12xi1>, vector<272x12xf32>
    %200 = arith.truncf %199 : vector<272x12xf32> to vector<272x12xbf16>
    %cst_138 = arith.constant dense<0.000000e+00> : vector<272x82xf32>
    %201 = tpu.matmul %200, %48, %cst_138 {dimension_numbers = #tpu.dot_dimension_numbers<[1], [0], [0], [1], [0, 0, 1, 1], [], []>} : vector<272x12xbf16>, vector<12x82xbf16>, vector<272x82xf32> -> vector<272x82xf32>
    %202 = vector.broadcast %50 : vector<1x82xf32> to vector<272x82xf32>
    %203 = arith.addf %201, %202 : vector<272x82xf32>
    %cst_139 = arith.constant 0.000000e+00 : f32
    %204 = vector.broadcast %cst_139 : f32 to vector<272x82xf32>
    %205 = arith.cmpf ogt, %203, %204 : vector<272x82xf32>
    %cst_140 = arith.constant -0.767660737 : f32
    %206 = vector.broadcast %cst_140 : f32 to vector<272x82xf32>
    %207 = arith.mulf %203, %206 : vector<272x82xf32>
    %208 = arith.select %205, %203, %207 : vector<272x82xi1>, vector<272x82xf32>
    %c0_141 = arith.constant 0 : index
    %c6_142 = arith.constant 6 : index
    %c0_143 = arith.constant 0 : index
    %c0_144 = arith.constant 0 : index
    %209 = vector.load %arg11[%c0_141, %c6_142, %c0_143, %c0_144] : memref<1x9x272x82xf32, #tpu.memory_space<vmem>>, vector<1x1x272x82xf32>
    %210 = vector.shape_cast %209 : vector<1x1x272x82xf32> to vector<272x82xf32>
    %211 = vector.shape_cast %208 : vector<272x82xf32> to vector<1x1x272x82xf32>
    tpu.vector_store %arg11[%c0_141, %c6_142, %c0_143, %c0_144], %211 {strides = array<i32>} : memref<1x9x272x82xf32, #tpu.memory_space<vmem>>, vector<1x1x272x82xf32>,
    %c18_145 = arith.constant 18 : index
    %c0_146 = arith.constant 0 : index
    %212 = vector.load %arg13[%c18_145, %c0_146] : memref<304x16xbf16, #tpu.memory_space<vmem>>, vector<272x16xbf16>
    %c7 = arith.constant 7 : index
    %c0_147 = arith.constant 0 : index
    %c0_148 = arith.constant 0 : index
    %213 = vector.load %arg7[%c7, %c0_147, %c0_148] : memref<9x16x12xbf16, #tpu.memory_space<vmem>>, vector<1x16x12xbf16>
    %214 = vector.shape_cast %213 : vector<1x16x12xbf16> to vector<16x12xbf16>
    %cst_149 = arith.constant dense<0.000000e+00> : vector<272x12xf32>
    %215 = tpu.matmul %212, %214, %cst_149 {dimension_numbers = #tpu.dot_dimension_numbers<[1], [0], [0], [1], [0, 0, 1, 1], [], []>} : vector<272x16xbf16>, vector<16x12xbf16>, vector<272x12xf32> -> vector<272x12xf32>
    %216 = vector.broadcast %49 : vector<1x12xf32> to vector<272x12xf32>
    %217 = arith.addf %215, %216 : vector<272x12xf32>
    %cst_150 = arith.constant 0.000000e+00 : f32
    %218 = vector.broadcast %cst_150 : f32 to vector<272x12xf32>
    %219 = arith.cmpf ogt, %217, %218 : vector<272x12xf32>
    %cst_151 = arith.constant -0.767660737 : f32
    %220 = vector.broadcast %cst_151 : f32 to vector<272x12xf32>
    %221 = arith.mulf %217, %220 : vector<272x12xf32>
    %222 = arith.select %219, %217, %221 : vector<272x12xi1>, vector<272x12xf32>
    %223 = arith.truncf %222 : vector<272x12xf32> to vector<272x12xbf16>
    %cst_152 = arith.constant dense<0.000000e+00> : vector<272x82xf32>
    %224 = tpu.matmul %223, %48, %cst_152 {dimension_numbers = #tpu.dot_dimension_numbers<[1], [0], [0], [1], [0, 0, 1, 1], [], []>} : vector<272x12xbf16>, vector<12x82xbf16>, vector<272x82xf32> -> vector<272x82xf32>
    %225 = vector.broadcast %50 : vector<1x82xf32> to vector<272x82xf32>
    %226 = arith.addf %224, %225 : vector<272x82xf32>
    %cst_153 = arith.constant 0.000000e+00 : f32
    %227 = vector.broadcast %cst_153 : f32 to vector<272x82xf32>
    %228 = arith.cmpf ogt, %226, %227 : vector<272x82xf32>
    %cst_154 = arith.constant -0.767660737 : f32
    %229 = vector.broadcast %cst_154 : f32 to vector<272x82xf32>
    %230 = arith.mulf %226, %229 : vector<272x82xf32>
    %231 = arith.select %228, %226, %230 : vector<272x82xi1>, vector<272x82xf32>
    %c0_155 = arith.constant 0 : index
    %c7_156 = arith.constant 7 : index
    %c0_157 = arith.constant 0 : index
    %c0_158 = arith.constant 0 : index
    %232 = vector.load %arg11[%c0_155, %c7_156, %c0_157, %c0_158] : memref<1x9x272x82xf32, #tpu.memory_space<vmem>>, vector<1x1x272x82xf32>
    %233 = vector.shape_cast %232 : vector<1x1x272x82xf32> to vector<272x82xf32>
    %234 = vector.shape_cast %231 : vector<272x82xf32> to vector<1x1x272x82xf32>
    tpu.vector_store %arg11[%c0_155, %c7_156, %c0_157, %c0_158], %234 {strides = array<i32>} : memref<1x9x272x82xf32, #tpu.memory_space<vmem>>, vector<1x1x272x82xf32>,
    %c18_159 = arith.constant 18 : index
    %c0_160 = arith.constant 0 : index
    %235 = vector.load %arg13[%c18_159, %c0_160] : memref<304x16xbf16, #tpu.memory_space<vmem>>, vector<272x16xbf16>
    %c8 = arith.constant 8 : index
    %c0_161 = arith.constant 0 : index
    %c0_162 = arith.constant 0 : index
    %236 = vector.load %arg7[%c8, %c0_161, %c0_162] : memref<9x16x12xbf16, #tpu.memory_space<vmem>>, vector<1x16x12xbf16>
    %237 = vector.shape_cast %236 : vector<1x16x12xbf16> to vector<16x12xbf16>
    %cst_163 = arith.constant dense<0.000000e+00> : vector<272x12xf32>
    %238 = tpu.matmul %235, %237, %cst_163 {dimension_numbers = #tpu.dot_dimension_numbers<[1], [0], [0], [1], [0, 0, 1, 1], [], []>} : vector<272x16xbf16>, vector<16x12xbf16>, vector<272x12xf32> -> vector<272x12xf32>
    %239 = vector.broadcast %49 : vector<1x12xf32> to vector<272x12xf32>
    %240 = arith.addf %238, %239 : vector<272x12xf32>
    %cst_164 = arith.constant 0.000000e+00 : f32
    %241 = vector.broadcast %cst_164 : f32 to vector<272x12xf32>
    %242 = arith.cmpf ogt, %240, %241 : vector<272x12xf32>
    %cst_165 = arith.constant -0.767660737 : f32
    %243 = vector.broadcast %cst_165 : f32 to vector<272x12xf32>
    %244 = arith.mulf %240, %243 : vector<272x12xf32>
    %245 = arith.select %242, %240, %244 : vector<272x12xi1>, vector<272x12xf32>
    %246 = arith.truncf %245 : vector<272x12xf32> to vector<272x12xbf16>
    %cst_166 = arith.constant dense<0.000000e+00> : vector<272x82xf32>
    %247 = tpu.matmul %246, %48, %cst_166 {dimension_numbers = #tpu.dot_dimension_numbers<[1], [0], [0], [1], [0, 0, 1, 1], [], []>} : vector<272x12xbf16>, vector<12x82xbf16>, vector<272x82xf32> -> vector<272x82xf32>
    %248 = vector.broadcast %50 : vector<1x82xf32> to vector<272x82xf32>
    %249 = arith.addf %247, %248 : vector<272x82xf32>
    %cst_167 = arith.constant 0.000000e+00 : f32
    %250 = vector.broadcast %cst_167 : f32 to vector<272x82xf32>
    %251 = arith.cmpf ogt, %249, %250 : vector<272x82xf32>
    %cst_168 = arith.constant -0.767660737 : f32
    %252 = vector.broadcast %cst_168 : f32 to vector<272x82xf32>
    %253 = arith.mulf %249, %252 : vector<272x82xf32>
    %254 = arith.select %251, %249, %253 : vector<272x82xi1>, vector<272x82xf32>
    %c0_169 = arith.constant 0 : index
    %c8_170 = arith.constant 8 : index
    %c0_171 = arith.constant 0 : index
    %c0_172 = arith.constant 0 : index
    %255 = vector.load %arg11[%c0_169, %c8_170, %c0_171, %c0_172] : memref<1x9x272x82xf32, #tpu.memory_space<vmem>>, vector<1x1x272x82xf32>
    %256 = vector.shape_cast %255 : vector<1x1x272x82xf32> to vector<272x82xf32>
    %257 = vector.shape_cast %254 : vector<272x82xf32> to vector<1x1x272x82xf32>
    tpu.vector_store %arg11[%c0_169, %c8_170, %c0_171, %c0_172], %257 {strides = array<i32>} : memref<1x9x272x82xf32, #tpu.memory_space<vmem>>, vector<1x1x272x82xf32>,
    return
  }
  func.func @transform_0(%arg0: i32) -> (i32, i32, i32) {
    %c0_i32 = arith.constant 0 : i32
    %c0_i32_0 = arith.constant 0 : i32
    %c0_i32_1 = arith.constant 0 : i32
    return %arg0, %c0_i32, %c0_i32_0 : i32, i32, i32
  }
  func.func @transform_1(%arg0: i32) -> (i32, i32) {
    %c0_i32 = arith.constant 0 : i32
    %c0_i32_0 = arith.constant 0 : i32
    %c0_i32_1 = arith.constant 0 : i32
    return %c0_i32, %c0_i32_0 : i32, i32
  }
  func.func @transform_2(%arg0: i32) -> (i32, i32) {
    %c0_i32 = arith.constant 0 : i32
    %c0_i32_0 = arith.constant 0 : i32
    %c0_i32_1 = arith.constant 0 : i32
    return %c0_i32, %c0_i32_0 : i32, i32
  }
  func.func @transform_3(%arg0: i32) -> (i32, i32, i32) {
    %c0_i32 = arith.constant 0 : i32
    %c0_i32_0 = arith.constant 0 : i32
    %c0_i32_1 = arith.constant 0 : i32
    %c0_i32_2 = arith.constant 0 : i32
    return %c0_i32, %c0_i32_0, %c0_i32_1 : i32, i32, i32
  }
  func.func @transform_4(%arg0: i32) -> (i32, i32) {
    %c0_i32 = arith.constant 0 : i32
    %c0_i32_0 = arith.constant 0 : i32
    %c0_i32_1 = arith.constant 0 : i32
    return %c0_i32, %c0_i32_0 : i32, i32
  }
  func.func @transform_5(%arg0: i32) -> (i32, i32) {
    %c0_i32 = arith.constant 0 : i32
    %c0_i32_0 = arith.constant 0 : i32
    %c0_i32_1 = arith.constant 0 : i32
    return %c0_i32, %c0_i32_0 : i32, i32
  }
  func.func @transform_6(%arg0: i32) -> (i32, i32, i32) {
    %c0_i32 = arith.constant 0 : i32
    %c0_i32_0 = arith.constant 0 : i32
    %c0_i32_1 = arith.constant 0 : i32
    %c0_i32_2 = arith.constant 0 : i32
    return %c0_i32, %c0_i32_0, %c0_i32_1 : i32, i32, i32
  }
  func.func @transform_7(%arg0: i32) -> (i32, i32) {
    %c0_i32 = arith.constant 0 : i32
    %c0_i32_0 = arith.constant 0 : i32
    %c0_i32_1 = arith.constant 0 : i32
    return %c0_i32, %c0_i32_0 : i32, i32
  }
  func.func @transform_8(%arg0: i32) -> (i32, i32) {
    %c0_i32 = arith.constant 0 : i32
    %c0_i32_0 = arith.constant 0 : i32
    %c0_i32_1 = arith.constant 0 : i32
    return %c0_i32, %c0_i32_0 : i32, i32
  }
  func.func @transform_9(%arg0: i32) -> (i32, i32) {
    %c0_i32 = arith.constant 0 : i32
    %c0_i32_0 = arith.constant 0 : i32
    %c0_i32_1 = arith.constant 0 : i32
    return %c0_i32, %c0_i32_0 : i32, i32
  }
  func.func @transform_10(%arg0: i32) -> (i32, i32, i32, i32) {
    %c0_i32 = arith.constant 0 : i32
    %c0_i32_0 = arith.constant 0 : i32
    %c0_i32_1 = arith.constant 0 : i32
    %c0_i32_2 = arith.constant 0 : i32
    return %arg0, %c0_i32, %c0_i32_0, %c0_i32_1 : i32, i32, i32, i32
  }
}

</mosaic_0001>

<llo_original>
// kernel: model_forward.1
$region0: #{model_forward.1}
  #allocation0 [shape = 'u32[]', space=smem, size = 0x4, offset = 0x4, fixed_abs, tag = 'smem constant byte address 0x4 - core index']
  #allocation1 [shape = 'u32[144,128]{1,0:T(1,128)}', space=vmem, size = 0x12000, scoped, tag = 'internal scratch']
  #allocation2 [shape = 'bf16[112,78]{1,0:T(8,128)(2,1)}', space=vmem, size = 0x7000, scoped, tag = 'scratch operand']
  #allocation3 [shape = 'bf16[304,16]{1,0:T(8,128)(2,1)}', space=vmem, size = 0x13000, scoped, tag = 'scratch operand']
  %s0 = inlined_call_operand.vmem [shape: bf16[2,112,387], index: 0, kind: input, shape index: {}]
  %s1 = inlined_call_operand.vmem [shape: bf16[387,78], index: 1, kind: input, shape index: {}]
  %s2 = inlined_call_operand.vmem [shape: f32[1,78], index: 2, kind: input, shape index: {}]
  %s3 = inlined_call_operand.vmem [shape: bf16[4,78,16], index: 3, kind: input, shape index: {}]
  %s4 = inlined_call_operand.vmem [shape: f32[1,16], index: 4, kind: input, shape index: {}]
  %s5 = inlined_call_operand.vmem [shape: bf16[304,88], index: 5, kind: input, shape index: {}]
  %s6 = inlined_call_operand.vmem [shape: bf16[9,16,12], index: 6, kind: input, shape index: {}]
  %s7 = inlined_call_operand.vmem [shape: f32[1,12], index: 7, kind: input, shape index: {}]
  %s8 = inlined_call_operand.vmem [shape: bf16[12,82], index: 8, kind: input, shape index: {}]
  %s9 = inlined_call_operand.vmem [shape: f32[1,82], index: 9, kind: input, shape index: {}]
  %s10 = inlined_call_operand.vmem [shape: f32[2,9,272,82], index: 10, kind: output, shape index: {}]
  %s11 = sld [smem:[#allocation0]]
  $region73: #{model_forward.1} parent=0
    _
  %s13 = ssub.s32 1, %s11
  %s14 = scalar_select 0, %s13, %s11
  loop: start=0, step=1, limit=4
  $region2: #{model_forward.1} parent=0 // loop_pre_header
    _
  $region3: #{model_forward.1} parent=0 // loop_header
    %s16 = sphi 0, %s20
    %p17 = scmp.ge.s32.totalorder %s16, 4
    %s26 = sphi 0, %s28
    %s29 = sphi 0, %s26
    %s30 = sphi 0, %s29
    %s46 = sphi 0, %s30
    %s50 = sphi 0, %s50
    %s52 = sphi 0, %s50
    %s53 = sphi 0, %s52
    %s67 = sphi 0, %s53
    %s71 = sphi 0, %s71
    %s73 = sphi 0, %s71
    %s74 = sphi 0, %s73
    %s88 = sphi 0, %s74
    %s92 = sphi 0, %s92
    %s94 = sphi 0, %s92
    %s95 = sphi 0, %s94
    %s109 = sphi 0, %s95
    %s113 = sphi 0, %s113
    %s115 = sphi 0, %s113
    %s116 = sphi 0, %s115
    %s130 = sphi 0, %s116
    %s134 = sphi 0, %s134
    %s136 = sphi 0, %s134
    %s137 = sphi 0, %s136
    %s151 = sphi 0, %s137
    %s155 = sphi 0, %s155
    %s157 = sphi 0, %s155
    %s158 = sphi 0, %s157
    %s172 = sphi 0, %s158
    %s176 = sphi 0, %s176
    %s178 = sphi 0, %s176
    %s179 = sphi 0, %s178
    %s193 = sphi 0, %s179
    %s197 = sphi 0, %s197
    %s199 = sphi 0, %s197
    %s200 = sphi 0, %s199
    %s214 = sphi 0, %s200
    %s218 = sphi 0, %s218
    %s220 = sphi 0, %s218
    %s221 = sphi 0, %s220
    %s235 = sphi 0, %s221
    %s241 = sphi 0, %s243
    %s244 = sphi 0, %s241
    %s245 = sphi 0, %s244
    %s261 = sphi 0, %s245
  $region4: #{model_forward.1} parent=0 // loop_header_branch
    %19 = sbr.rel (%p17) target = $region8
  $region5: #{model_forward.1} parent=0 // loop_body
    %s21 = ssub.s32 %s16, 1
    %s22 = ssub.s32 %s16, 2
    %s23 = sadd.s32 %s16, 1
    %s24 = ssub.s32 %s16, %s23
    %p25 = scmp.eq.s32.totalorder %s24, 0
    %s27 = sadd.s32 %s26, 1
    %s28 = scalar_select %p25, %s26, %s27
    %p31 = pneg %p25
    %p32 = scmp.eq.s32.totalorder %s16, 1
    %p33 = por %p31, %p32
    %p34 = scmp.ne.s32.totalorder %s26, %s29
    %p35 = scmp.eq.s32.totalorder %s16, 0
    %p36 = por %p34, %p35
    %p37 = scmp.ne.s32.totalorder %s26, %s29
    %p38 = scmp.eq.s32.totalorder %s21, 1
    %p39 = por %p37, %p38
    %p40 = scmp.ne.s32.totalorder %s29, %s30
    %p41 = scmp.eq.s32.totalorder %s21, 0
    %p42 = por %p40, %p41
    %p43 = scmp.ne.s32.totalorder %s29, %s30
    %p44 = scmp.eq.s32.totalorder %s22, 1
    %p45 = por %p43, %p44
    %p47 = scmp.ne.s32.totalorder %s30, %s46
    %p48 = scmp.eq.s32.totalorder %s22, 0
    %p49 = por %p47, %p48
    %s51 = sadd.s32 %s50, 1
    %p54 = scmp.eq.s32.totalorder %s16, 1
    %p55 = scmp.ne.s32.totalorder %s50, %s52
    %p56 = scmp.eq.s32.totalorder %s16, 0
    %p57 = por %p55, %p56
    %p58 = scmp.ne.s32.totalorder %s50, %s52
    %p59 = scmp.eq.s32.totalorder %s21, 1
    %p60 = por %p58, %p59
    %p61 = scmp.ne.s32.totalorder %s52, %s53
    %p62 = scmp.eq.s32.totalorder %s21, 0
    %p63 = por %p61, %p62
    %p64 = scmp.ne.s32.totalorder %s52, %s53
    %p65 = scmp.eq.s32.totalorder %s22, 1
    %p66 = por %p64, %p65
    %p68 = scmp.ne.s32.totalorder %s53, %s67
    %p69 = scmp.eq.s32.totalorder %s22, 0
    %p70 = por %p68, %p69
    %s72 = sadd.s32 %s71, 1
    %p75 = scmp.eq.s32.totalorder %s16, 1
    %p76 = scmp.ne.s32.totalorder %s71, %s73
    %p77 = scmp.eq.s32.totalorder %s16, 0
    %p78 = por %p76, %p77
    %p79 = scmp.ne.s32.totalorder %s71, %s73
    %p80 = scmp.eq.s32.totalorder %s21, 1
    %p81 = por %p79, %p80
    %p82 = scmp.ne.s32.totalorder %s73, %s74
    %p83 = scmp.eq.s32.totalorder %s21, 0
    %p84 = por %p82, %p83
    %p85 = scmp.ne.s32.totalorder %s73, %s74
    %p86 = scmp.eq.s32.totalorder %s22, 1
    %p87 = por %p85, %p86
    %p89 = scmp.ne.s32.totalorder %s74, %s88
    %p90 = scmp.eq.s32.totalorder %s22, 0
    %p91 = por %p89, %p90
    %s93 = sadd.s32 %s92, 1
    %p96 = scmp.eq.s32.totalorder %s16, 1
    %p97 = scmp.ne.s32.totalorder %s92, %s94
    %p98 = scmp.eq.s32.totalorder %s16, 0
    %p99 = por %p97, %p98
    %p100 = scmp.ne.s32.totalorder %s92, %s94
    %p101 = scmp.eq.s32.totalorder %s21, 1
    %p102 = por %p100, %p101
    %p103 = scmp.ne.s32.totalorder %s94, %s95
    %p104 = scmp.eq.s32.totalorder %s21, 0
    %p105 = por %p103, %p104
    %p106 = scmp.ne.s32.totalorder %s94, %s95
    %p107 = scmp.eq.s32.totalorder %s22, 1
    %p108 = por %p106, %p107
    %p110 = scmp.ne.s32.totalorder %s95, %s109
    %p111 = scmp.eq.s32.totalorder %s22, 0
    %p112 = por %p110, %p111
    %s114 = sadd.s32 %s113, 1
    %p117 = scmp.eq.s32.totalorder %s16, 1
    %p118 = scmp.ne.s32.totalorder %s113, %s115
    %p119 = scmp.eq.s32.totalorder %s16, 0
    %p120 = por %p118, %p119
    %p121 = scmp.ne.s32.totalorder %s113, %s115
    %p122 = scmp.eq.s32.totalorder %s21, 1
    %p123 = por %p121, %p122
    %p124 = scmp.ne.s32.totalorder %s115, %s116
    %p125 = scmp.eq.s32.totalorder %s21, 0
    %p126 = por %p124, %p125
    %p127 = scmp.ne.s32.totalorder %s115, %s116
    %p128 = scmp.eq.s32.totalorder %s22, 1
    %p129 = por %p127, %p128
    %p131 = scmp.ne.s32.totalorder %s116, %s130
    %p132 = scmp.eq.s32.totalorder %s22, 0
    %p133 = por %p131, %p132
    %s135 = sadd.s32 %s134, 1
    %p138 = scmp.eq.s32.totalorder %s16, 1
    %p139 = scmp.ne.s32.totalorder %s134, %s136
    %p140 = scmp.eq.s32.totalorder %s16, 0
    %p141 = por %p139, %p140
    %p142 = scmp.ne.s32.totalorder %s134, %s136
    %p143 = scmp.eq.s32.totalorder %s21, 1
    %p144 = por %p142, %p143
    %p145 = scmp.ne.s32.totalorder %s136, %s137
    %p146 = scmp.eq.s32.totalorder %s21, 0
    %p147 = por %p145, %p146
    %p148 = scmp.ne.s32.totalorder %s136, %s137
    %p149 = scmp.eq.s32.totalorder %s22, 1
    %p150 = por %p148, %p149
    %p152 = scmp.ne.s32.totalorder %s137, %s151
    %p153 = scmp.eq.s32.totalorder %s22, 0
    %p154 = por %p152, %p153
    %s156 = sadd.s32 %s155, 1
    %p159 = scmp.eq.s32.totalorder %s16, 1
    %p160 = scmp.ne.s32.totalorder %s155, %s157
    %p161 = scmp.eq.s32.totalorder %s16, 0
    %p162 = por %p160, %p161
    %p163 = scmp.ne.s32.totalorder %s155, %s157
    %p164 = scmp.eq.s32.totalorder %s21, 1
    %p165 = por %p163, %p164
    %p166 = scmp.ne.s32.totalorder %s157, %s158
    %p167 = scmp.eq.s32.totalorder %s21, 0
    %p168 = por %p166, %p167
    %p169 = scmp.ne.s32.totalorder %s157, %s158
    %p170 = scmp.eq.s32.totalorder %s22, 1
    %p171 = por %p169, %p170
    %p173 = scmp.ne.s32.totalorder %s158, %s172
    %p174 = scmp.eq.s32.totalorder %s22, 0
    %p175 = por %p173, %p174
    %s177 = sadd.s32 %s176, 1
    %p180 = scmp.eq.s32.totalorder %s16, 1
    %p181 = scmp.ne.s32.totalorder %s176, %s178
    %p182 = scmp.eq.s32.totalorder %s16, 0
    %p183 = por %p181, %p182
    %p184 = scmp.ne.s32.totalorder %s176, %s178
    %p185 = scmp.eq.s32.totalorder %s21, 1
    %p186 = por %p184, %p185
    %p187 = scmp.ne.s32.totalorder %s178, %s179
    %p188 = scmp.eq.s32.totalorder %s21, 0
    %p189 = por %p187, %p188
    %p190 = scmp.ne.s32.totalorder %s178, %s179
    %p191 = scmp.eq.s32.totalorder %s22, 1
    %p192 = por %p190, %p191
    %p194 = scmp.ne.s32.totalorder %s179, %s193
    %p195 = scmp.eq.s32.totalorder %s22, 0
    %p196 = por %p194, %p195
    %s198 = sadd.s32 %s197, 1
    %p201 = scmp.eq.s32.totalorder %s16, 1
    %p202 = scmp.ne.s32.totalorder %s197, %s199
    %p203 = scmp.eq.s32.totalorder %s16, 0
    %p204 = por %p202, %p203
    %p205 = scmp.ne.s32.totalorder %s197, %s199
    %p206 = scmp.eq.s32.totalorder %s21, 1
    %p207 = por %p205, %p206
    %p208 = scmp.ne.s32.totalorder %s199, %s200
    %p209 = scmp.eq.s32.totalorder %s21, 0
    %p210 = por %p208, %p209
    %p211 = scmp.ne.s32.totalorder %s199, %s200
    %p212 = scmp.eq.s32.totalorder %s22, 1
    %p213 = por %p211, %p212
    %p215 = scmp.ne.s32.totalorder %s200, %s214
    %p216 = scmp.eq.s32.totalorder %s22, 0
    %p217 = por %p215, %p216
    %s219 = sadd.s32 %s218, 1
    %p222 = scmp.eq.s32.totalorder %s16, 1
    %p223 = scmp.ne.s32.totalorder %s218, %s220
    %p224 = scmp.eq.s32.totalorder %s16, 0
    %p225 = por %p223, %p224
    %p226 = scmp.ne.s32.totalorder %s218, %s220
    %p227 = scmp.eq.s32.totalorder %s21, 1
    %p228 = por %p226, %p227
    %p229 = scmp.ne.s32.totalorder %s220, %s221
    %p230 = scmp.eq.s32.totalorder %s21, 0
    %p231 = por %p229, %p230
    %p232 = scmp.ne.s32.totalorder %s220, %s221
    %p233 = scmp.eq.s32.totalorder %s22, 1
    %p234 = por %p232, %p233
    %p236 = scmp.ne.s32.totalorder %s221, %s235
    %p237 = scmp.eq.s32.totalorder %s22, 0
    %p238 = por %p236, %p237
    %s239 = ssub.s32 %s16, %s23
    %p240 = scmp.eq.s32.totalorder %s239, 0
    %s242 = sadd.s32 %s241, 1
    %s243 = scalar_select %p240, %s241, %s242
    %p246 = pneg %p240
    %p247 = scmp.eq.s32.totalorder %s16, 1
    %p248 = por %p246, %p247
    %p249 = scmp.ne.s32.totalorder %s241, %s244
    %p250 = scmp.eq.s32.totalorder %s16, 0
    %p251 = por %p249, %p250
    %p252 = scmp.ne.s32.totalorder %s241, %s244
    %p253 = scmp.eq.s32.totalorder %s21, 1
    %p254 = por %p252, %p253
    %p255 = scmp.ne.s32.totalorder %s244, %s245
    %p256 = scmp.eq.s32.totalorder %s21, 0
    %p257 = por %p255, %p256
    %p258 = scmp.ne.s32.totalorder %s244, %s245
    %p259 = scmp.eq.s32.totalorder %s22, 1
    %p260 = por %p258, %p259
    %p262 = scmp.ne.s32.totalorder %s245, %s261
    %p263 = scmp.eq.s32.totalorder %s22, 0
    %p264 = por %p262, %p263
    %p265 = scmp.le.s32.totalorder 1, %s16
    %p266 = scmp.lt.s32.totalorder %s16, 3
    %p267 = pnand %p265, %p266
    %p268 = pneg %p267
    // Predicated region
    $region9: #{model_forward.1} parent=5 // pred_check
      _
    $region10: #{model_forward.1} parent=5 // pred_check_branch
      %270 = sbr.rel (%p267) target = $region12
    $region11: #{model_forward.1} parent=5 // pred_region
      %s271 = ssub.s32 %s16, 1
      // Predicated region
      $region13: #{model_forward.1} parent=11 // pred_check
        %p272 = pneg %p63
      $region14: #{model_forward.1} parent=11 // pred_check_branch
        %274 = sbr.rel (%p272) target = $region16
      $region15: #{model_forward.1} parent=11 // pred_region
        _
      $region16: #{model_forward.1} parent=11 // pred_fallthru
        _
      // Predicated region
      $region17: #{model_forward.1} parent=11 // pred_check
        %p275 = pneg %p84
      $region18: #{model_forward.1} parent=11 // pred_check_branch
        %277 = sbr.rel (%p275) target = $region20
      $region19: #{model_forward.1} parent=11 // pred_region
        _
      $region20: #{model_forward.1} parent=11 // pred_fallthru
        _
      // Predicated region
      $region21: #{model_forward.1} parent=11 // pred_check
        %p278 = pneg %p105
      $region22: #{model_forward.1} parent=11 // pred_check_branch
        %280 = sbr.rel (%p278) target = $region24
      $region23: #{model_forward.1} parent=11 // pred_region
        _
      $region24: #{model_forward.1} parent=11 // pred_fallthru
        _
      // Predicated region
      $region25: #{model_forward.1} parent=11 // pred_check
        %p281 = pneg %p126
      $region26: #{model_forward.1} parent=11 // pred_check_branch
        %283 = sbr.rel (%p281) target = $region28
      $region27: #{model_forward.1} parent=11 // pred_region
        _
      $region28: #{model_forward.1} parent=11 // pred_fallthru
        _
      // Predicated region
      $region29: #{model_forward.1} parent=11 // pred_check
        %p284 = pneg %p147
      $region30: #{model_forward.1} parent=11 // pred_check_branch
        %286 = sbr.rel (%p284) target = $region32
      $region31: #{model_forward.1} parent=11 // pred_region
        _
      $region32: #{model_forward.1} parent=11 // pred_fallthru
        _
      // Predicated region
      $region33: #{model_forward.1} parent=11 // pred_check
        %p287 = pneg %p168
      $region34: #{model_forward.1} parent=11 // pred_check_branch
        %289 = sbr.rel (%p287) target = $region36
      $region35: #{model_forward.1} parent=11 // pred_region
        _
      $region36: #{model_forward.1} parent=11 // pred_fallthru
        _
      // Predicated region
      $region37: #{model_forward.1} parent=11 // pred_check
        %p290 = pneg %p189
      $region38: #{model_forward.1} parent=11 // pred_check_branch
        %292 = sbr.rel (%p290) target = $region40
      $region39: #{model_forward.1} parent=11 // pred_region
        _
      $region40: #{model_forward.1} parent=11 // pred_fallthru
        _
      // Predicated region
      $region41: #{model_forward.1} parent=11 // pred_check
        %p293 = pneg %p210
      $region42: #{model_forward.1} parent=11 // pred_check_branch
        %295 = sbr.rel (%p293) target = $region44
      $region43: #{model_forward.1} parent=11 // pred_region
        _
      $region44: #{model_forward.1} parent=11 // pred_fallthru
        _
      // Predicated region
      $region45: #{model_forward.1} parent=11 // pred_check
        %p296 = pneg %p231
      $region46: #{model_forward.1} parent=11 // pred_check_branch
        %298 = sbr.rel (%p296) target = $region48
      $region47: #{model_forward.1} parent=11 // pred_region
        _
      $region48: #{model_forward.1} parent=11 // pred_fallthru
        _
    $region12: #{model_forward.1} parent=5 // pred_fallthru
      _
    %p299 = scmp.lt.s32.totalorder %s16, 2
    // Predicated region
    $region49: #{model_forward.1} parent=5 // pred_check
      %p300 = pneg %p299
    $region50: #{model_forward.1} parent=5 // pred_check_branch
      %302 = sbr.rel (%p300) target = $region52
    $region51: #{model_forward.1} parent=5 // pred_region
      // Predicated region
      $region53: #{model_forward.1} parent=51 // pred_check
        %p303 = pneg %p36
      $region54: #{model_forward.1} parent=51 // pred_check_branch
        %305 = sbr.rel (%p303) target = $region56
      $region55: #{model_forward.1} parent=51 // pred_region
        %p306 = scmp.lt.s32.totalorder %s16, 1
        %s307 = scalar_select %p306, %s16, 1
        %s308 = smul.addr %s307, 56
        %s309 = smul.addr %s308, 4
        %s310 = scalar_lea.vmem %s0, %s309
      $region56: #{model_forward.1} parent=51 // pred_fallthru
        _
    $region52: #{model_forward.1} parent=5 // pred_fallthru
      _
    %p311 = scmp.le.s32.totalorder 1, %s16
    %p312 = scmp.lt.s32.totalorder %s16, 3
    %p313 = pnand %p311, %p312
    %p314 = pneg %p313
    // Predicated region
    $region57: #{model_forward.1} parent=5 // pred_check
      _
    $region58: #{model_forward.1} parent=5 // pred_check_branch
      %316 = sbr.rel (%p313) target = $region60
    $region59: #{model_forward.1} parent=5 // pred_region
      %s317 = ssub.s32 %s16, 1
      %p318 = scmp.lt.s32.totalorder %s21, 1
      %s319 = scalar_select %p318, %s21, 1
      %s320 = smul.addr %s319, 56
      %s321 = smul.addr %s320, 4
      %s322 = scalar_lea.vmem %s0, %s321
      %p323 = pneg %p42
      %p324 = pneg %p39
      %p325 = pneg %p63
      %p326 = pneg %p60
      %p327 = pneg %p84
      %p328 = pneg %p81
      %p329 = pneg %p105
      %p330 = pneg %p102
      %p331 = pneg %p126
      %p332 = pneg %p123
      %p333 = pneg %p147
      %p334 = pneg %p144
      %p335 = pneg %p168
      %p336 = pneg %p165
      %p337 = pneg %p189
      %p338 = pneg %p186
      %p339 = pneg %p210
      %p340 = pneg %p207
      %p341 = pneg %p231
      %p342 = pneg %p228
      %p343 = pneg %p257
      %p344 = pneg %p254
      %p345 = scmp.lt.s32.totalorder %s21, 1
      %s346 = scalar_select %p345, %s21, 1
      %s347 = smul.addr %s346, 306
      %s348 = smul.addr %s347, 8
      %s349 = scalar_lea.vmem %s10, %s348
      %p350 = scmp.lt.s32.totalorder %s21, 1
      %s351 = scalar_select %p350, %s21, 1
      %s352 = smul.addr %s351, 56
      %s353 = smul.addr %s352, 4
      %s354 = scalar_lea.vmem %s0, %s353
      %p355 = scmp.lt.s32.totalorder %s21, 1
      %s356 = scalar_select %p355, %s21, 1
      %s357 = smul.addr %s356, 306
      %s358 = smul.addr %s357, 8
      %s359 = scalar_lea.vmem %s10, %s358
      %v361 = vld [vmem:[%s354] sm:$0xff]
      %v362 = vld [vmem:[%s354 + $0x8] sm:$0xff]
      %v363 = vld [vmem:[%s354 + $0x10] sm:$0xff]
      %v364 = vld [vmem:[%s354 + $0x18] sm:$0xff]
      %v365 = vld [vmem:[%s354 + $0x20] sm:$0xff]
      %v366 = vld [vmem:[%s354 + $0x28] sm:$0xff]
      %v367 = vld [vmem:[%s354 + $0x30] sm:$0xff]
      %v368 = vld [vmem:[%s354 + $0x38] sm:$0xff]
      %v369 = vld [vmem:[%s354 + $0x40] sm:$0xff]
      %v370 = vld [vmem:[%s354 + $0x48] sm:$0xff]
      %v371 = vld [vmem:[%s354 + $0x50] sm:$0xff]
      %v372 = vld [vmem:[%s354 + $0x58] sm:$0xff]
      %v373 = vld [vmem:[%s354 + $0x60] sm:$0xff]
      %v374 = vld [vmem:[%s354 + $0x68] sm:$0xff]
      %v375 = vld [vmem:[%s354 + $0x70] sm:$0xff]
      %v376 = vld [vmem:[%s354 + $0x78] sm:$0xff]
      %v377 = vld [vmem:[%s354 + $0x80] sm:$0xff]
      %v378 = vld [vmem:[%s354 + $0x88] sm:$0xff]
      %v379 = vld [vmem:[%s354 + $0x90] sm:$0xff]
      %v380 = vld [vmem:[%s354 + $0x98] sm:$0xff]
      %v381 = vld [vmem:[%s354 + $0xa0] sm:$0xff]
      %v382 = vld [vmem:[%s354 + $0xa8] sm:$0xff]
      %v383 = vld [vmem:[%s354 + $0xb0] sm:$0xff]
      %v384 = vld [vmem:[%s354 + $0xb8] sm:$0xff]
      %v385 = vld [vmem:[%s354 + $0xc0] sm:$0xff]
      %v386 = vld [vmem:[%s354 + $0xc8] sm:$0xff]
      %v387 = vld [vmem:[%s354 + $0xd0] sm:$0xff]
      %v388 = vld [vmem:[%s354 + $0xd8] sm:$0xff]
      %v389 = vld [vmem:[%s1] sm:$0xf]
      %v390 = vld [vmem:[%s1 + $0x4] sm:$0xf]
      %v391 = vld [vmem:[%s1 + $0x8] sm:$0xf]
      %v392 = vld [vmem:[%s1 + $0xc] sm:$0xf]
      %v393 = vld [vmem:[%s1 + $0x10] sm:$0xf]
      %v394 = vld [vmem:[%s1 + $0x14] sm:$0xf]
      %v395 = vld [vmem:[%s1 + $0x18] sm:$0xf]
      %v396 = vld [vmem:[%s1 + $0x1c] sm:$0xf]
      %v397 = vld [vmem:[%s1 + $0x20] sm:$0xf]
      %v398 = vld [vmem:[%s1 + $0x24] sm:$0xf]
      %v399 = vld [vmem:[%s1 + $0x28] sm:$0xf]
      %v400 = vld [vmem:[%s1 + $0x2c] sm:$0xf]
      %v401 = vld [vmem:[%s1 + $0x30] sm:$0xf]
      %v402 = vld [vmem:[%s1 + $0x34] sm:$0xf]
      %v403 = vld [vmem:[%s1 + $0x38] sm:$0xf]
      %v404 = vld [vmem:[%s1 + $0x3c] sm:$0xf]
      %v405 = vld [vmem:[%s1 + $0x40] sm:$0xf]
      %v406 = vld [vmem:[%s1 + $0x44] sm:$0xf]
      %v407 = vld [vmem:[%s1 + $0x48] sm:$0xf]
      %v408 = vld [vmem:[%s1 + $0x4c] sm:$0xf]
      %v409 = vld [vmem:[%s1 + $0x50] sm:$0xf]
      %v410 = vld [vmem:[%s1 + $0x54] sm:$0xf]
      %v411 = vld [vmem:[%s1 + $0x58] sm:$0xf]
      %v412 = vld [vmem:[%s1 + $0x5c] sm:$0xf]
      %v413 = vld [vmem:[%s1 + $0x60] sm:$0xf]
      %v414 = vld [vmem:[%s1 + $0x64] sm:$0xf]
      %v415 = vld [vmem:[%s1 + $0x68] sm:$0xf]
      %v416 = vld [vmem:[%s1 + $0x6c] sm:$0xf]
      %v417 = vld [vmem:[%s1 + $0x70] sm:$0xf]
      %v418 = vld [vmem:[%s1 + $0x74] sm:$0xf]
      %v419 = vld [vmem:[%s1 + $0x78] sm:$0xf]
      %v420 = vld [vmem:[%s1 + $0x7c] sm:$0xf]
      %v421 = vld [vmem:[%s1 + $0x80] sm:$0xf]
      %v422 = vld [vmem:[%s1 + $0x84] sm:$0xf]
      %v423 = vld [vmem:[%s1 + $0x88] sm:$0xf]
      %v424 = vld [vmem:[%s1 + $0x8c] sm:$0xf]
      %v425 = vld [vmem:[%s1 + $0x90] sm:$0xf]
      %v426 = vld [vmem:[%s1 + $0x94] sm:$0xf]
      %v427 = vld [vmem:[%s1 + $0x98] sm:$0xf]
      %v428 = vld [vmem:[%s1 + $0x9c] sm:$0xf]
      %v429 = vld [vmem:[%s1 + $0xa0] sm:$0xf]
      %v430 = vld [vmem:[%s1 + $0xa4] sm:$0xf]
      %v431 = vld [vmem:[%s1 + $0xa8] sm:$0xf]
      %v432 = vld [vmem:[%s1 + $0xac] sm:$0xf]
      %v433 = vld [vmem:[%s1 + $0xb0] sm:$0xf]
      %v434 = vld [vmem:[%s1 + $0xb4] sm:$0xf]
      %v435 = vld [vmem:[%s1 + $0xb8] sm:$0xf]
      %v436 = vld [vmem:[%s1 + $0xbc] sm:$0xf]
      %v437 = vld [vmem:[%s1 + $0xc0] sm:$0x3]
      %v438 = vld [vmem:[%s2] sm:$0x1]
      %v440 = vlaneseq
      %v441 = vshrl.u32 %v440, 7
      %v442 = vsub.s32 0, %v441
      %v443 = vrot.slane %v438, %v442
      %v473 = vunpack.c.l.b16 %v361
      %v474 = vunpack.c.h.b16 %v361
      %v475 = vunpack.c.l.b16 %v362
      %v476 = vunpack.c.h.b16 %v362
      %v477 = vunpack.c.l.b16 %v363
      %v478 = vunpack.c.h.b16 %v363
      %v479 = vunpack.c.l.b16 %v364
      %v480 = vunpack.c.h.b16 %v364
      %v481 = vunpack.c.l.b16 %v365
      %v482 = vunpack.c.h.b16 %v365
      %v483 = vunpack.c.l.b16 %v366
      %v484 = vunpack.c.h.b16 %v366
      %v485 = vunpack.c.l.b16 %v367
      %v486 = vunpack.c.h.b16 %v367
      %v487 = vunpack.c.l.b16 %v368
      %v488 = vunpack.c.h.b16 %v368
      %v489 = vunpack.c.l.b16 %v369
      %v490 = vunpack.c.h.b16 %v369
      %v491 = vunpack.c.l.b16 %v370
      %v492 = vunpack.c.h.b16 %v370
      %v493 = vunpack.c.l.b16 %v371
      %v494 = vunpack.c.h.b16 %v371
      %v495 = vunpack.c.l.b16 %v372
      %v496 = vunpack.c.h.b16 %v372
      %v497 = vunpack.c.l.b16 %v373
      %v498 = vunpack.c.h.b16 %v373
      %v499 = vunpack.c.l.b16 %v374
      %v500 = vunpack.c.h.b16 %v374
      %v501 = vunpack.c.l.b16 %v375
      %v502 = vunpack.c.h.b16 %v375
      %v503 = vunpack.c.l.b16 %v376
      %v504 = vunpack.c.h.b16 %v376
      %v505 = vunpack.c.l.b16 %v377
      %v506 = vunpack.c.h.b16 %v377
      %v507 = vunpack.c.l.b16 %v378
      %v508 = vunpack.c.h.b16 %v378
      %v509 = vunpack.c.l.b16 %v379
      %v510 = vunpack.c.h.b16 %v379
      %v511 = vunpack.c.l.b16 %v380
      %v512 = vunpack.c.h.b16 %v380
      %v513 = vunpack.c.l.b16 %v381
      %v514 = vunpack.c.h.b16 %v381
      %v515 = vunpack.c.l.b16 %v382
      %v516 = vunpack.c.h.b16 %v382
      %v517 = vunpack.c.l.b16 %v383
      %v518 = vunpack.c.h.b16 %v383
      %v519 = vunpack.c.l.b16 %v384
      %v520 = vunpack.c.h.b16 %v384
      %v521 = vunpack.c.l.b16 %v385
      %v522 = vunpack.c.h.b16 %v385
      %v523 = vunpack.c.l.b16 %v386
      %v524 = vunpack.c.h.b16 %v386
      %v525 = vunpack.c.l.b16 %v387
      %v526 = vunpack.c.h.b16 %v387
      %v527 = vunpack.c.l.b16 %v388
      %v528 = vunpack.c.h.b16 %v388
      %v529 = vpack.c.b16 %v477, %v473
      %v530 = vpack.c.b16 %v478, %v474
      %v531 = vpack.c.b16 %v479, %v475
      %v532 = vpack.c.b16 %v480, %v476
      %v533 = vpack.c.b16 %v485, %v481
      %v534 = vpack.c.b16 %v486, %v482
      %v535 = vpack.c.b16 %v487, %v483
      %v536 = vpack.c.b16 %v488, %v484
      %v537 = vpack.c.b16 %v493, %v489
      %v538 = vpack.c.b16 %v494, %v490
      %v539 = vpack.c.b16 %v495, %v491
      %v540 = vpack.c.b16 %v496, %v492
      %v541 = vpack.c.b16 %v501, %v497
      %v542 = vpack.c.b16 %v502, %v498
      %v543 = vpack.c.b16 %v503, %v499
      %v544 = vpack.c.b16 %v504, %v500
      %v545 = vpack.c.b16 %v509, %v505
      %v546 = vpack.c.b16 %v510, %v506
      %v547 = vpack.c.b16 %v511, %v507
      %v548 = vpack.c.b16 %v512, %v508
      %v549 = vpack.c.b16 %v517, %v513
      %v550 = vpack.c.b16 %v518, %v514
      %v551 = vpack.c.b16 %v519, %v515
      %v552 = vpack.c.b16 %v520, %v516
      %v553 = vpack.c.b16 %v525, %v521
      %v554 = vpack.c.b16 %v526, %v522
      %v555 = vpack.c.b16 %v527, %v523
      %v556 = vpack.c.b16 %v528, %v524
      %v627 = vunpack.c.l.b16 %v389
      %v628 = vunpack.c.l.b16 %v390
      %v629 = vunpack.c.l.b16 %v391
      %v630 = vunpack.c.l.b16 %v392
      %v631 = vunpack.c.l.b16 %v393
      %v632 = vunpack.c.l.b16 %v394
      %v633 = vunpack.c.l.b16 %v395
      %v634 = vunpack.c.l.b16 %v396
      %v635 = vunpack.c.l.b16 %v397
      %v636 = vunpack.c.l.b16 %v398
      %v637 = vunpack.c.l.b16 %v399
      %v638 = vunpack.c.l.b16 %v400
      %v639 = vunpack.c.l.b16 %v401
      %v640 = vunpack.c.l.b16 %v402
      %v641 = vunpack.c.l.b16 %v403
      %v642 = vunpack.c.l.b16 %v404
      %v643 = vunpack.c.l.b16 %v405
      %v644 = vunpack.c.l.b16 %v406
      %v645 = vunpack.c.l.b16 %v407
      %v646 = vunpack.c.l.b16 %v408
      %v647 = vunpack.c.l.b16 %v409
      %v648 = vunpack.c.l.b16 %v410
      %v649 = vunpack.c.l.b16 %v411
      %v650 = vunpack.c.l.b16 %v412
      %v651 = vunpack.c.l.b16 %v413
      %v652 = vunpack.c.l.b16 %v414
      %v653 = vunpack.c.l.b16 %v415
      %v654 = vunpack.c.l.b16 %v416
      %v655 = vunpack.c.l.b16 %v417
      %v656 = vunpack.c.l.b16 %v418
      %v657 = vunpack.c.l.b16 %v419
      %v658 = vunpack.c.l.b16 %v420
      %v659 = vunpack.c.l.b16 %v421
      %v660 = vunpack.c.l.b16 %v422
      %v661 = vunpack.c.l.b16 %v423
      %v662 = vunpack.c.l.b16 %v424
      %v663 = vunpack.c.l.b16 %v425
      %v664 = vunpack.c.l.b16 %v426
      %v665 = vunpack.c.l.b16 %v427
      %v666 = vunpack.c.l.b16 %v428
      %v667 = vunpack.c.l.b16 %v429
      %v668 = vunpack.c.l.b16 %v430
      %v669 = vunpack.c.l.b16 %v431
      %v670 = vunpack.c.l.b16 %v432
      %v671 = vunpack.c.l.b16 %v433
      %v672 = vunpack.c.l.b16 %v434
      %v673 = vunpack.c.l.b16 %v435
      %v674 = vunpack.c.l.b16 %v436
      %v675 = vunpack.c.l.b16 %v437
      %v676 = vpack.c.b16 %v628, %v627
      %v677 = vpack.c.b16 %v630, %v629
      %v678 = vpack.c.b16 %v632, %v631
      %v679 = vpack.c.b16 %v634, %v633
      %v680 = vpack.c.b16 %v636, %v635
      %v681 = vpack.c.b16 %v638, %v637
      %v682 = vpack.c.b16 %v640, %v639
      %v683 = vpack.c.b16 %v642, %v641
      %v684 = vpack.c.b16 %v644, %v643
      %v685 = vpack.c.b16 %v646, %v645
      %v686 = vpack.c.b16 %v648, %v647
      %v687 = vpack.c.b16 %v650, %v649
      %v688 = vpack.c.b16 %v652, %v651
      %v689 = vpack.c.b16 %v654, %v653
      %v690 = vpack.c.b16 %v656, %v655
      %v691 = vpack.c.b16 %v658, %v657
      %v692 = vpack.c.b16 %v660, %v659
      %v693 = vpack.c.b16 %v662, %v661
      %v694 = vpack.c.b16 %v664, %v663
      %v695 = vpack.c.b16 %v666, %v665
      %v696 = vpack.c.b16 %v668, %v667
      %v697 = vpack.c.b16 %v670, %v669
      %v698 = vpack.c.b16 %v672, %v671
      %v699 = vpack.c.b16 %v674, %v673
      %v700 = vpack.c.b16 %v675, %v675
      %vm725 = vcmask 23552
      %v727 = vsel %vm725, %v532, 0
      %v730 = vsel %vm725, %v536, 0
      %v733 = vsel %vm725, %v540, 0
      %v736 = vsel %vm725, %v544, 0
      %v739 = vsel %vm725, %v548, 0
      %v742 = vsel %vm725, %v552, 0
      %v745 = vsel %vm725, %v556, 0
      %vm747 = vcmask 1040384
      %vm748 = vcmask 1041408
      %v749 = vsel %vm747, 4294967295, 65535
      %v750 = vsel %vm748, %v749, 0
      %v752 = vand.u32 %v700, %v750
      %754 = vmatprep.subr.bf16.mxu0 0
      %755 = vmatpush1.bf16.msra.mxu0 %v683
      %756 = vmatprep.subr.bf16.mxu0 0
      %757 = vmatpush1.bf16.msra.mxu0 %v682
      %758 = vmatprep.subr.bf16.mxu0 0
      %759 = vmatpush1.bf16.msra.mxu0 %v681
      %760 = vmatprep.subr.bf16.mxu0 0
      %761 = vmatpush1.bf16.msra.mxu0 %v680
      %762 = vmatprep.subr.bf16.mxu0 0
      %763 = vmatpush1.bf16.msra.mxu0 %v679
      %764 = vmatprep.subr.bf16.mxu0 0
      %765 = vmatpush1.bf16.msra.mxu0 %v678
      %766 = vmatprep.subr.bf16.mxu0 0
      %767 = vmatpush1.bf16.msra.mxu0 %v677
      %768 = vmatprep.subr.bf16.mxu0 0
      %769 = vmatpush1.bf16.msra.mxu0 %v676
      %770 = vmatprep.subr.bf16.mxu0 0
      %771 = vmatpush2.bf16.msra.mxu0 %v691
      %772 = vmatprep.subr.bf16.mxu0 0
      %773 = vmatpush2.bf16.msra.mxu0 %v690
      %774 = vmatprep.subr.bf16.mxu0 0
      %775 = vmatpush2.bf16.msra.mxu0 %v689
      %776 = vmatprep.subr.bf16.mxu0 0
      %777 = vmatpush2.bf16.msra.mxu0 %v688
      %778 = vmatprep.subr.bf16.mxu0 0
      %779 = vmatpush2.bf16.msra.mxu0 %v687
      %780 = vmatprep.subr.bf16.mxu0 0
      %781 = vmatpush2.bf16.msra.mxu0 %v686
      %782 = vmatprep.subr.bf16.mxu0 0
      %783 = vmatpush2.bf16.msra.mxu0 %v685
      %784 = vmatprep.subr.bf16.mxu0 0
      %785 = vmatpush2.bf16.msra.mxu0 %v684
      %786 = vmatprep.mubr.bf16.mxu0 %v530
      %787 = vmatmul.mubr.bf16.gmra.mxu0 %v529
      %v788 = vpop.f32.mrf.mxu0
      %v789 = vadd.f32 %v443, %v788
      %v790 = vpop.f32.mrf.mxu0
      %v791 = vpop.f32.mrf.mxu0
      %v792 = vadd.f32 %v443, %v791
      %v793 = vpop.f32.mrf.mxu0
      %794 = vmatprep.mubr.bf16.mxu0 %v534
      %795 = vmatmul.mubr.bf16.gmra.mxu0 %v533
      %v796 = vpop.f32.mrf.mxu0
      %v797 = vadd.f32 %v443, %v796
      %v798 = vpop.f32.mrf.mxu0
      %v799 = vpop.f32.mrf.mxu0
      %v800 = vadd.f32 %v443, %v799
      %v801 = vpop.f32.mrf.mxu0
      %802 = vmatprep.mubr.bf16.mxu0 %v538
      %803 = vmatmul.mubr.bf16.gmra.mxu0 %v537
      %v804 = vpop.f32.mrf.mxu0
      %v805 = vadd.f32 %v443, %v804
      %v806 = vpop.f32.mrf.mxu0
      %v807 = vpop.f32.mrf.mxu0
      %v808 = vadd.f32 %v443, %v807
      %v809 = vpop.f32.mrf.mxu0
      %810 = vmatprep.mubr.bf16.mxu0 %v542
      %811 = vmatmul.mubr.bf16.gmra.mxu0 %v541
      %v812 = vpop.f32.mrf.mxu0
      %v813 = vadd.f32 %v443, %v812
      %v814 = vpop.f32.mrf.mxu0
      %v815 = vpop.f32.mrf.mxu0
      %v816 = vadd.f32 %v443, %v815
      %v817 = vpop.f32.mrf.mxu0
      %818 = vmatprep.mubr.bf16.mxu0 %v546
      %819 = vmatmul.mubr.bf16.gmra.mxu0 %v545
      %v820 = vpop.f32.mrf.mxu0
      %v821 = vadd.f32 %v443, %v820
      %v822 = vpop.f32.mrf.mxu0
      %v823 = vpop.f32.mrf.mxu0
      %v824 = vadd.f32 %v443, %v823
      %v825 = vpop.f32.mrf.mxu0
      %826 = vmatprep.mubr.bf16.mxu0 %v550
      %827 = vmatmul.mubr.bf16.gmra.mxu0 %v549
      %v828 = vpop.f32.mrf.mxu0
      %v829 = vadd.f32 %v443, %v828
      %v830 = vpop.f32.mrf.mxu0
      %v831 = vpop.f32.mrf.mxu0
      %v832 = vadd.f32 %v443, %v831
      %v833 = vpop.f32.mrf.mxu0
      %834 = vmatprep.mubr.bf16.mxu0 %v554
      %835 = vmatmul.mubr.bf16.gmra.mxu0 %v553
      %v836 = vpop.f32.mrf.mxu0
      %v837 = vadd.f32 %v443, %v836
      %v838 = vpop.f32.mrf.mxu0
      %v839 = vpop.f32.mrf.mxu0
      %v840 = vadd.f32 %v443, %v839
      %v841 = vpop.f32.mrf.mxu0
      %842 = vdwg.mxu0
      %843 = vmatprep.subr.bf16.mxu0 0
      %844 = vmatpush1.bf16.msra.mxu0 %v699
      %845 = vmatprep.subr.bf16.mxu0 0
      %846 = vmatpush1.bf16.msra.mxu0 %v698
      %847 = vmatprep.subr.bf16.mxu0 0
      %848 = vmatpush1.bf16.msra.mxu0 %v697
      %849 = vmatprep.subr.bf16.mxu0 0
      %850 = vmatpush1.bf16.msra.mxu0 %v696
      %851 = vmatprep.subr.bf16.mxu0 0
      %852 = vmatpush1.bf16.msra.mxu0 %v695
      %853 = vmatprep.subr.bf16.mxu0 0
      %854 = vmatpush1.bf16.msra.mxu0 %v694
      %855 = vmatprep.subr.bf16.mxu0 0
      %856 = vmatpush1.bf16.msra.mxu0 %v693
      %857 = vmatprep.subr.bf16.mxu0 0
      %858 = vmatpush1.bf16.msra.mxu0 %v692
      %859 = vmatprep.subr.bf16.mxu0 0
      %860 = vmatpush2.bf16.msra.mxu0 0
      %861 = vmatprep.subr.bf16.mxu0 0
      %862 = vmatpush2.bf16.msra.mxu0 0
      %863 = vmatprep.subr.bf16.mxu0 0
      %864 = vmatpush2.bf16.msra.mxu0 0
      %865 = vmatprep.subr.bf16.mxu0 0
      %866 = vmatpush2.bf16.msra.mxu0 0
      %867 = vmatprep.subr.bf16.mxu0 0
      %868 = vmatpush2.bf16.msra.mxu0 0
      %869 = vmatprep.subr.bf16.mxu0 0
      %870 = vmatpush2.bf16.msra.mxu0 0
      %871 = vmatprep.subr.bf16.mxu0 0
      %872 = vmatpush2.bf16.msra.mxu0 0
      %873 = vmatprep.subr.bf16.mxu0 0
      %874 = vmatpush2.bf16.msra.mxu0 %v752
      %875 = vmatprep.mubr.bf16.mxu0 %v727
      %876 = vmatmul.mubr.bf16.gmra.mxu0 %v531
      %v877 = vpop.f32.mrf.mxu0
      %v878 = vadd.f32 %v789, %v877
      %v879 = vpop.f32.mrf.mxu0
      %v880 = vpop.f32.mrf.mxu0
      %v881 = vadd.f32 %v792, %v880
      %v882 = vpop.f32.mrf.mxu0
      %883 = vmatprep.mubr.bf16.mxu0 %v730
      %884 = vmatmul.mubr.bf16.gmra.mxu0 %v535
      %v885 = vpop.f32.mrf.mxu0
      %v886 = vadd.f32 %v797, %v885
      %v887 = vpop.f32.mrf.mxu0
      %v888 = vpop.f32.mrf.mxu0
      %v889 = vadd.f32 %v800, %v888
      %v890 = vpop.f32.mrf.mxu0
      %891 = vmatprep.mubr.bf16.mxu0 %v733
      %892 = vmatmul.mubr.bf16.gmra.mxu0 %v539
      %v893 = vpop.f32.mrf.mxu0
      %v894 = vadd.f32 %v805, %v893
      %v895 = vpop.f32.mrf.mxu0
      %v896 = vpop.f32.mrf.mxu0
      %v897 = vadd.f32 %v808, %v896
      %v898 = vpop.f32.mrf.mxu0
      %899 = vmatprep.mubr.bf16.mxu0 %v736
      %900 = vmatmul.mubr.bf16.gmra.mxu0 %v543
      %v901 = vpop.f32.mrf.mxu0
      %v902 = vadd.f32 %v813, %v901
      %v903 = vpop.f32.mrf.mxu0
      %v904 = vpop.f32.mrf.mxu0
      %v905 = vadd.f32 %v816, %v904
      %v906 = vpop.f32.mrf.mxu0
      %907 = vmatprep.mubr.bf16.mxu0 %v739
      %908 = vmatmul.mubr.bf16.gmra.mxu0 %v547
      %v909 = vpop.f32.mrf.mxu0
      %v910 = vadd.f32 %v821, %v909
      %v911 = vpop.f32.mrf.mxu0
      %v912 = vpop.f32.mrf.mxu0
      %v913 = vadd.f32 %v824, %v912
      %v914 = vpop.f32.mrf.mxu0
      %915 = vmatprep.mubr.bf16.mxu0 %v742
      %916 = vmatmul.mubr.bf16.gmra.mxu0 %v551
      %v917 = vpop.f32.mrf.mxu0
      %v918 = vadd.f32 %v829, %v917
      %v919 = vpop.f32.mrf.mxu0
      %v920 = vpop.f32.mrf.mxu0
      %v921 = vadd.f32 %v832, %v920
      %v922 = vpop.f32.mrf.mxu0
      %923 = vmatprep.mubr.bf16.mxu0 %v745
      %924 = vmatmul.mubr.bf16.gmra.mxu0 %v555
      %v925 = vpop.f32.mrf.mxu0
      %v926 = vadd.f32 %v837, %v925
      %v927 = vpop.f32.mrf.mxu0
      %v928 = vpop.f32.mrf.mxu0
      %v929 = vadd.f32 %v840, %v928
      %v930 = vpop.f32.mrf.mxu0
      %931 = vdwg.mxu0
      %vm932 = vcmp.gt.f32.partialorder %v878, 0.0
      %vm933 = vcmp.gt.f32.partialorder %v881, 0.0
      %vm934 = vcmp.gt.f32.partialorder %v886, 0.0
      %vm935 = vcmp.gt.f32.partialorder %v889, 0.0
      %vm936 = vcmp.gt.f32.partialorder %v894, 0.0
      %vm937 = vcmp.gt.f32.partialorder %v897, 0.0
      %vm938 = vcmp.gt.f32.partialorder %v902, 0.0
      %vm939 = vcmp.gt.f32.partialorder %v905, 0.0
      %vm940 = vcmp.gt.f32.partialorder %v910, 0.0
      %vm941 = vcmp.gt.f32.partialorder %v913, 0.0
      %vm942 = vcmp.gt.f32.partialorder %v918, 0.0
      %vm943 = vcmp.gt.f32.partialorder %v921, 0.0
      %vm944 = vcmp.gt.f32.partialorder %v926, 0.0
      %vm945 = vcmp.gt.f32.partialorder %v929, 0.0
      %v946 = vmul.f32 %v878, -0.76766074
      %v947 = vmul.f32 %v881, -0.76766074
      %v948 = vmul.f32 %v886, -0.76766074
      %v949 = vmul.f32 %v889, -0.76766074
      %v950 = vmul.f32 %v894, -0.76766074
      %v951 = vmul.f32 %v897, -0.76766074
      %v952 = vmul.f32 %v902, -0.76766074
      %v953 = vmul.f32 %v905, -0.76766074
      %v954 = vmul.f32 %v910, -0.76766074
      %v955 = vmul.f32 %v913, -0.76766074
      %v956 = vmul.f32 %v918, -0.76766074
      %v957 = vmul.f32 %v921, -0.76766074
      %v958 = vmul.f32 %v926, -0.76766074
      %v959 = vmul.f32 %v929, -0.76766074
      %v960 = vsel %vm932, %v878, %v946
      %v961 = vsel %vm933, %v881, %v947
      %v962 = vsel %vm934, %v886, %v948
      %v963 = vsel %vm935, %v889, %v949
      %v964 = vsel %vm936, %v894, %v950
      %v965 = vsel %vm937, %v897, %v951
      %v966 = vsel %vm938, %v902, %v952
      %v967 = vsel %vm939, %v905, %v953
      %v968 = vsel %vm940, %v910, %v954
      %v969 = vsel %vm941, %v913, %v955
      %v970 = vsel %vm942, %v918, %v956
      %v971 = vsel %vm943, %v921, %v957
      %v972 = vsel %vm944, %v926, %v958
      %v973 = vsel %vm945, %v929, %v959
      %v974 = vpack.c.bf16 %v961, %v960
      %v975 = vpack.c.bf16 %v963, %v962
      %v976 = vpack.c.bf16 %v965, %v964
      %v977 = vpack.c.bf16 %v967, %v966
      %v978 = vpack.c.bf16 %v969, %v968
      %v979 = vpack.c.bf16 %v971, %v970
      %v980 = vpack.c.bf16 %v973, %v972
      %v988 = vunpack.c.l.b16 %v974
      %v989 = vunpack.c.h.b16 %v974
      %v990 = vunpack.c.l.b16 %v975
      %v991 = vunpack.c.h.b16 %v975
      %v992 = vunpack.c.l.b16 %v976
      %v993 = vunpack.c.h.b16 %v976
      %v994 = vunpack.c.l.b16 %v977
      %v995 = vunpack.c.h.b16 %v977
      %v996 = vunpack.c.l.b16 %v978
      %v997 = vunpack.c.h.b16 %v978
      %v998 = vunpack.c.l.b16 %v979
      %v999 = vunpack.c.h.b16 %v979
      %v1000 = vunpack.c.l.b16 %v980
      %v1001 = vunpack.c.h.b16 %v980
      %v1002 = vpack.c.b16 %v988, %v988
      %v1003 = vpack.c.b16 %v989, %v989
      %v1004 = vpack.c.b16 %v990, %v990
      %v1005 = vpack.c.b16 %v991, %v991
      %v1006 = vpack.c.b16 %v992, %v992
      %v1007 = vpack.c.b16 %v993, %v993
      %v1008 = vpack.c.b16 %v994, %v994
      %v1009 = vpack.c.b16 %v995, %v995
      %v1010 = vpack.c.b16 %v996, %v996
      %v1011 = vpack.c.b16 %v997, %v997
      %v1012 = vpack.c.b16 %v998, %v998
      %v1013 = vpack.c.b16 %v999, %v999
      %v1014 = vpack.c.b16 %v1000, %v1000
      %v1015 = vpack.c.b16 %v1001, %v1001
      %vm1030 = vcmask 633856
      %1031 = vst.msk [vmem:[#allocation2] sm:$0xf] %vm1030, %v1002
      %1032 = vst.msk [vmem:[#allocation2 + $0x4] sm:$0xf] %vm1030, %v1003
      %1033 = vst.msk [vmem:[#allocation2 + $0x8] sm:$0xf] %vm1030, %v1004
      %1034 = vst.msk [vmem:[#allocation2 + $0xc] sm:$0xf] %vm1030, %v1005
      %1035 = vst.msk [vmem:[#allocation2 + $0x10] sm:$0xf] %vm1030, %v1006
      %1036 = vst.msk [vmem:[#allocation2 + $0x14] sm:$0xf] %vm1030, %v1007
      %1037 = vst.msk [vmem:[#allocation2 + $0x18] sm:$0xf] %vm1030, %v1008
      %1038 = vst.msk [vmem:[#allocation2 + $0x1c] sm:$0xf] %vm1030, %v1009
      %1039 = vst.msk [vmem:[#allocation2 + $0x20] sm:$0xf] %vm1030, %v1010
      %1040 = vst.msk [vmem:[#allocation2 + $0x24] sm:$0xf] %vm1030, %v1011
      %1041 = vst.msk [vmem:[#allocation2 + $0x28] sm:$0xf] %vm1030, %v1012
      %1042 = vst.msk [vmem:[#allocation2 + $0x2c] sm:$0xf] %vm1030, %v1013
      %1043 = vst.msk [vmem:[#allocation2 + $0x30] sm:$0xf] %vm1030, %v1014
      %1044 = vst.msk [vmem:[#allocation2 + $0x34] sm:$0xf] %vm1030, %v1015
      %v1045 = vld [vmem:[#allocation2] sm:$0xf]
      %v1046 = vld [vmem:[#allocation2 + $0x4] sm:$0xf]
      %v1047 = vld [vmem:[#allocation2 + $0x8] sm:$0xf]
      %v1048 = vld [vmem:[#allocation2 + $0xc] sm:$0xf]
      %v1049 = vld [vmem:[#allocation2 + $0x10] sm:$0xf]
      %v1050 = vld [vmem:[#allocation2 + $0x14] sm:$0xf]
      %v1051 = vld [vmem:[#allocation2 + $0x18] sm:$0xf]
      %v1052 = vld [vmem:[#allocation2 + $0x1c] sm:$0xf]
      %v1053 = vld [vmem:[#allocation2 + $0x20] sm:$0xf]
      %v1054 = vld [vmem:[#allocation2 + $0x24] sm:$0xf]
      %v1055 = vld [vmem:[#allocation2 + $0x28] sm:$0xf]
      %v1056 = vld [vmem:[%s3] sm:$0xf]
      %v1057 = vld [vmem:[%s3 + $0x4] sm:$0xf]
      %v1058 = vld [vmem:[%s3 + $0x8] sm:$0xf]
      %v1059 = vld [vmem:[%s3 + $0xc] sm:$0xf]
      %v1060 = vld [vmem:[%s3 + $0x10] sm:$0xf]
      %v1061 = vld [vmem:[%s3 + $0x14] sm:$0xf]
      %v1062 = vld [vmem:[%s3 + $0x18] sm:$0xf]
      %v1063 = vld [vmem:[%s3 + $0x1c] sm:$0xf]
      %v1064 = vld [vmem:[%s3 + $0x20] sm:$0xf]
      %v1065 = vld [vmem:[%s3 + $0x24] sm:$0x7]
      %v1066 = vld [vmem:[#allocation2 + $0x2c] sm:$0x1]
      %s1067 = scalar_lea.vmem %s3, 40
      %v1068 = vld [vmem:[%s1067] sm:$0xf]
      %v1069 = vld [vmem:[%s1067 + $0x4] sm:$0xf]
      %v1070 = vld [vmem:[%s1067 + $0x8] sm:$0xf]
      %v1071 = vld [vmem:[%s1067 + $0xc] sm:$0xf]
      %v1072 = vld [vmem:[%s1067 + $0x10] sm:$0xf]
      %v1073 = vld [vmem:[%s1067 + $0x14] sm:$0xf]
      %v1074 = vld [vmem:[%s1067 + $0x18] sm:$0xf]
      %v1075 = vld [vmem:[%s1067 + $0x1c] sm:$0xf]
      %v1076 = vld [vmem:[%s1067 + $0x20] sm:$0xf]
      %v1077 = vld [vmem:[%s1067 + $0x24] sm:$0x7]
      %v1090 = vunpack.c.l.b16 %v1045
      %v1091 = vunpack.c.l.b16 %v1046
      %v1092 = vunpack.c.l.b16 %v1047
      %v1093 = vunpack.c.l.b16 %v1048
      %v1094 = vunpack.c.l.b16 %v1049
      %v1095 = vunpack.c.l.b16 %v1050
      %v1096 = vunpack.c.l.b16 %v1051
      %v1097 = vunpack.c.l.b16 %v1052
      %v1098 = vunpack.c.l.b16 %v1053
      %v1099 = vunpack.c.l.b16 %v1054
      %v1100 = vunpack.c.l.b16 %v1055
      %v1101 = vunpack.c.l.b16 %v1066
      %v1102 = vpack.c.b16 %v1091, %v1090
      %v1103 = vpack.c.b16 %v1093, %v1092
      %v1104 = vpack.c.b16 %v1095, %v1094
      %v1105 = vpack.c.b16 %v1097, %v1096
      %v1106 = vpack.c.b16 %v1099, %v1098
      %v1107 = vpack.c.b16 %v1101, %v1100
      %vm1108 = vsmask.f32 7424
      %v1110 = vshrl.u32 %v1102, 16
      %v1112 = vshll.u32 %v1102, 16
      %v1114 = vrot.slane %v1112, 1
      %v1115 = vor.u32 %v1110, %v1114
      %v1117 = vshll.u32 %v1103, 16
      %v1119 = vrot.slane %v1117, 1
      %v1120 = vsel %vm1108, %v1115, %v1119
      %v1121 = vshrl.u32 %v1103, 16
      %v1123 = vor.u32 %v1121, %v1119
      %v1125 = vshll.u32 %v1104, 16
      %v1127 = vrot.slane %v1125, 1
      %v1128 = vsel %vm1108, %v1123, %v1127
      %v1129 = vshrl.u32 %v1104, 16
      %v1131 = vor.u32 %v1129, %v1127
      %v1133 = vshll.u32 %v1105, 16
      %v1135 = vrot.slane %v1133, 1
      %v1136 = vsel %vm1108, %v1131, %v1135
      %v1137 = vshrl.u32 %v1105, 16
      %v1139 = vor.u32 %v1137, %v1135
      %v1141 = vshll.u32 %v1106, 16
      %v1143 = vrot.slane %v1141, 1
      %v1144 = vsel %vm1108, %v1139, %v1143
      %v1145 = vshrl.u32 %v1106, 16
      %v1147 = vor.u32 %v1145, %v1143
      %v1149 = vshll.u32 %v1107, 16
      %v1151 = vrot.slane %v1149, 1
      %v1152 = vsel %vm1108, %v1147, %v1151
      %v1153 = vshrl.u32 %v1107, 16
      %v1155 = vor.u32 %v1153, %v1151
      %v1166 = vunpack.c.l.b16 %v1068
      %v1167 = vunpack.c.l.b16 %v1069
      %v1168 = vunpack.c.l.b16 %v1070
      %v1169 = vunpack.c.l.b16 %v1071
      %v1170 = vunpack.c.l.b16 %v1072
      %v1171 = vunpack.c.l.b16 %v1073
      %v1172 = vunpack.c.l.b16 %v1074
      %v1173 = vunpack.c.l.b16 %v1075
      %v1174 = vunpack.c.l.b16 %v1076
      %v1175 = vunpack.c.l.b16 %v1077
      %v1176 = vpack.c.b16 %v1167, %v1166
      %v1177 = vpack.c.b16 %v1169, %v1168
      %v1178 = vpack.c.b16 %v1171, %v1170
      %v1179 = vpack.c.b16 %v1173, %v1172
      %v1180 = vpack.c.b16 %v1175, %v1174
      %vm1185 = vcmask 637952
      %v1187 = vsel %vm1185, %v1120, 0
      %v1190 = vsel %vm1185, %v1128, 0
      %v1193 = vsel %vm1185, %v1136, 0
      %v1196 = vsel %vm1185, %v1144, 0
      %v1199 = vsel %vm1185, %v1152, 0
      %v1202 = vsel %vm1185, %v1155, 0
      %vm1204 = vcmask 1046528
      %v1206 = vsel %vm1204, %v1180, 0
      %1208 = vmatprep.subr.bf16.mxu0 0
      %1209 = vmatpush1.bf16.msra.mxu0 0
      %1210 = vmatprep.subr.bf16.mxu0 0
      %1211 = vmatpush1.bf16.msra.mxu0 0
      %1212 = vmatprep.subr.bf16.mxu0 0
      %1213 = vmatpush1.bf16.msra.mxu0 0
      %1214 = vmatprep.subr.bf16.mxu0 0
      %1215 = vmatpush1.bf16.msra.mxu0 %v1206
      %1216 = vmatprep.subr.bf16.mxu0 0
      %1217 = vmatpush1.bf16.msra.mxu0 %v1179
      %1218 = vmatprep.subr.bf16.mxu0 0
      %1219 = vmatpush1.bf16.msra.mxu0 %v1178
      %1220 = vmatprep.subr.bf16.mxu0 0
      %1221 = vmatpush1.bf16.msra.mxu0 %v1177
      %1222 = vmatprep.subr.bf16.mxu0 0
      %1223 = vmatpush1.bf16.msra.mxu0 %v1176
      %1224 = vmatprep.subr.bf16.mxu0 0
      %1225 = vmatpush2.bf16.msra.mxu0 0
      %1226 = vmatprep.subr.bf16.mxu0 0
      %1227 = vmatpush2.bf16.msra.mxu0 0
      %1228 = vmatprep.subr.bf16.mxu0 0
      %1229 = vmatpush2.bf16.msra.mxu0 0
      %1230 = vmatprep.subr.bf16.mxu0 0
      %1231 = vmatpush2.bf16.msra.mxu0 0
      %1232 = vmatprep.subr.bf16.mxu0 0
      %1233 = vmatpush2.bf16.msra.mxu0 0
      %1234 = vmatprep.subr.bf16.mxu0 0
      %1235 = vmatpush2.bf16.msra.mxu0 0
      %1236 = vmatprep.subr.bf16.mxu0 0
      %1237 = vmatpush2.bf16.msra.mxu0 0
      %1238 = vmatprep.subr.bf16.mxu0 0
      %1239 = vmatpush2.bf16.msra.mxu0 0
      %1240 = vmatprep.mubr.bf16.mxu0 0
      %1241 = vmatmul.mubr.bf16.gmra.mxu0 %v1187
      %v1242 = vpop.f32.mrf.mxu0
      %v1243 = vadd.f32 0.0, %v1242
      %v1244 = vpop.f32.mrf.mxu0
      %v1245 = vpop.f32.mrf.mxu0
      %v1246 = vadd.f32 0.0, %v1245
      %v1247 = vpop.f32.mrf.mxu0
      %1248 = vmatprep.mubr.bf16.mxu0 0
      %1249 = vmatmul.mubr.bf16.gmra.mxu0 %v1190
      %v1250 = vpop.f32.mrf.mxu0
      %v1251 = vadd.f32 0.0, %v1250
      %v1252 = vpop.f32.mrf.mxu0
      %v1253 = vpop.f32.mrf.mxu0
      %v1254 = vadd.f32 0.0, %v1253
      %v1255 = vpop.f32.mrf.mxu0
      %1256 = vmatprep.mubr.bf16.mxu0 0
      %1257 = vmatmul.mubr.bf16.gmra.mxu0 %v1193
      %v1258 = vpop.f32.mrf.mxu0
      %v1259 = vadd.f32 0.0, %v1258
      %v1260 = vpop.f32.mrf.mxu0
      %v1261 = vpop.f32.mrf.mxu0
      %v1262 = vadd.f32 0.0, %v1261
      %v1263 = vpop.f32.mrf.mxu0
      %1264 = vmatprep.mubr.bf16.mxu0 0
      %1265 = vmatmul.mubr.bf16.gmra.mxu0 %v1196
      %v1266 = vpop.f32.mrf.mxu0
      %v1267 = vadd.f32 0.0, %v1266
      %v1268 = vpop.f32.mrf.mxu0
      %v1269 = vpop.f32.mrf.mxu0
      %v1270 = vadd.f32 0.0, %v1269
      %v1271 = vpop.f32.mrf.mxu0
      %1272 = vmatprep.mubr.bf16.mxu0 0
      %1273 = vmatmul.mubr.bf16.gmra.mxu0 %v1199
      %v1274 = vpop.f32.mrf.mxu0
      %v1275 = vadd.f32 0.0, %v1274
      %v1276 = vpop.f32.mrf.mxu0
      %v1277 = vpop.f32.mrf.mxu0
      %v1278 = vadd.f32 0.0, %v1277
      %v1279 = vpop.f32.mrf.mxu0
      %1280 = vmatprep.mubr.bf16.mxu0 0
      %1281 = vmatmul.mubr.bf16.gmra.mxu0 %v1202
      %v1282 = vpop.f32.mrf.mxu0
      %v1283 = vadd.f32 0.0, %v1282
      %v1284 = vpop.f32.mrf.mxu0
      %v1285 = vpop.f32.mrf.mxu0
      %v1286 = vpop.f32.mrf.mxu0
      %1287 = vdwg.mxu0
      %v1288 = vpack.c.b16 %v1100, %v1100
      %v1299 = vunpack.c.l.b16 %v1056
      %v1300 = vunpack.c.l.b16 %v1057
      %v1301 = vunpack.c.l.b16 %v1058
      %v1302 = vunpack.c.l.b16 %v1059
      %v1303 = vunpack.c.l.b16 %v1060
      %v1304 = vunpack.c.l.b16 %v1061
      %v1305 = vunpack.c.l.b16 %v1062
      %v1306 = vunpack.c.l.b16 %v1063
      %v1307 = vunpack.c.l.b16 %v1064
      %v1308 = vunpack.c.l.b16 %v1065
      %v1309 = vpack.c.b16 %v1300, %v1299
      %v1310 = vpack.c.b16 %v1302, %v1301
      %v1311 = vpack.c.b16 %v1304, %v1303
      %v1312 = vpack.c.b16 %v1306, %v1305
      %v1313 = vpack.c.b16 %v1308, %v1307
      %v1318 = vsel %vm1185, %v1102, 0
      %v1320 = vsel %vm1185, %v1103, 0
      %v1322 = vsel %vm1185, %v1104, 0
      %v1324 = vsel %vm1185, %v1105, 0
      %v1326 = vsel %vm1185, %v1106, 0
      %v1329 = vsel %vm1185, %v1288, 0
      %v1332 = vsel %vm1204, %v1313, 0
      %1334 = vmatprep.subr.bf16.mxu0 0
      %1335 = vmatpush1.bf16.msra.mxu0 0
      %1336 = vmatprep.subr.bf16.mxu0 0
      %1337 = vmatpush1.bf16.msra.mxu0 0
      %1338 = vmatprep.subr.bf16.mxu0 0
      %1339 = vmatpush1.bf16.msra.mxu0 0
      %1340 = vmatprep.subr.bf16.mxu0 0
      %1341 = vmatpush1.bf16.msra.mxu0 %v1332
      %1342 = vmatprep.subr.bf16.mxu0 0
      %1343 = vmatpush1.bf16.msra.mxu0 %v1312
      %1344 = vmatprep.subr.bf16.mxu0 0
      %1345 = vmatpush1.bf16.msra.mxu0 %v1311
      %1346 = vmatprep.subr.bf16.mxu0 0
      %1347 = vmatpush1.bf16.msra.mxu0 %v1310
      %1348 = vmatprep.subr.bf16.mxu0 0
      %1349 = vmatpush1.bf16.msra.mxu0 %v1309
      %1350 = vmatprep.subr.bf16.mxu0 0
      %1351 = vmatpush2.bf16.msra.mxu0 0
      %1352 = vmatprep.subr.bf16.mxu0 0
      %1353 = vmatpush2.bf16.msra.mxu0 0
      %1354 = vmatprep.subr.bf16.mxu0 0
      %1355 = vmatpush2.bf16.msra.mxu0 0
      %1356 = vmatprep.subr.bf16.mxu0 0
      %1357 = vmatpush2.bf16.msra.mxu0 0
      %1358 = vmatprep.subr.bf16.mxu0 0
      %1359 = vmatpush2.bf16.msra.mxu0 0
      %1360 = vmatprep.subr.bf16.mxu0 0
      %1361 = vmatpush2.bf16.msra.mxu0 0
      %1362 = vmatprep.subr.bf16.mxu0 0
      %1363 = vmatpush2.bf16.msra.mxu0 0
      %1364 = vmatprep.subr.bf16.mxu0 0
      %1365 = vmatpush2.bf16.msra.mxu0 0
      %1366 = vmatprep.mubr.bf16.mxu0 0
      %1367 = vmatmul.mubr.bf16.gmra.mxu0 %v1318
      %v1368 = vpop.f32.mrf.mxu0
      %v1369 = vadd.f32 %v1243, %v1368
      %v1370 = vpop.f32.mrf.mxu0
      %v1371 = vpop.f32.mrf.mxu0
      %v1372 = vadd.f32 %v1246, %v1371
      %v1373 = vpop.f32.mrf.mxu0
      %1374 = vmatprep.mubr.bf16.mxu0 0
      %1375 = vmatmul.mubr.bf16.gmra.mxu0 %v1320
      %v1376 = vpop.f32.mrf.mxu0
      %v1377 = vadd.f32 %v1251, %v1376
      %v1378 = vpop.f32.mrf.mxu0
      %v1379 = vpop.f32.mrf.mxu0
      %v1380 = vadd.f32 %v1254, %v1379
      %v1381 = vpop.f32.mrf.mxu0
      %1382 = vmatprep.mubr.bf16.mxu0 0
      %1383 = vmatmul.mubr.bf16.gmra.mxu0 %v1322
      %v1384 = vpop.f32.mrf.mxu0
      %v1385 = vadd.f32 %v1259, %v1384
      %v1386 = vpop.f32.mrf.mxu0
      %v1387 = vpop.f32.mrf.mxu0
      %v1388 = vadd.f32 %v1262, %v1387
      %v1389 = vpop.f32.mrf.mxu0
      %1390 = vmatprep.mubr.bf16.mxu0 0
      %1391 = vmatmul.mubr.bf16.gmra.mxu0 %v1324
      %v1392 = vpop.f32.mrf.mxu0
      %v1393 = vadd.f32 %v1267, %v1392
      %v1394 = vpop.f32.mrf.mxu0
      %v1395 = vpop.f32.mrf.mxu0
      %v1396 = vadd.f32 %v1270, %v1395
      %v1397 = vpop.f32.mrf.mxu0
      %1398 = vmatprep.mubr.bf16.mxu0 0
      %1399 = vmatmul.mubr.bf16.gmra.mxu0 %v1326
      %v1400 = vpop.f32.mrf.mxu0
      %v1401 = vadd.f32 %v1275, %v1400
      %v1402 = vpop.f32.mrf.mxu0
      %v1403 = vpop.f32.mrf.mxu0
      %v1404 = vadd.f32 %v1278, %v1403
      %v1405 = vpop.f32.mrf.mxu0
      %1406 = vmatprep.mubr.bf16.mxu0 0
      %1407 = vmatmul.mubr.bf16.gmra.mxu0 %v1329
      %v1408 = vpop.f32.mrf.mxu0
      %v1409 = vadd.f32 %v1283, %v1408
      %v1410 = vpop.f32.mrf.mxu0
      %v1411 = vpop.f32.mrf.mxu0
      %v1412 = vpop.f32.mrf.mxu0
      %1413 = vdwg.mxu0
      %v1414 = vld [vmem:[#allocation2 + $0x4] sm:$0xe]
      %v1415 = vld [vmem:[#allocation2 + $0x8] sm:$0xf]
      %v1416 = vld [vmem:[#allocation2 + $0xc] sm:$0xf]
      %v1417 = vld [vmem:[#allocation2 + $0x10] sm:$0xf]
      %v1418 = vld [vmem:[#allocation2 + $0x14] sm:$0xf]
      %v1419 = vld [vmem:[#allocation2 + $0x18] sm:$0xf]
      %v1420 = vld [vmem:[#allocation2 + $0x1c] sm:$0xf]
      %v1421 = vld [vmem:[#allocation2 + $0x20] sm:$0xf]
      %v1422 = vld [vmem:[#allocation2 + $0x24] sm:$0xf]
      %v1423 = vld [vmem:[#allocation2 + $0x28] sm:$0xf]
      %v1424 = vld [vmem:[#allocation2 + $0x2c] sm:$0xf]
      %v1425 = vld [vmem:[#allocation2 + $0x30] sm:$0x3]
      %s1426 = scalar_lea.vmem %s3, 80
      %v1427 = vld [vmem:[%s1426] sm:$0xf]
      %v1428 = vld [vmem:[%s1426 + $0x4] sm:$0xf]
      %v1429 = vld [vmem:[%s1426 + $0x8] sm:$0xf]
      %v1430 = vld [vmem:[%s1426 + $0xc] sm:$0xf]
      %v1431 = vld [vmem:[%s1426 + $0x10] sm:$0xf]
      %v1432 = vld [vmem:[%s1426 + $0x14] sm:$0xf]
      %v1433 = vld [vmem:[%s1426 + $0x18] sm:$0xf]
      %v1434 = vld [vmem:[%s1426 + $0x1c] sm:$0xf]
      %v1435 = vld [vmem:[%s1426 + $0x20] sm:$0xf]
      %v1436 = vld [vmem:[%s1426 + $0x24] sm:$0x7]
      %v1449 = vunpack.c.l.b16 %v1414
      %v1450 = vunpack.c.l.b16 %v1415
      %v1451 = vunpack.c.l.b16 %v1416
      %v1452 = vunpack.c.l.b16 %v1417
      %v1453 = vunpack.c.l.b16 %v1418
      %v1454 = vunpack.c.l.b16 %v1419
      %v1455 = vunpack.c.l.b16 %v1420
      %v1456 = vunpack.c.l.b16 %v1421
      %v1457 = vunpack.c.l.b16 %v1422
      %v1458 = vunpack.c.l.b16 %v1423
      %v1459 = vunpack.c.l.b16 %v1424
      %v1460 = vunpack.c.l.b16 %v1425
      %v1461 = vpack.c.b16 %v1450, %v1449
      %v1462 = vpack.c.b16 %v1452, %v1451
      %v1463 = vpack.c.b16 %v1454, %v1453
      %v1464 = vpack.c.b16 %v1456, %v1455
      %v1465 = vpack.c.b16 %v1458, %v1457
      %v1466 = vpack.c.b16 %v1460, %v1459
      %vm1467 = vsmask.f32 6400
      %v1469 = vshrl.u32 %v1461, 16
      %v1471 = vrot.slane %v1469, 1
      %v1472 = vshll.u32 %v1461, 16
      %v1474 = vrot.slane %v1472, 2
      %v1475 = vor.u32 %v1471, %v1474
      %v1477 = vshrl.u32 %v1462, 16
      %v1479 = vrot.slane %v1477, 1
      %v1480 = vshll.u32 %v1462, 16
      %v1482 = vrot.slane %v1480, 2
      %v1483 = vor.u32 %v1479, %v1482
      %v1484 = vsel %vm1467, %v1475, %v1483
      %v1486 = vshrl.u32 %v1463, 16
      %v1488 = vrot.slane %v1486, 1
      %v1489 = vshll.u32 %v1463, 16
      %v1491 = vrot.slane %v1489, 2
      %v1492 = vor.u32 %v1488, %v1491
      %v1493 = vsel %vm1467, %v1483, %v1492
      %v1495 = vshrl.u32 %v1464, 16
      %v1497 = vrot.slane %v1495, 1
      %v1498 = vshll.u32 %v1464, 16
      %v1500 = vrot.slane %v1498, 2
      %v1501 = vor.u32 %v1497, %v1500
      %v1502 = vsel %vm1467, %v1492, %v1501
      %v1504 = vshrl.u32 %v1465, 16
      %v1506 = vrot.slane %v1504, 1
      %v1507 = vshll.u32 %v1465, 16
      %v1509 = vrot.slane %v1507, 2
      %v1510 = vor.u32 %v1506, %v1509
      %v1511 = vsel %vm1467, %v1501, %v1510
      %v1513 = vshrl.u32 %v1466, 16
      %v1515 = vrot.slane %v1513, 1
      %v1516 = vshll.u32 %v1466, 16
      %v1518 = vrot.slane %v1516, 2
      %v1519 = vor.u32 %v1515, %v1518
      %v1520 = vsel %vm1467, %v1510, %v1519
      %v1531 = vunpack.c.l.b16 %v1427
      %v1532 = vunpack.c.l.b16 %v1428
      %v1533 = vunpack.c.l.b16 %v1429
      %v1534 = vunpack.c.l.b16 %v1430
      %v1535 = vunpack.c.l.b16 %v1431
      %v1536 = vunpack.c.l.b16 %v1432
      %v1537 = vunpack.c.l.b16 %v1433
      %v1538 = vunpack.c.l.b16 %v1434
      %v1539 = vunpack.c.l.b16 %v1435
      %v1540 = vunpack.c.l.b16 %v1436
      %v1541 = vpack.c.b16 %v1532, %v1531
      %v1542 = vpack.c.b16 %v1534, %v1533
      %v1543 = vpack.c.b16 %v1536, %v1535
      %v1544 = vpack.c.b16 %v1538, %v1537
      %v1545 = vpack.c.b16 %v1540, %v1539
      %v1551 = vsel %vm1185, %v1484, 0
      %v1554 = vsel %vm1185, %v1493, 0
      %v1557 = vsel %vm1185, %v1502, 0
      %v1560 = vsel %vm1185, %v1511, 0
      %v1563 = vsel %vm1185, %v1520, 0
      %v1566 = vsel %vm1185, %v1519, 0
      %v1569 = vsel %vm1204, %v1545, 0
      %1571 = vmatprep.subr.bf16.mxu0 0
      %1572 = vmatpush1.bf16.msra.mxu0 0
      %1573 = vmatprep.subr.bf16.mxu0 0
      %1574 = vmatpush1.bf16.msra.mxu0 0
      %1575 = vmatprep.subr.bf16.mxu0 0
      %1576 = vmatpush1.bf16.msra.mxu0 0
      %1577 = vmatprep.subr.bf16.mxu0 0
      %1578 = vmatpush1.bf16.msra.mxu0 %v1569
      %1579 = vmatprep.subr.bf16.mxu0 0
      %1580 = vmatpush1.bf16.msra.mxu0 %v1544
      %1581 = vmatprep.subr.bf16.mxu0 0
      %1582 = vmatpush1.bf16.msra.mxu0 %v1543
      %1583 = vmatprep.subr.bf16.mxu0 0
      %1584 = vmatpush1.bf16.msra.mxu0 %v1542
      %1585 = vmatprep.subr.bf16.mxu0 0
      %1586 = vmatpush1.bf16.msra.mxu0 %v1541
      %1587 = vmatprep.subr.bf16.mxu0 0
      %1588 = vmatpush2.bf16.msra.mxu0 0
      %1589 = vmatprep.subr.bf16.mxu0 0
      %1590 = vmatpush2.bf16.msra.mxu0 0
      %1591 = vmatprep.subr.bf16.mxu0 0
      %1592 = vmatpush2.bf16.msra.mxu0 0
      %1593 = vmatprep.subr.bf16.mxu0 0
      %1594 = vmatpush2.bf16.msra.mxu0 0
      %1595 = vmatprep.subr.bf16.mxu0 0
      %1596 = vmatpush2.bf16.msra.mxu0 0
      %1597 = vmatprep.subr.bf16.mxu0 0
      %1598 = vmatpush2.bf16.msra.mxu0 0
      %1599 = vmatprep.subr.bf16.mxu0 0
      %1600 = vmatpush2.bf16.msra.mxu0 0
      %1601 = vmatprep.subr.bf16.mxu0 0
      %1602 = vmatpush2.bf16.msra.mxu0 0
      %1603 = vmatprep.mubr.bf16.mxu0 0
      %1604 = vmatmul.mubr.bf16.gmra.mxu0 %v1551
      %v1605 = vpop.f32.mrf.mxu0
      %v1606 = vadd.f32 0.0, %v1605
      %v1607 = vpop.f32.mrf.mxu0
      %v1608 = vpop.f32.mrf.mxu0
      %v1609 = vadd.f32 0.0, %v1608
      %v1610 = vpop.f32.mrf.mxu0
      %1611 = vmatprep.mubr.bf16.mxu0 0
      %1612 = vmatmul.mubr.bf16.gmra.mxu0 %v1554
      %v1613 = vpop.f32.mrf.mxu0
      %v1614 = vadd.f32 0.0, %v1613
      %v1615 = vpop.f32.mrf.mxu0
      %v1616 = vpop.f32.mrf.mxu0
      %v1617 = vadd.f32 0.0, %v1616
      %v1618 = vpop.f32.mrf.mxu0
      %1619 = vmatprep.mubr.bf16.mxu0 0
      %1620 = vmatmul.mubr.bf16.gmra.mxu0 %v1557
      %v1621 = vpop.f32.mrf.mxu0
      %v1622 = vadd.f32 0.0, %v1621
      %v1623 = vpop.f32.mrf.mxu0
      %v1624 = vpop.f32.mrf.mxu0
      %v1625 = vadd.f32 0.0, %v1624
      %v1626 = vpop.f32.mrf.mxu0
      %1627 = vmatprep.mubr.bf16.mxu0 0
      %1628 = vmatmul.mubr.bf16.gmra.mxu0 %v1560
      %v1629 = vpop.f32.mrf.mxu0
      %v1630 = vadd.f32 0.0, %v1629
      %v1631 = vpop.f32.mrf.mxu0
      %v1632 = vpop.f32.mrf.mxu0
      %v1633 = vadd.f32 0.0, %v1632
      %v1634 = vpop.f32.mrf.mxu0
      %1635 = vmatprep.mubr.bf16.mxu0 0
      %1636 = vmatmul.mubr.bf16.gmra.mxu0 %v1563
      %v1637 = vpop.f32.mrf.mxu0
      %v1638 = vadd.f32 0.0, %v1637
      %v1639 = vpop.f32.mrf.mxu0
      %v1640 = vpop.f32.mrf.mxu0
      %v1641 = vadd.f32 0.0, %v1640
      %v1642 = vpop.f32.mrf.mxu0
      %1643 = vmatprep.mubr.bf16.mxu0 0
      %1644 = vmatmul.mubr.bf16.gmra.mxu0 %v1566
      %v1645 = vpop.f32.mrf.mxu0
      %v1646 = vadd.f32 0.0, %v1645
      %v1647 = vpop.f32.mrf.mxu0
      %v1648 = vpop.f32.mrf.mxu0
      %v1649 = vpop.f32.mrf.mxu0
      %1650 = vdwg.mxu0
      %v1651 = vadd.f32 %v1369, %v1606
      %v1652 = vadd.f32 %v1372, %v1609
      %v1653 = vadd.f32 %v1377, %v1614
      %v1654 = vadd.f32 %v1380, %v1617
      %v1655 = vadd.f32 %v1385, %v1622
      %v1656 = vadd.f32 %v1388, %v1625
      %v1657 = vadd.f32 %v1393, %v1630
      %v1658 = vadd.f32 %v1396, %v1633
      %v1659 = vadd.f32 %v1401, %v1638
      %v1660 = vadd.f32 %v1404, %v1641
      %v1661 = vadd.f32 %v1409, %v1646
      %v1662 = vld [vmem:[#allocation2 + $0x4] sm:$0xc]
      %s1663 = scalar_lea.vmem %s3, 120
      %v1664 = vld [vmem:[%s1663] sm:$0xf]
      %v1665 = vld [vmem:[%s1663 + $0x4] sm:$0xf]
      %v1666 = vld [vmem:[%s1663 + $0x8] sm:$0xf]
      %v1667 = vld [vmem:[%s1663 + $0xc] sm:$0xf]
      %v1668 = vld [vmem:[%s1663 + $0x10] sm:$0xf]
      %v1669 = vld [vmem:[%s1663 + $0x14] sm:$0xf]
      %v1670 = vld [vmem:[%s1663 + $0x18] sm:$0xf]
      %v1671 = vld [vmem:[%s1663 + $0x1c] sm:$0xf]
      %v1672 = vld [vmem:[%s1663 + $0x20] sm:$0xf]
      %v1673 = vld [vmem:[%s1663 + $0x24] sm:$0x7]
      %v1675 = vunpack.c.l.b16 %v1662
      %v1676 = vpack.c.b16 %v1450, %v1675
      %vm1677 = vcmask 1045504
      %v1678 = vrot.slane %v1676, 2
      %v1679 = vrot.slane %v1462, 2
      %v1680 = vsel %vm1677, %v1678, %v1679
      %v1681 = vrot.slane %v1463, 2
      %v1682 = vsel %vm1677, %v1679, %v1681
      %v1683 = vrot.slane %v1464, 2
      %v1684 = vsel %vm1677, %v1681, %v1683
      %v1685 = vrot.slane %v1465, 2
      %v1686 = vsel %vm1677, %v1683, %v1685
      %v1687 = vrot.slane %v1466, 2
      %v1688 = vsel %vm1677, %v1685, %v1687
      %v1699 = vunpack.c.l.b16 %v1664
      %v1700 = vunpack.c.l.b16 %v1665
      %v1701 = vunpack.c.l.b16 %v1666
      %v1702 = vunpack.c.l.b16 %v1667
      %v1703 = vunpack.c.l.b16 %v1668
      %v1704 = vunpack.c.l.b16 %v1669
      %v1705 = vunpack.c.l.b16 %v1670
      %v1706 = vunpack.c.l.b16 %v1671
      %v1707 = vunpack.c.l.b16 %v1672
      %v1708 = vunpack.c.l.b16 %v1673
      %v1709 = vpack.c.b16 %v1700, %v1699
      %v1710 = vpack.c.b16 %v1702, %v1701
      %v1711 = vpack.c.b16 %v1704, %v1703
      %v1712 = vpack.c.b16 %v1706, %v1705
      %v1713 = vpack.c.b16 %v1708, %v1707
      %v1719 = vsel %vm1185, %v1680, 0
      %v1722 = vsel %vm1185, %v1682, 0
      %v1725 = vsel %vm1185, %v1684, 0
      %v1728 = vsel %vm1185, %v1686, 0
      %v1731 = vsel %vm1185, %v1688, 0
      %v1734 = vsel %vm1185, %v1687, 0
      %v1737 = vsel %vm1204, %v1713, 0
      %1739 = vmatprep.subr.bf16.mxu0 0
      %1740 = vmatpush1.bf16.msra.mxu0 0
      %1741 = vmatprep.subr.bf16.mxu0 0
      %1742 = vmatpush1.bf16.msra.mxu0 0
      %1743 = vmatprep.subr.bf16.mxu0 0
      %1744 = vmatpush1.bf16.msra.mxu0 0
      %1745 = vmatprep.subr.bf16.mxu0 0
      %1746 = vmatpush1.bf16.msra.mxu0 %v1737
      %1747 = vmatprep.subr.bf16.mxu0 0
      %1748 = vmatpush1.bf16.msra.mxu0 %v1712
      %1749 = vmatprep.subr.bf16.mxu0 0
      %1750 = vmatpush1.bf16.msra.mxu0 %v1711
      %1751 = vmatprep.subr.bf16.mxu0 0
      %1752 = vmatpush1.bf16.msra.mxu0 %v1710
      %1753 = vmatprep.subr.bf16.mxu0 0
      %1754 = vmatpush1.bf16.msra.mxu0 %v1709
      %1755 = vmatprep.subr.bf16.mxu0 0
      %1756 = vmatpush2.bf16.msra.mxu0 0
      %1757 = vmatprep.subr.bf16.mxu0 0
      %1758 = vmatpush2.bf16.msra.mxu0 0
      %1759 = vmatprep.subr.bf16.mxu0 0
      %1760 = vmatpush2.bf16.msra.mxu0 0
      %1761 = vmatprep.subr.bf16.mxu0 0
      %1762 = vmatpush2.bf16.msra.mxu0 0
      %1763 = vmatprep.subr.bf16.mxu0 0
      %1764 = vmatpush2.bf16.msra.mxu0 0
      %1765 = vmatprep.subr.bf16.mxu0 0
      %1766 = vmatpush2.bf16.msra.mxu0 0
      %1767 = vmatprep.subr.bf16.mxu0 0
      %1768 = vmatpush2.bf16.msra.mxu0 0
      %1769 = vmatprep.subr.bf16.mxu0 0
      %1770 = vmatpush2.bf16.msra.mxu0 0
      %1771 = vmatprep.mubr.bf16.mxu0 0
      %1772 = vmatmul.mubr.bf16.gmra.mxu0 %v1719
      %v1773 = vpop.f32.mrf.mxu0
      %v1774 = vadd.f32 0.0, %v1773
      %v1775 = vpop.f32.mrf.mxu0
      %v1776 = vpop.f32.mrf.mxu0
      %v1777 = vadd.f32 0.0, %v1776
      %v1778 = vpop.f32.mrf.mxu0
      %1779 = vmatprep.mubr.bf16.mxu0 0
      %1780 = vmatmul.mubr.bf16.gmra.mxu0 %v1722
      %v1781 = vpop.f32.mrf.mxu0
      %v1782 = vadd.f32 0.0, %v1781
      %v1783 = vpop.f32.mrf.mxu0
      %v1784 = vpop.f32.mrf.mxu0
      %v1785 = vadd.f32 0.0, %v1784
      %v1786 = vpop.f32.mrf.mxu0
      %1787 = vmatprep.mubr.bf16.mxu0 0
      %1788 = vmatmul.mubr.bf16.gmra.mxu0 %v1725
      %v1789 = vpop.f32.mrf.mxu0
      %v1790 = vadd.f32 0.0, %v1789
      %v1791 = vpop.f32.mrf.mxu0
      %v1792 = vpop.f32.mrf.mxu0
      %v1793 = vadd.f32 0.0, %v1792
      %v1794 = vpop.f32.mrf.mxu0
      %1795 = vmatprep.mubr.bf16.mxu0 0
      %1796 = vmatmul.mubr.bf16.gmra.mxu0 %v1728
      %v1797 = vpop.f32.mrf.mxu0
      %v1798 = vadd.f32 0.0, %v1797
      %v1799 = vpop.f32.mrf.mxu0
      %v1800 = vpop.f32.mrf.mxu0
      %v1801 = vadd.f32 0.0, %v1800
      %v1802 = vpop.f32.mrf.mxu0
      %1803 = vmatprep.mubr.bf16.mxu0 0
      %1804 = vmatmul.mubr.bf16.gmra.mxu0 %v1731
      %v1805 = vpop.f32.mrf.mxu0
      %v1806 = vadd.f32 0.0, %v1805
      %v1807 = vpop.f32.mrf.mxu0
      %v1808 = vpop.f32.mrf.mxu0
      %v1809 = vadd.f32 0.0, %v1808
      %v1810 = vpop.f32.mrf.mxu0
      %1811 = vmatprep.mubr.bf16.mxu0 0
      %1812 = vmatmul.mubr.bf16.gmra.mxu0 %v1734
      %v1813 = vpop.f32.mrf.mxu0
      %v1814 = vadd.f32 0.0, %v1813
      %v1815 = vpop.f32.mrf.mxu0
      %v1816 = vpop.f32.mrf.mxu0
      %v1817 = vpop.f32.mrf.mxu0
      %1818 = vdwg.mxu0
      %v1819 = vadd.f32 %v1651, %v1774
      %v1820 = vadd.f32 %v1652, %v1777
      %v1821 = vadd.f32 %v1653, %v1782
      %v1822 = vadd.f32 %v1654, %v1785
      %v1823 = vadd.f32 %v1655, %v1790
      %v1824 = vadd.f32 %v1656, %v1793
      %v1825 = vadd.f32 %v1657, %v1798
      %v1826 = vadd.f32 %v1658, %v1801
      %v1827 = vadd.f32 %v1659, %v1806
      %v1828 = vadd.f32 %v1660, %v1809
      %v1829 = vadd.f32 %v1661, %v1814
      %v1830 = vld [vmem:[%s5] sm:$0xf]
      %v1831 = vld [vmem:[%s5 + $0x4] sm:$0xf]
      %v1832 = vld [vmem:[%s5 + $0x8] sm:$0xf]
      %v1833 = vld [vmem:[%s5 + $0xc] sm:$0xf]
      %v1834 = vld [vmem:[%s5 + $0x10] sm:$0xf]
      %v1835 = vld [vmem:[%s5 + $0x14] sm:$0xf]
      %v1836 = vld [vmem:[%s5 + $0x18] sm:$0xf]
      %v1837 = vld [vmem:[%s5 + $0x1c] sm:$0xf]
      %v1838 = vld [vmem:[%s5 + $0x20] sm:$0xf]
      %v1839 = vld [vmem:[%s5 + $0x24] sm:$0xf]
      %v1840 = vld [vmem:[%s5 + $0x28] sm:$0xf]
      %v1841 = vld [vmem:[%s5 + $0x2c] sm:$0xf]
      %v1842 = vld [vmem:[%s5 + $0x30] sm:$0xf]
      %v1843 = vld [vmem:[%s5 + $0x34] sm:$0xf]
      %v1844 = vld [vmem:[%s5 + $0x38] sm:$0xf]
      %v1845 = vld [vmem:[%s5 + $0x3c] sm:$0xf]
      %v1846 = vld [vmem:[%s5 + $0x40] sm:$0xf]
      %v1847 = vld [vmem:[%s5 + $0x44] sm:$0xf]
      %v1848 = vld [vmem:[%s5 + $0x48] sm:$0xf]
      %v1849 = vld [vmem:[%s5 + $0x4c] sm:$0xf]
      %v1850 = vld [vmem:[%s5 + $0x50] sm:$0xf]
      %v1851 = vld [vmem:[%s5 + $0x54] sm:$0xf]
      %v1852 = vld [vmem:[%s5 + $0x58] sm:$0xf]
      %v1853 = vld [vmem:[%s5 + $0x5c] sm:$0xf]
      %v1854 = vld [vmem:[%s5 + $0x60] sm:$0xf]
      %v1855 = vld [vmem:[%s5 + $0x64] sm:$0xf]
      %v1856 = vld [vmem:[%s5 + $0x68] sm:$0xf]
      %v1857 = vld [vmem:[%s5 + $0x6c] sm:$0xf]
      %v1858 = vld [vmem:[%s5 + $0x70] sm:$0xf]
      %v1859 = vld [vmem:[%s5 + $0x74] sm:$0xf]
      %v1860 = vld [vmem:[%s5 + $0x78] sm:$0xf]
      %v1861 = vld [vmem:[%s5 + $0x7c] sm:$0xf]
      %v1862 = vld [vmem:[%s5 + $0x80] sm:$0xf]
      %v1863 = vld [vmem:[%s5 + $0x84] sm:$0xf]
      %v1864 = vld [vmem:[%s5 + $0x88] sm:$0xf]
      %v1865 = vld [vmem:[%s5 + $0x8c] sm:$0xf]
      %v1866 = vld [vmem:[%s5 + $0x90] sm:$0xf]
      %v1867 = vld [vmem:[%s5 + $0x94] sm:$0xf]
      %v1868 = vpack.c.bf16 %v1820, %v1819
      %v1869 = vpack.c.bf16 %v1822, %v1821
      %v1870 = vpack.c.bf16 %v1824, %v1823
      %v1871 = vpack.c.bf16 %v1826, %v1825
      %v1872 = vpack.c.bf16 %v1828, %v1827
      %v1873 = vpack.c.bf16 %v1829, %v1829
      %v1874 = vld [vmem:[%s4] sm:$0x1]
      %v1876 = vlaneseq
      %v1877 = vshrl.u32 %v1876, 7
      %v1878 = vsub.s32 0, %v1877
      %v1879 = vrot.slane %v1874, %v1878
      %v1919 = vunpack.c.l.b16 %v1830
      %v1920 = vunpack.c.l.b16 %v1831
      %v1921 = vunpack.c.l.b16 %v1832
      %v1922 = vunpack.c.l.b16 %v1833
      %v1923 = vunpack.c.l.b16 %v1834
      %v1924 = vunpack.c.l.b16 %v1835
      %v1925 = vunpack.c.l.b16 %v1836
      %v1926 = vunpack.c.l.b16 %v1837
      %v1927 = vunpack.c.l.b16 %v1838
      %v1928 = vunpack.c.l.b16 %v1839
      %v1929 = vunpack.c.l.b16 %v1840
      %v1930 = vunpack.c.l.b16 %v1841
      %v1931 = vunpack.c.l.b16 %v1842
      %v1932 = vunpack.c.l.b16 %v1843
      %v1933 = vunpack.c.l.b16 %v1844
      %v1934 = vunpack.c.l.b16 %v1845
      %v1935 = vunpack.c.l.b16 %v1846
      %v1936 = vunpack.c.l.b16 %v1847
      %v1937 = vunpack.c.l.b16 %v1848
      %v1938 = vunpack.c.l.b16 %v1849
      %v1939 = vunpack.c.l.b16 %v1850
      %v1940 = vunpack.c.l.b16 %v1851
      %v1941 = vunpack.c.l.b16 %v1852
      %v1942 = vunpack.c.l.b16 %v1853
      %v1943 = vunpack.c.l.b16 %v1854
      %v1944 = vunpack.c.l.b16 %v1855
      %v1945 = vunpack.c.l.b16 %v1856
      %v1946 = vunpack.c.l.b16 %v1857
      %v1947 = vunpack.c.l.b16 %v1858
      %v1948 = vunpack.c.l.b16 %v1859
      %v1949 = vunpack.c.l.b16 %v1860
      %v1950 = vunpack.c.l.b16 %v1861
      %v1951 = vunpack.c.l.b16 %v1862
      %v1952 = vunpack.c.l.b16 %v1863
      %v1953 = vunpack.c.l.b16 %v1864
      %v1954 = vunpack.c.l.b16 %v1865
      %v1955 = vunpack.c.l.b16 %v1866
      %v1956 = vunpack.c.l.b16 %v1867
      %v1957 = vpack.c.b16 %v1920, %v1919
      %v1958 = vpack.c.b16 %v1922, %v1921
      %v1959 = vpack.c.b16 %v1924, %v1923
      %v1960 = vpack.c.b16 %v1926, %v1925
      %v1961 = vpack.c.b16 %v1928, %v1927
      %v1962 = vpack.c.b16 %v1930, %v1929
      %v1963 = vpack.c.b16 %v1932, %v1931
      %v1964 = vpack.c.b16 %v1934, %v1933
      %v1965 = vpack.c.b16 %v1936, %v1935
      %v1966 = vpack.c.b16 %v1938, %v1937
      %v1967 = vpack.c.b16 %v1940, %v1939
      %v1968 = vpack.c.b16 %v1942, %v1941
      %v1969 = vpack.c.b16 %v1944, %v1943
      %v1970 = vpack.c.b16 %v1946, %v1945
      %v1971 = vpack.c.b16 %v1948, %v1947
      %v1972 = vpack.c.b16 %v1950, %v1949
      %v1973 = vpack.c.b16 %v1952, %v1951
      %v1974 = vpack.c.b16 %v1954, %v1953
      %v1975 = vpack.c.b16 %v1956, %v1955
      %vm1976 = vcmask 719872
      %v1978 = vsel %vm1976, %v1957, 0
      %v1981 = vsel %vm1976, %v1958, 0
      %v1984 = vsel %vm1976, %v1959, 0
      %v1987 = vsel %vm1976, %v1960, 0
      %v1990 = vsel %vm1976, %v1961, 0
      %v1993 = vsel %vm1976, %v1962, 0
      %v1996 = vsel %vm1976, %v1963, 0
      %v1999 = vsel %vm1976, %v1964, 0
      %v2002 = vsel %vm1976, %v1965, 0
      %v2005 = vsel %vm1976, %v1966, 0
      %v2008 = vsel %vm1976, %v1967, 0
      %v2011 = vsel %vm1976, %v1968, 0
      %v2014 = vsel %vm1976, %v1969, 0
      %v2017 = vsel %vm1976, %v1970, 0
      %v2020 = vsel %vm1976, %v1971, 0
      %v2023 = vsel %vm1976, %v1972, 0
      %v2026 = vsel %vm1976, %v1973, 0
      %v2029 = vsel %vm1976, %v1974, 0
      %v2032 = vsel %vm1976, %v1975, 0
      %vm2034 = vcmask 1043456
      %v2036 = vsel %vm2034, %v1873, 0
      %2038 = vmatprep.subr.bf16.mxu0 0
      %2039 = vmatpush1.bf16.msra.mxu0 0
      %2040 = vmatprep.subr.bf16.mxu0 0
      %2041 = vmatpush1.bf16.msra.mxu0 0
      %2042 = vmatprep.subr.bf16.mxu0 0
      %2043 = vmatpush1.bf16.msra.mxu0 %v2036
      %2044 = vmatprep.subr.bf16.mxu0 0
      %2045 = vmatpush1.bf16.msra.mxu0 %v1872
      %2046 = vmatprep.subr.bf16.mxu0 0
      %2047 = vmatpush1.bf16.msra.mxu0 %v1871
      %2048 = vmatprep.subr.bf16.mxu0 0
      %2049 = vmatpush1.bf16.msra.mxu0 %v1870
      %2050 = vmatprep.subr.bf16.mxu0 0
      %2051 = vmatpush1.bf16.msra.mxu0 %v1869
      %2052 = vmatprep.subr.bf16.mxu0 0
      %2053 = vmatpush1.bf16.msra.mxu0 %v1868
      %2054 = vmatprep.subr.bf16.mxu0 0
      %2055 = vmatpush2.bf16.msra.mxu0 0
      %2056 = vmatprep.subr.bf16.mxu0 0
      %2057 = vmatpush2.bf16.msra.mxu0 0
      %2058 = vmatprep.subr.bf16.mxu0 0
      %2059 = vmatpush2.bf16.msra.mxu0 0
      %2060 = vmatprep.subr.bf16.mxu0 0
      %2061 = vmatpush2.bf16.msra.mxu0 0
      %2062 = vmatprep.subr.bf16.mxu0 0
      %2063 = vmatpush2.bf16.msra.mxu0 0
      %2064 = vmatprep.subr.bf16.mxu0 0
      %2065 = vmatpush2.bf16.msra.mxu0 0
      %2066 = vmatprep.subr.bf16.mxu0 0
      %2067 = vmatpush2.bf16.msra.mxu0 0
      %2068 = vmatprep.subr.bf16.mxu0 0
      %2069 = vmatpush2.bf16.msra.mxu0 0
      %2070 = vmatprep.mubr.bf16.mxu0 0
      %2071 = vmatmul.mubr.bf16.gmra.mxu0 %v1978
      %v2072 = vpop.f32.mrf.mxu0
      %v2073 = vadd.f32 %v1879, %v2072
      %v2074 = vpop.f32.mrf.mxu0
      %v2075 = vpop.f32.mrf.mxu0
      %v2076 = vadd.f32 %v1879, %v2075
      %v2077 = vpop.f32.mrf.mxu0
      %2078 = vmatprep.mubr.bf16.mxu0 0
      %2079 = vmatmul.mubr.bf16.gmra.mxu0 %v1981
      %v2080 = vpop.f32.mrf.mxu0
      %v2081 = vadd.f32 %v1879, %v2080
      %v2082 = vpop.f32.mrf.mxu0
      %v2083 = vpop.f32.mrf.mxu0
      %v2084 = vadd.f32 %v1879, %v2083
      %v2085 = vpop.f32.mrf.mxu0
      %2086 = vmatprep.mubr.bf16.mxu0 0
      %2087 = vmatmul.mubr.bf16.gmra.mxu0 %v1984
      %v2088 = vpop.f32.mrf.mxu0
      %v2089 = vadd.f32 %v1879, %v2088
      %v2090 = vpop.f32.mrf.mxu0
      %v2091 = vpop.f32.mrf.mxu0
      %v2092 = vadd.f32 %v1879, %v2091
      %v2093 = vpop.f32.mrf.mxu0
      %2094 = vmatprep.mubr.bf16.mxu0 0
      %2095 = vmatmul.mubr.bf16.gmra.mxu0 %v1987
      %v2096 = vpop.f32.mrf.mxu0
      %v2097 = vadd.f32 %v1879, %v2096
      %v2098 = vpop.f32.mrf.mxu0
      %v2099 = vpop.f32.mrf.mxu0
      %v2100 = vadd.f32 %v1879, %v2099
      %v2101 = vpop.f32.mrf.mxu0
      %2102 = vmatprep.mubr.bf16.mxu0 0
      %2103 = vmatmul.mubr.bf16.gmra.mxu0 %v1990
      %v2104 = vpop.f32.mrf.mxu0
      %v2105 = vadd.f32 %v1879, %v2104
      %v2106 = vpop.f32.mrf.mxu0
      %v2107 = vpop.f32.mrf.mxu0
      %v2108 = vadd.f32 %v1879, %v2107
      %v2109 = vpop.f32.mrf.mxu0
      %2110 = vmatprep.mubr.bf16.mxu0 0
      %2111 = vmatmul.mubr.bf16.gmra.mxu0 %v1993
      %v2112 = vpop.f32.mrf.mxu0
      %v2113 = vadd.f32 %v1879, %v2112
      %v2114 = vpop.f32.mrf.mxu0
      %v2115 = vpop.f32.mrf.mxu0
      %v2116 = vadd.f32 %v1879, %v2115
      %v2117 = vpop.f32.mrf.mxu0
      %2118 = vmatprep.mubr.bf16.mxu0 0
      %2119 = vmatmul.mubr.bf16.gmra.mxu0 %v1996
      %v2120 = vpop.f32.mrf.mxu0
      %v2121 = vadd.f32 %v1879, %v2120
      %v2122 = vpop.f32.mrf.mxu0
      %v2123 = vpop.f32.mrf.mxu0
      %v2124 = vadd.f32 %v1879, %v2123
      %v2125 = vpop.f32.mrf.mxu0
      %2126 = vmatprep.mubr.bf16.mxu0 0
      %2127 = vmatmul.mubr.bf16.gmra.mxu0 %v1999
      %v2128 = vpop.f32.mrf.mxu0
      %v2129 = vadd.f32 %v1879, %v2128
      %v2130 = vpop.f32.mrf.mxu0
      %v2131 = vpop.f32.mrf.mxu0
      %v2132 = vadd.f32 %v1879, %v2131
      %v2133 = vpop.f32.mrf.mxu0
      %2134 = vmatprep.mubr.bf16.mxu0 0
      %2135 = vmatmul.mubr.bf16.gmra.mxu0 %v2002
      %v2136 = vpop.f32.mrf.mxu0
      %v2137 = vadd.f32 %v1879, %v2136
      %v2138 = vpop.f32.mrf.mxu0
      %v2139 = vpop.f32.mrf.mxu0
      %v2140 = vadd.f32 %v1879, %v2139
      %v2141 = vpop.f32.mrf.mxu0
      %2142 = vmatprep.mubr.bf16.mxu0 0
      %2143 = vmatmul.mubr.bf16.gmra.mxu0 %v2005
      %v2144 = vpop.f32.mrf.mxu0
      %v2145 = vadd.f32 %v1879, %v2144
      %v2146 = vpop.f32.mrf.mxu0
      %v2147 = vpop.f32.mrf.mxu0
      %v2148 = vadd.f32 %v1879, %v2147
      %v2149 = vpop.f32.mrf.mxu0
      %2150 = vmatprep.mubr.bf16.mxu0 0
      %2151 = vmatmul.mubr.bf16.gmra.mxu0 %v2008
      %v2152 = vpop.f32.mrf.mxu0
      %v2153 = vadd.f32 %v1879, %v2152
      %v2154 = vpop.f32.mrf.mxu0
      %v2155 = vpop.f32.mrf.mxu0
      %v2156 = vadd.f32 %v1879, %v2155
      %v2157 = vpop.f32.mrf.mxu0
      %2158 = vmatprep.mubr.bf16.mxu0 0
      %2159 = vmatmul.mubr.bf16.gmra.mxu0 %v2011
      %v2160 = vpop.f32.mrf.mxu0
      %v2161 = vadd.f32 %v1879, %v2160
      %v2162 = vpop.f32.mrf.mxu0
      %v2163 = vpop.f32.mrf.mxu0
      %v2164 = vadd.f32 %v1879, %v2163
      %v2165 = vpop.f32.mrf.mxu0
      %2166 = vmatprep.mubr.bf16.mxu0 0
      %2167 = vmatmul.mubr.bf16.gmra.mxu0 %v2014
      %v2168 = vpop.f32.mrf.mxu0
      %v2169 = vadd.f32 %v1879, %v2168
      %v2170 = vpop.f32.mrf.mxu0
      %v2171 = vpop.f32.mrf.mxu0
      %v2172 = vadd.f32 %v1879, %v2171
      %v2173 = vpop.f32.mrf.mxu0
      %2174 = vmatprep.mubr.bf16.mxu0 0
      %2175 = vmatmul.mubr.bf16.gmra.mxu0 %v2017
      %v2176 = vpop.f32.mrf.mxu0
      %v2177 = vadd.f32 %v1879, %v2176
      %v2178 = vpop.f32.mrf.mxu0
      %v2179 = vpop.f32.mrf.mxu0
      %v2180 = vadd.f32 %v1879, %v2179
      %v2181 = vpop.f32.mrf.mxu0
      %2182 = vmatprep.mubr.bf16.mxu0 0
      %2183 = vmatmul.mubr.bf16.gmra.mxu0 %v2020
      %v2184 = vpop.f32.mrf.mxu0
      %v2185 = vadd.f32 %v1879, %v2184
      %v2186 = vpop.f32.mrf.mxu0
      %v2187 = vpop.f32.mrf.mxu0
      %v2188 = vadd.f32 %v1879, %v2187
      %v2189 = vpop.f32.mrf.mxu0
      %2190 = vmatprep.mubr.bf16.mxu0 0
      %2191 = vmatmul.mubr.bf16.gmra.mxu0 %v2023
      %v2192 = vpop.f32.mrf.mxu0
      %v2193 = vadd.f32 %v1879, %v2192
      %v2194 = vpop.f32.mrf.mxu0
      %v2195 = vpop.f32.mrf.mxu0
      %v2196 = vadd.f32 %v1879, %v2195
      %v2197 = vpop.f32.mrf.mxu0
      %2198 = vmatprep.mubr.bf16.mxu0 0
      %2199 = vmatmul.mubr.bf16.gmra.mxu0 %v2026
      %v2200 = vpop.f32.mrf.mxu0
      %v2201 = vadd.f32 %v1879, %v2200
      %v2202 = vpop.f32.mrf.mxu0
      %v2203 = vpop.f32.mrf.mxu0
      %v2204 = vadd.f32 %v1879, %v2203
      %v2205 = vpop.f32.mrf.mxu0
      %2206 = vmatprep.mubr.bf16.mxu0 0
      %2207 = vmatmul.mubr.bf16.gmra.mxu0 %v2029
      %v2208 = vpop.f32.mrf.mxu0
      %v2209 = vadd.f32 %v1879, %v2208
      %v2210 = vpop.f32.mrf.mxu0
      %v2211 = vpop.f32.mrf.mxu0
      %v2212 = vadd.f32 %v1879, %v2211
      %v2213 = vpop.f32.mrf.mxu0
      %2214 = vmatprep.mubr.bf16.mxu0 0
      %2215 = vmatmul.mubr.bf16.gmra.mxu0 %v2032
      %v2216 = vpop.f32.mrf.mxu0
      %v2217 = vadd.f32 %v1879, %v2216
      %v2218 = vpop.f32.mrf.mxu0
      %v2219 = vpop.f32.mrf.mxu0
      %v2220 = vadd.f32 %v1879, %v2219
      %v2221 = vpop.f32.mrf.mxu0
      %2222 = vdwg.mxu0
      %vm2223 = vcmp.gt.f32.partialorder %v2073, 0.0
      %vm2224 = vcmp.gt.f32.partialorder %v2076, 0.0
      %vm2225 = vcmp.gt.f32.partialorder %v2081, 0.0
      %vm2226 = vcmp.gt.f32.partialorder %v2084, 0.0
      %vm2227 = vcmp.gt.f32.partialorder %v2089, 0.0
      %vm2228 = vcmp.gt.f32.partialorder %v2092, 0.0
      %vm2229 = vcmp.gt.f32.partialorder %v2097, 0.0
      %vm2230 = vcmp.gt.f32.partialorder %v2100, 0.0
      %vm2231 = vcmp.gt.f32.partialorder %v2105, 0.0
      %vm2232 = vcmp.gt.f32.partialorder %v2108, 0.0
      %vm2233 = vcmp.gt.f32.partialorder %v2113, 0.0
      %vm2234 = vcmp.gt.f32.partialorder %v2116, 0.0
      %vm2235 = vcmp.gt.f32.partialorder %v2121, 0.0
      %vm2236 = vcmp.gt.f32.partialorder %v2124, 0.0
      %vm2237 = vcmp.gt.f32.partialorder %v2129, 0.0
      %vm2238 = vcmp.gt.f32.partialorder %v2132, 0.0
      %vm2239 = vcmp.gt.f32.partialorder %v2137, 0.0
      %vm2240 = vcmp.gt.f32.partialorder %v2140, 0.0
      %vm2241 = vcmp.gt.f32.partialorder %v2145, 0.0
      %vm2242 = vcmp.gt.f32.partialorder %v2148, 0.0
      %vm2243 = vcmp.gt.f32.partialorder %v2153, 0.0
      %vm2244 = vcmp.gt.f32.partialorder %v2156, 0.0
      %vm2245 = vcmp.gt.f32.partialorder %v2161, 0.0
      %vm2246 = vcmp.gt.f32.partialorder %v2164, 0.0
      %vm2247 = vcmp.gt.f32.partialorder %v2169, 0.0
      %vm2248 = vcmp.gt.f32.partialorder %v2172, 0.0
      %vm2249 = vcmp.gt.f32.partialorder %v2177, 0.0
      %vm2250 = vcmp.gt.f32.partialorder %v2180, 0.0
      %vm2251 = vcmp.gt.f32.partialorder %v2185, 0.0
      %vm2252 = vcmp.gt.f32.partialorder %v2188, 0.0
      %vm2253 = vcmp.gt.f32.partialorder %v2193, 0.0
      %vm2254 = vcmp.gt.f32.partialorder %v2196, 0.0
      %vm2255 = vcmp.gt.f32.partialorder %v2201, 0.0
      %vm2256 = vcmp.gt.f32.partialorder %v2204, 0.0
      %vm2257 = vcmp.gt.f32.partialorder %v2209, 0.0
      %vm2258 = vcmp.gt.f32.partialorder %v2212, 0.0
      %vm2259 = vcmp.gt.f32.partialorder %v2217, 0.0
      %vm2260 = vcmp.gt.f32.partialorder %v2220, 0.0
      %v2261 = vmul.f32 %v2073, -0.76766074
      %v2262 = vmul.f32 %v2076, -0.76766074
      %v2263 = vmul.f32 %v2081, -0.76766074
      %v2264 = vmul.f32 %v2084, -0.76766074
      %v2265 = vmul.f32 %v2089, -0.76766074
      %v2266 = vmul.f32 %v2092, -0.76766074
      %v2267 = vmul.f32 %v2097, -0.76766074
      %v2268 = vmul.f32 %v2100, -0.76766074
      %v2269 = vmul.f32 %v2105, -0.76766074
      %v2270 = vmul.f32 %v2108, -0.76766074
      %v2271 = vmul.f32 %v2113, -0.76766074
      %v2272 = vmul.f32 %v2116, -0.76766074
      %v2273 = vmul.f32 %v2121, -0.76766074
      %v2274 = vmul.f32 %v2124, -0.76766074
      %v2275 = vmul.f32 %v2129, -0.76766074
      %v2276 = vmul.f32 %v2132, -0.76766074
      %v2277 = vmul.f32 %v2137, -0.76766074
      %v2278 = vmul.f32 %v2140, -0.76766074
      %v2279 = vmul.f32 %v2145, -0.76766074
      %v2280 = vmul.f32 %v2148, -0.76766074
      %v2281 = vmul.f32 %v2153, -0.76766074
      %v2282 = vmul.f32 %v2156, -0.76766074
      %v2283 = vmul.f32 %v2161, -0.76766074
      %v2284 = vmul.f32 %v2164, -0.76766074
      %v2285 = vmul.f32 %v2169, -0.76766074
      %v2286 = vmul.f32 %v2172, -0.76766074
      %v2287 = vmul.f32 %v2177, -0.76766074
      %v2288 = vmul.f32 %v2180, -0.76766074
      %v2289 = vmul.f32 %v2185, -0.76766074
      %v2290 = vmul.f32 %v2188, -0.76766074
      %v2291 = vmul.f32 %v2193, -0.76766074
      %v2292 = vmul.f32 %v2196, -0.76766074
      %v2293 = vmul.f32 %v2201, -0.76766074
      %v2294 = vmul.f32 %v2204, -0.76766074
      %v2295 = vmul.f32 %v2209, -0.76766074
      %v2296 = vmul.f32 %v2212, -0.76766074
      %v2297 = vmul.f32 %v2217, -0.76766074
      %v2298 = vmul.f32 %v2220, -0.76766074
      %v2299 = vsel %vm2223, %v2073, %v2261
      %v2300 = vsel %vm2224, %v2076, %v2262
      %v2301 = vsel %vm2225, %v2081, %v2263
      %v2302 = vsel %vm2226, %v2084, %v2264
      %v2303 = vsel %vm2227, %v2089, %v2265
      %v2304 = vsel %vm2228, %v2092, %v2266
      %v2305 = vsel %vm2229, %v2097, %v2267
      %v2306 = vsel %vm2230, %v2100, %v2268
      %v2307 = vsel %vm2231, %v2105, %v2269
      %v2308 = vsel %vm2232, %v2108, %v2270
      %v2309 = vsel %vm2233, %v2113, %v2271
      %v2310 = vsel %vm2234, %v2116, %v2272
      %v2311 = vsel %vm2235, %v2121, %v2273
      %v2312 = vsel %vm2236, %v2124, %v2274
      %v2313 = vsel %vm2237, %v2129, %v2275
      %v2314 = vsel %vm2238, %v2132, %v2276
      %v2315 = vsel %vm2239, %v2137, %v2277
      %v2316 = vsel %vm2240, %v2140, %v2278
      %v2317 = vsel %vm2241, %v2145, %v2279
      %v2318 = vsel %vm2242, %v2148, %v2280
      %v2319 = vsel %vm2243, %v2153, %v2281
      %v2320 = vsel %vm2244, %v2156, %v2282
      %v2321 = vsel %vm2245, %v2161, %v2283
      %v2322 = vsel %vm2246, %v2164, %v2284
      %v2323 = vsel %vm2247, %v2169, %v2285
      %v2324 = vsel %vm2248, %v2172, %v2286
      %v2325 = vsel %vm2249, %v2177, %v2287
      %v2326 = vsel %vm2250, %v2180, %v2288
      %v2327 = vsel %vm2251, %v2185, %v2289
      %v2328 = vsel %vm2252, %v2188, %v2290
      %v2329 = vsel %vm2253, %v2193, %v2291
      %v2330 = vsel %vm2254, %v2196, %v2292
      %v2331 = vsel %vm2255, %v2201, %v2293
      %v2332 = vsel %vm2256, %v2204, %v2294
      %v2333 = vsel %vm2257, %v2209, %v2295
      %v2334 = vsel %vm2258, %v2212, %v2296
      %v2335 = vsel %vm2259, %v2217, %v2297
      %v2336 = vsel %vm2260, %v2220, %v2298
      %v2337 = vpack.c.bf16 %v2300, %v2299
      %v2338 = vpack.c.bf16 %v2302, %v2301
      %v2339 = vpack.c.bf16 %v2304, %v2303
      %v2340 = vpack.c.bf16 %v2306, %v2305
      %v2341 = vpack.c.bf16 %v2308, %v2307
      %v2342 = vpack.c.bf16 %v2310, %v2309
      %v2343 = vpack.c.bf16 %v2312, %v2311
      %v2344 = vpack.c.bf16 %v2314, %v2313
      %v2345 = vpack.c.bf16 %v2316, %v2315
      %v2346 = vpack.c.bf16 %v2318, %v2317
      %v2347 = vpack.c.bf16 %v2320, %v2319
      %v2348 = vpack.c.bf16 %v2322, %v2321
      %v2349 = vpack.c.bf16 %v2324, %v2323
      %v2350 = vpack.c.bf16 %v2326, %v2325
      %v2351 = vpack.c.bf16 %v2328, %v2327
      %v2352 = vpack.c.bf16 %v2330, %v2329
      %v2353 = vpack.c.bf16 %v2332, %v2331
      %v2354 = vpack.c.bf16 %v2334, %v2333
      %v2355 = vpack.c.bf16 %v2336, %v2335
      %v2375 = vunpack.c.l.b16 %v2337
      %v2376 = vunpack.c.h.b16 %v2337
      %v2377 = vunpack.c.l.b16 %v2338
      %v2378 = vunpack.c.h.b16 %v2338
      %v2379 = vunpack.c.l.b16 %v2339
      %v2380 = vunpack.c.h.b16 %v2339
      %v2381 = vunpack.c.l.b16 %v2340
      %v2382 = vunpack.c.h.b16 %v2340
      %v2383 = vunpack.c.l.b16 %v2341
      %v2384 = vunpack.c.h.b16 %v2341
      %v2385 = vunpack.c.l.b16 %v2342
      %v2386 = vunpack.c.h.b16 %v2342
      %v2387 = vunpack.c.l.b16 %v2343
      %v2388 = vunpack.c.h.b16 %v2343
      %v2389 = vunpack.c.l.b16 %v2344
      %v2390 = vunpack.c.h.b16 %v2344
      %v2391 = vunpack.c.l.b16 %v2345
      %v2392 = vunpack.c.h.b16 %v2345
      %v2393 = vunpack.c.l.b16 %v2346
      %v2394 = vunpack.c.h.b16 %v2346
      %v2395 = vunpack.c.l.b16 %v2347
      %v2396 = vunpack.c.h.b16 %v2347
      %v2397 = vunpack.c.l.b16 %v2348
      %v2398 = vunpack.c.h.b16 %v2348
      %v2399 = vunpack.c.l.b16 %v2349
      %v2400 = vunpack.c.h.b16 %v2349
      %v2401 = vunpack.c.l.b16 %v2350
      %v2402 = vunpack.c.h.b16 %v2350
      %v2403 = vunpack.c.l.b16 %v2351
      %v2404 = vunpack.c.h.b16 %v2351
      %v2405 = vunpack.c.l.b16 %v2352
      %v2406 = vunpack.c.h.b16 %v2352
      %v2407 = vunpack.c.l.b16 %v2353
      %v2408 = vunpack.c.h.b16 %v2353
      %v2409 = vunpack.c.l.b16 %v2354
      %v2410 = vunpack.c.h.b16 %v2354
      %v2411 = vunpack.c.l.b16 %v2355
      %v2412 = vunpack.c.h.b16 %v2355
      %v2413 = vpack.c.b16 %v2375, %v2375
      %v2414 = vpack.c.b16 %v2376, %v2376
      %v2415 = vpack.c.b16 %v2377, %v2377
      %v2416 = vpack.c.b16 %v2378, %v2378
      %v2417 = vpack.c.b16 %v2379, %v2379
      %v2418 = vpack.c.b16 %v2380, %v2380
      %v2419 = vpack.c.b16 %v2381, %v2381
      %v2420 = vpack.c.b16 %v2382, %v2382
      %v2421 = vpack.c.b16 %v2383, %v2383
      %v2422 = vpack.c.b16 %v2384, %v2384
      %v2423 = vpack.c.b16 %v2385, %v2385
      %v2424 = vpack.c.b16 %v2386, %v2386
      %v2425 = vpack.c.b16 %v2387, %v2387
      %v2426 = vpack.c.b16 %v2388, %v2388
      %v2427 = vpack.c.b16 %v2389, %v2389
      %v2428 = vpack.c.b16 %v2390, %v2390
      %v2429 = vpack.c.b16 %v2391, %v2391
      %v2430 = vpack.c.b16 %v2392, %v2392
      %v2431 = vpack.c.b16 %v2393, %v2393
      %v2432 = vpack.c.b16 %v2394, %v2394
      %v2433 = vpack.c.b16 %v2395, %v2395
      %v2434 = vpack.c.b16 %v2396, %v2396
      %v2435 = vpack.c.b16 %v2397, %v2397
      %v2436 = vpack.c.b16 %v2398, %v2398
      %v2437 = vpack.c.b16 %v2399, %v2399
      %v2438 = vpack.c.b16 %v2400, %v2400
      %v2439 = vpack.c.b16 %v2401, %v2401
      %v2440 = vpack.c.b16 %v2402, %v2402
      %v2441 = vpack.c.b16 %v2403, %v2403
      %v2442 = vpack.c.b16 %v2404, %v2404
      %v2443 = vpack.c.b16 %v2405, %v2405
      %v2444 = vpack.c.b16 %v2406, %v2406
      %v2445 = vpack.c.b16 %v2407, %v2407
      %v2446 = vpack.c.b16 %v2408, %v2408
      %v2447 = vpack.c.b16 %v2409, %v2409
      %v2448 = vpack.c.b16 %v2410, %v2410
      %v2449 = vpack.c.b16 %v2411, %v2411
      %v2450 = vpack.c.b16 %v2412, %v2412
      %vm2489 = vcmask 125952
      %2490 = vst.msk [vmem:[#allocation3] sm:$0xf] %vm2489, %v2413
      %2491 = vst.msk [vmem:[#allocation3 + $0x4] sm:$0xf] %vm2489, %v2414
      %2492 = vst.msk [vmem:[#allocation3 + $0x8] sm:$0xf] %vm2489, %v2415
      %2493 = vst.msk [vmem:[#allocation3 + $0xc] sm:$0xf] %vm2489, %v2416
      %2494 = vst.msk [vmem:[#allocation3 + $0x10] sm:$0xf] %vm2489, %v2417
      %2495 = vst.msk [vmem:[#allocation3 + $0x14] sm:$0xf] %vm2489, %v2418
      %2496 = vst.msk [vmem:[#allocation3 + $0x18] sm:$0xf] %vm2489, %v2419
      %2497 = vst.msk [vmem:[#allocation3 + $0x1c] sm:$0xf] %vm2489, %v2420
      %2498 = vst.msk [vmem:[#allocation3 + $0x20] sm:$0xf] %vm2489, %v2421
      %2499 = vst.msk [vmem:[#allocation3 + $0x24] sm:$0xf] %vm2489, %v2422
      %2500 = vst.msk [vmem:[#allocation3 + $0x28] sm:$0xf] %vm2489, %v2423
      %2501 = vst.msk [vmem:[#allocation3 + $0x2c] sm:$0xf] %vm2489, %v2424
      %2502 = vst.msk [vmem:[#allocation3 + $0x30] sm:$0xf] %vm2489, %v2425
      %2503 = vst.msk [vmem:[#allocation3 + $0x34] sm:$0xf] %vm2489, %v2426
      %2504 = vst.msk [vmem:[#allocation3 + $0x38] sm:$0xf] %vm2489, %v2427
      %2505 = vst.msk [vmem:[#allocation3 + $0x3c] sm:$0xf] %vm2489, %v2428
      %2506 = vst.msk [vmem:[#allocation3 + $0x40] sm:$0xf] %vm2489, %v2429
      %2507 = vst.msk [vmem:[#allocation3 + $0x44] sm:$0xf] %vm2489, %v2430
      %2508 = vst.msk [vmem:[#allocation3 + $0x48] sm:$0xf] %vm2489, %v2431
      %2509 = vst.msk [vmem:[#allocation3 + $0x4c] sm:$0xf] %vm2489, %v2432
      %2510 = vst.msk [vmem:[#allocation3 + $0x50] sm:$0xf] %vm2489, %v2433
      %2511 = vst.msk [vmem:[#allocation3 + $0x54] sm:$0xf] %vm2489, %v2434
      %2512 = vst.msk [vmem:[#allocation3 + $0x58] sm:$0xf] %vm2489, %v2435
      %2513 = vst.msk [vmem:[#allocation3 + $0x5c] sm:$0xf] %vm2489, %v2436
      %2514 = vst.msk [vmem:[#allocation3 + $0x60] sm:$0xf] %vm2489, %v2437
      %2515 = vst.msk [vmem:[#allocation3 + $0x64] sm:$0xf] %vm2489, %v2438
      %2516 = vst.msk [vmem:[#allocation3 + $0x68] sm:$0xf] %vm2489, %v2439
      %2517 = vst.msk [vmem:[#allocation3 + $0x6c] sm:$0xf] %vm2489, %v2440
      %2518 = vst.msk [vmem:[#allocation3 + $0x70] sm:$0xf] %vm2489, %v2441
      %2519 = vst.msk [vmem:[#allocation3 + $0x74] sm:$0xf] %vm2489, %v2442
      %2520 = vst.msk [vmem:[#allocation3 + $0x78] sm:$0xf] %vm2489, %v2443
      %2521 = vst.msk [vmem:[#allocation3 + $0x7c] sm:$0xf] %vm2489, %v2444
      %2522 = vst.msk [vmem:[#allocation3 + $0x80] sm:$0xf] %vm2489, %v2445
      %2523 = vst.msk [vmem:[#allocation3 + $0x84] sm:$0xf] %vm2489, %v2446
      %2524 = vst.msk [vmem:[#allocation3 + $0x88] sm:$0xf] %vm2489, %v2447
      %2525 = vst.msk [vmem:[#allocation3 + $0x8c] sm:$0xf] %vm2489, %v2448
      %2526 = vst.msk [vmem:[#allocation3 + $0x90] sm:$0xf] %vm2489, %v2449
      %2527 = vst.msk [vmem:[#allocation3 + $0x94] sm:$0xf] %vm2489, %v2450
      %v2528 = vld [vmem:[%s8] sm:$0xf]
      %v2529 = vld [vmem:[%s8 + $0x4] sm:$0x3]
      %v2530 = vld [vmem:[%s7] sm:$0x1]
      %v2531 = vld [vmem:[%s9] sm:$0x1]
      %v2532 = vld [vmem:[#allocation3] sm:$0xf]
      %v2533 = vld [vmem:[#allocation3 + $0x4] sm:$0xf]
      %v2534 = vld [vmem:[#allocation3 + $0x8] sm:$0xf]
      %v2535 = vld [vmem:[#allocation3 + $0xc] sm:$0xf]
      %v2536 = vld [vmem:[#allocation3 + $0x10] sm:$0xf]
      %v2537 = vld [vmem:[#allocation3 + $0x14] sm:$0xf]
      %v2538 = vld [vmem:[#allocation3 + $0x18] sm:$0xf]
      %v2539 = vld [vmem:[#allocation3 + $0x1c] sm:$0xf]
      %v2540 = vld [vmem:[#allocation3 + $0x20] sm:$0xf]
      %v2541 = vld [vmem:[#allocation3 + $0x24] sm:$0xf]
      %v2542 = vld [vmem:[#allocation3 + $0x28] sm:$0xf]
      %v2543 = vld [vmem:[#allocation3 + $0x2c] sm:$0xf]
      %v2544 = vld [vmem:[#allocation3 + $0x30] sm:$0xf]
      %v2545 = vld [vmem:[#allocation3 + $0x34] sm:$0xf]
      %v2546 = vld [vmem:[#allocation3 + $0x38] sm:$0xf]
      %v2547 = vld [vmem:[#allocation3 + $0x3c] sm:$0xf]
      %v2548 = vld [vmem:[#allocation3 + $0x40] sm:$0xf]
      %v2549 = vld [vmem:[#allocation3 + $0x44] sm:$0xf]
      %v2550 = vld [vmem:[#allocation3 + $0x48] sm:$0xf]
      %v2551 = vld [vmem:[#allocation3 + $0x4c] sm:$0xf]
      %v2552 = vld [vmem:[#allocation3 + $0x50] sm:$0xf]
      %v2553 = vld [vmem:[#allocation3 + $0x54] sm:$0xf]
      %v2554 = vld [vmem:[#allocation3 + $0x58] sm:$0xf]
      %v2555 = vld [vmem:[#allocation3 + $0x5c] sm:$0xf]
      %v2556 = vld [vmem:[#allocation3 + $0x60] sm:$0xf]
      %v2557 = vld [vmem:[#allocation3 + $0x64] sm:$0xf]
      %v2558 = vld [vmem:[#allocation3 + $0x68] sm:$0xf]
      %v2559 = vld [vmem:[#allocation3 + $0x6c] sm:$0xf]
      %v2560 = vld [vmem:[#allocation3 + $0x70] sm:$0xf]
      %v2561 = vld [vmem:[#allocation3 + $0x74] sm:$0xf]
      %v2562 = vld [vmem:[#allocation3 + $0x78] sm:$0xf]
      %v2563 = vld [vmem:[#allocation3 + $0x7c] sm:$0xf]
      %v2564 = vld [vmem:[#allocation3 + $0x80] sm:$0xf]
      %v2565 = vld [vmem:[#allocation3 + $0x84] sm:$0xf]
      %v2566 = vld [vmem:[%s6] sm:$0xf]
      %v2567 = vld [vmem:[%s6 + $0x4] sm:$0xf]
      %v2569 = vlaneseq
      %v2570 = vshrl.u32 %v2569, 7
      %v2571 = vsub.s32 0, %v2570
      %v2572 = vrot.slane %v2530, %v2571
      %v2608 = vunpack.c.l.b16 %v2532
      %v2609 = vunpack.c.l.b16 %v2533
      %v2610 = vunpack.c.l.b16 %v2534
      %v2611 = vunpack.c.l.b16 %v2535
      %v2612 = vunpack.c.l.b16 %v2536
      %v2613 = vunpack.c.l.b16 %v2537
      %v2614 = vunpack.c.l.b16 %v2538
      %v2615 = vunpack.c.l.b16 %v2539
      %v2616 = vunpack.c.l.b16 %v2540
      %v2617 = vunpack.c.l.b16 %v2541
      %v2618 = vunpack.c.l.b16 %v2542
      %v2619 = vunpack.c.l.b16 %v2543
      %v2620 = vunpack.c.l.b16 %v2544
      %v2621 = vunpack.c.l.b16 %v2545
      %v2622 = vunpack.c.l.b16 %v2546
      %v2623 = vunpack.c.l.b16 %v2547
      %v2624 = vunpack.c.l.b16 %v2548
      %v2625 = vunpack.c.l.b16 %v2549
      %v2626 = vunpack.c.l.b16 %v2550
      %v2627 = vunpack.c.l.b16 %v2551
      %v2628 = vunpack.c.l.b16 %v2552
      %v2629 = vunpack.c.l.b16 %v2553
      %v2630 = vunpack.c.l.b16 %v2554
      %v2631 = vunpack.c.l.b16 %v2555
      %v2632 = vunpack.c.l.b16 %v2556
      %v2633 = vunpack.c.l.b16 %v2557
      %v2634 = vunpack.c.l.b16 %v2558
      %v2635 = vunpack.c.l.b16 %v2559
      %v2636 = vunpack.c.l.b16 %v2560
      %v2637 = vunpack.c.l.b16 %v2561
      %v2638 = vunpack.c.l.b16 %v2562
      %v2639 = vunpack.c.l.b16 %v2563
      %v2640 = vunpack.c.l.b16 %v2564
      %v2641 = vunpack.c.l.b16 %v2565
      %v2642 = vpack.c.b16 %v2609, %v2608
      %v2643 = vpack.c.b16 %v2611, %v2610
      %v2644 = vpack.c.b16 %v2613, %v2612
      %v2645 = vpack.c.b16 %v2615, %v2614
      %v2646 = vpack.c.b16 %v2617, %v2616
      %v2647 = vpack.c.b16 %v2619, %v2618
      %v2648 = vpack.c.b16 %v2621, %v2620
      %v2649 = vpack.c.b16 %v2623, %v2622
      %v2650 = vpack.c.b16 %v2625, %v2624
      %v2651 = vpack.c.b16 %v2627, %v2626
      %v2652 = vpack.c.b16 %v2629, %v2628
      %v2653 = vpack.c.b16 %v2631, %v2630
      %v2654 = vpack.c.b16 %v2633, %v2632
      %v2655 = vpack.c.b16 %v2635, %v2634
      %v2656 = vpack.c.b16 %v2637, %v2636
      %v2657 = vpack.c.b16 %v2639, %v2638
      %v2658 = vpack.c.b16 %v2641, %v2640
      %v2661 = vunpack.c.l.b16 %v2566
      %v2662 = vunpack.c.l.b16 %v2567
      %v2663 = vpack.c.b16 %v2662, %v2661
      %vm2665 = vcmask 130048
      %v2667 = vsel %vm2665, %v2642, 0
      %v2670 = vsel %vm2665, %v2643, 0
      %v2673 = vsel %vm2665, %v2644, 0
      %v2676 = vsel %vm2665, %v2645, 0
      %v2679 = vsel %vm2665, %v2646, 0
      %v2682 = vsel %vm2665, %v2647, 0
      %v2685 = vsel %vm2665, %v2648, 0
      %v2688 = vsel %vm2665, %v2649, 0
      %v2691 = vsel %vm2665, %v2650, 0
      %v2694 = vsel %vm2665, %v2651, 0
      %v2697 = vsel %vm2665, %v2652, 0
      %v2700 = vsel %vm2665, %v2653, 0
      %v2703 = vsel %vm2665, %v2654, 0
      %v2706 = vsel %vm2665, %v2655, 0
      %v2709 = vsel %vm2665, %v2656, 0
      %v2712 = vsel %vm2665, %v2657, 0
      %v2715 = vsel %vm2665, %v2658, 0
      %2717 = vmatprep.subr.bf16.mxu0 0
      %2718 = vmatpush1.bf16.msra.mxu0 0
      %2719 = vmatprep.subr.bf16.mxu0 0
      %2720 = vmatpush1.bf16.msra.mxu0 0
      %2721 = vmatprep.subr.bf16.mxu0 0
      %2722 = vmatpush1.bf16.msra.mxu0 0
      %2723 = vmatprep.subr.bf16.mxu0 0
      %2724 = vmatpush1.bf16.msra.mxu0 0
      %2725 = vmatprep.subr.bf16.mxu0 0
      %2726 = vmatpush1.bf16.msra.mxu0 0
      %2727 = vmatprep.subr.bf16.mxu0 0
      %2728 = vmatpush1.bf16.msra.mxu0 0
      %2729 = vmatprep.subr.bf16.mxu0 0
      %2730 = vmatpush1.bf16.msra.mxu0 0
      %2731 = vmatprep.subr.bf16.mxu0 0
      %2732 = vmatpush1.bf16.msra.mxu0 %v2663
      %2733 = vmatprep.subr.bf16.mxu0 0
      %2734 = vmatpush2.bf16.msra.mxu0 0
      %2735 = vmatprep.subr.bf16.mxu0 0
      %2736 = vmatpush2.bf16.msra.mxu0 0
      %2737 = vmatprep.subr.bf16.mxu0 0
      %2738 = vmatpush2.bf16.msra.mxu0 0
      %2739 = vmatprep.subr.bf16.mxu0 0
      %2740 = vmatpush2.bf16.msra.mxu0 0
      %2741 = vmatprep.subr.bf16.mxu0 0
      %2742 = vmatpush2.bf16.msra.mxu0 0
      %2743 = vmatprep.subr.bf16.mxu0 0
      %2744 = vmatpush2.bf16.msra.mxu0 0
      %2745 = vmatprep.subr.bf16.mxu0 0
      %2746 = vmatpush2.bf16.msra.mxu0 0
      %2747 = vmatprep.subr.bf16.mxu0 0
      %2748 = vmatpush2.bf16.msra.mxu0 0
      %2749 = vmatprep.mubr.bf16.mxu0 0
      %2750 = vmatmul.mubr.bf16.gmra.mxu0 %v2667
      %v2751 = vpop.f32.mrf.mxu0
      %v2752 = vadd.f32 %v2572, %v2751
      %v2753 = vpop.f32.mrf.mxu0
      %v2754 = vpop.f32.mrf.mxu0
      %v2755 = vadd.f32 %v2572, %v2754
      %v2756 = vpop.f32.mrf.mxu0
      %2757 = vmatprep.mubr.bf16.mxu0 0
      %2758 = vmatmul.mubr.bf16.gmra.mxu0 %v2670
      %v2759 = vpop.f32.mrf.mxu0
      %v2760 = vadd.f32 %v2572, %v2759
      %v2761 = vpop.f32.mrf.mxu0
      %v2762 = vpop.f32.mrf.mxu0
      %v2763 = vadd.f32 %v2572, %v2762
      %v2764 = vpop.f32.mrf.mxu0
      %2765 = vmatprep.mubr.bf16.mxu0 0
      %2766 = vmatmul.mubr.bf16.gmra.mxu0 %v2673
      %v2767 = vpop.f32.mrf.mxu0
      %v2768 = vadd.f32 %v2572, %v2767
      %v2769 = vpop.f32.mrf.mxu0
      %v2770 = vpop.f32.mrf.mxu0
      %v2771 = vadd.f32 %v2572, %v2770
      %v2772 = vpop.f32.mrf.mxu0
      %2773 = vmatprep.mubr.bf16.mxu0 0
      %2774 = vmatmul.mubr.bf16.gmra.mxu0 %v2676
      %v2775 = vpop.f32.mrf.mxu0
      %v2776 = vadd.f32 %v2572, %v2775
      %v2777 = vpop.f32.mrf.mxu0
      %v2778 = vpop.f32.mrf.mxu0
      %v2779 = vadd.f32 %v2572, %v2778
      %v2780 = vpop.f32.mrf.mxu0
      %2781 = vmatprep.mubr.bf16.mxu0 0
      %2782 = vmatmul.mubr.bf16.gmra.mxu0 %v2679
      %v2783 = vpop.f32.mrf.mxu0
      %v2784 = vadd.f32 %v2572, %v2783
      %v2785 = vpop.f32.mrf.mxu0
      %v2786 = vpop.f32.mrf.mxu0
      %v2787 = vadd.f32 %v2572, %v2786
      %v2788 = vpop.f32.mrf.mxu0
      %2789 = vmatprep.mubr.bf16.mxu0 0
      %2790 = vmatmul.mubr.bf16.gmra.mxu0 %v2682
      %v2791 = vpop.f32.mrf.mxu0
      %v2792 = vadd.f32 %v2572, %v2791
      %v2793 = vpop.f32.mrf.mxu0
      %v2794 = vpop.f32.mrf.mxu0
      %v2795 = vadd.f32 %v2572, %v2794
      %v2796 = vpop.f32.mrf.mxu0
      %2797 = vmatprep.mubr.bf16.mxu0 0
      %2798 = vmatmul.mubr.bf16.gmra.mxu0 %v2685
      %v2799 = vpop.f32.mrf.mxu0
      %v2800 = vadd.f32 %v2572, %v2799
      %v2801 = vpop.f32.mrf.mxu0
      %v2802 = vpop.f32.mrf.mxu0
      %v2803 = vadd.f32 %v2572, %v2802
      %v2804 = vpop.f32.mrf.mxu0
      %2805 = vmatprep.mubr.bf16.mxu0 0
      %2806 = vmatmul.mubr.bf16.gmra.mxu0 %v2688
      %v2807 = vpop.f32.mrf.mxu0
      %v2808 = vadd.f32 %v2572, %v2807
      %v2809 = vpop.f32.mrf.mxu0
      %v2810 = vpop.f32.mrf.mxu0
      %v2811 = vadd.f32 %v2572, %v2810
      %v2812 = vpop.f32.mrf.mxu0
      %2813 = vmatprep.mubr.bf16.mxu0 0
      %2814 = vmatmul.mubr.bf16.gmra.mxu0 %v2691
      %v2815 = vpop.f32.mrf.mxu0
      %v2816 = vadd.f32 %v2572, %v2815
      %v2817 = vpop.f32.mrf.mxu0
      %v2818 = vpop.f32.mrf.mxu0
      %v2819 = vadd.f32 %v2572, %v2818
      %v2820 = vpop.f32.mrf.mxu0
      %2821 = vmatprep.mubr.bf16.mxu0 0
      %2822 = vmatmul.mubr.bf16.gmra.mxu0 %v2694
      %v2823 = vpop.f32.mrf.mxu0
      %v2824 = vadd.f32 %v2572, %v2823
      %v2825 = vpop.f32.mrf.mxu0
      %v2826 = vpop.f32.mrf.mxu0
      %v2827 = vadd.f32 %v2572, %v2826
      %v2828 = vpop.f32.mrf.mxu0
      %2829 = vmatprep.mubr.bf16.mxu0 0
      %2830 = vmatmul.mubr.bf16.gmra.mxu0 %v2697
      %v2831 = vpop.f32.mrf.mxu0
      %v2832 = vadd.f32 %v2572, %v2831
      %v2833 = vpop.f32.mrf.mxu0
      %v2834 = vpop.f32.mrf.mxu0
      %v2835 = vadd.f32 %v2572, %v2834
      %v2836 = vpop.f32.mrf.mxu0
      %2837 = vmatprep.mubr.bf16.mxu0 0
      %2838 = vmatmul.mubr.bf16.gmra.mxu0 %v2700
      %v2839 = vpop.f32.mrf.mxu0
      %v2840 = vadd.f32 %v2572, %v2839
      %v2841 = vpop.f32.mrf.mxu0
      %v2842 = vpop.f32.mrf.mxu0
      %v2843 = vadd.f32 %v2572, %v2842
      %v2844 = vpop.f32.mrf.mxu0
      %2845 = vmatprep.mubr.bf16.mxu0 0
      %2846 = vmatmul.mubr.bf16.gmra.mxu0 %v2703
      %v2847 = vpop.f32.mrf.mxu0
      %v2848 = vadd.f32 %v2572, %v2847
      %v2849 = vpop.f32.mrf.mxu0
      %v2850 = vpop.f32.mrf.mxu0
      %v2851 = vadd.f32 %v2572, %v2850
      %v2852 = vpop.f32.mrf.mxu0
      %2853 = vmatprep.mubr.bf16.mxu0 0
      %2854 = vmatmul.mubr.bf16.gmra.mxu0 %v2706
      %v2855 = vpop.f32.mrf.mxu0
      %v2856 = vadd.f32 %v2572, %v2855
      %v2857 = vpop.f32.mrf.mxu0
      %v2858 = vpop.f32.mrf.mxu0
      %v2859 = vadd.f32 %v2572, %v2858
      %v2860 = vpop.f32.mrf.mxu0
      %2861 = vmatprep.mubr.bf16.mxu0 0
      %2862 = vmatmul.mubr.bf16.gmra.mxu0 %v2709
      %v2863 = vpop.f32.mrf.mxu0
      %v2864 = vadd.f32 %v2572, %v2863
      %v2865 = vpop.f32.mrf.mxu0
      %v2866 = vpop.f32.mrf.mxu0
      %v2867 = vadd.f32 %v2572, %v2866
      %v2868 = vpop.f32.mrf.mxu0
      %2869 = vmatprep.mubr.bf16.mxu0 0
      %2870 = vmatmul.mubr.bf16.gmra.mxu0 %v2712
      %v2871 = vpop.f32.mrf.mxu0
      %v2872 = vadd.f32 %v2572, %v2871
      %v2873 = vpop.f32.mrf.mxu0
      %v2874 = vpop.f32.mrf.mxu0
      %v2875 = vadd.f32 %v2572, %v2874
      %v2876 = vpop.f32.mrf.mxu0
      %2877 = vmatprep.mubr.bf16.mxu0 0
      %2878 = vmatmul.mubr.bf16.gmra.mxu0 %v2715
      %v2879 = vpop.f32.mrf.mxu0
      %v2880 = vadd.f32 %v2572, %v2879
      %v2881 = vpop.f32.mrf.mxu0
      %v2882 = vpop.f32.mrf.mxu0
      %v2883 = vadd.f32 %v2572, %v2882
      %v2884 = vpop.f32.mrf.mxu0
      %2885 = vdwg.mxu0
      %vm2886 = vcmp.gt.f32.partialorder %v2752, 0.0
      %vm2887 = vcmp.gt.f32.partialorder %v2755, 0.0
      %vm2888 = vcmp.gt.f32.partialorder %v2760, 0.0
      %vm2889 = vcmp.gt.f32.partialorder %v2763, 0.0
      %vm2890 = vcmp.gt.f32.partialorder %v2768, 0.0
      %vm2891 = vcmp.gt.f32.partialorder %v2771, 0.0
      %vm2892 = vcmp.gt.f32.partialorder %v2776, 0.0
      %vm2893 = vcmp.gt.f32.partialorder %v2779, 0.0
      %vm2894 = vcmp.gt.f32.partialorder %v2784, 0.0
      %vm2895 = vcmp.gt.f32.partialorder %v2787, 0.0
      %vm2896 = vcmp.gt.f32.partialorder %v2792, 0.0
      %vm2897 = vcmp.gt.f32.partialorder %v2795, 0.0
      %vm2898 = vcmp.gt.f32.partialorder %v2800, 0.0
      %vm2899 = vcmp.gt.f32.partialorder %v2803, 0.0
      %vm2900 = vcmp.gt.f32.partialorder %v2808, 0.0
      %vm2901 = vcmp.gt.f32.partialorder %v2811, 0.0
      %vm2902 = vcmp.gt.f32.partialorder %v2816, 0.0
      %vm2903 = vcmp.gt.f32.partialorder %v2819, 0.0
      %vm2904 = vcmp.gt.f32.partialorder %v2824, 0.0
      %vm2905 = vcmp.gt.f32.partialorder %v2827, 0.0
      %vm2906 = vcmp.gt.f32.partialorder %v2832, 0.0
      %vm2907 = vcmp.gt.f32.partialorder %v2835, 0.0
      %vm2908 = vcmp.gt.f32.partialorder %v2840, 0.0
      %vm2909 = vcmp.gt.f32.partialorder %v2843, 0.0
      %vm2910 = vcmp.gt.f32.partialorder %v2848, 0.0
      %vm2911 = vcmp.gt.f32.partialorder %v2851, 0.0
      %vm2912 = vcmp.gt.f32.partialorder %v2856, 0.0
      %vm2913 = vcmp.gt.f32.partialorder %v2859, 0.0
      %vm2914 = vcmp.gt.f32.partialorder %v2864, 0.0
      %vm2915 = vcmp.gt.f32.partialorder %v2867, 0.0
      %vm2916 = vcmp.gt.f32.partialorder %v2872, 0.0
      %vm2917 = vcmp.gt.f32.partialorder %v2875, 0.0
      %vm2918 = vcmp.gt.f32.partialorder %v2880, 0.0
      %vm2919 = vcmp.gt.f32.partialorder %v2883, 0.0
      %v2920 = vmul.f32 %v2752, -0.76766074
      %v2921 = vmul.f32 %v2755, -0.76766074
      %v2922 = vmul.f32 %v2760, -0.76766074
      %v2923 = vmul.f32 %v2763, -0.76766074
      %v2924 = vmul.f32 %v2768, -0.76766074
      %v2925 = vmul.f32 %v2771, -0.76766074
      %v2926 = vmul.f32 %v2776, -0.76766074
      %v2927 = vmul.f32 %v2779, -0.76766074
      %v2928 = vmul.f32 %v2784, -0.76766074
      %v2929 = vmul.f32 %v2787, -0.76766074
      %v2930 = vmul.f32 %v2792, -0.76766074
      %v2931 = vmul.f32 %v2795, -0.76766074
      %v2932 = vmul.f32 %v2800, -0.76766074
      %v2933 = vmul.f32 %v2803, -0.76766074
      %v2934 = vmul.f32 %v2808, -0.76766074
      %v2935 = vmul.f32 %v2811, -0.76766074
      %v2936 = vmul.f32 %v2816, -0.76766074
      %v2937 = vmul.f32 %v2819, -0.76766074
      %v2938 = vmul.f32 %v2824, -0.76766074
      %v2939 = vmul.f32 %v2827, -0.76766074
      %v2940 = vmul.f32 %v2832, -0.76766074
      %v2941 = vmul.f32 %v2835, -0.76766074
      %v2942 = vmul.f32 %v2840, -0.76766074
      %v2943 = vmul.f32 %v2843, -0.76766074
      %v2944 = vmul.f32 %v2848, -0.76766074
      %v2945 = vmul.f32 %v2851, -0.76766074
      %v2946 = vmul.f32 %v2856, -0.76766074
      %v2947 = vmul.f32 %v2859, -0.76766074
      %v2948 = vmul.f32 %v2864, -0.76766074
      %v2949 = vmul.f32 %v2867, -0.76766074
      %v2950 = vmul.f32 %v2872, -0.76766074
      %v2951 = vmul.f32 %v2875, -0.76766074
      %v2952 = vmul.f32 %v2880, -0.76766074
      %v2953 = vmul.f32 %v2883, -0.76766074
      %v2954 = vsel %vm2886, %v2752, %v2920
      %v2955 = vsel %vm2887, %v2755, %v2921
      %v2956 = vsel %vm2888, %v2760, %v2922
      %v2957 = vsel %vm2889, %v2763, %v2923
      %v2958 = vsel %vm2890, %v2768, %v2924
      %v2959 = vsel %vm2891, %v2771, %v2925
      %v2960 = vsel %vm2892, %v2776, %v2926
      %v2961 = vsel %vm2893, %v2779, %v2927
      %v2962 = vsel %vm2894, %v2784, %v2928
      %v2963 = vsel %vm2895, %v2787, %v2929
      %v2964 = vsel %vm2896, %v2792, %v2930
      %v2965 = vsel %vm2897, %v2795, %v2931
      %v2966 = vsel %vm2898, %v2800, %v2932
      %v2967 = vsel %vm2899, %v2803, %v2933
      %v2968 = vsel %vm2900, %v2808, %v2934
      %v2969 = vsel %vm2901, %v2811, %v2935
      %v2970 = vsel %vm2902, %v2816, %v2936
      %v2971 = vsel %vm2903, %v2819, %v2937
      %v2972 = vsel %vm2904, %v2824, %v2938
      %v2973 = vsel %vm2905, %v2827, %v2939
      %v2974 = vsel %vm2906, %v2832, %v2940
      %v2975 = vsel %vm2907, %v2835, %v2941
      %v2976 = vsel %vm2908, %v2840, %v2942
      %v2977 = vsel %vm2909, %v2843, %v2943
      %v2978 = vsel %vm2910, %v2848, %v2944
      %v2979 = vsel %vm2911, %v2851, %v2945
      %v2980 = vsel %vm2912, %v2856, %v2946
      %v2981 = vsel %vm2913, %v2859, %v2947
      %v2982 = vsel %vm2914, %v2864, %v2948
      %v2983 = vsel %vm2915, %v2867, %v2949
      %v2984 = vsel %vm2916, %v2872, %v2950
      %v2985 = vsel %vm2917, %v2875, %v2951
      %v2986 = vsel %vm2918, %v2880, %v2952
      %v2987 = vsel %vm2919, %v2883, %v2953
      %v2988 = vpack.c.bf16 %v2955, %v2954
      %v2989 = vpack.c.bf16 %v2957, %v2956
      %v2990 = vpack.c.bf16 %v2959, %v2958
      %v2991 = vpack.c.bf16 %v2961, %v2960
      %v2992 = vpack.c.bf16 %v2963, %v2962
      %v2993 = vpack.c.bf16 %v2965, %v2964
      %v2994 = vpack.c.bf16 %v2967, %v2966
      %v2995 = vpack.c.bf16 %v2969, %v2968
      %v2996 = vpack.c.bf16 %v2971, %v2970
      %v2997 = vpack.c.bf16 %v2973, %v2972
      %v2998 = vpack.c.bf16 %v2975, %v2974
      %v2999 = vpack.c.bf16 %v2977, %v2976
      %v3000 = vpack.c.bf16 %v2979, %v2978
      %v3001 = vpack.c.bf16 %v2981, %v2980
      %v3002 = vpack.c.bf16 %v2983, %v2982
      %v3003 = vpack.c.bf16 %v2985, %v2984
      %v3004 = vpack.c.bf16 %v2987, %v2986
      %v3006 = vlaneseq
      %v3007 = vshrl.u32 %v3006, 7
      %v3008 = vsub.s32 0, %v3007
      %v3009 = vrot.slane %v2531, %v3008
      %v3013 = vunpack.c.l.b16 %v2528
      %v3014 = vunpack.c.l.b16 %v2529
      %v3015 = vpack.c.b16 %v3014, %v3013
      %vm3016 = vcmask 97280
      %v3018 = vsel %vm3016, %v2988, 0
      %v3021 = vsel %vm3016, %v2989, 0
      %v3024 = vsel %vm3016, %v2990, 0
      %v3027 = vsel %vm3016, %v2991, 0
      %v3030 = vsel %vm3016, %v2992, 0
      %v3033 = vsel %vm3016, %v2993, 0
      %v3036 = vsel %vm3016, %v2994, 0
      %v3039 = vsel %vm3016, %v2995, 0
      %v3042 = vsel %vm3016, %v2996, 0
      %v3045 = vsel %vm3016, %v2997, 0
      %v3048 = vsel %vm3016, %v2998, 0
      %v3051 = vsel %vm3016, %v2999, 0
      %v3054 = vsel %vm3016, %v3000, 0
      %v3057 = vsel %vm3016, %v3001, 0
      %v3060 = vsel %vm3016, %v3002, 0
      %v3063 = vsel %vm3016, %v3003, 0
      %v3066 = vsel %vm3016, %v3004, 0
      %vm3068 = vcmask 1045504
      %v3070 = vsel %vm3068, %v3015, 0
      %3072 = vmatprep.subr.bf16.mxu0 0
      %3073 = vmatpush1.bf16.msra.mxu0 0
      %3074 = vmatprep.subr.bf16.mxu0 0
      %3075 = vmatpush1.bf16.msra.mxu0 0
      %3076 = vmatprep.subr.bf16.mxu0 0
      %3077 = vmatpush1.bf16.msra.mxu0 0
      %3078 = vmatprep.subr.bf16.mxu0 0
      %3079 = vmatpush1.bf16.msra.mxu0 0
      %3080 = vmatprep.subr.bf16.mxu0 0
      %3081 = vmatpush1.bf16.msra.mxu0 0
      %3082 = vmatprep.subr.bf16.mxu0 0
      %3083 = vmatpush1.bf16.msra.mxu0 0
      %3084 = vmatprep.subr.bf16.mxu0 0
      %3085 = vmatpush1.bf16.msra.mxu0 0
      %3086 = vmatprep.subr.bf16.mxu0 0
      %3087 = vmatpush1.bf16.msra.mxu0 %v3070
      %3088 = vmatprep.subr.bf16.mxu0 0
      %3089 = vmatpush2.bf16.msra.mxu0 0
      %3090 = vmatprep.subr.bf16.mxu0 0
      %3091 = vmatpush2.bf16.msra.mxu0 0
      %3092 = vmatprep.subr.bf16.mxu0 0
      %3093 = vmatpush2.bf16.msra.mxu0 0
      %3094 = vmatprep.subr.bf16.mxu0 0
      %3095 = vmatpush2.bf16.msra.mxu0 0
      %3096 = vmatprep.subr.bf16.mxu0 0
      %3097 = vmatpush2.bf16.msra.mxu0 0
      %3098 = vmatprep.subr.bf16.mxu0 0
      %3099 = vmatpush2.bf16.msra.mxu0 0
      %3100 = vmatprep.subr.bf16.mxu0 0
      %3101 = vmatpush2.bf16.msra.mxu0 0
      %3102 = vmatprep.subr.bf16.mxu0 0
      %3103 = vmatpush2.bf16.msra.mxu0 0
      %3104 = vmatprep.mubr.bf16.mxu0 0
      %3105 = vmatmul.mubr.bf16.gmra.mxu0 %v3018
      %v3106 = vpop.f32.mrf.mxu0
      %v3107 = vadd.f32 %v3009, %v3106
      %v3108 = vpop.f32.mrf.mxu0
      %v3109 = vpop.f32.mrf.mxu0
      %v3110 = vadd.f32 %v3009, %v3109
      %v3111 = vpop.f32.mrf.mxu0
      %3112 = vmatprep.mubr.bf16.mxu0 0
      %3113 = vmatmul.mubr.bf16.gmra.mxu0 %v3021
      %v3114 = vpop.f32.mrf.mxu0
      %v3115 = vadd.f32 %v3009, %v3114
      %v3116 = vpop.f32.mrf.mxu0
      %v3117 = vpop.f32.mrf.mxu0
      %v3118 = vadd.f32 %v3009, %v3117
      %v3119 = vpop.f32.mrf.mxu0
      %3120 = vmatprep.mubr.bf16.mxu0 0
      %3121 = vmatmul.mubr.bf16.gmra.mxu0 %v3024
      %v3122 = vpop.f32.mrf.mxu0
      %v3123 = vadd.f32 %v3009, %v3122
      %v3124 = vpop.f32.mrf.mxu0
      %v3125 = vpop.f32.mrf.mxu0
      %v3126 = vadd.f32 %v3009, %v3125
      %v3127 = vpop.f32.mrf.mxu0
      %3128 = vmatprep.mubr.bf16.mxu0 0
      %3129 = vmatmul.mubr.bf16.gmra.mxu0 %v3027
      %v3130 = vpop.f32.mrf.mxu0
      %v3131 = vadd.f32 %v3009, %v3130
      %v3132 = vpop.f32.mrf.mxu0
      %v3133 = vpop.f32.mrf.mxu0
      %v3134 = vadd.f32 %v3009, %v3133
      %v3135 = vpop.f32.mrf.mxu0
      %3136 = vmatprep.mubr.bf16.mxu0 0
      %3137 = vmatmul.mubr.bf16.gmra.mxu0 %v3030
      %v3138 = vpop.f32.mrf.mxu0
      %v3139 = vadd.f32 %v3009, %v3138
      %v3140 = vpop.f32.mrf.mxu0
      %v3141 = vpop.f32.mrf.mxu0
      %v3142 = vadd.f32 %v3009, %v3141
      %v3143 = vpop.f32.mrf.mxu0
      %3144 = vmatprep.mubr.bf16.mxu0 0
      %3145 = vmatmul.mubr.bf16.gmra.mxu0 %v3033
      %v3146 = vpop.f32.mrf.mxu0
      %v3147 = vadd.f32 %v3009, %v3146
      %v3148 = vpop.f32.mrf.mxu0
      %v3149 = vpop.f32.mrf.mxu0
      %v3150 = vadd.f32 %v3009, %v3149
      %v3151 = vpop.f32.mrf.mxu0
      %3152 = vmatprep.mubr.bf16.mxu0 0
      %3153 = vmatmul.mubr.bf16.gmra.mxu0 %v3036
      %v3154 = vpop.f32.mrf.mxu0
      %v3155 = vadd.f32 %v3009, %v3154
      %v3156 = vpop.f32.mrf.mxu0
      %v3157 = vpop.f32.mrf.mxu0
      %v3158 = vadd.f32 %v3009, %v3157
      %v3159 = vpop.f32.mrf.mxu0
      %3160 = vmatprep.mubr.bf16.mxu0 0
      %3161 = vmatmul.mubr.bf16.gmra.mxu0 %v3039
      %v3162 = vpop.f32.mrf.mxu0
      %v3163 = vadd.f32 %v3009, %v3162
      %v3164 = vpop.f32.mrf.mxu0
      %v3165 = vpop.f32.mrf.mxu0
      %v3166 = vadd.f32 %v3009, %v3165
      %v3167 = vpop.f32.mrf.mxu0
      %3168 = vmatprep.mubr.bf16.mxu0 0
      %3169 = vmatmul.mubr.bf16.gmra.mxu0 %v3042
      %v3170 = vpop.f32.mrf.mxu0
      %v3171 = vadd.f32 %v3009, %v3170
      %v3172 = vpop.f32.mrf.mxu0
      %v3173 = vpop.f32.mrf.mxu0
      %v3174 = vadd.f32 %v3009, %v3173
      %v3175 = vpop.f32.mrf.mxu0
      %3176 = vmatprep.mubr.bf16.mxu0 0
      %3177 = vmatmul.mubr.bf16.gmra.mxu0 %v3045
      %v3178 = vpop.f32.mrf.mxu0
      %v3179 = vadd.f32 %v3009, %v3178
      %v3180 = vpop.f32.mrf.mxu0
      %v3181 = vpop.f32.mrf.mxu0
      %v3182 = vadd.f32 %v3009, %v3181
      %v3183 = vpop.f32.mrf.mxu0
      %3184 = vmatprep.mubr.bf16.mxu0 0
      %3185 = vmatmul.mubr.bf16.gmra.mxu0 %v3048
      %v3186 = vpop.f32.mrf.mxu0
      %v3187 = vadd.f32 %v3009, %v3186
      %v3188 = vpop.f32.mrf.mxu0
      %v3189 = vpop.f32.mrf.mxu0
      %v3190 = vadd.f32 %v3009, %v3189
      %v3191 = vpop.f32.mrf.mxu0
      %3192 = vmatprep.mubr.bf16.mxu0 0
      %3193 = vmatmul.mubr.bf16.gmra.mxu0 %v3051
      %v3194 = vpop.f32.mrf.mxu0
      %v3195 = vadd.f32 %v3009, %v3194
      %v3196 = vpop.f32.mrf.mxu0
      %v3197 = vpop.f32.mrf.mxu0
      %v3198 = vadd.f32 %v3009, %v3197
      %v3199 = vpop.f32.mrf.mxu0
      %3200 = vmatprep.mubr.bf16.mxu0 0
      %3201 = vmatmul.mubr.bf16.gmra.mxu0 %v3054
      %v3202 = vpop.f32.mrf.mxu0
      %v3203 = vadd.f32 %v3009, %v3202
      %v3204 = vpop.f32.mrf.mxu0
      %v3205 = vpop.f32.mrf.mxu0
      %v3206 = vadd.f32 %v3009, %v3205
      %v3207 = vpop.f32.mrf.mxu0
      %3208 = vmatprep.mubr.bf16.mxu0 0
      %3209 = vmatmul.mubr.bf16.gmra.mxu0 %v3057
      %v3210 = vpop.f32.mrf.mxu0
      %v3211 = vadd.f32 %v3009, %v3210
      %v3212 = vpop.f32.mrf.mxu0
      %v3213 = vpop.f32.mrf.mxu0
      %v3214 = vadd.f32 %v3009, %v3213
      %v3215 = vpop.f32.mrf.mxu0
      %3216 = vmatprep.mubr.bf16.mxu0 0
      %3217 = vmatmul.mubr.bf16.gmra.mxu0 %v3060
      %v3218 = vpop.f32.mrf.mxu0
      %v3219 = vadd.f32 %v3009, %v3218
      %v3220 = vpop.f32.mrf.mxu0
      %v3221 = vpop.f32.mrf.mxu0
      %v3222 = vadd.f32 %v3009, %v3221
      %v3223 = vpop.f32.mrf.mxu0
      %3224 = vmatprep.mubr.bf16.mxu0 0
      %3225 = vmatmul.mubr.bf16.gmra.mxu0 %v3063
      %v3226 = vpop.f32.mrf.mxu0
      %v3227 = vadd.f32 %v3009, %v3226
      %v3228 = vpop.f32.mrf.mxu0
      %v3229 = vpop.f32.mrf.mxu0
      %v3230 = vadd.f32 %v3009, %v3229
      %v3231 = vpop.f32.mrf.mxu0
      %3232 = vmatprep.mubr.bf16.mxu0 0
      %3233 = vmatmul.mubr.bf16.gmra.mxu0 %v3066
      %v3234 = vpop.f32.mrf.mxu0
      %v3235 = vadd.f32 %v3009, %v3234
      %v3236 = vpop.f32.mrf.mxu0
      %v3237 = vpop.f32.mrf.mxu0
      %v3238 = vadd.f32 %v3009, %v3237
      %v3239 = vpop.f32.mrf.mxu0
      %3240 = vdwg.mxu0
      %vm3241 = vcmp.gt.f32.partialorder %v3107, 0.0
      %vm3242 = vcmp.gt.f32.partialorder %v3110, 0.0
      %vm3243 = vcmp.gt.f32.partialorder %v3115, 0.0
      %vm3244 = vcmp.gt.f32.partialorder %v3118, 0.0
      %vm3245 = vcmp.gt.f32.partialorder %v3123, 0.0
      %vm3246 = vcmp.gt.f32.partialorder %v3126, 0.0
      %vm3247 = vcmp.gt.f32.partialorder %v3131, 0.0
      %vm3248 = vcmp.gt.f32.partialorder %v3134, 0.0
      %vm3249 = vcmp.gt.f32.partialorder %v3139, 0.0
      %vm3250 = vcmp.gt.f32.partialorder %v3142, 0.0
      %vm3251 = vcmp.gt.f32.partialorder %v3147, 0.0
      %vm3252 = vcmp.gt.f32.partialorder %v3150, 0.0
      %vm3253 = vcmp.gt.f32.partialorder %v3155, 0.0
      %vm3254 = vcmp.gt.f32.partialorder %v3158, 0.0
      %vm3255 = vcmp.gt.f32.partialorder %v3163, 0.0
      %vm3256 = vcmp.gt.f32.partialorder %v3166, 0.0
      %vm3257 = vcmp.gt.f32.partialorder %v3171, 0.0
      %vm3258 = vcmp.gt.f32.partialorder %v3174, 0.0
      %vm3259 = vcmp.gt.f32.partialorder %v3179, 0.0
      %vm3260 = vcmp.gt.f32.partialorder %v3182, 0.0
      %vm3261 = vcmp.gt.f32.partialorder %v3187, 0.0
      %vm3262 = vcmp.gt.f32.partialorder %v3190, 0.0
      %vm3263 = vcmp.gt.f32.partialorder %v3195, 0.0
      %vm3264 = vcmp.gt.f32.partialorder %v3198, 0.0
      %vm3265 = vcmp.gt.f32.partialorder %v3203, 0.0
      %vm3266 = vcmp.gt.f32.partialorder %v3206, 0.0
      %vm3267 = vcmp.gt.f32.partialorder %v3211, 0.0
      %vm3268 = vcmp.gt.f32.partialorder %v3214, 0.0
      %vm3269 = vcmp.gt.f32.partialorder %v3219, 0.0
      %vm3270 = vcmp.gt.f32.partialorder %v3222, 0.0
      %vm3271 = vcmp.gt.f32.partialorder %v3227, 0.0
      %vm3272 = vcmp.gt.f32.partialorder %v3230, 0.0
      %vm3273 = vcmp.gt.f32.partialorder %v3235, 0.0
      %vm3274 = vcmp.gt.f32.partialorder %v3238, 0.0
      %v3275 = vmul.f32 %v3107, -0.76766074
      %v3276 = vmul.f32 %v3110, -0.76766074
      %v3277 = vmul.f32 %v3115, -0.76766074
      %v3278 = vmul.f32 %v3118, -0.76766074
      %v3279 = vmul.f32 %v3123, -0.76766074
      %v3280 = vmul.f32 %v3126, -0.76766074
      %v3281 = vmul.f32 %v3131, -0.76766074
      %v3282 = vmul.f32 %v3134, -0.76766074
      %v3283 = vmul.f32 %v3139, -0.76766074
      %v3284 = vmul.f32 %v3142, -0.76766074
      %v3285 = vmul.f32 %v3147, -0.76766074
      %v3286 = vmul.f32 %v3150, -0.76766074
      %v3287 = vmul.f32 %v3155, -0.76766074
      %v3288 = vmul.f32 %v3158, -0.76766074
      %v3289 = vmul.f32 %v3163, -0.76766074
      %v3290 = vmul.f32 %v3166, -0.76766074
      %v3291 = vmul.f32 %v3171, -0.76766074
      %v3292 = vmul.f32 %v3174, -0.76766074
      %v3293 = vmul.f32 %v3179, -0.76766074
      %v3294 = vmul.f32 %v3182, -0.76766074
      %v3295 = vmul.f32 %v3187, -0.76766074
      %v3296 = vmul.f32 %v3190, -0.76766074
      %v3297 = vmul.f32 %v3195, -0.76766074
      %v3298 = vmul.f32 %v3198, -0.76766074
      %v3299 = vmul.f32 %v3203, -0.76766074
      %v3300 = vmul.f32 %v3206, -0.76766074
      %v3301 = vmul.f32 %v3211, -0.76766074
      %v3302 = vmul.f32 %v3214, -0.76766074
      %v3303 = vmul.f32 %v3219, -0.76766074
      %v3304 = vmul.f32 %v3222, -0.76766074
      %v3305 = vmul.f32 %v3227, -0.76766074
      %v3306 = vmul.f32 %v3230, -0.76766074
      %v3307 = vmul.f32 %v3235, -0.76766074
      %v3308 = vmul.f32 %v3238, -0.76766074
      %v3309 = vsel %vm3241, %v3107, %v3275
      %v3310 = vsel %vm3242, %v3110, %v3276
      %v3311 = vsel %vm3243, %v3115, %v3277
      %v3312 = vsel %vm3244, %v3118, %v3278
      %v3313 = vsel %vm3245, %v3123, %v3279
      %v3314 = vsel %vm3246, %v3126, %v3280
      %v3315 = vsel %vm3247, %v3131, %v3281
      %v3316 = vsel %vm3248, %v3134, %v3282
      %v3317 = vsel %vm3249, %v3139, %v3283
      %v3318 = vsel %vm3250, %v3142, %v3284
      %v3319 = vsel %vm3251, %v3147, %v3285
      %v3320 = vsel %vm3252, %v3150, %v3286
      %v3321 = vsel %vm3253, %v3155, %v3287
      %v3322 = vsel %vm3254, %v3158, %v3288
      %v3323 = vsel %vm3255, %v3163, %v3289
      %v3324 = vsel %vm3256, %v3166, %v3290
      %v3325 = vsel %vm3257, %v3171, %v3291
      %v3326 = vsel %vm3258, %v3174, %v3292
      %v3327 = vsel %vm3259, %v3179, %v3293
      %v3328 = vsel %vm3260, %v3182, %v3294
      %v3329 = vsel %vm3261, %v3187, %v3295
      %v3330 = vsel %vm3262, %v3190, %v3296
      %v3331 = vsel %vm3263, %v3195, %v3297
      %v3332 = vsel %vm3264, %v3198, %v3298
      %v3333 = vsel %vm3265, %v3203, %v3299
      %v3334 = vsel %vm3266, %v3206, %v3300
      %v3335 = vsel %vm3267, %v3211, %v3301
      %v3336 = vsel %vm3268, %v3214, %v3302
      %v3337 = vsel %vm3269, %v3219, %v3303
      %v3338 = vsel %vm3270, %v3222, %v3304
      %v3339 = vsel %vm3271, %v3227, %v3305
      %v3340 = vsel %vm3272, %v3230, %v3306
      %v3341 = vsel %vm3273, %v3235, %v3307
      %v3342 = vsel %vm3274, %v3238, %v3308
      %vm3343 = vcmask 670720
      %3344 = vst.msk [vmem:[%s359] sm:$0xff] %vm3343, %v3309
      %3345 = vst.msk [vmem:[%s359 + $0x8] sm:$0xff] %vm3343, %v3310
      %3346 = vst.msk [vmem:[%s359 + $0x10] sm:$0xff] %vm3343, %v3311
      %3347 = vst.msk [vmem:[%s359 + $0x18] sm:$0xff] %vm3343, %v3312
      %3348 = vst.msk [vmem:[%s359 + $0x20] sm:$0xff] %vm3343, %v3313
      %3349 = vst.msk [vmem:[%s359 + $0x28] sm:$0xff] %vm3343, %v3314
      %3350 = vst.msk [vmem:[%s359 + $0x30] sm:$0xff] %vm3343, %v3315
      %3351 = vst.msk [vmem:[%s359 + $0x38] sm:$0xff] %vm3343, %v3316
      %3352 = vst.msk [vmem:[%s359 + $0x40] sm:$0xff] %vm3343, %v3317
      %3353 = vst.msk [vmem:[%s359 + $0x48] sm:$0xff] %vm3343, %v3318
      %3354 = vst.msk [vmem:[%s359 + $0x50] sm:$0xff] %vm3343, %v3319
      %3355 = vst.msk [vmem:[%s359 + $0x58] sm:$0xff] %vm3343, %v3320
      %3356 = vst.msk [vmem:[%s359 + $0x60] sm:$0xff] %vm3343, %v3321
      %3357 = vst.msk [vmem:[%s359 + $0x68] sm:$0xff] %vm3343, %v3322
      %3358 = vst.msk [vmem:[%s359 + $0x70] sm:$0xff] %vm3343, %v3323
      %3359 = vst.msk [vmem:[%s359 + $0x78] sm:$0xff] %vm3343, %v3324
      %3360 = vst.msk [vmem:[%s359 + $0x80] sm:$0xff] %vm3343, %v3325
      %3361 = vst.msk [vmem:[%s359 + $0x88] sm:$0xff] %vm3343, %v3326
      %3362 = vst.msk [vmem:[%s359 + $0x90] sm:$0xff] %vm3343, %v3327
      %3363 = vst.msk [vmem:[%s359 + $0x98] sm:$0xff] %vm3343, %v3328
      %3364 = vst.msk [vmem:[%s359 + $0xa0] sm:$0xff] %vm3343, %v3329
      %3365 = vst.msk [vmem:[%s359 + $0xa8] sm:$0xff] %vm3343, %v3330
      %3366 = vst.msk [vmem:[%s359 + $0xb0] sm:$0xff] %vm3343, %v3331
      %3367 = vst.msk [vmem:[%s359 + $0xb8] sm:$0xff] %vm3343, %v3332
      %3368 = vst.msk [vmem:[%s359 + $0xc0] sm:$0xff] %vm3343, %v3333
      %3369 = vst.msk [vmem:[%s359 + $0xc8] sm:$0xff] %vm3343, %v3334
      %3370 = vst.msk [vmem:[%s359 + $0xd0] sm:$0xff] %vm3343, %v3335
      %3371 = vst.msk [vmem:[%s359 + $0xd8] sm:$0xff] %vm3343, %v3336
      %3372 = vst.msk [vmem:[%s359 + $0xe0] sm:$0xff] %vm3343, %v3337
      %3373 = vst.msk [vmem:[%s359 + $0xe8] sm:$0xff] %vm3343, %v3338
      %3374 = vst.msk [vmem:[%s359 + $0xf0] sm:$0xff] %vm3343, %v3339
      %3375 = vst.msk [vmem:[%s359 + $0xf8] sm:$0xff] %vm3343, %v3340
      %3376 = vst.msk [vmem:[%s359 + $0x100] sm:$0xff] %vm3343, %v3341
      %3377 = vst.msk [vmem:[%s359 + $0x108] sm:$0xff] %vm3343, %v3342
      %v3378 = vld [vmem:[#allocation3] sm:$0xf]
      %v3379 = vld [vmem:[#allocation3 + $0x4] sm:$0xf]
      %v3380 = vld [vmem:[#allocation3 + $0x8] sm:$0xf]
      %v3381 = vld [vmem:[#allocation3 + $0xc] sm:$0xf]
      %v3382 = vld [vmem:[#allocation3 + $0x10] sm:$0xf]
      %v3383 = vld [vmem:[#allocation3 + $0x14] sm:$0xf]
      %v3384 = vld [vmem:[#allocation3 + $0x18] sm:$0xf]
      %v3385 = vld [vmem:[#allocation3 + $0x1c] sm:$0xf]
      %v3386 = vld [vmem:[#allocation3 + $0x20] sm:$0xf]
      %v3387 = vld [vmem:[#allocation3 + $0x24] sm:$0xf]
      %v3388 = vld [vmem:[#allocation3 + $0x28] sm:$0xf]
      %v3389 = vld [vmem:[#allocation3 + $0x2c] sm:$0xf]
      %v3390 = vld [vmem:[#allocation3 + $0x30] sm:$0xf]
      %v3391 = vld [vmem:[#allocation3 + $0x34] sm:$0xf]
      %v3392 = vld [vmem:[#allocation3 + $0x38] sm:$0xf]
      %v3393 = vld [vmem:[#allocation3 + $0x3c] sm:$0xf]
      %v3394 = vld [vmem:[#allocation3 + $0x40] sm:$0xf]
      %v3395 = vld [vmem:[#allocation3 + $0x44] sm:$0xf]
      %v3396 = vld [vmem:[#allocation3 + $0x48] sm:$0xf]
      %v3397 = vld [vmem:[#allocation3 + $0x4c] sm:$0xf]
      %v3398 = vld [vmem:[#allocation3 + $0x50] sm:$0xf]
      %v3399 = vld [vmem:[#allocation3 + $0x54] sm:$0xf]
      %v3400 = vld [vmem:[#allocation3 + $0x58] sm:$0xf]
      %v3401 = vld [vmem:[#allocation3 + $0x5c] sm:$0xf]
      %v3402 = vld [vmem:[#allocation3 + $0x60] sm:$0xf]
      %v3403 = vld [vmem:[#allocation3 + $0x64] sm:$0xf]
      %v3404 = vld [vmem:[#allocation3 + $0x68] sm:$0xf]
      %v3405 = vld [vmem:[#allocation3 + $0x6c] sm:$0xf]
      %v3406 = vld [vmem:[#allocation3 + $0x70] sm:$0xf]
      %v3407 = vld [vmem:[#allocation3 + $0x74] sm:$0xf]
      %v3408 = vld [vmem:[#allocation3 + $0x78] sm:$0xf]
      %v3409 = vld [vmem:[#allocation3 + $0x7c] sm:$0xf]
      %v3410 = vld [vmem:[#allocation3 + $0x80] sm:$0xf]
      %v3411 = vld [vmem:[#allocation3 + $0x84] sm:$0xf]
      %v3412 = vld [vmem:[#allocation3 + $0x88] sm:$0x1]
      %s3413 = scalar_lea.vmem %s6, 8
      %v3414 = vld [vmem:[%s3413] sm:$0xf]
      %v3415 = vld [vmem:[%s3413 + $0x4] sm:$0xf]
      %v3451 = vunpack.c.l.b16 %v3378
      %v3452 = vunpack.c.l.b16 %v3379
      %v3453 = vunpack.c.l.b16 %v3380
      %v3454 = vunpack.c.l.b16 %v3381
      %v3455 = vunpack.c.l.b16 %v3382
      %v3456 = vunpack.c.l.b16 %v3383
      %v3457 = vunpack.c.l.b16 %v3384
      %v3458 = vunpack.c.l.b16 %v3385
      %v3459 = vunpack.c.l.b16 %v3386
      %v3460 = vunpack.c.l.b16 %v3387
      %v3461 = vunpack.c.l.b16 %v3388
      %v3462 = vunpack.c.l.b16 %v3389
      %v3463 = vunpack.c.l.b16 %v3390
      %v3464 = vunpack.c.l.b16 %v3391
      %v3465 = vunpack.c.l.b16 %v3392
      %v3466 = vunpack.c.l.b16 %v3393
      %v3467 = vunpack.c.l.b16 %v3394
      %v3468 = vunpack.c.l.b16 %v3395
      %v3469 = vunpack.c.l.b16 %v3396
      %v3470 = vunpack.c.l.b16 %v3397
      %v3471 = vunpack.c.l.b16 %v3398
      %v3472 = vunpack.c.l.b16 %v3399
      %v3473 = vunpack.c.l.b16 %v3400
      %v3474 = vunpack.c.l.b16 %v3401
      %v3475 = vunpack.c.l.b16 %v3402
      %v3476 = vunpack.c.l.b16 %v3403
      %v3477 = vunpack.c.l.b16 %v3404
      %v3478 = vunpack.c.l.b16 %v3405
      %v3479 = vunpack.c.l.b16 %v3406
      %v3480 = vunpack.c.l.b16 %v3407
      %v3481 = vunpack.c.l.b16 %v3408
      %v3482 = vunpack.c.l.b16 %v3409
      %v3483 = vunpack.c.l.b16 %v3410
      %v3484 = vunpack.c.l.b16 %v3411
      %v3485 = vunpack.c.l.b16 %v3412
      %v3486 = vpack.c.b16 %v3452, %v3451
      %v3487 = vpack.c.b16 %v3454, %v3453
      %v3488 = vpack.c.b16 %v3456, %v3455
      %v3489 = vpack.c.b16 %v3458, %v3457
      %v3490 = vpack.c.b16 %v3460, %v3459
      %v3491 = vpack.c.b16 %v3462, %v3461
      %v3492 = vpack.c.b16 %v3464, %v3463
      %v3493 = vpack.c.b16 %v3466, %v3465
      %v3494 = vpack.c.b16 %v3468, %v3467
      %v3495 = vpack.c.b16 %v3470, %v3469
      %v3496 = vpack.c.b16 %v3472, %v3471
      %v3497 = vpack.c.b16 %v3474, %v3473
      %v3498 = vpack.c.b16 %v3476, %v3475
      %v3499 = vpack.c.b16 %v3478, %v3477
      %v3500 = vpack.c.b16 %v3480, %v3479
      %v3501 = vpack.c.b16 %v3482, %v3481
      %v3502 = vpack.c.b16 %v3484, %v3483
      %v3503 = vpack.c.b16 %v3485, %v3485
      %v3505 = vshrl.u32 %v3486, 16
      %v3507 = vshll.u32 %v3486, 16
      %v3509 = vrot.slane %v3507, 1
      %v3510 = vor.u32 %v3505, %v3509
      %v3512 = vshll.u32 %v3487, 16
      %v3514 = vrot.slane %v3512, 1
      %v3515 = vsel %vm1108, %v3510, %v3514
      %v3516 = vshrl.u32 %v3487, 16
      %v3518 = vor.u32 %v3516, %v3514
      %v3520 = vshll.u32 %v3488, 16
      %v3522 = vrot.slane %v3520, 1
      %v3523 = vsel %vm1108, %v3518, %v3522
      %v3524 = vshrl.u32 %v3488, 16
      %v3526 = vor.u32 %v3524, %v3522
      %v3528 = vshll.u32 %v3489, 16
      %v3530 = vrot.slane %v3528, 1
      %v3531 = vsel %vm1108, %v3526, %v3530
      %v3532 = vshrl.u32 %v3489, 16
      %v3534 = vor.u32 %v3532, %v3530
      %v3536 = vshll.u32 %v3490, 16
      %v3538 = vrot.slane %v3536, 1
      %v3539 = vsel %vm1108, %v3534, %v3538
      %v3540 = vshrl.u32 %v3490, 16
      %v3542 = vor.u32 %v3540, %v3538
      %v3544 = vshll.u32 %v3491, 16
      %v3546 = vrot.slane %v3544, 1
      %v3547 = vsel %vm1108, %v3542, %v3546
      %v3548 = vshrl.u32 %v3491, 16
      %v3550 = vor.u32 %v3548, %v3546
      %v3552 = vshll.u32 %v3492, 16
      %v3554 = vrot.slane %v3552, 1
      %v3555 = vsel %vm1108, %v3550, %v3554
      %v3556 = vshrl.u32 %v3492, 16
      %v3558 = vor.u32 %v3556, %v3554
      %v3560 = vshll.u32 %v3493, 16
      %v3562 = vrot.slane %v3560, 1
      %v3563 = vsel %vm1108, %v3558, %v3562
      %v3564 = vshrl.u32 %v3493, 16
      %v3566 = vor.u32 %v3564, %v3562
      %v3568 = vshll.u32 %v3494, 16
      %v3570 = vrot.slane %v3568, 1
      %v3571 = vsel %vm1108, %v3566, %v3570
      %v3572 = vshrl.u32 %v3494, 16
      %v3574 = vor.u32 %v3572, %v3570
      %v3576 = vshll.u32 %v3495, 16
      %v3578 = vrot.slane %v3576, 1
      %v3579 = vsel %vm1108, %v3574, %v3578
      %v3580 = vshrl.u32 %v3495, 16
      %v3582 = vor.u32 %v3580, %v3578
      %v3584 = vshll.u32 %v3496, 16
      %v3586 = vrot.slane %v3584, 1
      %v3587 = vsel %vm1108, %v3582, %v3586
      %v3588 = vshrl.u32 %v3496, 16
      %v3590 = vor.u32 %v3588, %v3586
      %v3592 = vshll.u32 %v3497, 16
      %v3594 = vrot.slane %v3592, 1
      %v3595 = vsel %vm1108, %v3590, %v3594
      %v3596 = vshrl.u32 %v3497, 16
      %v3598 = vor.u32 %v3596, %v3594
      %v3600 = vshll.u32 %v3498, 16
      %v3602 = vrot.slane %v3600, 1
      %v3603 = vsel %vm1108, %v3598, %v3602
      %v3604 = vshrl.u32 %v3498, 16
      %v3606 = vor.u32 %v3604, %v3602
      %v3608 = vshll.u32 %v3499, 16
      %v3610 = vrot.slane %v3608, 1
      %v3611 = vsel %vm1108, %v3606, %v3610
      %v3612 = vshrl.u32 %v3499, 16
      %v3614 = vor.u32 %v3612, %v3610
      %v3616 = vshll.u32 %v3500, 16
      %v3618 = vrot.slane %v3616, 1
      %v3619 = vsel %vm1108, %v3614, %v3618
      %v3620 = vshrl.u32 %v3500, 16
      %v3622 = vor.u32 %v3620, %v3618
      %v3624 = vshll.u32 %v3501, 16
      %v3626 = vrot.slane %v3624, 1
      %v3627 = vsel %vm1108, %v3622, %v3626
      %v3628 = vshrl.u32 %v3501, 16
      %v3630 = vor.u32 %v3628, %v3626
      %v3632 = vshll.u32 %v3502, 16
      %v3634 = vrot.slane %v3632, 1
      %v3635 = vsel %vm1108, %v3630, %v3634
      %v3636 = vshrl.u32 %v3502, 16
      %v3638 = vor.u32 %v3636, %v3634
      %v3640 = vshll.u32 %v3503, 16
      %v3642 = vrot.slane %v3640, 1
      %v3643 = vsel %vm1108, %v3638, %v3642
      %v3646 = vunpack.c.l.b16 %v3414
      %v3647 = vunpack.c.l.b16 %v3415
      %v3648 = vpack.c.b16 %v3647, %v3646
      %v3651 = vsel %vm2665, %v3515, 0
      %v3654 = vsel %vm2665, %v3523, 0
      %v3657 = vsel %vm2665, %v3531, 0
      %v3660 = vsel %vm2665, %v3539, 0
      %v3663 = vsel %vm2665, %v3547, 0
      %v3666 = vsel %vm2665, %v3555, 0
      %v3669 = vsel %vm2665, %v3563, 0
      %v3672 = vsel %vm2665, %v3571, 0
      %v3675 = vsel %vm2665, %v3579, 0
      %v3678 = vsel %vm2665, %v3587, 0
      %v3681 = vsel %vm2665, %v3595, 0
      %v3684 = vsel %vm2665, %v3603, 0
      %v3687 = vsel %vm2665, %v3611, 0
      %v3690 = vsel %vm2665, %v3619, 0
      %v3693 = vsel %vm2665, %v3627, 0
      %v3696 = vsel %vm2665, %v3635, 0
      %v3699 = vsel %vm2665, %v3643, 0
      %3701 = vmatprep.subr.bf16.mxu0 0
      %3702 = vmatpush1.bf16.msra.mxu0 0
      %3703 = vmatprep.subr.bf16.mxu0 0
      %3704 = vmatpush1.bf16.msra.mxu0 0
      %3705 = vmatprep.subr.bf16.mxu0 0
      %3706 = vmatpush1.bf16.msra.mxu0 0
      %3707 = vmatprep.subr.bf16.mxu0 0
      %3708 = vmatpush1.bf16.msra.mxu0 0
      %3709 = vmatprep.subr.bf16.mxu0 0
      %3710 = vmatpush1.bf16.msra.mxu0 0
      %3711 = vmatprep.subr.bf16.mxu0 0
      %3712 = vmatpush1.bf16.msra.mxu0 0
      %3713 = vmatprep.subr.bf16.mxu0 0
      %3714 = vmatpush1.bf16.msra.mxu0 0
      %3715 = vmatprep.subr.bf16.mxu0 0
      %3716 = vmatpush1.bf16.msra.mxu0 %v3648
      %3717 = vmatprep.subr.bf16.mxu0 0
      %3718 = vmatpush2.bf16.msra.mxu0 0
      %3719 = vmatprep.subr.bf16.mxu0 0
      %3720 = vmatpush2.bf16.msra.mxu0 0
      %3721 = vmatprep.subr.bf16.mxu0 0
      %3722 = vmatpush2.bf16.msra.mxu0 0
      %3723 = vmatprep.subr.bf16.mxu0 0
      %3724 = vmatpush2.bf16.msra.mxu0 0
      %3725 = vmatprep.subr.bf16.mxu0 0
      %3726 = vmatpush2.bf16.msra.mxu0 0
      %3727 = vmatprep.subr.bf16.mxu0 0
      %3728 = vmatpush2.bf16.msra.mxu0 0
      %3729 = vmatprep.subr.bf16.mxu0 0
      %3730 = vmatpush2.bf16.msra.mxu0 0
      %3731 = vmatprep.subr.bf16.mxu0 0
      %3732 = vmatpush2.bf16.msra.mxu0 0
      %3733 = vmatprep.mubr.bf16.mxu0 0
      %3734 = vmatmul.mubr.bf16.gmra.mxu0 %v3651
      %v3735 = vpop.f32.mrf.mxu0
      %v3736 = vadd.f32 %v2572, %v3735
      %v3737 = vpop.f32.mrf.mxu0
      %v3738 = vpop.f32.mrf.mxu0
      %v3739 = vadd.f32 %v2572, %v3738
      %v3740 = vpop.f32.mrf.mxu0
      %3741 = vmatprep.mubr.bf16.mxu0 0
      %3742 = vmatmul.mubr.bf16.gmra.mxu0 %v3654
      %v3743 = vpop.f32.mrf.mxu0
      %v3744 = vadd.f32 %v2572, %v3743
      %v3745 = vpop.f32.mrf.mxu0
      %v3746 = vpop.f32.mrf.mxu0
      %v3747 = vadd.f32 %v2572, %v3746
      %v3748 = vpop.f32.mrf.mxu0
      %3749 = vmatprep.mubr.bf16.mxu0 0
      %3750 = vmatmul.mubr.bf16.gmra.mxu0 %v3657
      %v3751 = vpop.f32.mrf.mxu0
      %v3752 = vadd.f32 %v2572, %v3751
      %v3753 = vpop.f32.mrf.mxu0
      %v3754 = vpop.f32.mrf.mxu0
      %v3755 = vadd.f32 %v2572, %v3754
      %v3756 = vpop.f32.mrf.mxu0
      %3757 = vmatprep.mubr.bf16.mxu0 0
      %3758 = vmatmul.mubr.bf16.gmra.mxu0 %v3660
      %v3759 = vpop.f32.mrf.mxu0
      %v3760 = vadd.f32 %v2572, %v3759
      %v3761 = vpop.f32.mrf.mxu0
      %v3762 = vpop.f32.mrf.mxu0
      %v3763 = vadd.f32 %v2572, %v3762
      %v3764 = vpop.f32.mrf.mxu0
      %3765 = vmatprep.mubr.bf16.mxu0 0
      %3766 = vmatmul.mubr.bf16.gmra.mxu0 %v3663
      %v3767 = vpop.f32.mrf.mxu0
      %v3768 = vadd.f32 %v2572, %v3767
      %v3769 = vpop.f32.mrf.mxu0
      %v3770 = vpop.f32.mrf.mxu0
      %v3771 = vadd.f32 %v2572, %v3770
      %v3772 = vpop.f32.mrf.mxu0
      %3773 = vmatprep.mubr.bf16.mxu0 0
      %3774 = vmatmul.mubr.bf16.gmra.mxu0 %v3666
      %v3775 = vpop.f32.mrf.mxu0
      %v3776 = vadd.f32 %v2572, %v3775
      %v3777 = vpop.f32.mrf.mxu0
      %v3778 = vpop.f32.mrf.mxu0
      %v3779 = vadd.f32 %v2572, %v3778
      %v3780 = vpop.f32.mrf.mxu0
      %3781 = vmatprep.mubr.bf16.mxu0 0
      %3782 = vmatmul.mubr.bf16.gmra.mxu0 %v3669
      %v3783 = vpop.f32.mrf.mxu0
      %v3784 = vadd.f32 %v2572, %v3783
      %v3785 = vpop.f32.mrf.mxu0
      %v3786 = vpop.f32.mrf.mxu0
      %v3787 = vadd.f32 %v2572, %v3786
      %v3788 = vpop.f32.mrf.mxu0
      %3789 = vmatprep.mubr.bf16.mxu0 0
      %3790 = vmatmul.mubr.bf16.gmra.mxu0 %v3672
      %v3791 = vpop.f32.mrf.mxu0
      %v3792 = vadd.f32 %v2572, %v3791
      %v3793 = vpop.f32.mrf.mxu0
      %v3794 = vpop.f32.mrf.mxu0
      %v3795 = vadd.f32 %v2572, %v3794
      %v3796 = vpop.f32.mrf.mxu0
      %3797 = vmatprep.mubr.bf16.mxu0 0
      %3798 = vmatmul.mubr.bf16.gmra.mxu0 %v3675
      %v3799 = vpop.f32.mrf.mxu0
      %v3800 = vadd.f32 %v2572, %v3799
      %v3801 = vpop.f32.mrf.mxu0
      %v3802 = vpop.f32.mrf.mxu0
      %v3803 = vadd.f32 %v2572, %v3802
      %v3804 = vpop.f32.mrf.mxu0
      %3805 = vmatprep.mubr.bf16.mxu0 0
      %3806 = vmatmul.mubr.bf16.gmra.mxu0 %v3678
      %v3807 = vpop.f32.mrf.mxu0
      %v3808 = vadd.f32 %v2572, %v3807
      %v3809 = vpop.f32.mrf.mxu0
      %v3810 = vpop.f32.mrf.mxu0
      %v3811 = vadd.f32 %v2572, %v3810
      %v3812 = vpop.f32.mrf.mxu0
      %3813 = vmatprep.mubr.bf16.mxu0 0
      %3814 = vmatmul.mubr.bf16.gmra.mxu0 %v3681
      %v3815 = vpop.f32.mrf.mxu0
      %v3816 = vadd.f32 %v2572, %v3815
      %v3817 = vpop.f32.mrf.mxu0
      %v3818 = vpop.f32.mrf.mxu0
      %v3819 = vadd.f32 %v2572, %v3818
      %v3820 = vpop.f32.mrf.mxu0
      %3821 = vmatprep.mubr.bf16.mxu0 0
      %3822 = vmatmul.mubr.bf16.gmra.mxu0 %v3684
      %v3823 = vpop.f32.mrf.mxu0
      %v3824 = vadd.f32 %v2572, %v3823
      %v3825 = vpop.f32.mrf.mxu0
      %v3826 = vpop.f32.mrf.mxu0
      %v3827 = vadd.f32 %v2572, %v3826
      %v3828 = vpop.f32.mrf.mxu0
      %3829 = vmatprep.mubr.bf16.mxu0 0
      %3830 = vmatmul.mubr.bf16.gmra.mxu0 %v3687
      %v3831 = vpop.f32.mrf.mxu0
      %v3832 = vadd.f32 %v2572, %v3831
      %v3833 = vpop.f32.mrf.mxu0
      %v3834 = vpop.f32.mrf.mxu0
      %v3835 = vadd.f32 %v2572, %v3834
      %v3836 = vpop.f32.mrf.mxu0
      %3837 = vmatprep.mubr.bf16.mxu0 0
      %3838 = vmatmul.mubr.bf16.gmra.mxu0 %v3690
      %v3839 = vpop.f32.mrf.mxu0
      %v3840 = vadd.f32 %v2572, %v3839
      %v3841 = vpop.f32.mrf.mxu0
      %v3842 = vpop.f32.mrf.mxu0
      %v3843 = vadd.f32 %v2572, %v3842
      %v3844 = vpop.f32.mrf.mxu0
      %3845 = vmatprep.mubr.bf16.mxu0 0
      %3846 = vmatmul.mubr.bf16.gmra.mxu0 %v3693
      %v3847 = vpop.f32.mrf.mxu0
      %v3848 = vadd.f32 %v2572, %v3847
      %v3849 = vpop.f32.mrf.mxu0
      %v3850 = vpop.f32.mrf.mxu0
      %v3851 = vadd.f32 %v2572, %v3850
      %v3852 = vpop.f32.mrf.mxu0
      %3853 = vmatprep.mubr.bf16.mxu0 0
      %3854 = vmatmul.mubr.bf16.gmra.mxu0 %v3696
      %v3855 = vpop.f32.mrf.mxu0
      %v3856 = vadd.f32 %v2572, %v3855
      %v3857 = vpop.f32.mrf.mxu0
      %v3858 = vpop.f32.mrf.mxu0
      %v3859 = vadd.f32 %v2572, %v3858
      %v3860 = vpop.f32.mrf.mxu0
      %3861 = vmatprep.mubr.bf16.mxu0 0
      %3862 = vmatmul.mubr.bf16.gmra.mxu0 %v3699
      %v3863 = vpop.f32.mrf.mxu0
      %v3864 = vadd.f32 %v2572, %v3863
      %v3865 = vpop.f32.mrf.mxu0
      %v3866 = vpop.f32.mrf.mxu0
      %v3867 = vadd.f32 %v2572, %v3866
      %v3868 = vpop.f32.mrf.mxu0
      %3869 = vdwg.mxu0
      %vm3870 = vcmp.gt.f32.partialorder %v3736, 0.0
      %vm3871 = vcmp.gt.f32.partialorder %v3739, 0.0
      %vm3872 = vcmp.gt.f32.partialorder %v3744, 0.0
      %vm3873 = vcmp.gt.f32.partialorder %v3747, 0.0
      %vm3874 = vcmp.gt.f32.partialorder %v3752, 0.0
      %vm3875 = vcmp.gt.f32.partialorder %v3755, 0.0
      %vm3876 = vcmp.gt.f32.partialorder %v3760, 0.0
      %vm3877 = vcmp.gt.f32.partialorder %v3763, 0.0
      %vm3878 = vcmp.gt.f32.partialorder %v3768, 0.0
      %vm3879 = vcmp.gt.f32.partialorder %v3771, 0.0
      %vm3880 = vcmp.gt.f32.partialorder %v3776, 0.0
      %vm3881 = vcmp.gt.f32.partialorder %v3779, 0.0
      %vm3882 = vcmp.gt.f32.partialorder %v3784, 0.0
      %vm3883 = vcmp.gt.f32.partialorder %v3787, 0.0
      %vm3884 = vcmp.gt.f32.partialorder %v3792, 0.0
      %vm3885 = vcmp.gt.f32.partialorder %v3795, 0.0
      %vm3886 = vcmp.gt.f32.partialorder %v3800, 0.0
      %vm3887 = vcmp.gt.f32.partialorder %v3803, 0.0
      %vm3888 = vcmp.gt.f32.partialorder %v3808, 0.0
      %vm3889 = vcmp.gt.f32.partialorder %v3811, 0.0
      %vm3890 = vcmp.gt.f32.partialorder %v3816, 0.0
      %vm3891 = vcmp.gt.f32.partialorder %v3819, 0.0
      %vm3892 = vcmp.gt.f32.partialorder %v3824, 0.0
      %vm3893 = vcmp.gt.f32.partialorder %v3827, 0.0
      %vm3894 = vcmp.gt.f32.partialorder %v3832, 0.0
      %vm3895 = vcmp.gt.f32.partialorder %v3835, 0.0
      %vm3896 = vcmp.gt.f32.partialorder %v3840, 0.0
      %vm3897 = vcmp.gt.f32.partialorder %v3843, 0.0
      %vm3898 = vcmp.gt.f32.partialorder %v3848, 0.0
      %vm3899 = vcmp.gt.f32.partialorder %v3851, 0.0
      %vm3900 = vcmp.gt.f32.partialorder %v3856, 0.0
      %vm3901 = vcmp.gt.f32.partialorder %v3859, 0.0
      %vm3902 = vcmp.gt.f32.partialorder %v3864, 0.0
      %vm3903 = vcmp.gt.f32.partialorder %v3867, 0.0
      %v3904 = vmul.f32 %v3736, -0.76766074
      %v3905 = vmul.f32 %v3739, -0.76766074
      %v3906 = vmul.f32 %v3744, -0.76766074
      %v3907 = vmul.f32 %v3747, -0.76766074
      %v3908 = vmul.f32 %v3752, -0.76766074
      %v3909 = vmul.f32 %v3755, -0.76766074
      %v3910 = vmul.f32 %v3760, -0.76766074
      %v3911 = vmul.f32 %v3763, -0.76766074
      %v3912 = vmul.f32 %v3768, -0.76766074
      %v3913 = vmul.f32 %v3771, -0.76766074
      %v3914 = vmul.f32 %v3776, -0.76766074
      %v3915 = vmul.f32 %v3779, -0.76766074
      %v3916 = vmul.f32 %v3784, -0.76766074
      %v3917 = vmul.f32 %v3787, -0.76766074
      %v3918 = vmul.f32 %v3792, -0.76766074
      %v3919 = vmul.f32 %v3795, -0.76766074
      %v3920 = vmul.f32 %v3800, -0.76766074
      %v3921 = vmul.f32 %v3803, -0.76766074
      %v3922 = vmul.f32 %v3808, -0.76766074
      %v3923 = vmul.f32 %v3811, -0.76766074
      %v3924 = vmul.f32 %v3816, -0.76766074
      %v3925 = vmul.f32 %v3819, -0.76766074
      %v3926 = vmul.f32 %v3824, -0.76766074
      %v3927 = vmul.f32 %v3827, -0.76766074
      %v3928 = vmul.f32 %v3832, -0.76766074
      %v3929 = vmul.f32 %v3835, -0.76766074
      %v3930 = vmul.f32 %v3840, -0.76766074
      %v3931 = vmul.f32 %v3843, -0.76766074
      %v3932 = vmul.f32 %v3848, -0.76766074
      %v3933 = vmul.f32 %v3851, -0.76766074
      %v3934 = vmul.f32 %v3856, -0.76766074
      %v3935 = vmul.f32 %v3859, -0.76766074
      %v3936 = vmul.f32 %v3864, -0.76766074
      %v3937 = vmul.f32 %v3867, -0.76766074
      %v3938 = vsel %vm3870, %v3736, %v3904
      %v3939 = vsel %vm3871, %v3739, %v3905
      %v3940 = vsel %vm3872, %v3744, %v3906
      %v3941 = vsel %vm3873, %v3747, %v3907
      %v3942 = vsel %vm3874, %v3752, %v3908
      %v3943 = vsel %vm3875, %v3755, %v3909
      %v3944 = vsel %vm3876, %v3760, %v3910
      %v3945 = vsel %vm3877, %v3763, %v3911
      %v3946 = vsel %vm3878, %v3768, %v3912
      %v3947 = vsel %vm3879, %v3771, %v3913
      %v3948 = vsel %vm3880, %v3776, %v3914
      %v3949 = vsel %vm3881, %v3779, %v3915
      %v3950 = vsel %vm3882, %v3784, %v3916
      %v3951 = vsel %vm3883, %v3787, %v3917
      %v3952 = vsel %vm3884, %v3792, %v3918
      %v3953 = vsel %vm3885, %v3795, %v3919
      %v3954 = vsel %vm3886, %v3800, %v3920
      %v3955 = vsel %vm3887, %v3803, %v3921
      %v3956 = vsel %vm3888, %v3808, %v3922
      %v3957 = vsel %vm3889, %v3811, %v3923
      %v3958 = vsel %vm3890, %v3816, %v3924
      %v3959 = vsel %vm3891, %v3819, %v3925
      %v3960 = vsel %vm3892, %v3824, %v3926
      %v3961 = vsel %vm3893, %v3827, %v3927
      %v3962 = vsel %vm3894, %v3832, %v3928
      %v3963 = vsel %vm3895, %v3835, %v3929
      %v3964 = vsel %vm3896, %v3840, %v3930
      %v3965 = vsel %vm3897, %v3843, %v3931
      %v3966 = vsel %vm3898, %v3848, %v3932
      %v3967 = vsel %vm3899, %v3851, %v3933
      %v3968 = vsel %vm3900, %v3856, %v3934
      %v3969 = vsel %vm3901, %v3859, %v3935
      %v3970 = vsel %vm3902, %v3864, %v3936
      %v3971 = vsel %vm3903, %v3867, %v3937
      %v3972 = vpack.c.bf16 %v3939, %v3938
      %v3973 = vpack.c.bf16 %v3941, %v3940
      %v3974 = vpack.c.bf16 %v3943, %v3942
      %v3975 = vpack.c.bf16 %v3945, %v3944
      %v3976 = vpack.c.bf16 %v3947, %v3946
      %v3977 = vpack.c.bf16 %v3949, %v3948
      %v3978 = vpack.c.bf16 %v3951, %v3950
      %v3979 = vpack.c.bf16 %v3953, %v3952
      %v3980 = vpack.c.bf16 %v3955, %v3954
      %v3981 = vpack.c.bf16 %v3957, %v3956
      %v3982 = vpack.c.bf16 %v3959, %v3958
      %v3983 = vpack.c.bf16 %v3961, %v3960
      %v3984 = vpack.c.bf16 %v3963, %v3962
      %v3985 = vpack.c.bf16 %v3965, %v3964
      %v3986 = vpack.c.bf16 %v3967, %v3966
      %v3987 = vpack.c.bf16 %v3969, %v3968
      %v3988 = vpack.c.bf16 %v3971, %v3970
      %v3990 = vsel %vm3016, %v3972, 0
      %v3993 = vsel %vm3016, %v3973, 0
      %v3996 = vsel %vm3016, %v3974, 0
      %v3999 = vsel %vm3016, %v3975, 0
      %v4002 = vsel %vm3016, %v3976, 0
      %v4005 = vsel %vm3016, %v3977, 0
      %v4008 = vsel %vm3016, %v3978, 0
      %v4011 = vsel %vm3016, %v3979, 0
      %v4014 = vsel %vm3016, %v3980, 0
      %v4017 = vsel %vm3016, %v3981, 0
      %v4020 = vsel %vm3016, %v3982, 0
      %v4023 = vsel %vm3016, %v3983, 0
      %v4026 = vsel %vm3016, %v3984, 0
      %v4029 = vsel %vm3016, %v3985, 0
      %v4032 = vsel %vm3016, %v3986, 0
      %v4035 = vsel %vm3016, %v3987, 0
      %v4038 = vsel %vm3016, %v3988, 0
      %4040 = vmatprep.subr.bf16.mxu0 0
      %4041 = vmatpush1.bf16.msra.mxu0 0
      %4042 = vmatprep.subr.bf16.mxu0 0
      %4043 = vmatpush1.bf16.msra.mxu0 0
      %4044 = vmatprep.subr.bf16.mxu0 0
      %4045 = vmatpush1.bf16.msra.mxu0 0
      %4046 = vmatprep.subr.bf16.mxu0 0
      %4047 = vmatpush1.bf16.msra.mxu0 0
      %4048 = vmatprep.subr.bf16.mxu0 0
      %4049 = vmatpush1.bf16.msra.mxu0 0
      %4050 = vmatprep.subr.bf16.mxu0 0
      %4051 = vmatpush1.bf16.msra.mxu0 0
      %4052 = vmatprep.subr.bf16.mxu0 0
      %4053 = vmatpush1.bf16.msra.mxu0 0
      %4054 = vmatprep.subr.bf16.mxu0 0
      %4055 = vmatpush1.bf16.msra.mxu0 %v3070
      %4056 = vmatprep.subr.bf16.mxu0 0
      %4057 = vmatpush2.bf16.msra.mxu0 0
      %4058 = vmatprep.subr.bf16.mxu0 0
      %4059 = vmatpush2.bf16.msra.mxu0 0
      %4060 = vmatprep.subr.bf16.mxu0 0
      %4061 = vmatpush2.bf16.msra.mxu0 0
      %4062 = vmatprep.subr.bf16.mxu0 0
      %4063 = vmatpush2.bf16.msra.mxu0 0
      %4064 = vmatprep.subr.bf16.mxu0 0
      %4065 = vmatpush2.bf16.msra.mxu0 0
      %4066 = vmatprep.subr.bf16.mxu0 0
      %4067 = vmatpush2.bf16.msra.mxu0 0
      %4068 = vmatprep.subr.bf16.mxu0 0
      %4069 = vmatpush2.bf16.msra.mxu0 0
      %4070 = vmatprep.subr.bf16.mxu0 0
      %4071 = vmatpush2.bf16.msra.mxu0 0
      %4072 = vmatprep.mubr.bf16.mxu0 0
      %4073 = vmatmul.mubr.bf16.gmra.mxu0 %v3990
      %v4074 = vpop.f32.mrf.mxu0
      %v4075 = vadd.f32 %v3009, %v4074
      %v4076 = vpop.f32.mrf.mxu0
      %v4077 = vpop.f32.mrf.mxu0
      %v4078 = vadd.f32 %v3009, %v4077
      %v4079 = vpop.f32.mrf.mxu0
      %4080 = vmatprep.mubr.bf16.mxu0 0
      %4081 = vmatmul.mubr.bf16.gmra.mxu0 %v3993
      %v4082 = vpop.f32.mrf.mxu0
      %v4083 = vadd.f32 %v3009, %v4082
      %v4084 = vpop.f32.mrf.mxu0
      %v4085 = vpop.f32.mrf.mxu0
      %v4086 = vadd.f32 %v3009, %v4085
      %v4087 = vpop.f32.mrf.mxu0
      %4088 = vmatprep.mubr.bf16.mxu0 0
      %4089 = vmatmul.mubr.bf16.gmra.mxu0 %v3996
      %v4090 = vpop.f32.mrf.mxu0
      %v4091 = vadd.f32 %v3009, %v4090
      %v4092 = vpop.f32.mrf.mxu0
      %v4093 = vpop.f32.mrf.mxu0
      %v4094 = vadd.f32 %v3009, %v4093
      %v4095 = vpop.f32.mrf.mxu0
      %4096 = vmatprep.mubr.bf16.mxu0 0
      %4097 = vmatmul.mubr.bf16.gmra.mxu0 %v3999
      %v4098 = vpop.f32.mrf.mxu0
      %v4099 = vadd.f32 %v3009, %v4098
      %v4100 = vpop.f32.mrf.mxu0
      %v4101 = vpop.f32.mrf.mxu0
      %v4102 = vadd.f32 %v3009, %v4101
      %v4103 = vpop.f32.mrf.mxu0
      %4104 = vmatprep.mubr.bf16.mxu0 0
      %4105 = vmatmul.mubr.bf16.gmra.mxu0 %v4002
      %v4106 = vpop.f32.mrf.mxu0
      %v4107 = vadd.f32 %v3009, %v4106
      %v4108 = vpop.f32.mrf.mxu0
      %v4109 = vpop.f32.mrf.mxu0
      %v4110 = vadd.f32 %v3009, %v4109
      %v4111 = vpop.f32.mrf.mxu0
      %4112 = vmatprep.mubr.bf16.mxu0 0
      %4113 = vmatmul.mubr.bf16.gmra.mxu0 %v4005
      %v4114 = vpop.f32.mrf.mxu0
      %v4115 = vadd.f32 %v3009, %v4114
      %v4116 = vpop.f32.mrf.mxu0
      %v4117 = vpop.f32.mrf.mxu0
      %v4118 = vadd.f32 %v3009, %v4117
      %v4119 = vpop.f32.mrf.mxu0
      %4120 = vmatprep.mubr.bf16.mxu0 0
      %4121 = vmatmul.mubr.bf16.gmra.mxu0 %v4008
      %v4122 = vpop.f32.mrf.mxu0
      %v4123 = vadd.f32 %v3009, %v4122
      %v4124 = vpop.f32.mrf.mxu0
      %v4125 = vpop.f32.mrf.mxu0
      %v4126 = vadd.f32 %v3009, %v4125
      %v4127 = vpop.f32.mrf.mxu0
      %4128 = vmatprep.mubr.bf16.mxu0 0
      %4129 = vmatmul.mubr.bf16.gmra.mxu0 %v4011
      %v4130 = vpop.f32.mrf.mxu0
      %v4131 = vadd.f32 %v3009, %v4130
      %v4132 = vpop.f32.mrf.mxu0
      %v4133 = vpop.f32.mrf.mxu0
      %v4134 = vadd.f32 %v3009, %v4133
      %v4135 = vpop.f32.mrf.mxu0
      %4136 = vmatprep.mubr.bf16.mxu0 0
      %4137 = vmatmul.mubr.bf16.gmra.mxu0 %v4014
      %v4138 = vpop.f32.mrf.mxu0
      %v4139 = vadd.f32 %v3009, %v4138
      %v4140 = vpop.f32.mrf.mxu0
      %v4141 = vpop.f32.mrf.mxu0
      %v4142 = vadd.f32 %v3009, %v4141
      %v4143 = vpop.f32.mrf.mxu0
      %4144 = vmatprep.mubr.bf16.mxu0 0
      %4145 = vmatmul.mubr.bf16.gmra.mxu0 %v4017
      %v4146 = vpop.f32.mrf.mxu0
      %v4147 = vadd.f32 %v3009, %v4146
      %v4148 = vpop.f32.mrf.mxu0
      %v4149 = vpop.f32.mrf.mxu0
      %v4150 = vadd.f32 %v3009, %v4149
      %v4151 = vpop.f32.mrf.mxu0
      %4152 = vmatprep.mubr.bf16.mxu0 0
      %4153 = vmatmul.mubr.bf16.gmra.mxu0 %v4020
      %v4154 = vpop.f32.mrf.mxu0
      %v4155 = vadd.f32 %v3009, %v4154
      %v4156 = vpop.f32.mrf.mxu0
      %v4157 = vpop.f32.mrf.mxu0
      %v4158 = vadd.f32 %v3009, %v4157
      %v4159 = vpop.f32.mrf.mxu0
      %4160 = vmatprep.mubr.bf16.mxu0 0
      %4161 = vmatmul.mubr.bf16.gmra.mxu0 %v4023
      %v4162 = vpop.f32.mrf.mxu0
      %v4163 = vadd.f32 %v3009, %v4162
      %v4164 = vpop.f32.mrf.mxu0
      %v4165 = vpop.f32.mrf.mxu0
      %v4166 = vadd.f32 %v3009, %v4165
      %v4167 = vpop.f32.mrf.mxu0
      %4168 = vmatprep.mubr.bf16.mxu0 0
      %4169 = vmatmul.mubr.bf16.gmra.mxu0 %v4026
      %v4170 = vpop.f32.mrf.mxu0
      %v4171 = vadd.f32 %v3009, %v4170
      %v4172 = vpop.f32.mrf.mxu0
      %v4173 = vpop.f32.mrf.mxu0
      %v4174 = vadd.f32 %v3009, %v4173
      %v4175 = vpop.f32.mrf.mxu0
      %4176 = vmatprep.mubr.bf16.mxu0 0
      %4177 = vmatmul.mubr.bf16.gmra.mxu0 %v4029
      %v4178 = vpop.f32.mrf.mxu0
      %v4179 = vadd.f32 %v3009, %v4178
      %v4180 = vpop.f32.mrf.mxu0
      %v4181 = vpop.f32.mrf.mxu0
      %v4182 = vadd.f32 %v3009, %v4181
      %v4183 = vpop.f32.mrf.mxu0
      %4184 = vmatprep.mubr.bf16.mxu0 0
      %4185 = vmatmul.mubr.bf16.gmra.mxu0 %v4032
      %v4186 = vpop.f32.mrf.mxu0
      %v4187 = vadd.f32 %v3009, %v4186
      %v4188 = vpop.f32.mrf.mxu0
      %v4189 = vpop.f32.mrf.mxu0
      %v4190 = vadd.f32 %v3009, %v4189
      %v4191 = vpop.f32.mrf.mxu0
      %4192 = vmatprep.mubr.bf16.mxu0 0
      %4193 = vmatmul.mubr.bf16.gmra.mxu0 %v4035
      %v4194 = vpop.f32.mrf.mxu0
      %v4195 = vadd.f32 %v3009, %v4194
      %v4196 = vpop.f32.mrf.mxu0
      %v4197 = vpop.f32.mrf.mxu0
      %v4198 = vadd.f32 %v3009, %v4197
      %v4199 = vpop.f32.mrf.mxu0
      %4200 = vmatprep.mubr.bf16.mxu0 0
      %4201 = vmatmul.mubr.bf16.gmra.mxu0 %v4038
      %v4202 = vpop.f32.mrf.mxu0
      %v4203 = vadd.f32 %v3009, %v4202
      %v4204 = vpop.f32.mrf.mxu0
      %v4205 = vpop.f32.mrf.mxu0
      %v4206 = vadd.f32 %v3009, %v4205
      %v4207 = vpop.f32.mrf.mxu0
      %4208 = vdwg.mxu0
      %vm4209 = vcmp.gt.f32.partialorder %v4075, 0.0
      %vm4210 = vcmp.gt.f32.partialorder %v4078, 0.0
      %vm4211 = vcmp.gt.f32.partialorder %v4083, 0.0
      %vm4212 = vcmp.gt.f32.partialorder %v4086, 0.0
      %vm4213 = vcmp.gt.f32.partialorder %v4091, 0.0
      %vm4214 = vcmp.gt.f32.partialorder %v4094, 0.0
      %vm4215 = vcmp.gt.f32.partialorder %v4099, 0.0
      %vm4216 = vcmp.gt.f32.partialorder %v4102, 0.0
      %vm4217 = vcmp.gt.f32.partialorder %v4107, 0.0
      %vm4218 = vcmp.gt.f32.partialorder %v4110, 0.0
      %vm4219 = vcmp.gt.f32.partialorder %v4115, 0.0
      %vm4220 = vcmp.gt.f32.partialorder %v4118, 0.0
      %vm4221 = vcmp.gt.f32.partialorder %v4123, 0.0
      %vm4222 = vcmp.gt.f32.partialorder %v4126, 0.0
      %vm4223 = vcmp.gt.f32.partialorder %v4131, 0.0
      %vm4224 = vcmp.gt.f32.partialorder %v4134, 0.0
      %vm4225 = vcmp.gt.f32.partialorder %v4139, 0.0
      %vm4226 = vcmp.gt.f32.partialorder %v4142, 0.0
      %vm4227 = vcmp.gt.f32.partialorder %v4147, 0.0
      %vm4228 = vcmp.gt.f32.partialorder %v4150, 0.0
      %vm4229 = vcmp.gt.f32.partialorder %v4155, 0.0
      %vm4230 = vcmp.gt.f32.partialorder %v4158, 0.0
      %vm4231 = vcmp.gt.f32.partialorder %v4163, 0.0
      %vm4232 = vcmp.gt.f32.partialorder %v4166, 0.0
      %vm4233 = vcmp.gt.f32.partialorder %v4171, 0.0
      %vm4234 = vcmp.gt.f32.partialorder %v4174, 0.0
      %vm4235 = vcmp.gt.f32.partialorder %v4179, 0.0
      %vm4236 = vcmp.gt.f32.partialorder %v4182, 0.0
      %vm4237 = vcmp.gt.f32.partialorder %v4187, 0.0
      %vm4238 = vcmp.gt.f32.partialorder %v4190, 0.0
      %vm4239 = vcmp.gt.f32.partialorder %v4195, 0.0
      %vm4240 = vcmp.gt.f32.partialorder %v4198, 0.0
      %vm4241 = vcmp.gt.f32.partialorder %v4203, 0.0
      %vm4242 = vcmp.gt.f32.partialorder %v4206, 0.0
      %v4243 = vmul.f32 %v4075, -0.76766074
      %v4244 = vmul.f32 %v4078, -0.76766074
      %v4245 = vmul.f32 %v4083, -0.76766074
      %v4246 = vmul.f32 %v4086, -0.76766074
      %v4247 = vmul.f32 %v4091, -0.76766074
      %v4248 = vmul.f32 %v4094, -0.76766074
      %v4249 = vmul.f32 %v4099, -0.76766074
      %v4250 = vmul.f32 %v4102, -0.76766074
      %v4251 = vmul.f32 %v4107, -0.76766074
      %v4252 = vmul.f32 %v4110, -0.76766074
      %v4253 = vmul.f32 %v4115, -0.76766074
      %v4254 = vmul.f32 %v4118, -0.76766074
      %v4255 = vmul.f32 %v4123, -0.76766074
      %v4256 = vmul.f32 %v4126, -0.76766074
      %v4257 = vmul.f32 %v4131, -0.76766074
      %v4258 = vmul.f32 %v4134, -0.76766074
      %v4259 = vmul.f32 %v4139, -0.76766074
      %v4260 = vmul.f32 %v4142, -0.76766074
      %v4261 = vmul.f32 %v4147, -0.76766074
      %v4262 = vmul.f32 %v4150, -0.76766074
      %v4263 = vmul.f32 %v4155, -0.76766074
      %v4264 = vmul.f32 %v4158, -0.76766074
      %v4265 = vmul.f32 %v4163, -0.76766074
      %v4266 = vmul.f32 %v4166, -0.76766074
      %v4267 = vmul.f32 %v4171, -0.76766074
      %v4268 = vmul.f32 %v4174, -0.76766074
      %v4269 = vmul.f32 %v4179, -0.76766074
      %v4270 = vmul.f32 %v4182, -0.76766074
      %v4271 = vmul.f32 %v4187, -0.76766074
      %v4272 = vmul.f32 %v4190, -0.76766074
      %v4273 = vmul.f32 %v4195, -0.76766074
      %v4274 = vmul.f32 %v4198, -0.76766074
      %v4275 = vmul.f32 %v4203, -0.76766074
      %v4276 = vmul.f32 %v4206, -0.76766074
      %v4277 = vsel %vm4209, %v4075, %v4243
      %v4278 = vsel %vm4210, %v4078, %v4244
      %v4279 = vsel %vm4211, %v4083, %v4245
      %v4280 = vsel %vm4212, %v4086, %v4246
      %v4281 = vsel %vm4213, %v4091, %v4247
      %v4282 = vsel %vm4214, %v4094, %v4248
      %v4283 = vsel %vm4215, %v4099, %v4249
      %v4284 = vsel %vm4216, %v4102, %v4250
      %v4285 = vsel %vm4217, %v4107, %v4251
      %v4286 = vsel %vm4218, %v4110, %v4252
      %v4287 = vsel %vm4219, %v4115, %v4253
      %v4288 = vsel %vm4220, %v4118, %v4254
      %v4289 = vsel %vm4221, %v4123, %v4255
      %v4290 = vsel %vm4222, %v4126, %v4256
      %v4291 = vsel %vm4223, %v4131, %v4257
      %v4292 = vsel %vm4224, %v4134, %v4258
      %v4293 = vsel %vm4225, %v4139, %v4259
      %v4294 = vsel %vm4226, %v4142, %v4260
      %v4295 = vsel %vm4227, %v4147, %v4261
      %v4296 = vsel %vm4228, %v4150, %v4262
      %v4297 = vsel %vm4229, %v4155, %v4263
      %v4298 = vsel %vm4230, %v4158, %v4264
      %v4299 = vsel %vm4231, %v4163, %v4265
      %v4300 = vsel %vm4232, %v4166, %v4266
      %v4301 = vsel %vm4233, %v4171, %v4267
      %v4302 = vsel %vm4234, %v4174, %v4268
      %v4303 = vsel %vm4235, %v4179, %v4269
      %v4304 = vsel %vm4236, %v4182, %v4270
      %v4305 = vsel %vm4237, %v4187, %v4271
      %v4306 = vsel %vm4238, %v4190, %v4272
      %v4307 = vsel %vm4239, %v4195, %v4273
      %v4308 = vsel %vm4240, %v4198, %v4274
      %v4309 = vsel %vm4241, %v4203, %v4275
      %v4310 = vsel %vm4242, %v4206, %v4276
      %s4311 = scalar_lea.vmem %s359, 272
      %4312 = vst.msk [vmem:[%s4311] sm:$0xff] %vm3343, %v4277
      %4313 = vst.msk [vmem:[%s4311 + $0x8] sm:$0xff] %vm3343, %v4278
      %4314 = vst.msk [vmem:[%s4311 + $0x10] sm:$0xff] %vm3343, %v4279
      %4315 = vst.msk [vmem:[%s4311 + $0x18] sm:$0xff] %vm3343, %v4280
      %4316 = vst.msk [vmem:[%s4311 + $0x20] sm:$0xff] %vm3343, %v4281
      %4317 = vst.msk [vmem:[%s4311 + $0x28] sm:$0xff] %vm3343, %v4282
      %4318 = vst.msk [vmem:[%s4311 + $0x30] sm:$0xff] %vm3343, %v4283
      %4319 = vst.msk [vmem:[%s4311 + $0x38] sm:$0xff] %vm3343, %v4284
      %4320 = vst.msk [vmem:[%s4311 + $0x40] sm:$0xff] %vm3343, %v4285
      %4321 = vst.msk [vmem:[%s4311 + $0x48] sm:$0xff] %vm3343, %v4286
      %4322 = vst.msk [vmem:[%s4311 + $0x50] sm:$0xff] %vm3343, %v4287
      %4323 = vst.msk [vmem:[%s4311 + $0x58] sm:$0xff] %vm3343, %v4288
      %4324 = vst.msk [vmem:[%s4311 + $0x60] sm:$0xff] %vm3343, %v4289
      %4325 = vst.msk [vmem:[%s4311 + $0x68] sm:$0xff] %vm3343, %v4290
      %4326 = vst.msk [vmem:[%s4311 + $0x70] sm:$0xff] %vm3343, %v4291
      %4327 = vst.msk [vmem:[%s4311 + $0x78] sm:$0xff] %vm3343, %v4292
      %4328 = vst.msk [vmem:[%s4311 + $0x80] sm:$0xff] %vm3343, %v4293
      %4329 = vst.msk [vmem:[%s4311 + $0x88] sm:$0xff] %vm3343, %v4294
      %4330 = vst.msk [vmem:[%s4311 + $0x90] sm:$0xff] %vm3343, %v4295
      %4331 = vst.msk [vmem:[%s4311 + $0x98] sm:$0xff] %vm3343, %v4296
      %4332 = vst.msk [vmem:[%s4311 + $0xa0] sm:$0xff] %vm3343, %v4297
      %4333 = vst.msk [vmem:[%s4311 + $0xa8] sm:$0xff] %vm3343, %v4298
      %4334 = vst.msk [vmem:[%s4311 + $0xb0] sm:$0xff] %vm3343, %v4299
      %4335 = vst.msk [vmem:[%s4311 + $0xb8] sm:$0xff] %vm3343, %v4300
      %4336 = vst.msk [vmem:[%s4311 + $0xc0] sm:$0xff] %vm3343, %v4301
      %4337 = vst.msk [vmem:[%s4311 + $0xc8] sm:$0xff] %vm3343, %v4302
      %4338 = vst.msk [vmem:[%s4311 + $0xd0] sm:$0xff] %vm3343, %v4303
      %4339 = vst.msk [vmem:[%s4311 + $0xd8] sm:$0xff] %vm3343, %v4304
      %4340 = vst.msk [vmem:[%s4311 + $0xe0] sm:$0xff] %vm3343, %v4305
      %4341 = vst.msk [vmem:[%s4311 + $0xe8] sm:$0xff] %vm3343, %v4306
      %4342 = vst.msk [vmem:[%s4311 + $0xf0] sm:$0xff] %vm3343, %v4307
      %4343 = vst.msk [vmem:[%s4311 + $0xf8] sm:$0xff] %vm3343, %v4308
      %4344 = vst.msk [vmem:[%s4311 + $0x100] sm:$0xff] %vm3343, %v4309
      %4345 = vst.msk [vmem:[%s4311 + $0x108] sm:$0xff] %vm3343, %v4310
      %v4346 = vld [vmem:[#allocation3] sm:$0xf]
      %v4347 = vld [vmem:[#allocation3 + $0x4] sm:$0xf]
      %v4348 = vld [vmem:[#allocation3 + $0x8] sm:$0xf]
      %v4349 = vld [vmem:[#allocation3 + $0xc] sm:$0xf]
      %v4350 = vld [vmem:[#allocation3 + $0x10] sm:$0xf]
      %v4351 = vld [vmem:[#allocation3 + $0x14] sm:$0xf]
      %v4352 = vld [vmem:[#allocation3 + $0x18] sm:$0xf]
      %v4353 = vld [vmem:[#allocation3 + $0x1c] sm:$0xf]
      %v4354 = vld [vmem:[#allocation3 + $0x20] sm:$0xf]
      %v4355 = vld [vmem:[#allocation3 + $0x24] sm:$0xf]
      %v4356 = vld [vmem:[#allocation3 + $0x28] sm:$0xf]
      %v4357 = vld [vmem:[#allocation3 + $0x2c] sm:$0xf]
      %v4358 = vld [vmem:[#allocation3 + $0x30] sm:$0xf]
      %v4359 = vld [vmem:[#allocation3 + $0x34] sm:$0xf]
      %v4360 = vld [vmem:[#allocation3 + $0x38] sm:$0xf]
      %v4361 = vld [vmem:[#allocation3 + $0x3c] sm:$0xf]
      %v4362 = vld [vmem:[#allocation3 + $0x40] sm:$0xf]
      %v4363 = vld [vmem:[#allocation3 + $0x44] sm:$0xf]
      %v4364 = vld [vmem:[#allocation3 + $0x48] sm:$0xf]
      %v4365 = vld [vmem:[#allocation3 + $0x4c] sm:$0xf]
      %v4366 = vld [vmem:[#allocation3 + $0x50] sm:$0xf]
      %v4367 = vld [vmem:[#allocation3 + $0x54] sm:$0xf]
      %v4368 = vld [vmem:[#allocation3 + $0x58] sm:$0xf]
      %v4369 = vld [vmem:[#allocation3 + $0x5c] sm:$0xf]
      %v4370 = vld [vmem:[#allocation3 + $0x60] sm:$0xf]
      %v4371 = vld [vmem:[#allocation3 + $0x64] sm:$0xf]
      %v4372 = vld [vmem:[#allocation3 + $0x68] sm:$0xf]
      %v4373 = vld [vmem:[#allocation3 + $0x6c] sm:$0xf]
      %v4374 = vld [vmem:[#allocation3 + $0x70] sm:$0xf]
      %v4375 = vld [vmem:[#allocation3 + $0x74] sm:$0xf]
      %v4376 = vld [vmem:[#allocation3 + $0x78] sm:$0xf]
      %v4377 = vld [vmem:[#allocation3 + $0x7c] sm:$0xf]
      %v4378 = vld [vmem:[#allocation3 + $0x80] sm:$0xf]
      %v4379 = vld [vmem:[#allocation3 + $0x84] sm:$0xf]
      %v4380 = vld [vmem:[#allocation3 + $0x88] sm:$0x1]
      %s4381 = scalar_lea.vmem %s6, 16
      %v4382 = vld [vmem:[%s4381] sm:$0xf]
      %v4383 = vld [vmem:[%s4381 + $0x4] sm:$0xf]
      %v4419 = vunpack.c.l.b16 %v4346
      %v4420 = vunpack.c.l.b16 %v4347
      %v4421 = vunpack.c.l.b16 %v4348
      %v4422 = vunpack.c.l.b16 %v4349
      %v4423 = vunpack.c.l.b16 %v4350
      %v4424 = vunpack.c.l.b16 %v4351
      %v4425 = vunpack.c.l.b16 %v4352
      %v4426 = vunpack.c.l.b16 %v4353
      %v4427 = vunpack.c.l.b16 %v4354
      %v4428 = vunpack.c.l.b16 %v4355
      %v4429 = vunpack.c.l.b16 %v4356
      %v4430 = vunpack.c.l.b16 %v4357
      %v4431 = vunpack.c.l.b16 %v4358
      %v4432 = vunpack.c.l.b16 %v4359
      %v4433 = vunpack.c.l.b16 %v4360
      %v4434 = vunpack.c.l.b16 %v4361
      %v4435 = vunpack.c.l.b16 %v4362
      %v4436 = vunpack.c.l.b16 %v4363
      %v4437 = vunpack.c.l.b16 %v4364
      %v4438 = vunpack.c.l.b16 %v4365
      %v4439 = vunpack.c.l.b16 %v4366
      %v4440 = vunpack.c.l.b16 %v4367
      %v4441 = vunpack.c.l.b16 %v4368
      %v4442 = vunpack.c.l.b16 %v4369
      %v4443 = vunpack.c.l.b16 %v4370
      %v4444 = vunpack.c.l.b16 %v4371
      %v4445 = vunpack.c.l.b16 %v4372
      %v4446 = vunpack.c.l.b16 %v4373
      %v4447 = vunpack.c.l.b16 %v4374
      %v4448 = vunpack.c.l.b16 %v4375
      %v4449 = vunpack.c.l.b16 %v4376
      %v4450 = vunpack.c.l.b16 %v4377
      %v4451 = vunpack.c.l.b16 %v4378
      %v4452 = vunpack.c.l.b16 %v4379
      %v4453 = vunpack.c.l.b16 %v4380
      %v4454 = vpack.c.b16 %v4420, %v4419
      %v4455 = vpack.c.b16 %v4422, %v4421
      %v4456 = vpack.c.b16 %v4424, %v4423
      %v4457 = vpack.c.b16 %v4426, %v4425
      %v4458 = vpack.c.b16 %v4428, %v4427
      %v4459 = vpack.c.b16 %v4430, %v4429
      %v4460 = vpack.c.b16 %v4432, %v4431
      %v4461 = vpack.c.b16 %v4434, %v4433
      %v4462 = vpack.c.b16 %v4436, %v4435
      %v4463 = vpack.c.b16 %v4438, %v4437
      %v4464 = vpack.c.b16 %v4440, %v4439
      %v4465 = vpack.c.b16 %v4442, %v4441
      %v4466 = vpack.c.b16 %v4444, %v4443
      %v4467 = vpack.c.b16 %v4446, %v4445
      %v4468 = vpack.c.b16 %v4448, %v4447
      %v4469 = vpack.c.b16 %v4450, %v4449
      %v4470 = vpack.c.b16 %v4452, %v4451
      %v4471 = vpack.c.b16 %v4453, %v4453
      %v4473 = vshrl.u32 %v4454, 16
      %v4475 = vshll.u32 %v4454, 16
      %v4477 = vrot.slane %v4475, 1
      %v4478 = vor.u32 %v4473, %v4477
      %v4480 = vshll.u32 %v4455, 16
      %v4482 = vrot.slane %v4480, 1
      %v4483 = vsel %vm1108, %v4478, %v4482
      %v4484 = vshrl.u32 %v4455, 16
      %v4486 = vor.u32 %v4484, %v4482
      %v4488 = vshll.u32 %v4456, 16
      %v4490 = vrot.slane %v4488, 1
      %v4491 = vsel %vm1108, %v4486, %v4490
      %v4492 = vshrl.u32 %v4456, 16
      %v4494 = vor.u32 %v4492, %v4490
      %v4496 = vshll.u32 %v4457, 16
      %v4498 = vrot.slane %v4496, 1
      %v4499 = vsel %vm1108, %v4494, %v4498
      %v4500 = vshrl.u32 %v4457, 16
      %v4502 = vor.u32 %v4500, %v4498
      %v4504 = vshll.u32 %v4458, 16
      %v4506 = vrot.slane %v4504, 1
      %v4507 = vsel %vm1108, %v4502, %v4506
      %v4508 = vshrl.u32 %v4458, 16
      %v4510 = vor.u32 %v4508, %v4506
      %v4512 = vshll.u32 %v4459, 16
      %v4514 = vrot.slane %v4512, 1
      %v4515 = vsel %vm1108, %v4510, %v4514
      %v4516 = vshrl.u32 %v4459, 16
      %v4518 = vor.u32 %v4516, %v4514
      %v4520 = vshll.u32 %v4460, 16
      %v4522 = vrot.slane %v4520, 1
      %v4523 = vsel %vm1108, %v4518, %v4522
      %v4524 = vshrl.u32 %v4460, 16
      %v4526 = vor.u32 %v4524, %v4522
      %v4528 = vshll.u32 %v4461, 16
      %v4530 = vrot.slane %v4528, 1
      %v4531 = vsel %vm1108, %v4526, %v4530
      %v4532 = vshrl.u32 %v4461, 16
      %v4534 = vor.u32 %v4532, %v4530
      %v4536 = vshll.u32 %v4462, 16
      %v4538 = vrot.slane %v4536, 1
      %v4539 = vsel %vm1108, %v4534, %v4538
      %v4540 = vshrl.u32 %v4462, 16
      %v4542 = vor.u32 %v4540, %v4538
      %v4544 = vshll.u32 %v4463, 16
      %v4546 = vrot.slane %v4544, 1
      %v4547 = vsel %vm1108, %v4542, %v4546
      %v4548 = vshrl.u32 %v4463, 16
      %v4550 = vor.u32 %v4548, %v4546
      %v4552 = vshll.u32 %v4464, 16
      %v4554 = vrot.slane %v4552, 1
      %v4555 = vsel %vm1108, %v4550, %v4554
      %v4556 = vshrl.u32 %v4464, 16
      %v4558 = vor.u32 %v4556, %v4554
      %v4560 = vshll.u32 %v4465, 16
      %v4562 = vrot.slane %v4560, 1
      %v4563 = vsel %vm1108, %v4558, %v4562
      %v4564 = vshrl.u32 %v4465, 16
      %v4566 = vor.u32 %v4564, %v4562
      %v4568 = vshll.u32 %v4466, 16
      %v4570 = vrot.slane %v4568, 1
      %v4571 = vsel %vm1108, %v4566, %v4570
      %v4572 = vshrl.u32 %v4466, 16
      %v4574 = vor.u32 %v4572, %v4570
      %v4576 = vshll.u32 %v4467, 16
      %v4578 = vrot.slane %v4576, 1
      %v4579 = vsel %vm1108, %v4574, %v4578
      %v4580 = vshrl.u32 %v4467, 16
      %v4582 = vor.u32 %v4580, %v4578
      %v4584 = vshll.u32 %v4468, 16
      %v4586 = vrot.slane %v4584, 1
      %v4587 = vsel %vm1108, %v4582, %v4586
      %v4588 = vshrl.u32 %v4468, 16
      %v4590 = vor.u32 %v4588, %v4586
      %v4592 = vshll.u32 %v4469, 16
      %v4594 = vrot.slane %v4592, 1
      %v4595 = vsel %vm1108, %v4590, %v4594
      %v4596 = vshrl.u32 %v4469, 16
      %v4598 = vor.u32 %v4596, %v4594
      %v4600 = vshll.u32 %v4470, 16
      %v4602 = vrot.slane %v4600, 1
      %v4603 = vsel %vm1108, %v4598, %v4602
      %v4604 = vshrl.u32 %v4470, 16
      %v4606 = vor.u32 %v4604, %v4602
      %v4608 = vshll.u32 %v4471, 16
      %v4610 = vrot.slane %v4608, 1
      %v4611 = vsel %vm1108, %v4606, %v4610
      %v4614 = vunpack.c.l.b16 %v4382
      %v4615 = vunpack.c.l.b16 %v4383
      %v4616 = vpack.c.b16 %v4615, %v4614
      %v4619 = vsel %vm2665, %v4483, 0
      %v4622 = vsel %vm2665, %v4491, 0
      %v4625 = vsel %vm2665, %v4499, 0
      %v4628 = vsel %vm2665, %v4507, 0
      %v4631 = vsel %vm2665, %v4515, 0
      %v4634 = vsel %vm2665, %v4523, 0
      %v4637 = vsel %vm2665, %v4531, 0
      %v4640 = vsel %vm2665, %v4539, 0
      %v4643 = vsel %vm2665, %v4547, 0
      %v4646 = vsel %vm2665, %v4555, 0
      %v4649 = vsel %vm2665, %v4563, 0
      %v4652 = vsel %vm2665, %v4571, 0
      %v4655 = vsel %vm2665, %v4579, 0
      %v4658 = vsel %vm2665, %v4587, 0
      %v4661 = vsel %vm2665, %v4595, 0
      %v4664 = vsel %vm2665, %v4603, 0
      %v4667 = vsel %vm2665, %v4611, 0
      %4669 = vmatprep.subr.bf16.mxu0 0
      %4670 = vmatpush1.bf16.msra.mxu0 0
      %4671 = vmatprep.subr.bf16.mxu0 0
      %4672 = vmatpush1.bf16.msra.mxu0 0
      %4673 = vmatprep.subr.bf16.mxu0 0
      %4674 = vmatpush1.bf16.msra.mxu0 0
      %4675 = vmatprep.subr.bf16.mxu0 0
      %4676 = vmatpush1.bf16.msra.mxu0 0
      %4677 = vmatprep.subr.bf16.mxu0 0
      %4678 = vmatpush1.bf16.msra.mxu0 0
      %4679 = vmatprep.subr.bf16.mxu0 0
      %4680 = vmatpush1.bf16.msra.mxu0 0
      %4681 = vmatprep.subr.bf16.mxu0 0
      %4682 = vmatpush1.bf16.msra.mxu0 0
      %4683 = vmatprep.subr.bf16.mxu0 0
      %4684 = vmatpush1.bf16.msra.mxu0 %v4616
      %4685 = vmatprep.subr.bf16.mxu0 0
      %4686 = vmatpush2.bf16.msra.mxu0 0
      %4687 = vmatprep.subr.bf16.mxu0 0
      %4688 = vmatpush2.bf16.msra.mxu0 0
      %4689 = vmatprep.subr.bf16.mxu0 0
      %4690 = vmatpush2.bf16.msra.mxu0 0
      %4691 = vmatprep.subr.bf16.mxu0 0
      %4692 = vmatpush2.bf16.msra.mxu0 0
      %4693 = vmatprep.subr.bf16.mxu0 0
      %4694 = vmatpush2.bf16.msra.mxu0 0
      %4695 = vmatprep.subr.bf16.mxu0 0
      %4696 = vmatpush2.bf16.msra.mxu0 0
      %4697 = vmatprep.subr.bf16.mxu0 0
      %4698 = vmatpush2.bf16.msra.mxu0 0
      %4699 = vmatprep.subr.bf16.mxu0 0
      %4700 = vmatpush2.bf16.msra.mxu0 0
      %4701 = vmatprep.mubr.bf16.mxu0 0
      %4702 = vmatmul.mubr.bf16.gmra.mxu0 %v4619
      %v4703 = vpop.f32.mrf.mxu0
      %v4704 = vadd.f32 %v2572, %v4703
      %v4705 = vpop.f32.mrf.mxu0
      %v4706 = vpop.f32.mrf.mxu0
      %v4707 = vadd.f32 %v2572, %v4706
      %v4708 = vpop.f32.mrf.mxu0
      %4709 = vmatprep.mubr.bf16.mxu0 0
      %4710 = vmatmul.mubr.bf16.gmra.mxu0 %v4622
      %v4711 = vpop.f32.mrf.mxu0
      %v4712 = vadd.f32 %v2572, %v4711
      %v4713 = vpop.f32.mrf.mxu0
      %v4714 = vpop.f32.mrf.mxu0
      %v4715 = vadd.f32 %v2572, %v4714
      %v4716 = vpop.f32.mrf.mxu0
      %4717 = vmatprep.mubr.bf16.mxu0 0
      %4718 = vmatmul.mubr.bf16.gmra.mxu0 %v4625
      %v4719 = vpop.f32.mrf.mxu0
      %v4720 = vadd.f32 %v2572, %v4719
      %v4721 = vpop.f32.mrf.mxu0
      %v4722 = vpop.f32.mrf.mxu0
      %v4723 = vadd.f32 %v2572, %v4722
      %v4724 = vpop.f32.mrf.mxu0
      %4725 = vmatprep.mubr.bf16.mxu0 0
      %4726 = vmatmul.mubr.bf16.gmra.mxu0 %v4628
      %v4727 = vpop.f32.mrf.mxu0
      %v4728 = vadd.f32 %v2572, %v4727
      %v4729 = vpop.f32.mrf.mxu0
      %v4730 = vpop.f32.mrf.mxu0
      %v4731 = vadd.f32 %v2572, %v4730
      %v4732 = vpop.f32.mrf.mxu0
      %4733 = vmatprep.mubr.bf16.mxu0 0
      %4734 = vmatmul.mubr.bf16.gmra.mxu0 %v4631
      %v4735 = vpop.f32.mrf.mxu0
      %v4736 = vadd.f32 %v2572, %v4735
      %v4737 = vpop.f32.mrf.mxu0
      %v4738 = vpop.f32.mrf.mxu0
      %v4739 = vadd.f32 %v2572, %v4738
      %v4740 = vpop.f32.mrf.mxu0
      %4741 = vmatprep.mubr.bf16.mxu0 0
      %4742 = vmatmul.mubr.bf16.gmra.mxu0 %v4634
      %v4743 = vpop.f32.mrf.mxu0
      %v4744 = vadd.f32 %v2572, %v4743
      %v4745 = vpop.f32.mrf.mxu0
      %v4746 = vpop.f32.mrf.mxu0
      %v4747 = vadd.f32 %v2572, %v4746
      %v4748 = vpop.f32.mrf.mxu0
      %4749 = vmatprep.mubr.bf16.mxu0 0
      %4750 = vmatmul.mubr.bf16.gmra.mxu0 %v4637
      %v4751 = vpop.f32.mrf.mxu0
      %v4752 = vadd.f32 %v2572, %v4751
      %v4753 = vpop.f32.mrf.mxu0
      %v4754 = vpop.f32.mrf.mxu0
      %v4755 = vadd.f32 %v2572, %v4754
      %v4756 = vpop.f32.mrf.mxu0
      %4757 = vmatprep.mubr.bf16.mxu0 0
      %4758 = vmatmul.mubr.bf16.gmra.mxu0 %v4640
      %v4759 = vpop.f32.mrf.mxu0
      %v4760 = vadd.f32 %v2572, %v4759
      %v4761 = vpop.f32.mrf.mxu0
      %v4762 = vpop.f32.mrf.mxu0
      %v4763 = vadd.f32 %v2572, %v4762
      %v4764 = vpop.f32.mrf.mxu0
      %4765 = vmatprep.mubr.bf16.mxu0 0
      %4766 = vmatmul.mubr.bf16.gmra.mxu0 %v4643
      %v4767 = vpop.f32.mrf.mxu0
      %v4768 = vadd.f32 %v2572, %v4767
      %v4769 = vpop.f32.mrf.mxu0
      %v4770 = vpop.f32.mrf.mxu0
      %v4771 = vadd.f32 %v2572, %v4770
      %v4772 = vpop.f32.mrf.mxu0
      %4773 = vmatprep.mubr.bf16.mxu0 0
      %4774 = vmatmul.mubr.bf16.gmra.mxu0 %v4646
      %v4775 = vpop.f32.mrf.mxu0
      %v4776 = vadd.f32 %v2572, %v4775
      %v4777 = vpop.f32.mrf.mxu0
      %v4778 = vpop.f32.mrf.mxu0
      %v4779 = vadd.f32 %v2572, %v4778
      %v4780 = vpop.f32.mrf.mxu0
      %4781 = vmatprep.mubr.bf16.mxu0 0
      %4782 = vmatmul.mubr.bf16.gmra.mxu0 %v4649
      %v4783 = vpop.f32.mrf.mxu0
      %v4784 = vadd.f32 %v2572, %v4783
      %v4785 = vpop.f32.mrf.mxu0
      %v4786 = vpop.f32.mrf.mxu0
      %v4787 = vadd.f32 %v2572, %v4786
      %v4788 = vpop.f32.mrf.mxu0
      %4789 = vmatprep.mubr.bf16.mxu0 0
      %4790 = vmatmul.mubr.bf16.gmra.mxu0 %v4652
      %v4791 = vpop.f32.mrf.mxu0
      %v4792 = vadd.f32 %v2572, %v4791
      %v4793 = vpop.f32.mrf.mxu0
      %v4794 = vpop.f32.mrf.mxu0
      %v4795 = vadd.f32 %v2572, %v4794
      %v4796 = vpop.f32.mrf.mxu0
      %4797 = vmatprep.mubr.bf16.mxu0 0
      %4798 = vmatmul.mubr.bf16.gmra.mxu0 %v4655
      %v4799 = vpop.f32.mrf.mxu0
      %v4800 = vadd.f32 %v2572, %v4799
      %v4801 = vpop.f32.mrf.mxu0
      %v4802 = vpop.f32.mrf.mxu0
      %v4803 = vadd.f32 %v2572, %v4802
      %v4804 = vpop.f32.mrf.mxu0
      %4805 = vmatprep.mubr.bf16.mxu0 0
      %4806 = vmatmul.mubr.bf16.gmra.mxu0 %v4658
      %v4807 = vpop.f32.mrf.mxu0
      %v4808 = vadd.f32 %v2572, %v4807
      %v4809 = vpop.f32.mrf.mxu0
      %v4810 = vpop.f32.mrf.mxu0
      %v4811 = vadd.f32 %v2572, %v4810
      %v4812 = vpop.f32.mrf.mxu0
      %4813 = vmatprep.mubr.bf16.mxu0 0
      %4814 = vmatmul.mubr.bf16.gmra.mxu0 %v4661
      %v4815 = vpop.f32.mrf.mxu0
      %v4816 = vadd.f32 %v2572, %v4815
      %v4817 = vpop.f32.mrf.mxu0
      %v4818 = vpop.f32.mrf.mxu0
      %v4819 = vadd.f32 %v2572, %v4818
      %v4820 = vpop.f32.mrf.mxu0
      %4821 = vmatprep.mubr.bf16.mxu0 0
      %4822 = vmatmul.mubr.bf16.gmra.mxu0 %v4664
      %v4823 = vpop.f32.mrf.mxu0
      %v4824 = vadd.f32 %v2572, %v4823
      %v4825 = vpop.f32.mrf.mxu0
      %v4826 = vpop.f32.mrf.mxu0
      %v4827 = vadd.f32 %v2572, %v4826
      %v4828 = vpop.f32.mrf.mxu0
      %4829 = vmatprep.mubr.bf16.mxu0 0
      %4830 = vmatmul.mubr.bf16.gmra.mxu0 %v4667
      %v4831 = vpop.f32.mrf.mxu0
      %v4832 = vadd.f32 %v2572, %v4831
      %v4833 = vpop.f32.mrf.mxu0
      %v4834 = vpop.f32.mrf.mxu0
      %v4835 = vadd.f32 %v2572, %v4834
      %v4836 = vpop.f32.mrf.mxu0
      %4837 = vdwg.mxu0
      %vm4838 = vcmp.gt.f32.partialorder %v4704, 0.0
      %vm4839 = vcmp.gt.f32.partialorder %v4707, 0.0
      %vm4840 = vcmp.gt.f32.partialorder %v4712, 0.0
      %vm4841 = vcmp.gt.f32.partialorder %v4715, 0.0
      %vm4842 = vcmp.gt.f32.partialorder %v4720, 0.0
      %vm4843 = vcmp.gt.f32.partialorder %v4723, 0.0
      %vm4844 = vcmp.gt.f32.partialorder %v4728, 0.0
      %vm4845 = vcmp.gt.f32.partialorder %v4731, 0.0
      %vm4846 = vcmp.gt.f32.partialorder %v4736, 0.0
      %vm4847 = vcmp.gt.f32.partialorder %v4739, 0.0
      %vm4848 = vcmp.gt.f32.partialorder %v4744, 0.0
      %vm4849 = vcmp.gt.f32.partialorder %v4747, 0.0
      %vm4850 = vcmp.gt.f32.partialorder %v4752, 0.0
      %vm4851 = vcmp.gt.f32.partialorder %v4755, 0.0
      %vm4852 = vcmp.gt.f32.partialorder %v4760, 0.0
      %vm4853 = vcmp.gt.f32.partialorder %v4763, 0.0
      %vm4854 = vcmp.gt.f32.partialorder %v4768, 0.0
      %vm4855 = vcmp.gt.f32.partialorder %v4771, 0.0
      %vm4856 = vcmp.gt.f32.partialorder %v4776, 0.0
      %vm4857 = vcmp.gt.f32.partialorder %v4779, 0.0
      %vm4858 = vcmp.gt.f32.partialorder %v4784, 0.0
      %vm4859 = vcmp.gt.f32.partialorder %v4787, 0.0
      %vm4860 = vcmp.gt.f32.partialorder %v4792, 0.0
      %vm4861 = vcmp.gt.f32.partialorder %v4795, 0.0
      %vm4862 = vcmp.gt.f32.partialorder %v4800, 0.0
      %vm4863 = vcmp.gt.f32.partialorder %v4803, 0.0
      %vm4864 = vcmp.gt.f32.partialorder %v4808, 0.0
      %vm4865 = vcmp.gt.f32.partialorder %v4811, 0.0
      %vm4866 = vcmp.gt.f32.partialorder %v4816, 0.0
      %vm4867 = vcmp.gt.f32.partialorder %v4819, 0.0
      %vm4868 = vcmp.gt.f32.partialorder %v4824, 0.0
      %vm4869 = vcmp.gt.f32.partialorder %v4827, 0.0
      %vm4870 = vcmp.gt.f32.partialorder %v4832, 0.0
      %vm4871 = vcmp.gt.f32.partialorder %v4835, 0.0
      %v4872 = vmul.f32 %v4704, -0.76766074
      %v4873 = vmul.f32 %v4707, -0.76766074
      %v4874 = vmul.f32 %v4712, -0.76766074
      %v4875 = vmul.f32 %v4715, -0.76766074
      %v4876 = vmul.f32 %v4720, -0.76766074
      %v4877 = vmul.f32 %v4723, -0.76766074
      %v4878 = vmul.f32 %v4728, -0.76766074
      %v4879 = vmul.f32 %v4731, -0.76766074
      %v4880 = vmul.f32 %v4736, -0.76766074
      %v4881 = vmul.f32 %v4739, -0.76766074
      %v4882 = vmul.f32 %v4744, -0.76766074
      %v4883 = vmul.f32 %v4747, -0.76766074
      %v4884 = vmul.f32 %v4752, -0.76766074
      %v4885 = vmul.f32 %v4755, -0.76766074
      %v4886 = vmul.f32 %v4760, -0.76766074
      %v4887 = vmul.f32 %v4763, -0.76766074
      %v4888 = vmul.f32 %v4768, -0.76766074
      %v4889 = vmul.f32 %v4771, -0.76766074
      %v4890 = vmul.f32 %v4776, -0.76766074
      %v4891 = vmul.f32 %v4779, -0.76766074
      %v4892 = vmul.f32 %v4784, -0.76766074
      %v4893 = vmul.f32 %v4787, -0.76766074
      %v4894 = vmul.f32 %v4792, -0.76766074
      %v4895 = vmul.f32 %v4795, -0.76766074
      %v4896 = vmul.f32 %v4800, -0.76766074
      %v4897 = vmul.f32 %v4803, -0.76766074
      %v4898 = vmul.f32 %v4808, -0.76766074
      %v4899 = vmul.f32 %v4811, -0.76766074
      %v4900 = vmul.f32 %v4816, -0.76766074
      %v4901 = vmul.f32 %v4819, -0.76766074
      %v4902 = vmul.f32 %v4824, -0.76766074
      %v4903 = vmul.f32 %v4827, -0.76766074
      %v4904 = vmul.f32 %v4832, -0.76766074
      %v4905 = vmul.f32 %v4835, -0.76766074
      %v4906 = vsel %vm4838, %v4704, %v4872
      %v4907 = vsel %vm4839, %v4707, %v4873
      %v4908 = vsel %vm4840, %v4712, %v4874
      %v4909 = vsel %vm4841, %v4715, %v4875
      %v4910 = vsel %vm4842, %v4720, %v4876
      %v4911 = vsel %vm4843, %v4723, %v4877
      %v4912 = vsel %vm4844, %v4728, %v4878
      %v4913 = vsel %vm4845, %v4731, %v4879
      %v4914 = vsel %vm4846, %v4736, %v4880
      %v4915 = vsel %vm4847, %v4739, %v4881
      %v4916 = vsel %vm4848, %v4744, %v4882
      %v4917 = vsel %vm4849, %v4747, %v4883
      %v4918 = vsel %vm4850, %v4752, %v4884
      %v4919 = vsel %vm4851, %v4755, %v4885
      %v4920 = vsel %vm4852, %v4760, %v4886
      %v4921 = vsel %vm4853, %v4763, %v4887
      %v4922 = vsel %vm4854, %v4768, %v4888
      %v4923 = vsel %vm4855, %v4771, %v4889
      %v4924 = vsel %vm4856, %v4776, %v4890
      %v4925 = vsel %vm4857, %v4779, %v4891
      %v4926 = vsel %vm4858, %v4784, %v4892
      %v4927 = vsel %vm4859, %v4787, %v4893
      %v4928 = vsel %vm4860, %v4792, %v4894
      %v4929 = vsel %vm4861, %v4795, %v4895
      %v4930 = vsel %vm4862, %v4800, %v4896
      %v4931 = vsel %vm4863, %v4803, %v4897
      %v4932 = vsel %vm4864, %v4808, %v4898
      %v4933 = vsel %vm4865, %v4811, %v4899
      %v4934 = vsel %vm4866, %v4816, %v4900
      %v4935 = vsel %vm4867, %v4819, %v4901
      %v4936 = vsel %vm4868, %v4824, %v4902
      %v4937 = vsel %vm4869, %v4827, %v4903
      %v4938 = vsel %vm4870, %v4832, %v4904
      %v4939 = vsel %vm4871, %v4835, %v4905
      %v4940 = vpack.c.bf16 %v4907, %v4906
      %v4941 = vpack.c.bf16 %v4909, %v4908
      %v4942 = vpack.c.bf16 %v4911, %v4910
      %v4943 = vpack.c.bf16 %v4913, %v4912
      %v4944 = vpack.c.bf16 %v4915, %v4914
      %v4945 = vpack.c.bf16 %v4917, %v4916
      %v4946 = vpack.c.bf16 %v4919, %v4918
      %v4947 = vpack.c.bf16 %v4921, %v4920
      %v4948 = vpack.c.bf16 %v4923, %v4922
      %v4949 = vpack.c.bf16 %v4925, %v4924
      %v4950 = vpack.c.bf16 %v4927, %v4926
      %v4951 = vpack.c.bf16 %v4929, %v4928
      %v4952 = vpack.c.bf16 %v4931, %v4930
      %v4953 = vpack.c.bf16 %v4933, %v4932
      %v4954 = vpack.c.bf16 %v4935, %v4934
      %v4955 = vpack.c.bf16 %v4937, %v4936
      %v4956 = vpack.c.bf16 %v4939, %v4938
      %v4958 = vsel %vm3016, %v4940, 0
      %v4961 = vsel %vm3016, %v4941, 0
      %v4964 = vsel %vm3016, %v4942, 0
      %v4967 = vsel %vm3016, %v4943, 0
      %v4970 = vsel %vm3016, %v4944, 0
      %v4973 = vsel %vm3016, %v4945, 0
      %v4976 = vsel %vm3016, %v4946, 0
      %v4979 = vsel %vm3016, %v4947, 0
      %v4982 = vsel %vm3016, %v4948, 0
      %v4985 = vsel %vm3016, %v4949, 0
      %v4988 = vsel %vm3016, %v4950, 0
      %v4991 = vsel %vm3016, %v4951, 0
      %v4994 = vsel %vm3016, %v4952, 0
      %v4997 = vsel %vm3016, %v4953, 0
      %v5000 = vsel %vm3016, %v4954, 0
      %v5003 = vsel %vm3016, %v4955, 0
      %v5006 = vsel %vm3016, %v4956, 0
      %5008 = vmatprep.subr.bf16.mxu0 0
      %5009 = vmatpush1.bf16.msra.mxu0 0
      %5010 = vmatprep.subr.bf16.mxu0 0
      %5011 = vmatpush1.bf16.msra.mxu0 0
      %5012 = vmatprep.subr.bf16.mxu0 0
      %5013 = vmatpush1.bf16.msra.mxu0 0
      %5014 = vmatprep.subr.bf16.mxu0 0
      %5015 = vmatpush1.bf16.msra.mxu0 0
      %5016 = vmatprep.subr.bf16.mxu0 0
      %5017 = vmatpush1.bf16.msra.mxu0 0
      %5018 = vmatprep.subr.bf16.mxu0 0
      %5019 = vmatpush1.bf16.msra.mxu0 0
      %5020 = vmatprep.subr.bf16.mxu0 0
      %5021 = vmatpush1.bf16.msra.mxu0 0
      %5022 = vmatprep.subr.bf16.mxu0 0
      %5023 = vmatpush1.bf16.msra.mxu0 %v3070
      %5024 = vmatprep.subr.bf16.mxu0 0
      %5025 = vmatpush2.bf16.msra.mxu0 0
      %5026 = vmatprep.subr.bf16.mxu0 0
      %5027 = vmatpush2.bf16.msra.mxu0 0
      %5028 = vmatprep.subr.bf16.mxu0 0
      %5029 = vmatpush2.bf16.msra.mxu0 0
      %5030 = vmatprep.subr.bf16.mxu0 0
      %5031 = vmatpush2.bf16.msra.mxu0 0
      %5032 = vmatprep.subr.bf16.mxu0 0
      %5033 = vmatpush2.bf16.msra.mxu0 0
      %5034 = vmatprep.subr.bf16.mxu0 0
      %5035 = vmatpush2.bf16.msra.mxu0 0
      %5036 = vmatprep.subr.bf16.mxu0 0
      %5037 = vmatpush2.bf16.msra.mxu0 0
      %5038 = vmatprep.subr.bf16.mxu0 0
      %5039 = vmatpush2.bf16.msra.mxu0 0
      %5040 = vmatprep.mubr.bf16.mxu0 0
      %5041 = vmatmul.mubr.bf16.gmra.mxu0 %v4958
      %v5042 = vpop.f32.mrf.mxu0
      %v5043 = vadd.f32 %v3009, %v5042
      %v5044 = vpop.f32.mrf.mxu0
      %v5045 = vpop.f32.mrf.mxu0
      %v5046 = vadd.f32 %v3009, %v5045
      %v5047 = vpop.f32.mrf.mxu0
      %5048 = vmatprep.mubr.bf16.mxu0 0
      %5049 = vmatmul.mubr.bf16.gmra.mxu0 %v4961
      %v5050 = vpop.f32.mrf.mxu0
      %v5051 = vadd.f32 %v3009, %v5050
      %v5052 = vpop.f32.mrf.mxu0
      %v5053 = vpop.f32.mrf.mxu0
      %v5054 = vadd.f32 %v3009, %v5053
      %v5055 = vpop.f32.mrf.mxu0
      %5056 = vmatprep.mubr.bf16.mxu0 0
      %5057 = vmatmul.mubr.bf16.gmra.mxu0 %v4964
      %v5058 = vpop.f32.mrf.mxu0
      %v5059 = vadd.f32 %v3009, %v5058
      %v5060 = vpop.f32.mrf.mxu0
      %v5061 = vpop.f32.mrf.mxu0
      %v5062 = vadd.f32 %v3009, %v5061
      %v5063 = vpop.f32.mrf.mxu0
      %5064 = vmatprep.mubr.bf16.mxu0 0
      %5065 = vmatmul.mubr.bf16.gmra.mxu0 %v4967
      %v5066 = vpop.f32.mrf.mxu0
      %v5067 = vadd.f32 %v3009, %v5066
      %v5068 = vpop.f32.mrf.mxu0
      %v5069 = vpop.f32.mrf.mxu0
      %v5070 = vadd.f32 %v3009, %v5069
      %v5071 = vpop.f32.mrf.mxu0
      %5072 = vmatprep.mubr.bf16.mxu0 0
      %5073 = vmatmul.mubr.bf16.gmra.mxu0 %v4970
      %v5074 = vpop.f32.mrf.mxu0
      %v5075 = vadd.f32 %v3009, %v5074
      %v5076 = vpop.f32.mrf.mxu0
      %v5077 = vpop.f32.mrf.mxu0
      %v5078 = vadd.f32 %v3009, %v5077
      %v5079 = vpop.f32.mrf.mxu0
      %5080 = vmatprep.mubr.bf16.mxu0 0
      %5081 = vmatmul.mubr.bf16.gmra.mxu0 %v4973
      %v5082 = vpop.f32.mrf.mxu0
      %v5083 = vadd.f32 %v3009, %v5082
      %v5084 = vpop.f32.mrf.mxu0
      %v5085 = vpop.f32.mrf.mxu0
      %v5086 = vadd.f32 %v3009, %v5085
      %v5087 = vpop.f32.mrf.mxu0
      %5088 = vmatprep.mubr.bf16.mxu0 0
      %5089 = vmatmul.mubr.bf16.gmra.mxu0 %v4976
      %v5090 = vpop.f32.mrf.mxu0
      %v5091 = vadd.f32 %v3009, %v5090
      %v5092 = vpop.f32.mrf.mxu0
      %v5093 = vpop.f32.mrf.mxu0
      %v5094 = vadd.f32 %v3009, %v5093
      %v5095 = vpop.f32.mrf.mxu0
      %5096 = vmatprep.mubr.bf16.mxu0 0
      %5097 = vmatmul.mubr.bf16.gmra.mxu0 %v4979
      %v5098 = vpop.f32.mrf.mxu0
      %v5099 = vadd.f32 %v3009, %v5098
      %v5100 = vpop.f32.mrf.mxu0
      %v5101 = vpop.f32.mrf.mxu0
      %v5102 = vadd.f32 %v3009, %v5101
      %v5103 = vpop.f32.mrf.mxu0
      %5104 = vmatprep.mubr.bf16.mxu0 0
      %5105 = vmatmul.mubr.bf16.gmra.mxu0 %v4982
      %v5106 = vpop.f32.mrf.mxu0
      %v5107 = vadd.f32 %v3009, %v5106
      %v5108 = vpop.f32.mrf.mxu0
      %v5109 = vpop.f32.mrf.mxu0
      %v5110 = vadd.f32 %v3009, %v5109
      %v5111 = vpop.f32.mrf.mxu0
      %5112 = vmatprep.mubr.bf16.mxu0 0
      %5113 = vmatmul.mubr.bf16.gmra.mxu0 %v4985
      %v5114 = vpop.f32.mrf.mxu0
      %v5115 = vadd.f32 %v3009, %v5114
      %v5116 = vpop.f32.mrf.mxu0
      %v5117 = vpop.f32.mrf.mxu0
      %v5118 = vadd.f32 %v3009, %v5117
      %v5119 = vpop.f32.mrf.mxu0
      %5120 = vmatprep.mubr.bf16.mxu0 0
      %5121 = vmatmul.mubr.bf16.gmra.mxu0 %v4988
      %v5122 = vpop.f32.mrf.mxu0
      %v5123 = vadd.f32 %v3009, %v5122
      %v5124 = vpop.f32.mrf.mxu0
      %v5125 = vpop.f32.mrf.mxu0
      %v5126 = vadd.f32 %v3009, %v5125
      %v5127 = vpop.f32.mrf.mxu0
      %5128 = vmatprep.mubr.bf16.mxu0 0
      %5129 = vmatmul.mubr.bf16.gmra.mxu0 %v4991
      %v5130 = vpop.f32.mrf.mxu0
      %v5131 = vadd.f32 %v3009, %v5130
      %v5132 = vpop.f32.mrf.mxu0
      %v5133 = vpop.f32.mrf.mxu0
      %v5134 = vadd.f32 %v3009, %v5133
      %v5135 = vpop.f32.mrf.mxu0
      %5136 = vmatprep.mubr.bf16.mxu0 0
      %5137 = vmatmul.mubr.bf16.gmra.mxu0 %v4994
      %v5138 = vpop.f32.mrf.mxu0
      %v5139 = vadd.f32 %v3009, %v5138
      %v5140 = vpop.f32.mrf.mxu0
      %v5141 = vpop.f32.mrf.mxu0
      %v5142 = vadd.f32 %v3009, %v5141
      %v5143 = vpop.f32.mrf.mxu0
      %5144 = vmatprep.mubr.bf16.mxu0 0
      %5145 = vmatmul.mubr.bf16.gmra.mxu0 %v4997
      %v5146 = vpop.f32.mrf.mxu0
      %v5147 = vadd.f32 %v3009, %v5146
      %v5148 = vpop.f32.mrf.mxu0
      %v5149 = vpop.f32.mrf.mxu0
      %v5150 = vadd.f32 %v3009, %v5149
      %v5151 = vpop.f32.mrf.mxu0
      %5152 = vmatprep.mubr.bf16.mxu0 0
      %5153 = vmatmul.mubr.bf16.gmra.mxu0 %v5000
      %v5154 = vpop.f32.mrf.mxu0
      %v5155 = vadd.f32 %v3009, %v5154
      %v5156 = vpop.f32.mrf.mxu0
      %v5157 = vpop.f32.mrf.mxu0
      %v5158 = vadd.f32 %v3009, %v5157
      %v5159 = vpop.f32.mrf.mxu0
      %5160 = vmatprep.mubr.bf16.mxu0 0
      %5161 = vmatmul.mubr.bf16.gmra.mxu0 %v5003
      %v5162 = vpop.f32.mrf.mxu0
      %v5163 = vadd.f32 %v3009, %v5162
      %v5164 = vpop.f32.mrf.mxu0
      %v5165 = vpop.f32.mrf.mxu0
      %v5166 = vadd.f32 %v3009, %v5165
      %v5167 = vpop.f32.mrf.mxu0
      %5168 = vmatprep.mubr.bf16.mxu0 0
      %5169 = vmatmul.mubr.bf16.gmra.mxu0 %v5006
      %v5170 = vpop.f32.mrf.mxu0
      %v5171 = vadd.f32 %v3009, %v5170
      %v5172 = vpop.f32.mrf.mxu0
      %v5173 = vpop.f32.mrf.mxu0
      %v5174 = vadd.f32 %v3009, %v5173
      %v5175 = vpop.f32.mrf.mxu0
      %5176 = vdwg.mxu0
      %vm5177 = vcmp.gt.f32.partialorder %v5043, 0.0
      %vm5178 = vcmp.gt.f32.partialorder %v5046, 0.0
      %vm5179 = vcmp.gt.f32.partialorder %v5051, 0.0
      %vm5180 = vcmp.gt.f32.partialorder %v5054, 0.0
      %vm5181 = vcmp.gt.f32.partialorder %v5059, 0.0
      %vm5182 = vcmp.gt.f32.partialorder %v5062, 0.0
      %vm5183 = vcmp.gt.f32.partialorder %v5067, 0.0
      %vm5184 = vcmp.gt.f32.partialorder %v5070, 0.0
      %vm5185 = vcmp.gt.f32.partialorder %v5075, 0.0
      %vm5186 = vcmp.gt.f32.partialorder %v5078, 0.0
      %vm5187 = vcmp.gt.f32.partialorder %v5083, 0.0
      %vm5188 = vcmp.gt.f32.partialorder %v5086, 0.0
      %vm5189 = vcmp.gt.f32.partialorder %v5091, 0.0
      %vm5190 = vcmp.gt.f32.partialorder %v5094, 0.0
      %vm5191 = vcmp.gt.f32.partialorder %v5099, 0.0
      %vm5192 = vcmp.gt.f32.partialorder %v5102, 0.0
      %vm5193 = vcmp.gt.f32.partialorder %v5107, 0.0
      %vm5194 = vcmp.gt.f32.partialorder %v5110, 0.0
      %vm5195 = vcmp.gt.f32.partialorder %v5115, 0.0
      %vm5196 = vcmp.gt.f32.partialorder %v5118, 0.0
      %vm5197 = vcmp.gt.f32.partialorder %v5123, 0.0
      %vm5198 = vcmp.gt.f32.partialorder %v5126, 0.0
      %vm5199 = vcmp.gt.f32.partialorder %v5131, 0.0
      %vm5200 = vcmp.gt.f32.partialorder %v5134, 0.0
      %vm5201 = vcmp.gt.f32.partialorder %v5139, 0.0
      %vm5202 = vcmp.gt.f32.partialorder %v5142, 0.0
      %vm5203 = vcmp.gt.f32.partialorder %v5147, 0.0
      %vm5204 = vcmp.gt.f32.partialorder %v5150, 0.0
      %vm5205 = vcmp.gt.f32.partialorder %v5155, 0.0
      %vm5206 = vcmp.gt.f32.partialorder %v5158, 0.0
      %vm5207 = vcmp.gt.f32.partialorder %v5163, 0.0
      %vm5208 = vcmp.gt.f32.partialorder %v5166, 0.0
      %vm5209 = vcmp.gt.f32.partialorder %v5171, 0.0
      %vm5210 = vcmp.gt.f32.partialorder %v5174, 0.0
      %v5211 = vmul.f32 %v5043, -0.76766074
      %v5212 = vmul.f32 %v5046, -0.76766074
      %v5213 = vmul.f32 %v5051, -0.76766074
      %v5214 = vmul.f32 %v5054, -0.76766074
      %v5215 = vmul.f32 %v5059, -0.76766074
      %v5216 = vmul.f32 %v5062, -0.76766074
      %v5217 = vmul.f32 %v5067, -0.76766074
      %v5218 = vmul.f32 %v5070, -0.76766074
      %v5219 = vmul.f32 %v5075, -0.76766074
      %v5220 = vmul.f32 %v5078, -0.76766074
      %v5221 = vmul.f32 %v5083, -0.76766074
      %v5222 = vmul.f32 %v5086, -0.76766074
      %v5223 = vmul.f32 %v5091, -0.76766074
      %v5224 = vmul.f32 %v5094, -0.76766074
      %v5225 = vmul.f32 %v5099, -0.76766074
      %v5226 = vmul.f32 %v5102, -0.76766074
      %v5227 = vmul.f32 %v5107, -0.76766074
      %v5228 = vmul.f32 %v5110, -0.76766074
      %v5229 = vmul.f32 %v5115, -0.76766074
      %v5230 = vmul.f32 %v5118, -0.76766074
      %v5231 = vmul.f32 %v5123, -0.76766074
      %v5232 = vmul.f32 %v5126, -0.76766074
      %v5233 = vmul.f32 %v5131, -0.76766074
      %v5234 = vmul.f32 %v5134, -0.76766074
      %v5235 = vmul.f32 %v5139, -0.76766074
      %v5236 = vmul.f32 %v5142, -0.76766074
      %v5237 = vmul.f32 %v5147, -0.76766074
      %v5238 = vmul.f32 %v5150, -0.76766074
      %v5239 = vmul.f32 %v5155, -0.76766074
      %v5240 = vmul.f32 %v5158, -0.76766074
      %v5241 = vmul.f32 %v5163, -0.76766074
      %v5242 = vmul.f32 %v5166, -0.76766074
      %v5243 = vmul.f32 %v5171, -0.76766074
      %v5244 = vmul.f32 %v5174, -0.76766074
      %v5245 = vsel %vm5177, %v5043, %v5211
      %v5246 = vsel %vm5178, %v5046, %v5212
      %v5247 = vsel %vm5179, %v5051, %v5213
      %v5248 = vsel %vm5180, %v5054, %v5214
      %v5249 = vsel %vm5181, %v5059, %v5215
      %v5250 = vsel %vm5182, %v5062, %v5216
      %v5251 = vsel %vm5183, %v5067, %v5217
      %v5252 = vsel %vm5184, %v5070, %v5218
      %v5253 = vsel %vm5185, %v5075, %v5219
      %v5254 = vsel %vm5186, %v5078, %v5220
      %v5255 = vsel %vm5187, %v5083, %v5221
      %v5256 = vsel %vm5188, %v5086, %v5222
      %v5257 = vsel %vm5189, %v5091, %v5223
      %v5258 = vsel %vm5190, %v5094, %v5224
      %v5259 = vsel %vm5191, %v5099, %v5225
      %v5260 = vsel %vm5192, %v5102, %v5226
      %v5261 = vsel %vm5193, %v5107, %v5227
      %v5262 = vsel %vm5194, %v5110, %v5228
      %v5263 = vsel %vm5195, %v5115, %v5229
      %v5264 = vsel %vm5196, %v5118, %v5230
      %v5265 = vsel %vm5197, %v5123, %v5231
      %v5266 = vsel %vm5198, %v5126, %v5232
      %v5267 = vsel %vm5199, %v5131, %v5233
      %v5268 = vsel %vm5200, %v5134, %v5234
      %v5269 = vsel %vm5201, %v5139, %v5235
      %v5270 = vsel %vm5202, %v5142, %v5236
      %v5271 = vsel %vm5203, %v5147, %v5237
      %v5272 = vsel %vm5204, %v5150, %v5238
      %v5273 = vsel %vm5205, %v5155, %v5239
      %v5274 = vsel %vm5206, %v5158, %v5240
      %v5275 = vsel %vm5207, %v5163, %v5241
      %v5276 = vsel %vm5208, %v5166, %v5242
      %v5277 = vsel %vm5209, %v5171, %v5243
      %v5278 = vsel %vm5210, %v5174, %v5244
      %s5279 = scalar_lea.vmem %s359, 544
      %5280 = vst.msk [vmem:[%s5279] sm:$0xff] %vm3343, %v5245
      %5281 = vst.msk [vmem:[%s5279 + $0x8] sm:$0xff] %vm3343, %v5246
      %5282 = vst.msk [vmem:[%s5279 + $0x10] sm:$0xff] %vm3343, %v5247
      %5283 = vst.msk [vmem:[%s5279 + $0x18] sm:$0xff] %vm3343, %v5248
      %5284 = vst.msk [vmem:[%s5279 + $0x20] sm:$0xff] %vm3343, %v5249
      %5285 = vst.msk [vmem:[%s5279 + $0x28] sm:$0xff] %vm3343, %v5250
      %5286 = vst.msk [vmem:[%s5279 + $0x30] sm:$0xff] %vm3343, %v5251
      %5287 = vst.msk [vmem:[%s5279 + $0x38] sm:$0xff] %vm3343, %v5252
      %5288 = vst.msk [vmem:[%s5279 + $0x40] sm:$0xff] %vm3343, %v5253
      %5289 = vst.msk [vmem:[%s5279 + $0x48] sm:$0xff] %vm3343, %v5254
      %5290 = vst.msk [vmem:[%s5279 + $0x50] sm:$0xff] %vm3343, %v5255
      %5291 = vst.msk [vmem:[%s5279 + $0x58] sm:$0xff] %vm3343, %v5256
      %5292 = vst.msk [vmem:[%s5279 + $0x60] sm:$0xff] %vm3343, %v5257
      %5293 = vst.msk [vmem:[%s5279 + $0x68] sm:$0xff] %vm3343, %v5258
      %5294 = vst.msk [vmem:[%s5279 + $0x70] sm:$0xff] %vm3343, %v5259
      %5295 = vst.msk [vmem:[%s5279 + $0x78] sm:$0xff] %vm3343, %v5260
      %5296 = vst.msk [vmem:[%s5279 + $0x80] sm:$0xff] %vm3343, %v5261
      %5297 = vst.msk [vmem:[%s5279 + $0x88] sm:$0xff] %vm3343, %v5262
      %5298 = vst.msk [vmem:[%s5279 + $0x90] sm:$0xff] %vm3343, %v5263
      %5299 = vst.msk [vmem:[%s5279 + $0x98] sm:$0xff] %vm3343, %v5264
      %5300 = vst.msk [vmem:[%s5279 + $0xa0] sm:$0xff] %vm3343, %v5265
      %5301 = vst.msk [vmem:[%s5279 + $0xa8] sm:$0xff] %vm3343, %v5266
      %5302 = vst.msk [vmem:[%s5279 + $0xb0] sm:$0xff] %vm3343, %v5267
      %5303 = vst.msk [vmem:[%s5279 + $0xb8] sm:$0xff] %vm3343, %v5268
      %5304 = vst.msk [vmem:[%s5279 + $0xc0] sm:$0xff] %vm3343, %v5269
      %5305 = vst.msk [vmem:[%s5279 + $0xc8] sm:$0xff] %vm3343, %v5270
      %5306 = vst.msk [vmem:[%s5279 + $0xd0] sm:$0xff] %vm3343, %v5271
      %5307 = vst.msk [vmem:[%s5279 + $0xd8] sm:$0xff] %vm3343, %v5272
      %5308 = vst.msk [vmem:[%s5279 + $0xe0] sm:$0xff] %vm3343, %v5273
      %5309 = vst.msk [vmem:[%s5279 + $0xe8] sm:$0xff] %vm3343, %v5274
      %5310 = vst.msk [vmem:[%s5279 + $0xf0] sm:$0xff] %vm3343, %v5275
      %5311 = vst.msk [vmem:[%s5279 + $0xf8] sm:$0xff] %vm3343, %v5276
      %5312 = vst.msk [vmem:[%s5279 + $0x100] sm:$0xff] %vm3343, %v5277
      %5313 = vst.msk [vmem:[%s5279 + $0x108] sm:$0xff] %vm3343, %v5278
      %v5314 = vld [vmem:[#allocation3 + $0x8] sm:$0xf]
      %v5315 = vld [vmem:[#allocation3 + $0xc] sm:$0xf]
      %v5316 = vld [vmem:[#allocation3 + $0x10] sm:$0xf]
      %v5317 = vld [vmem:[#allocation3 + $0x14] sm:$0xf]
      %v5318 = vld [vmem:[#allocation3 + $0x18] sm:$0xf]
      %v5319 = vld [vmem:[#allocation3 + $0x1c] sm:$0xf]
      %v5320 = vld [vmem:[#allocation3 + $0x20] sm:$0xf]
      %v5321 = vld [vmem:[#allocation3 + $0x24] sm:$0xf]
      %v5322 = vld [vmem:[#allocation3 + $0x28] sm:$0xf]
      %v5323 = vld [vmem:[#allocation3 + $0x2c] sm:$0xf]
      %v5324 = vld [vmem:[#allocation3 + $0x30] sm:$0xf]
      %v5325 = vld [vmem:[#allocation3 + $0x34] sm:$0xf]
      %v5326 = vld [vmem:[#allocation3 + $0x38] sm:$0xf]
      %v5327 = vld [vmem:[#allocation3 + $0x3c] sm:$0xf]
      %v5328 = vld [vmem:[#allocation3 + $0x40] sm:$0xf]
      %v5329 = vld [vmem:[#allocation3 + $0x44] sm:$0xf]
      %v5330 = vld [vmem:[#allocation3 + $0x48] sm:$0xf]
      %v5331 = vld [vmem:[#allocation3 + $0x4c] sm:$0xf]
      %v5332 = vld [vmem:[#allocation3 + $0x50] sm:$0xf]
      %v5333 = vld [vmem:[#allocation3 + $0x54] sm:$0xf]
      %v5334 = vld [vmem:[#allocation3 + $0x58] sm:$0xf]
      %v5335 = vld [vmem:[#allocation3 + $0x5c] sm:$0xf]
      %v5336 = vld [vmem:[#allocation3 + $0x60] sm:$0xf]
      %v5337 = vld [vmem:[#allocation3 + $0x64] sm:$0xf]
      %v5338 = vld [vmem:[#allocation3 + $0x68] sm:$0xf]
      %v5339 = vld [vmem:[#allocation3 + $0x6c] sm:$0xf]
      %v5340 = vld [vmem:[#allocation3 + $0x70] sm:$0xf]
      %v5341 = vld [vmem:[#allocation3 + $0x74] sm:$0xf]
      %v5342 = vld [vmem:[#allocation3 + $0x78] sm:$0xf]
      %v5343 = vld [vmem:[#allocation3 + $0x7c] sm:$0xf]
      %v5344 = vld [vmem:[#allocation3 + $0x80] sm:$0xf]
      %v5345 = vld [vmem:[#allocation3 + $0x84] sm:$0xf]
      %v5346 = vld [vmem:[#allocation3 + $0x88] sm:$0xf]
      %v5347 = vld [vmem:[#allocation3 + $0x8c] sm:$0xf]
      %v5348 = vld [vmem:[#allocation3 + $0x90] sm:$0x1]
      %s5349 = scalar_lea.vmem %s6, 24
      %v5350 = vld [vmem:[%s5349] sm:$0xf]
      %v5351 = vld [vmem:[%s5349 + $0x4] sm:$0xf]
      %v5387 = vunpack.c.l.b16 %v5314
      %v5388 = vunpack.c.l.b16 %v5315
      %v5389 = vunpack.c.l.b16 %v5316
      %v5390 = vunpack.c.l.b16 %v5317
      %v5391 = vunpack.c.l.b16 %v5318
      %v5392 = vunpack.c.l.b16 %v5319
      %v5393 = vunpack.c.l.b16 %v5320
      %v5394 = vunpack.c.l.b16 %v5321
      %v5395 = vunpack.c.l.b16 %v5322
      %v5396 = vunpack.c.l.b16 %v5323
      %v5397 = vunpack.c.l.b16 %v5324
      %v5398 = vunpack.c.l.b16 %v5325
      %v5399 = vunpack.c.l.b16 %v5326
      %v5400 = vunpack.c.l.b16 %v5327
      %v5401 = vunpack.c.l.b16 %v5328
      %v5402 = vunpack.c.l.b16 %v5329
      %v5403 = vunpack.c.l.b16 %v5330
      %v5404 = vunpack.c.l.b16 %v5331
      %v5405 = vunpack.c.l.b16 %v5332
      %v5406 = vunpack.c.l.b16 %v5333
      %v5407 = vunpack.c.l.b16 %v5334
      %v5408 = vunpack.c.l.b16 %v5335
      %v5409 = vunpack.c.l.b16 %v5336
      %v5410 = vunpack.c.l.b16 %v5337
      %v5411 = vunpack.c.l.b16 %v5338
      %v5412 = vunpack.c.l.b16 %v5339
      %v5413 = vunpack.c.l.b16 %v5340
      %v5414 = vunpack.c.l.b16 %v5341
      %v5415 = vunpack.c.l.b16 %v5342
      %v5416 = vunpack.c.l.b16 %v5343
      %v5417 = vunpack.c.l.b16 %v5344
      %v5418 = vunpack.c.l.b16 %v5345
      %v5419 = vunpack.c.l.b16 %v5346
      %v5420 = vunpack.c.l.b16 %v5347
      %v5421 = vunpack.c.l.b16 %v5348
      %v5422 = vpack.c.b16 %v5388, %v5387
      %v5423 = vpack.c.b16 %v5390, %v5389
      %v5424 = vpack.c.b16 %v5392, %v5391
      %v5425 = vpack.c.b16 %v5394, %v5393
      %v5426 = vpack.c.b16 %v5396, %v5395
      %v5427 = vpack.c.b16 %v5398, %v5397
      %v5428 = vpack.c.b16 %v5400, %v5399
      %v5429 = vpack.c.b16 %v5402, %v5401
      %v5430 = vpack.c.b16 %v5404, %v5403
      %v5431 = vpack.c.b16 %v5406, %v5405
      %v5432 = vpack.c.b16 %v5408, %v5407
      %v5433 = vpack.c.b16 %v5410, %v5409
      %v5434 = vpack.c.b16 %v5412, %v5411
      %v5435 = vpack.c.b16 %v5414, %v5413
      %v5436 = vpack.c.b16 %v5416, %v5415
      %v5437 = vpack.c.b16 %v5418, %v5417
      %v5438 = vpack.c.b16 %v5420, %v5419
      %v5439 = vpack.c.b16 %v5421, %v5421
      %v5441 = vshrl.u32 %v5422, 16
      %v5443 = vshll.u32 %v5422, 16
      %v5445 = vrot.slane %v5443, 1
      %v5446 = vor.u32 %v5441, %v5445
      %v5448 = vshll.u32 %v5423, 16
      %v5450 = vrot.slane %v5448, 1
      %v5451 = vsel %vm1108, %v5446, %v5450
      %v5452 = vshrl.u32 %v5423, 16
      %v5454 = vor.u32 %v5452, %v5450
      %v5456 = vshll.u32 %v5424, 16
      %v5458 = vrot.slane %v5456, 1
      %v5459 = vsel %vm1108, %v5454, %v5458
      %v5460 = vshrl.u32 %v5424, 16
      %v5462 = vor.u32 %v5460, %v5458
      %v5464 = vshll.u32 %v5425, 16
      %v5466 = vrot.slane %v5464, 1
      %v5467 = vsel %vm1108, %v5462, %v5466
      %v5468 = vshrl.u32 %v5425, 16
      %v5470 = vor.u32 %v5468, %v5466
      %v5472 = vshll.u32 %v5426, 16
      %v5474 = vrot.slane %v5472, 1
      %v5475 = vsel %vm1108, %v5470, %v5474
      %v5476 = vshrl.u32 %v5426, 16
      %v5478 = vor.u32 %v5476, %v5474
      %v5480 = vshll.u32 %v5427, 16
      %v5482 = vrot.slane %v5480, 1
      %v5483 = vsel %vm1108, %v5478, %v5482
      %v5484 = vshrl.u32 %v5427, 16
      %v5486 = vor.u32 %v5484, %v5482
      %v5488 = vshll.u32 %v5428, 16
      %v5490 = vrot.slane %v5488, 1
      %v5491 = vsel %vm1108, %v5486, %v5490
      %v5492 = vshrl.u32 %v5428, 16
      %v5494 = vor.u32 %v5492, %v5490
      %v5496 = vshll.u32 %v5429, 16
      %v5498 = vrot.slane %v5496, 1
      %v5499 = vsel %vm1108, %v5494, %v5498
      %v5500 = vshrl.u32 %v5429, 16
      %v5502 = vor.u32 %v5500, %v5498
      %v5504 = vshll.u32 %v5430, 16
      %v5506 = vrot.slane %v5504, 1
      %v5507 = vsel %vm1108, %v5502, %v5506
      %v5508 = vshrl.u32 %v5430, 16
      %v5510 = vor.u32 %v5508, %v5506
      %v5512 = vshll.u32 %v5431, 16
      %v5514 = vrot.slane %v5512, 1
      %v5515 = vsel %vm1108, %v5510, %v5514
      %v5516 = vshrl.u32 %v5431, 16
      %v5518 = vor.u32 %v5516, %v5514
      %v5520 = vshll.u32 %v5432, 16
      %v5522 = vrot.slane %v5520, 1
      %v5523 = vsel %vm1108, %v5518, %v5522
      %v5524 = vshrl.u32 %v5432, 16
      %v5526 = vor.u32 %v5524, %v5522
      %v5528 = vshll.u32 %v5433, 16
      %v5530 = vrot.slane %v5528, 1
      %v5531 = vsel %vm1108, %v5526, %v5530
      %v5532 = vshrl.u32 %v5433, 16
      %v5534 = vor.u32 %v5532, %v5530
      %v5536 = vshll.u32 %v5434, 16
      %v5538 = vrot.slane %v5536, 1
      %v5539 = vsel %vm1108, %v5534, %v5538
      %v5540 = vshrl.u32 %v5434, 16
      %v5542 = vor.u32 %v5540, %v5538
      %v5544 = vshll.u32 %v5435, 16
      %v5546 = vrot.slane %v5544, 1
      %v5547 = vsel %vm1108, %v5542, %v5546
      %v5548 = vshrl.u32 %v5435, 16
      %v5550 = vor.u32 %v5548, %v5546
      %v5552 = vshll.u32 %v5436, 16
      %v5554 = vrot.slane %v5552, 1
      %v5555 = vsel %vm1108, %v5550, %v5554
      %v5556 = vshrl.u32 %v5436, 16
      %v5558 = vor.u32 %v5556, %v5554
      %v5560 = vshll.u32 %v5437, 16
      %v5562 = vrot.slane %v5560, 1
      %v5563 = vsel %vm1108, %v5558, %v5562
      %v5564 = vshrl.u32 %v5437, 16
      %v5566 = vor.u32 %v5564, %v5562
      %v5568 = vshll.u32 %v5438, 16
      %v5570 = vrot.slane %v5568, 1
      %v5571 = vsel %vm1108, %v5566, %v5570
      %v5572 = vshrl.u32 %v5438, 16
      %v5574 = vor.u32 %v5572, %v5570
      %v5576 = vshll.u32 %v5439, 16
      %v5578 = vrot.slane %v5576, 1
      %v5579 = vsel %vm1108, %v5574, %v5578
      %v5582 = vunpack.c.l.b16 %v5350
      %v5583 = vunpack.c.l.b16 %v5351
      %v5584 = vpack.c.b16 %v5583, %v5582
      %v5587 = vsel %vm2665, %v5451, 0
      %v5590 = vsel %vm2665, %v5459, 0
      %v5593 = vsel %vm2665, %v5467, 0
      %v5596 = vsel %vm2665, %v5475, 0
      %v5599 = vsel %vm2665, %v5483, 0
      %v5602 = vsel %vm2665, %v5491, 0
      %v5605 = vsel %vm2665, %v5499, 0
      %v5608 = vsel %vm2665, %v5507, 0
      %v5611 = vsel %vm2665, %v5515, 0
      %v5614 = vsel %vm2665, %v5523, 0
      %v5617 = vsel %vm2665, %v5531, 0
      %v5620 = vsel %vm2665, %v5539, 0
      %v5623 = vsel %vm2665, %v5547, 0
      %v5626 = vsel %vm2665, %v5555, 0
      %v5629 = vsel %vm2665, %v5563, 0
      %v5632 = vsel %vm2665, %v5571, 0
      %v5635 = vsel %vm2665, %v5579, 0
      %5637 = vmatprep.subr.bf16.mxu0 0
      %5638 = vmatpush1.bf16.msra.mxu0 0
      %5639 = vmatprep.subr.bf16.mxu0 0
      %5640 = vmatpush1.bf16.msra.mxu0 0
      %5641 = vmatprep.subr.bf16.mxu0 0
      %5642 = vmatpush1.bf16.msra.mxu0 0
      %5643 = vmatprep.subr.bf16.mxu0 0
      %5644 = vmatpush1.bf16.msra.mxu0 0
      %5645 = vmatprep.subr.bf16.mxu0 0
      %5646 = vmatpush1.bf16.msra.mxu0 0
      %5647 = vmatprep.subr.bf16.mxu0 0
      %5648 = vmatpush1.bf16.msra.mxu0 0
      %5649 = vmatprep.subr.bf16.mxu0 0
      %5650 = vmatpush1.bf16.msra.mxu0 0
      %5651 = vmatprep.subr.bf16.mxu0 0
      %5652 = vmatpush1.bf16.msra.mxu0 %v5584
      %5653 = vmatprep.subr.bf16.mxu0 0
      %5654 = vmatpush2.bf16.msra.mxu0 0
      %5655 = vmatprep.subr.bf16.mxu0 0
      %5656 = vmatpush2.bf16.msra.mxu0 0
      %5657 = vmatprep.subr.bf16.mxu0 0
      %5658 = vmatpush2.bf16.msra.mxu0 0
      %5659 = vmatprep.subr.bf16.mxu0 0
      %5660 = vmatpush2.bf16.msra.mxu0 0
      %5661 = vmatprep.subr.bf16.mxu0 0
      %5662 = vmatpush2.bf16.msra.mxu0 0
      %5663 = vmatprep.subr.bf16.mxu0 0
      %5664 = vmatpush2.bf16.msra.mxu0 0
      %5665 = vmatprep.subr.bf16.mxu0 0
      %5666 = vmatpush2.bf16.msra.mxu0 0
      %5667 = vmatprep.subr.bf16.mxu0 0
      %5668 = vmatpush2.bf16.msra.mxu0 0
      %5669 = vmatprep.mubr.bf16.mxu0 0
      %5670 = vmatmul.mubr.bf16.gmra.mxu0 %v5587
      %v5671 = vpop.f32.mrf.mxu0
      %v5672 = vadd.f32 %v2572, %v5671
      %v5673 = vpop.f32.mrf.mxu0
      %v5674 = vpop.f32.mrf.mxu0
      %v5675 = vadd.f32 %v2572, %v5674
      %v5676 = vpop.f32.mrf.mxu0
      %5677 = vmatprep.mubr.bf16.mxu0 0
      %5678 = vmatmul.mubr.bf16.gmra.mxu0 %v5590
      %v5679 = vpop.f32.mrf.mxu0
      %v5680 = vadd.f32 %v2572, %v5679
      %v5681 = vpop.f32.mrf.mxu0
      %v5682 = vpop.f32.mrf.mxu0
      %v5683 = vadd.f32 %v2572, %v5682
      %v5684 = vpop.f32.mrf.mxu0
      %5685 = vmatprep.mubr.bf16.mxu0 0
      %5686 = vmatmul.mubr.bf16.gmra.mxu0 %v5593
      %v5687 = vpop.f32.mrf.mxu0
      %v5688 = vadd.f32 %v2572, %v5687
      %v5689 = vpop.f32.mrf.mxu0
      %v5690 = vpop.f32.mrf.mxu0
      %v5691 = vadd.f32 %v2572, %v5690
      %v5692 = vpop.f32.mrf.mxu0
      %5693 = vmatprep.mubr.bf16.mxu0 0
      %5694 = vmatmul.mubr.bf16.gmra.mxu0 %v5596
      %v5695 = vpop.f32.mrf.mxu0
      %v5696 = vadd.f32 %v2572, %v5695
      %v5697 = vpop.f32.mrf.mxu0
      %v5698 = vpop.f32.mrf.mxu0
      %v5699 = vadd.f32 %v2572, %v5698
      %v5700 = vpop.f32.mrf.mxu0
      %5701 = vmatprep.mubr.bf16.mxu0 0
      %5702 = vmatmul.mubr.bf16.gmra.mxu0 %v5599
      %v5703 = vpop.f32.mrf.mxu0
      %v5704 = vadd.f32 %v2572, %v5703
      %v5705 = vpop.f32.mrf.mxu0
      %v5706 = vpop.f32.mrf.mxu0
      %v5707 = vadd.f32 %v2572, %v5706
      %v5708 = vpop.f32.mrf.mxu0
      %5709 = vmatprep.mubr.bf16.mxu0 0
      %5710 = vmatmul.mubr.bf16.gmra.mxu0 %v5602
      %v5711 = vpop.f32.mrf.mxu0
      %v5712 = vadd.f32 %v2572, %v5711
      %v5713 = vpop.f32.mrf.mxu0
      %v5714 = vpop.f32.mrf.mxu0
      %v5715 = vadd.f32 %v2572, %v5714
      %v5716 = vpop.f32.mrf.mxu0
      %5717 = vmatprep.mubr.bf16.mxu0 0
      %5718 = vmatmul.mubr.bf16.gmra.mxu0 %v5605
      %v5719 = vpop.f32.mrf.mxu0
      %v5720 = vadd.f32 %v2572, %v5719
      %v5721 = vpop.f32.mrf.mxu0
      %v5722 = vpop.f32.mrf.mxu0
      %v5723 = vadd.f32 %v2572, %v5722
      %v5724 = vpop.f32.mrf.mxu0
      %5725 = vmatprep.mubr.bf16.mxu0 0
      %5726 = vmatmul.mubr.bf16.gmra.mxu0 %v5608
      %v5727 = vpop.f32.mrf.mxu0
      %v5728 = vadd.f32 %v2572, %v5727
      %v5729 = vpop.f32.mrf.mxu0
      %v5730 = vpop.f32.mrf.mxu0
      %v5731 = vadd.f32 %v2572, %v5730
      %v5732 = vpop.f32.mrf.mxu0
      %5733 = vmatprep.mubr.bf16.mxu0 0
      %5734 = vmatmul.mubr.bf16.gmra.mxu0 %v5611
      %v5735 = vpop.f32.mrf.mxu0
      %v5736 = vadd.f32 %v2572, %v5735
      %v5737 = vpop.f32.mrf.mxu0
      %v5738 = vpop.f32.mrf.mxu0
      %v5739 = vadd.f32 %v2572, %v5738
      %v5740 = vpop.f32.mrf.mxu0
      %5741 = vmatprep.mubr.bf16.mxu0 0
      %5742 = vmatmul.mubr.bf16.gmra.mxu0 %v5614
      %v5743 = vpop.f32.mrf.mxu0
      %v5744 = vadd.f32 %v2572, %v5743
      %v5745 = vpop.f32.mrf.mxu0
      %v5746 = vpop.f32.mrf.mxu0
      %v5747 = vadd.f32 %v2572, %v5746
      %v5748 = vpop.f32.mrf.mxu0
      %5749 = vmatprep.mubr.bf16.mxu0 0
      %5750 = vmatmul.mubr.bf16.gmra.mxu0 %v5617
      %v5751 = vpop.f32.mrf.mxu0
      %v5752 = vadd.f32 %v2572, %v5751
      %v5753 = vpop.f32.mrf.mxu0
      %v5754 = vpop.f32.mrf.mxu0
      %v5755 = vadd.f32 %v2572, %v5754
      %v5756 = vpop.f32.mrf.mxu0
      %5757 = vmatprep.mubr.bf16.mxu0 0
      %5758 = vmatmul.mubr.bf16.gmra.mxu0 %v5620
      %v5759 = vpop.f32.mrf.mxu0
      %v5760 = vadd.f32 %v2572, %v5759
      %v5761 = vpop.f32.mrf.mxu0
      %v5762 = vpop.f32.mrf.mxu0
      %v5763 = vadd.f32 %v2572, %v5762
      %v5764 = vpop.f32.mrf.mxu0
      %5765 = vmatprep.mubr.bf16.mxu0 0
      %5766 = vmatmul.mubr.bf16.gmra.mxu0 %v5623
      %v5767 = vpop.f32.mrf.mxu0
      %v5768 = vadd.f32 %v2572, %v5767
      %v5769 = vpop.f32.mrf.mxu0
      %v5770 = vpop.f32.mrf.mxu0
      %v5771 = vadd.f32 %v2572, %v5770
      %v5772 = vpop.f32.mrf.mxu0
      %5773 = vmatprep.mubr.bf16.mxu0 0
      %5774 = vmatmul.mubr.bf16.gmra.mxu0 %v5626
      %v5775 = vpop.f32.mrf.mxu0
      %v5776 = vadd.f32 %v2572, %v5775
      %v5777 = vpop.f32.mrf.mxu0
      %v5778 = vpop.f32.mrf.mxu0
      %v5779 = vadd.f32 %v2572, %v5778
      %v5780 = vpop.f32.mrf.mxu0
      %5781 = vmatprep.mubr.bf16.mxu0 0
      %5782 = vmatmul.mubr.bf16.gmra.mxu0 %v5629
      %v5783 = vpop.f32.mrf.mxu0
      %v5784 = vadd.f32 %v2572, %v5783
      %v5785 = vpop.f32.mrf.mxu0
      %v5786 = vpop.f32.mrf.mxu0
      %v5787 = vadd.f32 %v2572, %v5786
      %v5788 = vpop.f32.mrf.mxu0
      %5789 = vmatprep.mubr.bf16.mxu0 0
      %5790 = vmatmul.mubr.bf16.gmra.mxu0 %v5632
      %v5791 = vpop.f32.mrf.mxu0
      %v5792 = vadd.f32 %v2572, %v5791
      %v5793 = vpop.f32.mrf.mxu0
      %v5794 = vpop.f32.mrf.mxu0
      %v5795 = vadd.f32 %v2572, %v5794
      %v5796 = vpop.f32.mrf.mxu0
      %5797 = vmatprep.mubr.bf16.mxu0 0
      %5798 = vmatmul.mubr.bf16.gmra.mxu0 %v5635
      %v5799 = vpop.f32.mrf.mxu0
      %v5800 = vadd.f32 %v2572, %v5799
      %v5801 = vpop.f32.mrf.mxu0
      %v5802 = vpop.f32.mrf.mxu0
      %v5803 = vadd.f32 %v2572, %v5802
      %v5804 = vpop.f32.mrf.mxu0
      %5805 = vdwg.mxu0
      %vm5806 = vcmp.gt.f32.partialorder %v5672, 0.0
      %vm5807 = vcmp.gt.f32.partialorder %v5675, 0.0
      %vm5808 = vcmp.gt.f32.partialorder %v5680, 0.0
      %vm5809 = vcmp.gt.f32.partialorder %v5683, 0.0
      %vm5810 = vcmp.gt.f32.partialorder %v5688, 0.0
      %vm5811 = vcmp.gt.f32.partialorder %v5691, 0.0
      %vm5812 = vcmp.gt.f32.partialorder %v5696, 0.0
      %vm5813 = vcmp.gt.f32.partialorder %v5699, 0.0
      %vm5814 = vcmp.gt.f32.partialorder %v5704, 0.0
      %vm5815 = vcmp.gt.f32.partialorder %v5707, 0.0
      %vm5816 = vcmp.gt.f32.partialorder %v5712, 0.0
      %vm5817 = vcmp.gt.f32.partialorder %v5715, 0.0
      %vm5818 = vcmp.gt.f32.partialorder %v5720, 0.0
      %vm5819 = vcmp.gt.f32.partialorder %v5723, 0.0
      %vm5820 = vcmp.gt.f32.partialorder %v5728, 0.0
      %vm5821 = vcmp.gt.f32.partialorder %v5731, 0.0
      %vm5822 = vcmp.gt.f32.partialorder %v5736, 0.0
      %vm5823 = vcmp.gt.f32.partialorder %v5739, 0.0
      %vm5824 = vcmp.gt.f32.partialorder %v5744, 0.0
      %vm5825 = vcmp.gt.f32.partialorder %v5747, 0.0
      %vm5826 = vcmp.gt.f32.partialorder %v5752, 0.0
      %vm5827 = vcmp.gt.f32.partialorder %v5755, 0.0
      %vm5828 = vcmp.gt.f32.partialorder %v5760, 0.0
      %vm5829 = vcmp.gt.f32.partialorder %v5763, 0.0
      %vm5830 = vcmp.gt.f32.partialorder %v5768, 0.0
      %vm5831 = vcmp.gt.f32.partialorder %v5771, 0.0
      %vm5832 = vcmp.gt.f32.partialorder %v5776, 0.0
      %vm5833 = vcmp.gt.f32.partialorder %v5779, 0.0
      %vm5834 = vcmp.gt.f32.partialorder %v5784, 0.0
      %vm5835 = vcmp.gt.f32.partialorder %v5787, 0.0
      %vm5836 = vcmp.gt.f32.partialorder %v5792, 0.0
      %vm5837 = vcmp.gt.f32.partialorder %v5795, 0.0
      %vm5838 = vcmp.gt.f32.partialorder %v5800, 0.0
      %vm5839 = vcmp.gt.f32.partialorder %v5803, 0.0
      %v5840 = vmul.f32 %v5672, -0.76766074
      %v5841 = vmul.f32 %v5675, -0.76766074
      %v5842 = vmul.f32 %v5680, -0.76766074
      %v5843 = vmul.f32 %v5683, -0.76766074
      %v5844 = vmul.f32 %v5688, -0.76766074
      %v5845 = vmul.f32 %v5691, -0.76766074
      %v5846 = vmul.f32 %v5696, -0.76766074
      %v5847 = vmul.f32 %v5699, -0.76766074
      %v5848 = vmul.f32 %v5704, -0.76766074
      %v5849 = vmul.f32 %v5707, -0.76766074
      %v5850 = vmul.f32 %v5712, -0.76766074
      %v5851 = vmul.f32 %v5715, -0.76766074
      %v5852 = vmul.f32 %v5720, -0.76766074
      %v5853 = vmul.f32 %v5723, -0.76766074
      %v5854 = vmul.f32 %v5728, -0.76766074
      %v5855 = vmul.f32 %v5731, -0.76766074
      %v5856 = vmul.f32 %v5736, -0.76766074
      %v5857 = vmul.f32 %v5739, -0.76766074
      %v5858 = vmul.f32 %v5744, -0.76766074
      %v5859 = vmul.f32 %v5747, -0.76766074
      %v5860 = vmul.f32 %v5752, -0.76766074
      %v5861 = vmul.f32 %v5755, -0.76766074
      %v5862 = vmul.f32 %v5760, -0.76766074
      %v5863 = vmul.f32 %v5763, -0.76766074
      %v5864 = vmul.f32 %v5768, -0.76766074
      %v5865 = vmul.f32 %v5771, -0.76766074
      %v5866 = vmul.f32 %v5776, -0.76766074
      %v5867 = vmul.f32 %v5779, -0.76766074
      %v5868 = vmul.f32 %v5784, -0.76766074
      %v5869 = vmul.f32 %v5787, -0.76766074
      %v5870 = vmul.f32 %v5792, -0.76766074
      %v5871 = vmul.f32 %v5795, -0.76766074
      %v5872 = vmul.f32 %v5800, -0.76766074
      %v5873 = vmul.f32 %v5803, -0.76766074
      %v5874 = vsel %vm5806, %v5672, %v5840
      %v5875 = vsel %vm5807, %v5675, %v5841
      %v5876 = vsel %vm5808, %v5680, %v5842
      %v5877 = vsel %vm5809, %v5683, %v5843
      %v5878 = vsel %vm5810, %v5688, %v5844
      %v5879 = vsel %vm5811, %v5691, %v5845
      %v5880 = vsel %vm5812, %v5696, %v5846
      %v5881 = vsel %vm5813, %v5699, %v5847
      %v5882 = vsel %vm5814, %v5704, %v5848
      %v5883 = vsel %vm5815, %v5707, %v5849
      %v5884 = vsel %vm5816, %v5712, %v5850
      %v5885 = vsel %vm5817, %v5715, %v5851
      %v5886 = vsel %vm5818, %v5720, %v5852
      %v5887 = vsel %vm5819, %v5723, %v5853
      %v5888 = vsel %vm5820, %v5728, %v5854
      %v5889 = vsel %vm5821, %v5731, %v5855
      %v5890 = vsel %vm5822, %v5736, %v5856
      %v5891 = vsel %vm5823, %v5739, %v5857
      %v5892 = vsel %vm5824, %v5744, %v5858
      %v5893 = vsel %vm5825, %v5747, %v5859
      %v5894 = vsel %vm5826, %v5752, %v5860
      %v5895 = vsel %vm5827, %v5755, %v5861
      %v5896 = vsel %vm5828, %v5760, %v5862
      %v5897 = vsel %vm5829, %v5763, %v5863
      %v5898 = vsel %vm5830, %v5768, %v5864
      %v5899 = vsel %vm5831, %v5771, %v5865
      %v5900 = vsel %vm5832, %v5776, %v5866
      %v5901 = vsel %vm5833, %v5779, %v5867
      %v5902 = vsel %vm5834, %v5784, %v5868
      %v5903 = vsel %vm5835, %v5787, %v5869
      %v5904 = vsel %vm5836, %v5792, %v5870
      %v5905 = vsel %vm5837, %v5795, %v5871
      %v5906 = vsel %vm5838, %v5800, %v5872
      %v5907 = vsel %vm5839, %v5803, %v5873
      %v5908 = vpack.c.bf16 %v5875, %v5874
      %v5909 = vpack.c.bf16 %v5877, %v5876
      %v5910 = vpack.c.bf16 %v5879, %v5878
      %v5911 = vpack.c.bf16 %v5881, %v5880
      %v5912 = vpack.c.bf16 %v5883, %v5882
      %v5913 = vpack.c.bf16 %v5885, %v5884
      %v5914 = vpack.c.bf16 %v5887, %v5886
      %v5915 = vpack.c.bf16 %v5889, %v5888
      %v5916 = vpack.c.bf16 %v5891, %v5890
      %v5917 = vpack.c.bf16 %v5893, %v5892
      %v5918 = vpack.c.bf16 %v5895, %v5894
      %v5919 = vpack.c.bf16 %v5897, %v5896
      %v5920 = vpack.c.bf16 %v5899, %v5898
      %v5921 = vpack.c.bf16 %v5901, %v5900
      %v5922 = vpack.c.bf16 %v5903, %v5902
      %v5923 = vpack.c.bf16 %v5905, %v5904
      %v5924 = vpack.c.bf16 %v5907, %v5906
      %v5926 = vsel %vm3016, %v5908, 0
      %v5929 = vsel %vm3016, %v5909, 0
      %v5932 = vsel %vm3016, %v5910, 0
      %v5935 = vsel %vm3016, %v5911, 0
      %v5938 = vsel %vm3016, %v5912, 0
      %v5941 = vsel %vm3016, %v5913, 0
      %v5944 = vsel %vm3016, %v5914, 0
      %v5947 = vsel %vm3016, %v5915, 0
      %v5950 = vsel %vm3016, %v5916, 0
      %v5953 = vsel %vm3016, %v5917, 0
      %v5956 = vsel %vm3016, %v5918, 0
      %v5959 = vsel %vm3016, %v5919, 0
      %v5962 = vsel %vm3016, %v5920, 0
      %v5965 = vsel %vm3016, %v5921, 0
      %v5968 = vsel %vm3016, %v5922, 0
      %v5971 = vsel %vm3016, %v5923, 0
      %v5974 = vsel %vm3016, %v5924, 0
      %5976 = vmatprep.subr.bf16.mxu0 0
      %5977 = vmatpush1.bf16.msra.mxu0 0
      %5978 = vmatprep.subr.bf16.mxu0 0
      %5979 = vmatpush1.bf16.msra.mxu0 0
      %5980 = vmatprep.subr.bf16.mxu0 0
      %5981 = vmatpush1.bf16.msra.mxu0 0
      %5982 = vmatprep.subr.bf16.mxu0 0
      %5983 = vmatpush1.bf16.msra.mxu0 0
      %5984 = vmatprep.subr.bf16.mxu0 0
      %5985 = vmatpush1.bf16.msra.mxu0 0
      %5986 = vmatprep.subr.bf16.mxu0 0
      %5987 = vmatpush1.bf16.msra.mxu0 0
      %5988 = vmatprep.subr.bf16.mxu0 0
      %5989 = vmatpush1.bf16.msra.mxu0 0
      %5990 = vmatprep.subr.bf16.mxu0 0
      %5991 = vmatpush1.bf16.msra.mxu0 %v3070
      %5992 = vmatprep.subr.bf16.mxu0 0
      %5993 = vmatpush2.bf16.msra.mxu0 0
      %5994 = vmatprep.subr.bf16.mxu0 0
      %5995 = vmatpush2.bf16.msra.mxu0 0
      %5996 = vmatprep.subr.bf16.mxu0 0
      %5997 = vmatpush2.bf16.msra.mxu0 0
      %5998 = vmatprep.subr.bf16.mxu0 0
      %5999 = vmatpush2.bf16.msra.mxu0 0
      %6000 = vmatprep.subr.bf16.mxu0 0
      %6001 = vmatpush2.bf16.msra.mxu0 0
      %6002 = vmatprep.subr.bf16.mxu0 0
      %6003 = vmatpush2.bf16.msra.mxu0 0
      %6004 = vmatprep.subr.bf16.mxu0 0
      %6005 = vmatpush2.bf16.msra.mxu0 0
      %6006 = vmatprep.subr.bf16.mxu0 0
      %6007 = vmatpush2.bf16.msra.mxu0 0
      %6008 = vmatprep.mubr.bf16.mxu0 0
      %6009 = vmatmul.mubr.bf16.gmra.mxu0 %v5926
      %v6010 = vpop.f32.mrf.mxu0
      %v6011 = vadd.f32 %v3009, %v6010
      %v6012 = vpop.f32.mrf.mxu0
      %v6013 = vpop.f32.mrf.mxu0
      %v6014 = vadd.f32 %v3009, %v6013
      %v6015 = vpop.f32.mrf.mxu0
      %6016 = vmatprep.mubr.bf16.mxu0 0
      %6017 = vmatmul.mubr.bf16.gmra.mxu0 %v5929
      %v6018 = vpop.f32.mrf.mxu0
      %v6019 = vadd.f32 %v3009, %v6018
      %v6020 = vpop.f32.mrf.mxu0
      %v6021 = vpop.f32.mrf.mxu0
      %v6022 = vadd.f32 %v3009, %v6021
      %v6023 = vpop.f32.mrf.mxu0
      %6024 = vmatprep.mubr.bf16.mxu0 0
      %6025 = vmatmul.mubr.bf16.gmra.mxu0 %v5932
      %v6026 = vpop.f32.mrf.mxu0
      %v6027 = vadd.f32 %v3009, %v6026
      %v6028 = vpop.f32.mrf.mxu0
      %v6029 = vpop.f32.mrf.mxu0
      %v6030 = vadd.f32 %v3009, %v6029
      %v6031 = vpop.f32.mrf.mxu0
      %6032 = vmatprep.mubr.bf16.mxu0 0
      %6033 = vmatmul.mubr.bf16.gmra.mxu0 %v5935
      %v6034 = vpop.f32.mrf.mxu0
      %v6035 = vadd.f32 %v3009, %v6034
      %v6036 = vpop.f32.mrf.mxu0
      %v6037 = vpop.f32.mrf.mxu0
      %v6038 = vadd.f32 %v3009, %v6037
      %v6039 = vpop.f32.mrf.mxu0
      %6040 = vmatprep.mubr.bf16.mxu0 0
      %6041 = vmatmul.mubr.bf16.gmra.mxu0 %v5938
      %v6042 = vpop.f32.mrf.mxu0
      %v6043 = vadd.f32 %v3009, %v6042
      %v6044 = vpop.f32.mrf.mxu0
      %v6045 = vpop.f32.mrf.mxu0
      %v6046 = vadd.f32 %v3009, %v6045
      %v6047 = vpop.f32.mrf.mxu0
      %6048 = vmatprep.mubr.bf16.mxu0 0
      %6049 = vmatmul.mubr.bf16.gmra.mxu0 %v5941
      %v6050 = vpop.f32.mrf.mxu0
      %v6051 = vadd.f32 %v3009, %v6050
      %v6052 = vpop.f32.mrf.mxu0
      %v6053 = vpop.f32.mrf.mxu0
      %v6054 = vadd.f32 %v3009, %v6053
      %v6055 = vpop.f32.mrf.mxu0
      %6056 = vmatprep.mubr.bf16.mxu0 0
      %6057 = vmatmul.mubr.bf16.gmra.mxu0 %v5944
      %v6058 = vpop.f32.mrf.mxu0
      %v6059 = vadd.f32 %v3009, %v6058
      %v6060 = vpop.f32.mrf.mxu0
      %v6061 = vpop.f32.mrf.mxu0
      %v6062 = vadd.f32 %v3009, %v6061
      %v6063 = vpop.f32.mrf.mxu0
      %6064 = vmatprep.mubr.bf16.mxu0 0
      %6065 = vmatmul.mubr.bf16.gmra.mxu0 %v5947
      %v6066 = vpop.f32.mrf.mxu0
      %v6067 = vadd.f32 %v3009, %v6066
      %v6068 = vpop.f32.mrf.mxu0
      %v6069 = vpop.f32.mrf.mxu0
      %v6070 = vadd.f32 %v3009, %v6069
      %v6071 = vpop.f32.mrf.mxu0
      %6072 = vmatprep.mubr.bf16.mxu0 0
      %6073 = vmatmul.mubr.bf16.gmra.mxu0 %v5950
      %v6074 = vpop.f32.mrf.mxu0
      %v6075 = vadd.f32 %v3009, %v6074
      %v6076 = vpop.f32.mrf.mxu0
      %v6077 = vpop.f32.mrf.mxu0
      %v6078 = vadd.f32 %v3009, %v6077
      %v6079 = vpop.f32.mrf.mxu0
      %6080 = vmatprep.mubr.bf16.mxu0 0
      %6081 = vmatmul.mubr.bf16.gmra.mxu0 %v5953
      %v6082 = vpop.f32.mrf.mxu0
      %v6083 = vadd.f32 %v3009, %v6082
      %v6084 = vpop.f32.mrf.mxu0
      %v6085 = vpop.f32.mrf.mxu0
      %v6086 = vadd.f32 %v3009, %v6085
      %v6087 = vpop.f32.mrf.mxu0
      %6088 = vmatprep.mubr.bf16.mxu0 0
      %6089 = vmatmul.mubr.bf16.gmra.mxu0 %v5956
      %v6090 = vpop.f32.mrf.mxu0
      %v6091 = vadd.f32 %v3009, %v6090
      %v6092 = vpop.f32.mrf.mxu0
      %v6093 = vpop.f32.mrf.mxu0
      %v6094 = vadd.f32 %v3009, %v6093
      %v6095 = vpop.f32.mrf.mxu0
      %6096 = vmatprep.mubr.bf16.mxu0 0
      %6097 = vmatmul.mubr.bf16.gmra.mxu0 %v5959
      %v6098 = vpop.f32.mrf.mxu0
      %v6099 = vadd.f32 %v3009, %v6098
      %v6100 = vpop.f32.mrf.mxu0
      %v6101 = vpop.f32.mrf.mxu0
      %v6102 = vadd.f32 %v3009, %v6101
      %v6103 = vpop.f32.mrf.mxu0
      %6104 = vmatprep.mubr.bf16.mxu0 0
      %6105 = vmatmul.mubr.bf16.gmra.mxu0 %v5962
      %v6106 = vpop.f32.mrf.mxu0
      %v6107 = vadd.f32 %v3009, %v6106
      %v6108 = vpop.f32.mrf.mxu0
      %v6109 = vpop.f32.mrf.mxu0
      %v6110 = vadd.f32 %v3009, %v6109
      %v6111 = vpop.f32.mrf.mxu0
      %6112 = vmatprep.mubr.bf16.mxu0 0
      %6113 = vmatmul.mubr.bf16.gmra.mxu0 %v5965
      %v6114 = vpop.f32.mrf.mxu0
      %v6115 = vadd.f32 %v3009, %v6114
      %v6116 = vpop.f32.mrf.mxu0
      %v6117 = vpop.f32.mrf.mxu0
      %v6118 = vadd.f32 %v3009, %v6117
      %v6119 = vpop.f32.mrf.mxu0
      %6120 = vmatprep.mubr.bf16.mxu0 0
      %6121 = vmatmul.mubr.bf16.gmra.mxu0 %v5968
      %v6122 = vpop.f32.mrf.mxu0
      %v6123 = vadd.f32 %v3009, %v6122
      %v6124 = vpop.f32.mrf.mxu0
      %v6125 = vpop.f32.mrf.mxu0
      %v6126 = vadd.f32 %v3009, %v6125
      %v6127 = vpop.f32.mrf.mxu0
      %6128 = vmatprep.mubr.bf16.mxu0 0
      %6129 = vmatmul.mubr.bf16.gmra.mxu0 %v5971
      %v6130 = vpop.f32.mrf.mxu0
      %v6131 = vadd.f32 %v3009, %v6130
      %v6132 = vpop.f32.mrf.mxu0
      %v6133 = vpop.f32.mrf.mxu0
      %v6134 = vadd.f32 %v3009, %v6133
      %v6135 = vpop.f32.mrf.mxu0
      %6136 = vmatprep.mubr.bf16.mxu0 0
      %6137 = vmatmul.mubr.bf16.gmra.mxu0 %v5974
      %v6138 = vpop.f32.mrf.mxu0
      %v6139 = vadd.f32 %v3009, %v6138
      %v6140 = vpop.f32.mrf.mxu0
      %v6141 = vpop.f32.mrf.mxu0
      %v6142 = vadd.f32 %v3009, %v6141
      %v6143 = vpop.f32.mrf.mxu0
      %6144 = vdwg.mxu0
      %vm6145 = vcmp.gt.f32.partialorder %v6011, 0.0
      %vm6146 = vcmp.gt.f32.partialorder %v6014, 0.0
      %vm6147 = vcmp.gt.f32.partialorder %v6019, 0.0
      %vm6148 = vcmp.gt.f32.partialorder %v6022, 0.0
      %vm6149 = vcmp.gt.f32.partialorder %v6027, 0.0
      %vm6150 = vcmp.gt.f32.partialorder %v6030, 0.0
      %vm6151 = vcmp.gt.f32.partialorder %v6035, 0.0
      %vm6152 = vcmp.gt.f32.partialorder %v6038, 0.0
      %vm6153 = vcmp.gt.f32.partialorder %v6043, 0.0
      %vm6154 = vcmp.gt.f32.partialorder %v6046, 0.0
      %vm6155 = vcmp.gt.f32.partialorder %v6051, 0.0
      %vm6156 = vcmp.gt.f32.partialorder %v6054, 0.0
      %vm6157 = vcmp.gt.f32.partialorder %v6059, 0.0
      %vm6158 = vcmp.gt.f32.partialorder %v6062, 0.0
      %vm6159 = vcmp.gt.f32.partialorder %v6067, 0.0
      %vm6160 = vcmp.gt.f32.partialorder %v6070, 0.0
      %vm6161 = vcmp.gt.f32.partialorder %v6075, 0.0
      %vm6162 = vcmp.gt.f32.partialorder %v6078, 0.0
      %vm6163 = vcmp.gt.f32.partialorder %v6083, 0.0
      %vm6164 = vcmp.gt.f32.partialorder %v6086, 0.0
      %vm6165 = vcmp.gt.f32.partialorder %v6091, 0.0
      %vm6166 = vcmp.gt.f32.partialorder %v6094, 0.0
      %vm6167 = vcmp.gt.f32.partialorder %v6099, 0.0
      %vm6168 = vcmp.gt.f32.partialorder %v6102, 0.0
      %vm6169 = vcmp.gt.f32.partialorder %v6107, 0.0
      %vm6170 = vcmp.gt.f32.partialorder %v6110, 0.0
      %vm6171 = vcmp.gt.f32.partialorder %v6115, 0.0
      %vm6172 = vcmp.gt.f32.partialorder %v6118, 0.0
      %vm6173 = vcmp.gt.f32.partialorder %v6123, 0.0
      %vm6174 = vcmp.gt.f32.partialorder %v6126, 0.0
      %vm6175 = vcmp.gt.f32.partialorder %v6131, 0.0
      %vm6176 = vcmp.gt.f32.partialorder %v6134, 0.0
      %vm6177 = vcmp.gt.f32.partialorder %v6139, 0.0
      %vm6178 = vcmp.gt.f32.partialorder %v6142, 0.0
      %v6179 = vmul.f32 %v6011, -0.76766074
      %v6180 = vmul.f32 %v6014, -0.76766074
      %v6181 = vmul.f32 %v6019, -0.76766074
      %v6182 = vmul.f32 %v6022, -0.76766074
      %v6183 = vmul.f32 %v6027, -0.76766074
      %v6184 = vmul.f32 %v6030, -0.76766074
      %v6185 = vmul.f32 %v6035, -0.76766074
      %v6186 = vmul.f32 %v6038, -0.76766074
      %v6187 = vmul.f32 %v6043, -0.76766074
      %v6188 = vmul.f32 %v6046, -0.76766074
      %v6189 = vmul.f32 %v6051, -0.76766074
      %v6190 = vmul.f32 %v6054, -0.76766074
      %v6191 = vmul.f32 %v6059, -0.76766074
      %v6192 = vmul.f32 %v6062, -0.76766074
      %v6193 = vmul.f32 %v6067, -0.76766074
      %v6194 = vmul.f32 %v6070, -0.76766074
      %v6195 = vmul.f32 %v6075, -0.76766074
      %v6196 = vmul.f32 %v6078, -0.76766074
      %v6197 = vmul.f32 %v6083, -0.76766074
      %v6198 = vmul.f32 %v6086, -0.76766074
      %v6199 = vmul.f32 %v6091, -0.76766074
      %v6200 = vmul.f32 %v6094, -0.76766074
      %v6201 = vmul.f32 %v6099, -0.76766074
      %v6202 = vmul.f32 %v6102, -0.76766074
      %v6203 = vmul.f32 %v6107, -0.76766074
      %v6204 = vmul.f32 %v6110, -0.76766074
      %v6205 = vmul.f32 %v6115, -0.76766074
      %v6206 = vmul.f32 %v6118, -0.76766074
      %v6207 = vmul.f32 %v6123, -0.76766074
      %v6208 = vmul.f32 %v6126, -0.76766074
      %v6209 = vmul.f32 %v6131, -0.76766074
      %v6210 = vmul.f32 %v6134, -0.76766074
      %v6211 = vmul.f32 %v6139, -0.76766074
      %v6212 = vmul.f32 %v6142, -0.76766074
      %v6213 = vsel %vm6145, %v6011, %v6179
      %v6214 = vsel %vm6146, %v6014, %v6180
      %v6215 = vsel %vm6147, %v6019, %v6181
      %v6216 = vsel %vm6148, %v6022, %v6182
      %v6217 = vsel %vm6149, %v6027, %v6183
      %v6218 = vsel %vm6150, %v6030, %v6184
      %v6219 = vsel %vm6151, %v6035, %v6185
      %v6220 = vsel %vm6152, %v6038, %v6186
      %v6221 = vsel %vm6153, %v6043, %v6187
      %v6222 = vsel %vm6154, %v6046, %v6188
      %v6223 = vsel %vm6155, %v6051, %v6189
      %v6224 = vsel %vm6156, %v6054, %v6190
      %v6225 = vsel %vm6157, %v6059, %v6191
      %v6226 = vsel %vm6158, %v6062, %v6192
      %v6227 = vsel %vm6159, %v6067, %v6193
      %v6228 = vsel %vm6160, %v6070, %v6194
      %v6229 = vsel %vm6161, %v6075, %v6195
      %v6230 = vsel %vm6162, %v6078, %v6196
      %v6231 = vsel %vm6163, %v6083, %v6197
      %v6232 = vsel %vm6164, %v6086, %v6198
      %v6233 = vsel %vm6165, %v6091, %v6199
      %v6234 = vsel %vm6166, %v6094, %v6200
      %v6235 = vsel %vm6167, %v6099, %v6201
      %v6236 = vsel %vm6168, %v6102, %v6202
      %v6237 = vsel %vm6169, %v6107, %v6203
      %v6238 = vsel %vm6170, %v6110, %v6204
      %v6239 = vsel %vm6171, %v6115, %v6205
      %v6240 = vsel %vm6172, %v6118, %v6206
      %v6241 = vsel %vm6173, %v6123, %v6207
      %v6242 = vsel %vm6174, %v6126, %v6208
      %v6243 = vsel %vm6175, %v6131, %v6209
      %v6244 = vsel %vm6176, %v6134, %v6210
      %v6245 = vsel %vm6177, %v6139, %v6211
      %v6246 = vsel %vm6178, %v6142, %v6212
      %s6247 = scalar_lea.vmem %s359, 816
      %6248 = vst.msk [vmem:[%s6247] sm:$0xff] %vm3343, %v6213
      %6249 = vst.msk [vmem:[%s6247 + $0x8] sm:$0xff] %vm3343, %v6214
      %6250 = vst.msk [vmem:[%s6247 + $0x10] sm:$0xff] %vm3343, %v6215
      %6251 = vst.msk [vmem:[%s6247 + $0x18] sm:$0xff] %vm3343, %v6216
      %6252 = vst.msk [vmem:[%s6247 + $0x20] sm:$0xff] %vm3343, %v6217
      %6253 = vst.msk [vmem:[%s6247 + $0x28] sm:$0xff] %vm3343, %v6218
      %6254 = vst.msk [vmem:[%s6247 + $0x30] sm:$0xff] %vm3343, %v6219
      %6255 = vst.msk [vmem:[%s6247 + $0x38] sm:$0xff] %vm3343, %v6220
      %6256 = vst.msk [vmem:[%s6247 + $0x40] sm:$0xff] %vm3343, %v6221
      %6257 = vst.msk [vmem:[%s6247 + $0x48] sm:$0xff] %vm3343, %v6222
      %6258 = vst.msk [vmem:[%s6247 + $0x50] sm:$0xff] %vm3343, %v6223
      %6259 = vst.msk [vmem:[%s6247 + $0x58] sm:$0xff] %vm3343, %v6224
      %6260 = vst.msk [vmem:[%s6247 + $0x60] sm:$0xff] %vm3343, %v6225
      %6261 = vst.msk [vmem:[%s6247 + $0x68] sm:$0xff] %vm3343, %v6226
      %6262 = vst.msk [vmem:[%s6247 + $0x70] sm:$0xff] %vm3343, %v6227
      %6263 = vst.msk [vmem:[%s6247 + $0x78] sm:$0xff] %vm3343, %v6228
      %6264 = vst.msk [vmem:[%s6247 + $0x80] sm:$0xff] %vm3343, %v6229
      %6265 = vst.msk [vmem:[%s6247 + $0x88] sm:$0xff] %vm3343, %v6230
      %6266 = vst.msk [vmem:[%s6247 + $0x90] sm:$0xff] %vm3343, %v6231
      %6267 = vst.msk [vmem:[%s6247 + $0x98] sm:$0xff] %vm3343, %v6232
      %6268 = vst.msk [vmem:[%s6247 + $0xa0] sm:$0xff] %vm3343, %v6233
      %6269 = vst.msk [vmem:[%s6247 + $0xa8] sm:$0xff] %vm3343, %v6234
      %6270 = vst.msk [vmem:[%s6247 + $0xb0] sm:$0xff] %vm3343, %v6235
      %6271 = vst.msk [vmem:[%s6247 + $0xb8] sm:$0xff] %vm3343, %v6236
      %6272 = vst.msk [vmem:[%s6247 + $0xc0] sm:$0xff] %vm3343, %v6237
      %6273 = vst.msk [vmem:[%s6247 + $0xc8] sm:$0xff] %vm3343, %v6238
      %6274 = vst.msk [vmem:[%s6247 + $0xd0] sm:$0xff] %vm3343, %v6239
      %6275 = vst.msk [vmem:[%s6247 + $0xd8] sm:$0xff] %vm3343, %v6240
      %6276 = vst.msk [vmem:[%s6247 + $0xe0] sm:$0xff] %vm3343, %v6241
      %6277 = vst.msk [vmem:[%s6247 + $0xe8] sm:$0xff] %vm3343, %v6242
      %6278 = vst.msk [vmem:[%s6247 + $0xf0] sm:$0xff] %vm3343, %v6243
      %6279 = vst.msk [vmem:[%s6247 + $0xf8] sm:$0xff] %vm3343, %v6244
      %6280 = vst.msk [vmem:[%s6247 + $0x100] sm:$0xff] %vm3343, %v6245
      %6281 = vst.msk [vmem:[%s6247 + $0x108] sm:$0xff] %vm3343, %v6246
      %v6282 = vld [vmem:[#allocation3 + $0x8] sm:$0xe]
      %v6283 = vld [vmem:[#allocation3 + $0xc] sm:$0xf]
      %v6284 = vld [vmem:[#allocation3 + $0x10] sm:$0xf]
      %v6285 = vld [vmem:[#allocation3 + $0x14] sm:$0xf]
      %v6286 = vld [vmem:[#allocation3 + $0x18] sm:$0xf]
      %v6287 = vld [vmem:[#allocation3 + $0x1c] sm:$0xf]
      %v6288 = vld [vmem:[#allocation3 + $0x20] sm:$0xf]
      %v6289 = vld [vmem:[#allocation3 + $0x24] sm:$0xf]
      %v6290 = vld [vmem:[#allocation3 + $0x28] sm:$0xf]
      %v6291 = vld [vmem:[#allocation3 + $0x2c] sm:$0xf]
      %v6292 = vld [vmem:[#allocation3 + $0x30] sm:$0xf]
      %v6293 = vld [vmem:[#allocation3 + $0x34] sm:$0xf]
      %v6294 = vld [vmem:[#allocation3 + $0x38] sm:$0xf]
      %v6295 = vld [vmem:[#allocation3 + $0x3c] sm:$0xf]
      %v6296 = vld [vmem:[#allocation3 + $0x40] sm:$0xf]
      %v6297 = vld [vmem:[#allocation3 + $0x44] sm:$0xf]
      %v6298 = vld [vmem:[#allocation3 + $0x48] sm:$0xf]
      %v6299 = vld [vmem:[#allocation3 + $0x4c] sm:$0xf]
      %v6300 = vld [vmem:[#allocation3 + $0x50] sm:$0xf]
      %v6301 = vld [vmem:[#allocation3 + $0x54] sm:$0xf]
      %v6302 = vld [vmem:[#allocation3 + $0x58] sm:$0xf]
      %v6303 = vld [vmem:[#allocation3 + $0x5c] sm:$0xf]
      %v6304 = vld [vmem:[#allocation3 + $0x60] sm:$0xf]
      %v6305 = vld [vmem:[#allocation3 + $0x64] sm:$0xf]
      %v6306 = vld [vmem:[#allocation3 + $0x68] sm:$0xf]
      %v6307 = vld [vmem:[#allocation3 + $0x6c] sm:$0xf]
      %v6308 = vld [vmem:[#allocation3 + $0x70] sm:$0xf]
      %v6309 = vld [vmem:[#allocation3 + $0x74] sm:$0xf]
      %v6310 = vld [vmem:[#allocation3 + $0x78] sm:$0xf]
      %v6311 = vld [vmem:[#allocation3 + $0x7c] sm:$0xf]
      %v6312 = vld [vmem:[#allocation3 + $0x80] sm:$0xf]
      %v6313 = vld [vmem:[#allocation3 + $0x84] sm:$0xf]
      %v6314 = vld [vmem:[#allocation3 + $0x88] sm:$0xf]
      %v6315 = vld [vmem:[#allocation3 + $0x8c] sm:$0xf]
      %v6316 = vld [vmem:[#allocation3 + $0x90] sm:$0x1]
      %s6317 = scalar_lea.vmem %s6, 32
      %v6318 = vld [vmem:[%s6317] sm:$0xf]
      %v6319 = vld [vmem:[%s6317 + $0x4] sm:$0xf]
      %v6355 = vunpack.c.l.b16 %v6282
      %v6356 = vunpack.c.l.b16 %v6283
      %v6357 = vunpack.c.l.b16 %v6284
      %v6358 = vunpack.c.l.b16 %v6285
      %v6359 = vunpack.c.l.b16 %v6286
      %v6360 = vunpack.c.l.b16 %v6287
      %v6361 = vunpack.c.l.b16 %v6288
      %v6362 = vunpack.c.l.b16 %v6289
      %v6363 = vunpack.c.l.b16 %v6290
      %v6364 = vunpack.c.l.b16 %v6291
      %v6365 = vunpack.c.l.b16 %v6292
      %v6366 = vunpack.c.l.b16 %v6293
      %v6367 = vunpack.c.l.b16 %v6294
      %v6368 = vunpack.c.l.b16 %v6295
      %v6369 = vunpack.c.l.b16 %v6296
      %v6370 = vunpack.c.l.b16 %v6297
      %v6371 = vunpack.c.l.b16 %v6298
      %v6372 = vunpack.c.l.b16 %v6299
      %v6373 = vunpack.c.l.b16 %v6300
      %v6374 = vunpack.c.l.b16 %v6301
      %v6375 = vunpack.c.l.b16 %v6302
      %v6376 = vunpack.c.l.b16 %v6303
      %v6377 = vunpack.c.l.b16 %v6304
      %v6378 = vunpack.c.l.b16 %v6305
      %v6379 = vunpack.c.l.b16 %v6306
      %v6380 = vunpack.c.l.b16 %v6307
      %v6381 = vunpack.c.l.b16 %v6308
      %v6382 = vunpack.c.l.b16 %v6309
      %v6383 = vunpack.c.l.b16 %v6310
      %v6384 = vunpack.c.l.b16 %v6311
      %v6385 = vunpack.c.l.b16 %v6312
      %v6386 = vunpack.c.l.b16 %v6313
      %v6387 = vunpack.c.l.b16 %v6314
      %v6388 = vunpack.c.l.b16 %v6315
      %v6389 = vunpack.c.l.b16 %v6316
      %v6390 = vpack.c.b16 %v6356, %v6355
      %v6391 = vpack.c.b16 %v6358, %v6357
      %v6392 = vpack.c.b16 %v6360, %v6359
      %v6393 = vpack.c.b16 %v6362, %v6361
      %v6394 = vpack.c.b16 %v6364, %v6363
      %v6395 = vpack.c.b16 %v6366, %v6365
      %v6396 = vpack.c.b16 %v6368, %v6367
      %v6397 = vpack.c.b16 %v6370, %v6369
      %v6398 = vpack.c.b16 %v6372, %v6371
      %v6399 = vpack.c.b16 %v6374, %v6373
      %v6400 = vpack.c.b16 %v6376, %v6375
      %v6401 = vpack.c.b16 %v6378, %v6377
      %v6402 = vpack.c.b16 %v6380, %v6379
      %v6403 = vpack.c.b16 %v6382, %v6381
      %v6404 = vpack.c.b16 %v6384, %v6383
      %v6405 = vpack.c.b16 %v6386, %v6385
      %v6406 = vpack.c.b16 %v6388, %v6387
      %v6407 = vpack.c.b16 %v6389, %v6389
      %vm6408 = vcmask 1046528
      %v6409 = vrot.slane %v6390, 1
      %v6410 = vrot.slane %v6391, 1
      %v6411 = vsel %vm6408, %v6409, %v6410
      %v6412 = vrot.slane %v6392, 1
      %v6413 = vsel %vm6408, %v6410, %v6412
      %v6414 = vrot.slane %v6393, 1
      %v6415 = vsel %vm6408, %v6412, %v6414
      %v6416 = vrot.slane %v6394, 1
      %v6417 = vsel %vm6408, %v6414, %v6416
      %v6418 = vrot.slane %v6395, 1
      %v6419 = vsel %vm6408, %v6416, %v6418
      %v6420 = vrot.slane %v6396, 1
      %v6421 = vsel %vm6408, %v6418, %v6420
      %v6422 = vrot.slane %v6397, 1
      %v6423 = vsel %vm6408, %v6420, %v6422
      %v6424 = vrot.slane %v6398, 1
      %v6425 = vsel %vm6408, %v6422, %v6424
      %v6426 = vrot.slane %v6399, 1
      %v6427 = vsel %vm6408, %v6424, %v6426
      %v6428 = vrot.slane %v6400, 1
      %v6429 = vsel %vm6408, %v6426, %v6428
      %v6430 = vrot.slane %v6401, 1
      %v6431 = vsel %vm6408, %v6428, %v6430
      %v6432 = vrot.slane %v6402, 1
      %v6433 = vsel %vm6408, %v6430, %v6432
      %v6434 = vrot.slane %v6403, 1
      %v6435 = vsel %vm6408, %v6432, %v6434
      %v6436 = vrot.slane %v6404, 1
      %v6437 = vsel %vm6408, %v6434, %v6436
      %v6438 = vrot.slane %v6405, 1
      %v6439 = vsel %vm6408, %v6436, %v6438
      %v6440 = vrot.slane %v6406, 1
      %v6441 = vsel %vm6408, %v6438, %v6440
      %v6442 = vrot.slane %v6407, 1
      %v6443 = vsel %vm6408, %v6440, %v6442
      %v6446 = vunpack.c.l.b16 %v6318
      %v6447 = vunpack.c.l.b16 %v6319
      %v6448 = vpack.c.b16 %v6447, %v6446
      %v6451 = vsel %vm2665, %v6411, 0
      %v6454 = vsel %vm2665, %v6413, 0
      %v6457 = vsel %vm2665, %v6415, 0
      %v6460 = vsel %vm2665, %v6417, 0
      %v6463 = vsel %vm2665, %v6419, 0
      %v6466 = vsel %vm2665, %v6421, 0
      %v6469 = vsel %vm2665, %v6423, 0
      %v6472 = vsel %vm2665, %v6425, 0
      %v6475 = vsel %vm2665, %v6427, 0
      %v6478 = vsel %vm2665, %v6429, 0
      %v6481 = vsel %vm2665, %v6431, 0
      %v6484 = vsel %vm2665, %v6433, 0
      %v6487 = vsel %vm2665, %v6435, 0
      %v6490 = vsel %vm2665, %v6437, 0
      %v6493 = vsel %vm2665, %v6439, 0
      %v6496 = vsel %vm2665, %v6441, 0
      %v6499 = vsel %vm2665, %v6443, 0
      %6501 = vmatprep.subr.bf16.mxu0 0
      %6502 = vmatpush1.bf16.msra.mxu0 0
      %6503 = vmatprep.subr.bf16.mxu0 0
      %6504 = vmatpush1.bf16.msra.mxu0 0
      %6505 = vmatprep.subr.bf16.mxu0 0
      %6506 = vmatpush1.bf16.msra.mxu0 0
      %6507 = vmatprep.subr.bf16.mxu0 0
      %6508 = vmatpush1.bf16.msra.mxu0 0
      %6509 = vmatprep.subr.bf16.mxu0 0
      %6510 = vmatpush1.bf16.msra.mxu0 0
      %6511 = vmatprep.subr.bf16.mxu0 0
      %6512 = vmatpush1.bf16.msra.mxu0 0
      %6513 = vmatprep.subr.bf16.mxu0 0
      %6514 = vmatpush1.bf16.msra.mxu0 0
      %6515 = vmatprep.subr.bf16.mxu0 0
      %6516 = vmatpush1.bf16.msra.mxu0 %v6448
      %6517 = vmatprep.subr.bf16.mxu0 0
      %6518 = vmatpush2.bf16.msra.mxu0 0
      %6519 = vmatprep.subr.bf16.mxu0 0
      %6520 = vmatpush2.bf16.msra.mxu0 0
      %6521 = vmatprep.subr.bf16.mxu0 0
      %6522 = vmatpush2.bf16.msra.mxu0 0
      %6523 = vmatprep.subr.bf16.mxu0 0
      %6524 = vmatpush2.bf16.msra.mxu0 0
      %6525 = vmatprep.subr.bf16.mxu0 0
      %6526 = vmatpush2.bf16.msra.mxu0 0
      %6527 = vmatprep.subr.bf16.mxu0 0
      %6528 = vmatpush2.bf16.msra.mxu0 0
      %6529 = vmatprep.subr.bf16.mxu0 0
      %6530 = vmatpush2.bf16.msra.mxu0 0
      %6531 = vmatprep.subr.bf16.mxu0 0
      %6532 = vmatpush2.bf16.msra.mxu0 0
      %6533 = vmatprep.mubr.bf16.mxu0 0
      %6534 = vmatmul.mubr.bf16.gmra.mxu0 %v6451
      %v6535 = vpop.f32.mrf.mxu0
      %v6536 = vadd.f32 %v2572, %v6535
      %v6537 = vpop.f32.mrf.mxu0
      %v6538 = vpop.f32.mrf.mxu0
      %v6539 = vadd.f32 %v2572, %v6538
      %v6540 = vpop.f32.mrf.mxu0
      %6541 = vmatprep.mubr.bf16.mxu0 0
      %6542 = vmatmul.mubr.bf16.gmra.mxu0 %v6454
      %v6543 = vpop.f32.mrf.mxu0
      %v6544 = vadd.f32 %v2572, %v6543
      %v6545 = vpop.f32.mrf.mxu0
      %v6546 = vpop.f32.mrf.mxu0
      %v6547 = vadd.f32 %v2572, %v6546
      %v6548 = vpop.f32.mrf.mxu0
      %6549 = vmatprep.mubr.bf16.mxu0 0
      %6550 = vmatmul.mubr.bf16.gmra.mxu0 %v6457
      %v6551 = vpop.f32.mrf.mxu0
      %v6552 = vadd.f32 %v2572, %v6551
      %v6553 = vpop.f32.mrf.mxu0
      %v6554 = vpop.f32.mrf.mxu0
      %v6555 = vadd.f32 %v2572, %v6554
      %v6556 = vpop.f32.mrf.mxu0
      %6557 = vmatprep.mubr.bf16.mxu0 0
      %6558 = vmatmul.mubr.bf16.gmra.mxu0 %v6460
      %v6559 = vpop.f32.mrf.mxu0
      %v6560 = vadd.f32 %v2572, %v6559
      %v6561 = vpop.f32.mrf.mxu0
      %v6562 = vpop.f32.mrf.mxu0
      %v6563 = vadd.f32 %v2572, %v6562
      %v6564 = vpop.f32.mrf.mxu0
      %6565 = vmatprep.mubr.bf16.mxu0 0
      %6566 = vmatmul.mubr.bf16.gmra.mxu0 %v6463
      %v6567 = vpop.f32.mrf.mxu0
      %v6568 = vadd.f32 %v2572, %v6567
      %v6569 = vpop.f32.mrf.mxu0
      %v6570 = vpop.f32.mrf.mxu0
      %v6571 = vadd.f32 %v2572, %v6570
      %v6572 = vpop.f32.mrf.mxu0
      %6573 = vmatprep.mubr.bf16.mxu0 0
      %6574 = vmatmul.mubr.bf16.gmra.mxu0 %v6466
      %v6575 = vpop.f32.mrf.mxu0
      %v6576 = vadd.f32 %v2572, %v6575
      %v6577 = vpop.f32.mrf.mxu0
      %v6578 = vpop.f32.mrf.mxu0
      %v6579 = vadd.f32 %v2572, %v6578
      %v6580 = vpop.f32.mrf.mxu0
      %6581 = vmatprep.mubr.bf16.mxu0 0
      %6582 = vmatmul.mubr.bf16.gmra.mxu0 %v6469
      %v6583 = vpop.f32.mrf.mxu0
      %v6584 = vadd.f32 %v2572, %v6583
      %v6585 = vpop.f32.mrf.mxu0
      %v6586 = vpop.f32.mrf.mxu0
      %v6587 = vadd.f32 %v2572, %v6586
      %v6588 = vpop.f32.mrf.mxu0
      %6589 = vmatprep.mubr.bf16.mxu0 0
      %6590 = vmatmul.mubr.bf16.gmra.mxu0 %v6472
      %v6591 = vpop.f32.mrf.mxu0
      %v6592 = vadd.f32 %v2572, %v6591
      %v6593 = vpop.f32.mrf.mxu0
      %v6594 = vpop.f32.mrf.mxu0
      %v6595 = vadd.f32 %v2572, %v6594
      %v6596 = vpop.f32.mrf.mxu0
      %6597 = vmatprep.mubr.bf16.mxu0 0
      %6598 = vmatmul.mubr.bf16.gmra.mxu0 %v6475
      %v6599 = vpop.f32.mrf.mxu0
      %v6600 = vadd.f32 %v2572, %v6599
      %v6601 = vpop.f32.mrf.mxu0
      %v6602 = vpop.f32.mrf.mxu0
      %v6603 = vadd.f32 %v2572, %v6602
      %v6604 = vpop.f32.mrf.mxu0
      %6605 = vmatprep.mubr.bf16.mxu0 0
      %6606 = vmatmul.mubr.bf16.gmra.mxu0 %v6478
      %v6607 = vpop.f32.mrf.mxu0
      %v6608 = vadd.f32 %v2572, %v6607
      %v6609 = vpop.f32.mrf.mxu0
      %v6610 = vpop.f32.mrf.mxu0
      %v6611 = vadd.f32 %v2572, %v6610
      %v6612 = vpop.f32.mrf.mxu0
      %6613 = vmatprep.mubr.bf16.mxu0 0
      %6614 = vmatmul.mubr.bf16.gmra.mxu0 %v6481
      %v6615 = vpop.f32.mrf.mxu0
      %v6616 = vadd.f32 %v2572, %v6615
      %v6617 = vpop.f32.mrf.mxu0
      %v6618 = vpop.f32.mrf.mxu0
      %v6619 = vadd.f32 %v2572, %v6618
      %v6620 = vpop.f32.mrf.mxu0
      %6621 = vmatprep.mubr.bf16.mxu0 0
      %6622 = vmatmul.mubr.bf16.gmra.mxu0 %v6484
      %v6623 = vpop.f32.mrf.mxu0
      %v6624 = vadd.f32 %v2572, %v6623
      %v6625 = vpop.f32.mrf.mxu0
      %v6626 = vpop.f32.mrf.mxu0
      %v6627 = vadd.f32 %v2572, %v6626
      %v6628 = vpop.f32.mrf.mxu0
      %6629 = vmatprep.mubr.bf16.mxu0 0
      %6630 = vmatmul.mubr.bf16.gmra.mxu0 %v6487
      %v6631 = vpop.f32.mrf.mxu0
      %v6632 = vadd.f32 %v2572, %v6631
      %v6633 = vpop.f32.mrf.mxu0
      %v6634 = vpop.f32.mrf.mxu0
      %v6635 = vadd.f32 %v2572, %v6634
      %v6636 = vpop.f32.mrf.mxu0
      %6637 = vmatprep.mubr.bf16.mxu0 0
      %6638 = vmatmul.mubr.bf16.gmra.mxu0 %v6490
      %v6639 = vpop.f32.mrf.mxu0
      %v6640 = vadd.f32 %v2572, %v6639
      %v6641 = vpop.f32.mrf.mxu0
      %v6642 = vpop.f32.mrf.mxu0
      %v6643 = vadd.f32 %v2572, %v6642
      %v6644 = vpop.f32.mrf.mxu0
      %6645 = vmatprep.mubr.bf16.mxu0 0
      %6646 = vmatmul.mubr.bf16.gmra.mxu0 %v6493
      %v6647 = vpop.f32.mrf.mxu0
      %v6648 = vadd.f32 %v2572, %v6647
      %v6649 = vpop.f32.mrf.mxu0
      %v6650 = vpop.f32.mrf.mxu0
      %v6651 = vadd.f32 %v2572, %v6650
      %v6652 = vpop.f32.mrf.mxu0
      %6653 = vmatprep.mubr.bf16.mxu0 0
      %6654 = vmatmul.mubr.bf16.gmra.mxu0 %v6496
      %v6655 = vpop.f32.mrf.mxu0
      %v6656 = vadd.f32 %v2572, %v6655
      %v6657 = vpop.f32.mrf.mxu0
      %v6658 = vpop.f32.mrf.mxu0
      %v6659 = vadd.f32 %v2572, %v6658
      %v6660 = vpop.f32.mrf.mxu0
      %6661 = vmatprep.mubr.bf16.mxu0 0
      %6662 = vmatmul.mubr.bf16.gmra.mxu0 %v6499
      %v6663 = vpop.f32.mrf.mxu0
      %v6664 = vadd.f32 %v2572, %v6663
      %v6665 = vpop.f32.mrf.mxu0
      %v6666 = vpop.f32.mrf.mxu0
      %v6667 = vadd.f32 %v2572, %v6666
      %v6668 = vpop.f32.mrf.mxu0
      %6669 = vdwg.mxu0
      %vm6670 = vcmp.gt.f32.partialorder %v6536, 0.0
      %vm6671 = vcmp.gt.f32.partialorder %v6539, 0.0
      %vm6672 = vcmp.gt.f32.partialorder %v6544, 0.0
      %vm6673 = vcmp.gt.f32.partialorder %v6547, 0.0
      %vm6674 = vcmp.gt.f32.partialorder %v6552, 0.0
      %vm6675 = vcmp.gt.f32.partialorder %v6555, 0.0
      %vm6676 = vcmp.gt.f32.partialorder %v6560, 0.0
      %vm6677 = vcmp.gt.f32.partialorder %v6563, 0.0
      %vm6678 = vcmp.gt.f32.partialorder %v6568, 0.0
      %vm6679 = vcmp.gt.f32.partialorder %v6571, 0.0
      %vm6680 = vcmp.gt.f32.partialorder %v6576, 0.0
      %vm6681 = vcmp.gt.f32.partialorder %v6579, 0.0
      %vm6682 = vcmp.gt.f32.partialorder %v6584, 0.0
      %vm6683 = vcmp.gt.f32.partialorder %v6587, 0.0
      %vm6684 = vcmp.gt.f32.partialorder %v6592, 0.0
      %vm6685 = vcmp.gt.f32.partialorder %v6595, 0.0
      %vm6686 = vcmp.gt.f32.partialorder %v6600, 0.0
      %vm6687 = vcmp.gt.f32.partialorder %v6603, 0.0
      %vm6688 = vcmp.gt.f32.partialorder %v6608, 0.0
      %vm6689 = vcmp.gt.f32.partialorder %v6611, 0.0
      %vm6690 = vcmp.gt.f32.partialorder %v6616, 0.0
      %vm6691 = vcmp.gt.f32.partialorder %v6619, 0.0
      %vm6692 = vcmp.gt.f32.partialorder %v6624, 0.0
      %vm6693 = vcmp.gt.f32.partialorder %v6627, 0.0
      %vm6694 = vcmp.gt.f32.partialorder %v6632, 0.0
      %vm6695 = vcmp.gt.f32.partialorder %v6635, 0.0
      %vm6696 = vcmp.gt.f32.partialorder %v6640, 0.0
      %vm6697 = vcmp.gt.f32.partialorder %v6643, 0.0
      %vm6698 = vcmp.gt.f32.partialorder %v6648, 0.0
      %vm6699 = vcmp.gt.f32.partialorder %v6651, 0.0
      %vm6700 = vcmp.gt.f32.partialorder %v6656, 0.0
      %vm6701 = vcmp.gt.f32.partialorder %v6659, 0.0
      %vm6702 = vcmp.gt.f32.partialorder %v6664, 0.0
      %vm6703 = vcmp.gt.f32.partialorder %v6667, 0.0
      %v6704 = vmul.f32 %v6536, -0.76766074
      %v6705 = vmul.f32 %v6539, -0.76766074
      %v6706 = vmul.f32 %v6544, -0.76766074
      %v6707 = vmul.f32 %v6547, -0.76766074
      %v6708 = vmul.f32 %v6552, -0.76766074
      %v6709 = vmul.f32 %v6555, -0.76766074
      %v6710 = vmul.f32 %v6560, -0.76766074
      %v6711 = vmul.f32 %v6563, -0.76766074
      %v6712 = vmul.f32 %v6568, -0.76766074
      %v6713 = vmul.f32 %v6571, -0.76766074
      %v6714 = vmul.f32 %v6576, -0.76766074
      %v6715 = vmul.f32 %v6579, -0.76766074
      %v6716 = vmul.f32 %v6584, -0.76766074
      %v6717 = vmul.f32 %v6587, -0.76766074
      %v6718 = vmul.f32 %v6592, -0.76766074
      %v6719 = vmul.f32 %v6595, -0.76766074
      %v6720 = vmul.f32 %v6600, -0.76766074
      %v6721 = vmul.f32 %v6603, -0.76766074
      %v6722 = vmul.f32 %v6608, -0.76766074
      %v6723 = vmul.f32 %v6611, -0.76766074
      %v6724 = vmul.f32 %v6616, -0.76766074
      %v6725 = vmul.f32 %v6619, -0.76766074
      %v6726 = vmul.f32 %v6624, -0.76766074
      %v6727 = vmul.f32 %v6627, -0.76766074
      %v6728 = vmul.f32 %v6632, -0.76766074
      %v6729 = vmul.f32 %v6635, -0.76766074
      %v6730 = vmul.f32 %v6640, -0.76766074
      %v6731 = vmul.f32 %v6643, -0.76766074
      %v6732 = vmul.f32 %v6648, -0.76766074
      %v6733 = vmul.f32 %v6651, -0.76766074
      %v6734 = vmul.f32 %v6656, -0.76766074
      %v6735 = vmul.f32 %v6659, -0.76766074
      %v6736 = vmul.f32 %v6664, -0.76766074
      %v6737 = vmul.f32 %v6667, -0.76766074
      %v6738 = vsel %vm6670, %v6536, %v6704
      %v6739 = vsel %vm6671, %v6539, %v6705
      %v6740 = vsel %vm6672, %v6544, %v6706
      %v6741 = vsel %vm6673, %v6547, %v6707
      %v6742 = vsel %vm6674, %v6552, %v6708
      %v6743 = vsel %vm6675, %v6555, %v6709
      %v6744 = vsel %vm6676, %v6560, %v6710
      %v6745 = vsel %vm6677, %v6563, %v6711
      %v6746 = vsel %vm6678, %v6568, %v6712
      %v6747 = vsel %vm6679, %v6571, %v6713
      %v6748 = vsel %vm6680, %v6576, %v6714
      %v6749 = vsel %vm6681, %v6579, %v6715
      %v6750 = vsel %vm6682, %v6584, %v6716
      %v6751 = vsel %vm6683, %v6587, %v6717
      %v6752 = vsel %vm6684, %v6592, %v6718
      %v6753 = vsel %vm6685, %v6595, %v6719
      %v6754 = vsel %vm6686, %v6600, %v6720
      %v6755 = vsel %vm6687, %v6603, %v6721
      %v6756 = vsel %vm6688, %v6608, %v6722
      %v6757 = vsel %vm6689, %v6611, %v6723
      %v6758 = vsel %vm6690, %v6616, %v6724
      %v6759 = vsel %vm6691, %v6619, %v6725
      %v6760 = vsel %vm6692, %v6624, %v6726
      %v6761 = vsel %vm6693, %v6627, %v6727
      %v6762 = vsel %vm6694, %v6632, %v6728
      %v6763 = vsel %vm6695, %v6635, %v6729
      %v6764 = vsel %vm6696, %v6640, %v6730
      %v6765 = vsel %vm6697, %v6643, %v6731
      %v6766 = vsel %vm6698, %v6648, %v6732
      %v6767 = vsel %vm6699, %v6651, %v6733
      %v6768 = vsel %vm6700, %v6656, %v6734
      %v6769 = vsel %vm6701, %v6659, %v6735
      %v6770 = vsel %vm6702, %v6664, %v6736
      %v6771 = vsel %vm6703, %v6667, %v6737
      %v6772 = vpack.c.bf16 %v6739, %v6738
      %v6773 = vpack.c.bf16 %v6741, %v6740
      %v6774 = vpack.c.bf16 %v6743, %v6742
      %v6775 = vpack.c.bf16 %v6745, %v6744
      %v6776 = vpack.c.bf16 %v6747, %v6746
      %v6777 = vpack.c.bf16 %v6749, %v6748
      %v6778 = vpack.c.bf16 %v6751, %v6750
      %v6779 = vpack.c.bf16 %v6753, %v6752
      %v6780 = vpack.c.bf16 %v6755, %v6754
      %v6781 = vpack.c.bf16 %v6757, %v6756
      %v6782 = vpack.c.bf16 %v6759, %v6758
      %v6783 = vpack.c.bf16 %v6761, %v6760
      %v6784 = vpack.c.bf16 %v6763, %v6762
      %v6785 = vpack.c.bf16 %v6765, %v6764
      %v6786 = vpack.c.bf16 %v6767, %v6766
      %v6787 = vpack.c.bf16 %v6769, %v6768
      %v6788 = vpack.c.bf16 %v6771, %v6770
      %v6790 = vsel %vm3016, %v6772, 0
      %v6793 = vsel %vm3016, %v6773, 0
      %v6796 = vsel %vm3016, %v6774, 0
      %v6799 = vsel %vm3016, %v6775, 0
      %v6802 = vsel %vm3016, %v6776, 0
      %v6805 = vsel %vm3016, %v6777, 0
      %v6808 = vsel %vm3016, %v6778, 0
      %v6811 = vsel %vm3016, %v6779, 0
      %v6814 = vsel %vm3016, %v6780, 0
      %v6817 = vsel %vm3016, %v6781, 0
      %v6820 = vsel %vm3016, %v6782, 0
      %v6823 = vsel %vm3016, %v6783, 0
      %v6826 = vsel %vm3016, %v6784, 0
      %v6829 = vsel %vm3016, %v6785, 0
      %v6832 = vsel %vm3016, %v6786, 0
      %v6835 = vsel %vm3016, %v6787, 0
      %v6838 = vsel %vm3016, %v6788, 0
      %6840 = vmatprep.subr.bf16.mxu0 0
      %6841 = vmatpush1.bf16.msra.mxu0 0
      %6842 = vmatprep.subr.bf16.mxu0 0
      %6843 = vmatpush1.bf16.msra.mxu0 0
      %6844 = vmatprep.subr.bf16.mxu0 0
      %6845 = vmatpush1.bf16.msra.mxu0 0
      %6846 = vmatprep.subr.bf16.mxu0 0
      %6847 = vmatpush1.bf16.msra.mxu0 0
      %6848 = vmatprep.subr.bf16.mxu0 0
      %6849 = vmatpush1.bf16.msra.mxu0 0
      %6850 = vmatprep.subr.bf16.mxu0 0
      %6851 = vmatpush1.bf16.msra.mxu0 0
      %6852 = vmatprep.subr.bf16.mxu0 0
      %6853 = vmatpush1.bf16.msra.mxu0 0
      %6854 = vmatprep.subr.bf16.mxu0 0
      %6855 = vmatpush1.bf16.msra.mxu0 %v3070
      %6856 = vmatprep.subr.bf16.mxu0 0
      %6857 = vmatpush2.bf16.msra.mxu0 0
      %6858 = vmatprep.subr.bf16.mxu0 0
      %6859 = vmatpush2.bf16.msra.mxu0 0
      %6860 = vmatprep.subr.bf16.mxu0 0
      %6861 = vmatpush2.bf16.msra.mxu0 0
      %6862 = vmatprep.subr.bf16.mxu0 0
      %6863 = vmatpush2.bf16.msra.mxu0 0
      %6864 = vmatprep.subr.bf16.mxu0 0
      %6865 = vmatpush2.bf16.msra.mxu0 0
      %6866 = vmatprep.subr.bf16.mxu0 0
      %6867 = vmatpush2.bf16.msra.mxu0 0
      %6868 = vmatprep.subr.bf16.mxu0 0
      %6869 = vmatpush2.bf16.msra.mxu0 0
      %6870 = vmatprep.subr.bf16.mxu0 0
      %6871 = vmatpush2.bf16.msra.mxu0 0
      %6872 = vmatprep.mubr.bf16.mxu0 0
      %6873 = vmatmul.mubr.bf16.gmra.mxu0 %v6790
      %v6874 = vpop.f32.mrf.mxu0
      %v6875 = vadd.f32 %v3009, %v6874
      %v6876 = vpop.f32.mrf.mxu0
      %v6877 = vpop.f32.mrf.mxu0
      %v6878 = vadd.f32 %v3009, %v6877
      %v6879 = vpop.f32.mrf.mxu0
      %6880 = vmatprep.mubr.bf16.mxu0 0
      %6881 = vmatmul.mubr.bf16.gmra.mxu0 %v6793
      %v6882 = vpop.f32.mrf.mxu0
      %v6883 = vadd.f32 %v3009, %v6882
      %v6884 = vpop.f32.mrf.mxu0
      %v6885 = vpop.f32.mrf.mxu0
      %v6886 = vadd.f32 %v3009, %v6885
      %v6887 = vpop.f32.mrf.mxu0
      %6888 = vmatprep.mubr.bf16.mxu0 0
      %6889 = vmatmul.mubr.bf16.gmra.mxu0 %v6796
      %v6890 = vpop.f32.mrf.mxu0
      %v6891 = vadd.f32 %v3009, %v6890
      %v6892 = vpop.f32.mrf.mxu0
      %v6893 = vpop.f32.mrf.mxu0
      %v6894 = vadd.f32 %v3009, %v6893
      %v6895 = vpop.f32.mrf.mxu0
      %6896 = vmatprep.mubr.bf16.mxu0 0
      %6897 = vmatmul.mubr.bf16.gmra.mxu0 %v6799
      %v6898 = vpop.f32.mrf.mxu0
      %v6899 = vadd.f32 %v3009, %v6898
      %v6900 = vpop.f32.mrf.mxu0
      %v6901 = vpop.f32.mrf.mxu0
      %v6902 = vadd.f32 %v3009, %v6901
      %v6903 = vpop.f32.mrf.mxu0
      %6904 = vmatprep.mubr.bf16.mxu0 0
      %6905 = vmatmul.mubr.bf16.gmra.mxu0 %v6802
      %v6906 = vpop.f32.mrf.mxu0
      %v6907 = vadd.f32 %v3009, %v6906
      %v6908 = vpop.f32.mrf.mxu0
      %v6909 = vpop.f32.mrf.mxu0
      %v6910 = vadd.f32 %v3009, %v6909
      %v6911 = vpop.f32.mrf.mxu0
      %6912 = vmatprep.mubr.bf16.mxu0 0
      %6913 = vmatmul.mubr.bf16.gmra.mxu0 %v6805
      %v6914 = vpop.f32.mrf.mxu0
      %v6915 = vadd.f32 %v3009, %v6914
      %v6916 = vpop.f32.mrf.mxu0
      %v6917 = vpop.f32.mrf.mxu0
      %v6918 = vadd.f32 %v3009, %v6917
      %v6919 = vpop.f32.mrf.mxu0
      %6920 = vmatprep.mubr.bf16.mxu0 0
      %6921 = vmatmul.mubr.bf16.gmra.mxu0 %v6808
      %v6922 = vpop.f32.mrf.mxu0
      %v6923 = vadd.f32 %v3009, %v6922
      %v6924 = vpop.f32.mrf.mxu0
      %v6925 = vpop.f32.mrf.mxu0
      %v6926 = vadd.f32 %v3009, %v6925
      %v6927 = vpop.f32.mrf.mxu0
      %6928 = vmatprep.mubr.bf16.mxu0 0
      %6929 = vmatmul.mubr.bf16.gmra.mxu0 %v6811
      %v6930 = vpop.f32.mrf.mxu0
      %v6931 = vadd.f32 %v3009, %v6930
      %v6932 = vpop.f32.mrf.mxu0
      %v6933 = vpop.f32.mrf.mxu0
      %v6934 = vadd.f32 %v3009, %v6933
      %v6935 = vpop.f32.mrf.mxu0
      %6936 = vmatprep.mubr.bf16.mxu0 0
      %6937 = vmatmul.mubr.bf16.gmra.mxu0 %v6814
      %v6938 = vpop.f32.mrf.mxu0
      %v6939 = vadd.f32 %v3009, %v6938
      %v6940 = vpop.f32.mrf.mxu0
      %v6941 = vpop.f32.mrf.mxu0
      %v6942 = vadd.f32 %v3009, %v6941
      %v6943 = vpop.f32.mrf.mxu0
      %6944 = vmatprep.mubr.bf16.mxu0 0
      %6945 = vmatmul.mubr.bf16.gmra.mxu0 %v6817
      %v6946 = vpop.f32.mrf.mxu0
      %v6947 = vadd.f32 %v3009, %v6946
      %v6948 = vpop.f32.mrf.mxu0
      %v6949 = vpop.f32.mrf.mxu0
      %v6950 = vadd.f32 %v3009, %v6949
      %v6951 = vpop.f32.mrf.mxu0
      %6952 = vmatprep.mubr.bf16.mxu0 0
      %6953 = vmatmul.mubr.bf16.gmra.mxu0 %v6820
      %v6954 = vpop.f32.mrf.mxu0
      %v6955 = vadd.f32 %v3009, %v6954
      %v6956 = vpop.f32.mrf.mxu0
      %v6957 = vpop.f32.mrf.mxu0
      %v6958 = vadd.f32 %v3009, %v6957
      %v6959 = vpop.f32.mrf.mxu0
      %6960 = vmatprep.mubr.bf16.mxu0 0
      %6961 = vmatmul.mubr.bf16.gmra.mxu0 %v6823
      %v6962 = vpop.f32.mrf.mxu0
      %v6963 = vadd.f32 %v3009, %v6962
      %v6964 = vpop.f32.mrf.mxu0
      %v6965 = vpop.f32.mrf.mxu0
      %v6966 = vadd.f32 %v3009, %v6965
      %v6967 = vpop.f32.mrf.mxu0
      %6968 = vmatprep.mubr.bf16.mxu0 0
      %6969 = vmatmul.mubr.bf16.gmra.mxu0 %v6826
      %v6970 = vpop.f32.mrf.mxu0
      %v6971 = vadd.f32 %v3009, %v6970
      %v6972 = vpop.f32.mrf.mxu0
      %v6973 = vpop.f32.mrf.mxu0
      %v6974 = vadd.f32 %v3009, %v6973
      %v6975 = vpop.f32.mrf.mxu0
      %6976 = vmatprep.mubr.bf16.mxu0 0
      %6977 = vmatmul.mubr.bf16.gmra.mxu0 %v6829
      %v6978 = vpop.f32.mrf.mxu0
      %v6979 = vadd.f32 %v3009, %v6978
      %v6980 = vpop.f32.mrf.mxu0
      %v6981 = vpop.f32.mrf.mxu0
      %v6982 = vadd.f32 %v3009, %v6981
      %v6983 = vpop.f32.mrf.mxu0
      %6984 = vmatprep.mubr.bf16.mxu0 0
      %6985 = vmatmul.mubr.bf16.gmra.mxu0 %v6832
      %v6986 = vpop.f32.mrf.mxu0
      %v6987 = vadd.f32 %v3009, %v6986
      %v6988 = vpop.f32.mrf.mxu0
      %v6989 = vpop.f32.mrf.mxu0
      %v6990 = vadd.f32 %v3009, %v6989
      %v6991 = vpop.f32.mrf.mxu0
      %6992 = vmatprep.mubr.bf16.mxu0 0
      %6993 = vmatmul.mubr.bf16.gmra.mxu0 %v6835
      %v6994 = vpop.f32.mrf.mxu0
      %v6995 = vadd.f32 %v3009, %v6994
      %v6996 = vpop.f32.mrf.mxu0
      %v6997 = vpop.f32.mrf.mxu0
      %v6998 = vadd.f32 %v3009, %v6997
      %v6999 = vpop.f32.mrf.mxu0
      %7000 = vmatprep.mubr.bf16.mxu0 0
      %7001 = vmatmul.mubr.bf16.gmra.mxu0 %v6838
      %v7002 = vpop.f32.mrf.mxu0
      %v7003 = vadd.f32 %v3009, %v7002
      %v7004 = vpop.f32.mrf.mxu0
      %v7005 = vpop.f32.mrf.mxu0
      %v7006 = vadd.f32 %v3009, %v7005
      %v7007 = vpop.f32.mrf.mxu0
      %7008 = vdwg.mxu0
      %vm7009 = vcmp.gt.f32.partialorder %v6875, 0.0
      %vm7010 = vcmp.gt.f32.partialorder %v6878, 0.0
      %vm7011 = vcmp.gt.f32.partialorder %v6883, 0.0
      %vm7012 = vcmp.gt.f32.partialorder %v6886, 0.0
      %vm7013 = vcmp.gt.f32.partialorder %v6891, 0.0
      %vm7014 = vcmp.gt.f32.partialorder %v6894, 0.0
      %vm7015 = vcmp.gt.f32.partialorder %v6899, 0.0
      %vm7016 = vcmp.gt.f32.partialorder %v6902, 0.0
      %vm7017 = vcmp.gt.f32.partialorder %v6907, 0.0
      %vm7018 = vcmp.gt.f32.partialorder %v6910, 0.0
      %vm7019 = vcmp.gt.f32.partialorder %v6915, 0.0
      %vm7020 = vcmp.gt.f32.partialorder %v6918, 0.0
      %vm7021 = vcmp.gt.f32.partialorder %v6923, 0.0
      %vm7022 = vcmp.gt.f32.partialorder %v6926, 0.0
      %vm7023 = vcmp.gt.f32.partialorder %v6931, 0.0
      %vm7024 = vcmp.gt.f32.partialorder %v6934, 0.0
      %vm7025 = vcmp.gt.f32.partialorder %v6939, 0.0
      %vm7026 = vcmp.gt.f32.partialorder %v6942, 0.0
      %vm7027 = vcmp.gt.f32.partialorder %v6947, 0.0
      %vm7028 = vcmp.gt.f32.partialorder %v6950, 0.0
      %vm7029 = vcmp.gt.f32.partialorder %v6955, 0.0
      %vm7030 = vcmp.gt.f32.partialorder %v6958, 0.0
      %vm7031 = vcmp.gt.f32.partialorder %v6963, 0.0
      %vm7032 = vcmp.gt.f32.partialorder %v6966, 0.0
      %vm7033 = vcmp.gt.f32.partialorder %v6971, 0.0
      %vm7034 = vcmp.gt.f32.partialorder %v6974, 0.0
      %vm7035 = vcmp.gt.f32.partialorder %v6979, 0.0
      %vm7036 = vcmp.gt.f32.partialorder %v6982, 0.0
      %vm7037 = vcmp.gt.f32.partialorder %v6987, 0.0
      %vm7038 = vcmp.gt.f32.partialorder %v6990, 0.0
      %vm7039 = vcmp.gt.f32.partialorder %v6995, 0.0
      %vm7040 = vcmp.gt.f32.partialorder %v6998, 0.0
      %vm7041 = vcmp.gt.f32.partialorder %v7003, 0.0
      %vm7042 = vcmp.gt.f32.partialorder %v7006, 0.0
      %v7043 = vmul.f32 %v6875, -0.76766074
      %v7044 = vmul.f32 %v6878, -0.76766074
      %v7045 = vmul.f32 %v6883, -0.76766074
      %v7046 = vmul.f32 %v6886, -0.76766074
      %v7047 = vmul.f32 %v6891, -0.76766074
      %v7048 = vmul.f32 %v6894, -0.76766074
      %v7049 = vmul.f32 %v6899, -0.76766074
      %v7050 = vmul.f32 %v6902, -0.76766074
      %v7051 = vmul.f32 %v6907, -0.76766074
      %v7052 = vmul.f32 %v6910, -0.76766074
      %v7053 = vmul.f32 %v6915, -0.76766074
      %v7054 = vmul.f32 %v6918, -0.76766074
      %v7055 = vmul.f32 %v6923, -0.76766074
      %v7056 = vmul.f32 %v6926, -0.76766074
      %v7057 = vmul.f32 %v6931, -0.76766074
      %v7058 = vmul.f32 %v6934, -0.76766074
      %v7059 = vmul.f32 %v6939, -0.76766074
      %v7060 = vmul.f32 %v6942, -0.76766074
      %v7061 = vmul.f32 %v6947, -0.76766074
      %v7062 = vmul.f32 %v6950, -0.76766074
      %v7063 = vmul.f32 %v6955, -0.76766074
      %v7064 = vmul.f32 %v6958, -0.76766074
      %v7065 = vmul.f32 %v6963, -0.76766074
      %v7066 = vmul.f32 %v6966, -0.76766074
      %v7067 = vmul.f32 %v6971, -0.76766074
      %v7068 = vmul.f32 %v6974, -0.76766074
      %v7069 = vmul.f32 %v6979, -0.76766074
      %v7070 = vmul.f32 %v6982, -0.76766074
      %v7071 = vmul.f32 %v6987, -0.76766074
      %v7072 = vmul.f32 %v6990, -0.76766074
      %v7073 = vmul.f32 %v6995, -0.76766074
      %v7074 = vmul.f32 %v6998, -0.76766074
      %v7075 = vmul.f32 %v7003, -0.76766074
      %v7076 = vmul.f32 %v7006, -0.76766074
      %v7077 = vsel %vm7009, %v6875, %v7043
      %v7078 = vsel %vm7010, %v6878, %v7044
      %v7079 = vsel %vm7011, %v6883, %v7045
      %v7080 = vsel %vm7012, %v6886, %v7046
      %v7081 = vsel %vm7013, %v6891, %v7047
      %v7082 = vsel %vm7014, %v6894, %v7048
      %v7083 = vsel %vm7015, %v6899, %v7049
      %v7084 = vsel %vm7016, %v6902, %v7050
      %v7085 = vsel %vm7017, %v6907, %v7051
      %v7086 = vsel %vm7018, %v6910, %v7052
      %v7087 = vsel %vm7019, %v6915, %v7053
      %v7088 = vsel %vm7020, %v6918, %v7054
      %v7089 = vsel %vm7021, %v6923, %v7055
      %v7090 = vsel %vm7022, %v6926, %v7056
      %v7091 = vsel %vm7023, %v6931, %v7057
      %v7092 = vsel %vm7024, %v6934, %v7058
      %v7093 = vsel %vm7025, %v6939, %v7059
      %v7094 = vsel %vm7026, %v6942, %v7060
      %v7095 = vsel %vm7027, %v6947, %v7061
      %v7096 = vsel %vm7028, %v6950, %v7062
      %v7097 = vsel %vm7029, %v6955, %v7063
      %v7098 = vsel %vm7030, %v6958, %v7064
      %v7099 = vsel %vm7031, %v6963, %v7065
      %v7100 = vsel %vm7032, %v6966, %v7066
      %v7101 = vsel %vm7033, %v6971, %v7067
      %v7102 = vsel %vm7034, %v6974, %v7068
      %v7103 = vsel %vm7035, %v6979, %v7069
      %v7104 = vsel %vm7036, %v6982, %v7070
      %v7105 = vsel %vm7037, %v6987, %v7071
      %v7106 = vsel %vm7038, %v6990, %v7072
      %v7107 = vsel %vm7039, %v6995, %v7073
      %v7108 = vsel %vm7040, %v6998, %v7074
      %v7109 = vsel %vm7041, %v7003, %v7075
      %v7110 = vsel %vm7042, %v7006, %v7076
      %s7111 = scalar_lea.vmem %s359, 1088
      %7112 = vst.msk [vmem:[%s7111] sm:$0xff] %vm3343, %v7077
      %7113 = vst.msk [vmem:[%s7111 + $0x8] sm:$0xff] %vm3343, %v7078
      %7114 = vst.msk [vmem:[%s7111 + $0x10] sm:$0xff] %vm3343, %v7079
      %7115 = vst.msk [vmem:[%s7111 + $0x18] sm:$0xff] %vm3343, %v7080
      %7116 = vst.msk [vmem:[%s7111 + $0x20] sm:$0xff] %vm3343, %v7081
      %7117 = vst.msk [vmem:[%s7111 + $0x28] sm:$0xff] %vm3343, %v7082
      %7118 = vst.msk [vmem:[%s7111 + $0x30] sm:$0xff] %vm3343, %v7083
      %7119 = vst.msk [vmem:[%s7111 + $0x38] sm:$0xff] %vm3343, %v7084
      %7120 = vst.msk [vmem:[%s7111 + $0x40] sm:$0xff] %vm3343, %v7085
      %7121 = vst.msk [vmem:[%s7111 + $0x48] sm:$0xff] %vm3343, %v7086
      %7122 = vst.msk [vmem:[%s7111 + $0x50] sm:$0xff] %vm3343, %v7087
      %7123 = vst.msk [vmem:[%s7111 + $0x58] sm:$0xff] %vm3343, %v7088
      %7124 = vst.msk [vmem:[%s7111 + $0x60] sm:$0xff] %vm3343, %v7089
      %7125 = vst.msk [vmem:[%s7111 + $0x68] sm:$0xff] %vm3343, %v7090
      %7126 = vst.msk [vmem:[%s7111 + $0x70] sm:$0xff] %vm3343, %v7091
      %7127 = vst.msk [vmem:[%s7111 + $0x78] sm:$0xff] %vm3343, %v7092
      %7128 = vst.msk [vmem:[%s7111 + $0x80] sm:$0xff] %vm3343, %v7093
      %7129 = vst.msk [vmem:[%s7111 + $0x88] sm:$0xff] %vm3343, %v7094
      %7130 = vst.msk [vmem:[%s7111 + $0x90] sm:$0xff] %vm3343, %v7095
      %7131 = vst.msk [vmem:[%s7111 + $0x98] sm:$0xff] %vm3343, %v7096
      %7132 = vst.msk [vmem:[%s7111 + $0xa0] sm:$0xff] %vm3343, %v7097
      %7133 = vst.msk [vmem:[%s7111 + $0xa8] sm:$0xff] %vm3343, %v7098
      %7134 = vst.msk [vmem:[%s7111 + $0xb0] sm:$0xff] %vm3343, %v7099
      %7135 = vst.msk [vmem:[%s7111 + $0xb8] sm:$0xff] %vm3343, %v7100
      %7136 = vst.msk [vmem:[%s7111 + $0xc0] sm:$0xff] %vm3343, %v7101
      %7137 = vst.msk [vmem:[%s7111 + $0xc8] sm:$0xff] %vm3343, %v7102
      %7138 = vst.msk [vmem:[%s7111 + $0xd0] sm:$0xff] %vm3343, %v7103
      %7139 = vst.msk [vmem:[%s7111 + $0xd8] sm:$0xff] %vm3343, %v7104
      %7140 = vst.msk [vmem:[%s7111 + $0xe0] sm:$0xff] %vm3343, %v7105
      %7141 = vst.msk [vmem:[%s7111 + $0xe8] sm:$0xff] %vm3343, %v7106
      %7142 = vst.msk [vmem:[%s7111 + $0xf0] sm:$0xff] %vm3343, %v7107
      %7143 = vst.msk [vmem:[%s7111 + $0xf8] sm:$0xff] %vm3343, %v7108
      %7144 = vst.msk [vmem:[%s7111 + $0x100] sm:$0xff] %vm3343, %v7109
      %7145 = vst.msk [vmem:[%s7111 + $0x108] sm:$0xff] %vm3343, %v7110
      %v7146 = vld [vmem:[#allocation3 + $0x8] sm:$0xe]
      %v7147 = vld [vmem:[#allocation3 + $0xc] sm:$0xf]
      %v7148 = vld [vmem:[#allocation3 + $0x10] sm:$0xf]
      %v7149 = vld [vmem:[#allocation3 + $0x14] sm:$0xf]
      %v7150 = vld [vmem:[#allocation3 + $0x18] sm:$0xf]
      %v7151 = vld [vmem:[#allocation3 + $0x1c] sm:$0xf]
      %v7152 = vld [vmem:[#allocation3 + $0x20] sm:$0xf]
      %v7153 = vld [vmem:[#allocation3 + $0x24] sm:$0xf]
      %v7154 = vld [vmem:[#allocation3 + $0x28] sm:$0xf]
      %v7155 = vld [vmem:[#allocation3 + $0x2c] sm:$0xf]
      %v7156 = vld [vmem:[#allocation3 + $0x30] sm:$0xf]
      %v7157 = vld [vmem:[#allocation3 + $0x34] sm:$0xf]
      %v7158 = vld [vmem:[#allocation3 + $0x38] sm:$0xf]
      %v7159 = vld [vmem:[#allocation3 + $0x3c] sm:$0xf]
      %v7160 = vld [vmem:[#allocation3 + $0x40] sm:$0xf]
      %v7161 = vld [vmem:[#allocation3 + $0x44] sm:$0xf]
      %v7162 = vld [vmem:[#allocation3 + $0x48] sm:$0xf]
      %v7163 = vld [vmem:[#allocation3 + $0x4c] sm:$0xf]
      %v7164 = vld [vmem:[#allocation3 + $0x50] sm:$0xf]
      %v7165 = vld [vmem:[#allocation3 + $0x54] sm:$0xf]
      %v7166 = vld [vmem:[#allocation3 + $0x58] sm:$0xf]
      %v7167 = vld [vmem:[#allocation3 + $0x5c] sm:$0xf]
      %v7168 = vld [vmem:[#allocation3 + $0x60] sm:$0xf]
      %v7169 = vld [vmem:[#allocation3 + $0x64] sm:$0xf]
      %v7170 = vld [vmem:[#allocation3 + $0x68] sm:$0xf]
      %v7171 = vld [vmem:[#allocation3 + $0x6c] sm:$0xf]
      %v7172 = vld [vmem:[#allocation3 + $0x70] sm:$0xf]
      %v7173 = vld [vmem:[#allocation3 + $0x74] sm:$0xf]
      %v7174 = vld [vmem:[#allocation3 + $0x78] sm:$0xf]
      %v7175 = vld [vmem:[#allocation3 + $0x7c] sm:$0xf]
      %v7176 = vld [vmem:[#allocation3 + $0x80] sm:$0xf]
      %v7177 = vld [vmem:[#allocation3 + $0x84] sm:$0xf]
      %v7178 = vld [vmem:[#allocation3 + $0x88] sm:$0xf]
      %v7179 = vld [vmem:[#allocation3 + $0x8c] sm:$0xf]
      %v7180 = vld [vmem:[#allocation3 + $0x90] sm:$0x1]
      %s7181 = scalar_lea.vmem %s6, 40
      %v7182 = vld [vmem:[%s7181] sm:$0xf]
      %v7183 = vld [vmem:[%s7181 + $0x4] sm:$0xf]
      %v7219 = vunpack.c.l.b16 %v7146
      %v7220 = vunpack.c.l.b16 %v7147
      %v7221 = vunpack.c.l.b16 %v7148
      %v7222 = vunpack.c.l.b16 %v7149
      %v7223 = vunpack.c.l.b16 %v7150
      %v7224 = vunpack.c.l.b16 %v7151
      %v7225 = vunpack.c.l.b16 %v7152
      %v7226 = vunpack.c.l.b16 %v7153
      %v7227 = vunpack.c.l.b16 %v7154
      %v7228 = vunpack.c.l.b16 %v7155
      %v7229 = vunpack.c.l.b16 %v7156
      %v7230 = vunpack.c.l.b16 %v7157
      %v7231 = vunpack.c.l.b16 %v7158
      %v7232 = vunpack.c.l.b16 %v7159
      %v7233 = vunpack.c.l.b16 %v7160
      %v7234 = vunpack.c.l.b16 %v7161
      %v7235 = vunpack.c.l.b16 %v7162
      %v7236 = vunpack.c.l.b16 %v7163
      %v7237 = vunpack.c.l.b16 %v7164
      %v7238 = vunpack.c.l.b16 %v7165
      %v7239 = vunpack.c.l.b16 %v7166
      %v7240 = vunpack.c.l.b16 %v7167
      %v7241 = vunpack.c.l.b16 %v7168
      %v7242 = vunpack.c.l.b16 %v7169
      %v7243 = vunpack.c.l.b16 %v7170
      %v7244 = vunpack.c.l.b16 %v7171
      %v7245 = vunpack.c.l.b16 %v7172
      %v7246 = vunpack.c.l.b16 %v7173
      %v7247 = vunpack.c.l.b16 %v7174
      %v7248 = vunpack.c.l.b16 %v7175
      %v7249 = vunpack.c.l.b16 %v7176
      %v7250 = vunpack.c.l.b16 %v7177
      %v7251 = vunpack.c.l.b16 %v7178
      %v7252 = vunpack.c.l.b16 %v7179
      %v7253 = vunpack.c.l.b16 %v7180
      %v7254 = vpack.c.b16 %v7220, %v7219
      %v7255 = vpack.c.b16 %v7222, %v7221
      %v7256 = vpack.c.b16 %v7224, %v7223
      %v7257 = vpack.c.b16 %v7226, %v7225
      %v7258 = vpack.c.b16 %v7228, %v7227
      %v7259 = vpack.c.b16 %v7230, %v7229
      %v7260 = vpack.c.b16 %v7232, %v7231
      %v7261 = vpack.c.b16 %v7234, %v7233
      %v7262 = vpack.c.b16 %v7236, %v7235
      %v7263 = vpack.c.b16 %v7238, %v7237
      %v7264 = vpack.c.b16 %v7240, %v7239
      %v7265 = vpack.c.b16 %v7242, %v7241
      %v7266 = vpack.c.b16 %v7244, %v7243
      %v7267 = vpack.c.b16 %v7246, %v7245
      %v7268 = vpack.c.b16 %v7248, %v7247
      %v7269 = vpack.c.b16 %v7250, %v7249
      %v7270 = vpack.c.b16 %v7252, %v7251
      %v7271 = vpack.c.b16 %v7253, %v7253
      %v7272 = vrot.slane %v7254, 1
      %v7273 = vrot.slane %v7255, 1
      %v7274 = vsel %vm6408, %v7272, %v7273
      %v7275 = vrot.slane %v7256, 1
      %v7276 = vsel %vm6408, %v7273, %v7275
      %v7277 = vrot.slane %v7257, 1
      %v7278 = vsel %vm6408, %v7275, %v7277
      %v7279 = vrot.slane %v7258, 1
      %v7280 = vsel %vm6408, %v7277, %v7279
      %v7281 = vrot.slane %v7259, 1
      %v7282 = vsel %vm6408, %v7279, %v7281
      %v7283 = vrot.slane %v7260, 1
      %v7284 = vsel %vm6408, %v7281, %v7283
      %v7285 = vrot.slane %v7261, 1
      %v7286 = vsel %vm6408, %v7283, %v7285
      %v7287 = vrot.slane %v7262, 1
      %v7288 = vsel %vm6408, %v7285, %v7287
      %v7289 = vrot.slane %v7263, 1
      %v7290 = vsel %vm6408, %v7287, %v7289
      %v7291 = vrot.slane %v7264, 1
      %v7292 = vsel %vm6408, %v7289, %v7291
      %v7293 = vrot.slane %v7265, 1
      %v7294 = vsel %vm6408, %v7291, %v7293
      %v7295 = vrot.slane %v7266, 1
      %v7296 = vsel %vm6408, %v7293, %v7295
      %v7297 = vrot.slane %v7267, 1
      %v7298 = vsel %vm6408, %v7295, %v7297
      %v7299 = vrot.slane %v7268, 1
      %v7300 = vsel %vm6408, %v7297, %v7299
      %v7301 = vrot.slane %v7269, 1
      %v7302 = vsel %vm6408, %v7299, %v7301
      %v7303 = vrot.slane %v7270, 1
      %v7304 = vsel %vm6408, %v7301, %v7303
      %v7305 = vrot.slane %v7271, 1
      %v7306 = vsel %vm6408, %v7303, %v7305
      %v7309 = vunpack.c.l.b16 %v7182
      %v7310 = vunpack.c.l.b16 %v7183
      %v7311 = vpack.c.b16 %v7310, %v7309
      %v7314 = vsel %vm2665, %v7274, 0
      %v7317 = vsel %vm2665, %v7276, 0
      %v7320 = vsel %vm2665, %v7278, 0
      %v7323 = vsel %vm2665, %v7280, 0
      %v7326 = vsel %vm2665, %v7282, 0
      %v7329 = vsel %vm2665, %v7284, 0
      %v7332 = vsel %vm2665, %v7286, 0
      %v7335 = vsel %vm2665, %v7288, 0
      %v7338 = vsel %vm2665, %v7290, 0
      %v7341 = vsel %vm2665, %v7292, 0
      %v7344 = vsel %vm2665, %v7294, 0
      %v7347 = vsel %vm2665, %v7296, 0
      %v7350 = vsel %vm2665, %v7298, 0
      %v7353 = vsel %vm2665, %v7300, 0
      %v7356 = vsel %vm2665, %v7302, 0
      %v7359 = vsel %vm2665, %v7304, 0
      %v7362 = vsel %vm2665, %v7306, 0
      %7364 = vmatprep.subr.bf16.mxu0 0
      %7365 = vmatpush1.bf16.msra.mxu0 0
      %7366 = vmatprep.subr.bf16.mxu0 0
      %7367 = vmatpush1.bf16.msra.mxu0 0
      %7368 = vmatprep.subr.bf16.mxu0 0
      %7369 = vmatpush1.bf16.msra.mxu0 0
      %7370 = vmatprep.subr.bf16.mxu0 0
      %7371 = vmatpush1.bf16.msra.mxu0 0
      %7372 = vmatprep.subr.bf16.mxu0 0
      %7373 = vmatpush1.bf16.msra.mxu0 0
      %7374 = vmatprep.subr.bf16.mxu0 0
      %7375 = vmatpush1.bf16.msra.mxu0 0
      %7376 = vmatprep.subr.bf16.mxu0 0
      %7377 = vmatpush1.bf16.msra.mxu0 0
      %7378 = vmatprep.subr.bf16.mxu0 0
      %7379 = vmatpush1.bf16.msra.mxu0 %v7311
      %7380 = vmatprep.subr.bf16.mxu0 0
      %7381 = vmatpush2.bf16.msra.mxu0 0
      %7382 = vmatprep.subr.bf16.mxu0 0
      %7383 = vmatpush2.bf16.msra.mxu0 0
      %7384 = vmatprep.subr.bf16.mxu0 0
      %7385 = vmatpush2.bf16.msra.mxu0 0
      %7386 = vmatprep.subr.bf16.mxu0 0
      %7387 = vmatpush2.bf16.msra.mxu0 0
      %7388 = vmatprep.subr.bf16.mxu0 0
      %7389 = vmatpush2.bf16.msra.mxu0 0
      %7390 = vmatprep.subr.bf16.mxu0 0
      %7391 = vmatpush2.bf16.msra.mxu0 0
      %7392 = vmatprep.subr.bf16.mxu0 0
      %7393 = vmatpush2.bf16.msra.mxu0 0
      %7394 = vmatprep.subr.bf16.mxu0 0
      %7395 = vmatpush2.bf16.msra.mxu0 0
      %7396 = vmatprep.mubr.bf16.mxu0 0
      %7397 = vmatmul.mubr.bf16.gmra.mxu0 %v7314
      %v7398 = vpop.f32.mrf.mxu0
      %v7399 = vadd.f32 %v2572, %v7398
      %v7400 = vpop.f32.mrf.mxu0
      %v7401 = vpop.f32.mrf.mxu0
      %v7402 = vadd.f32 %v2572, %v7401
      %v7403 = vpop.f32.mrf.mxu0
      %7404 = vmatprep.mubr.bf16.mxu0 0
      %7405 = vmatmul.mubr.bf16.gmra.mxu0 %v7317
      %v7406 = vpop.f32.mrf.mxu0
      %v7407 = vadd.f32 %v2572, %v7406
      %v7408 = vpop.f32.mrf.mxu0
      %v7409 = vpop.f32.mrf.mxu0
      %v7410 = vadd.f32 %v2572, %v7409
      %v7411 = vpop.f32.mrf.mxu0
      %7412 = vmatprep.mubr.bf16.mxu0 0
      %7413 = vmatmul.mubr.bf16.gmra.mxu0 %v7320
      %v7414 = vpop.f32.mrf.mxu0
      %v7415 = vadd.f32 %v2572, %v7414
      %v7416 = vpop.f32.mrf.mxu0
      %v7417 = vpop.f32.mrf.mxu0
      %v7418 = vadd.f32 %v2572, %v7417
      %v7419 = vpop.f32.mrf.mxu0
      %7420 = vmatprep.mubr.bf16.mxu0 0
      %7421 = vmatmul.mubr.bf16.gmra.mxu0 %v7323
      %v7422 = vpop.f32.mrf.mxu0
      %v7423 = vadd.f32 %v2572, %v7422
      %v7424 = vpop.f32.mrf.mxu0
      %v7425 = vpop.f32.mrf.mxu0
      %v7426 = vadd.f32 %v2572, %v7425
      %v7427 = vpop.f32.mrf.mxu0
      %7428 = vmatprep.mubr.bf16.mxu0 0
      %7429 = vmatmul.mubr.bf16.gmra.mxu0 %v7326
      %v7430 = vpop.f32.mrf.mxu0
      %v7431 = vadd.f32 %v2572, %v7430
      %v7432 = vpop.f32.mrf.mxu0
      %v7433 = vpop.f32.mrf.mxu0
      %v7434 = vadd.f32 %v2572, %v7433
      %v7435 = vpop.f32.mrf.mxu0
      %7436 = vmatprep.mubr.bf16.mxu0 0
      %7437 = vmatmul.mubr.bf16.gmra.mxu0 %v7329
      %v7438 = vpop.f32.mrf.mxu0
      %v7439 = vadd.f32 %v2572, %v7438
      %v7440 = vpop.f32.mrf.mxu0
      %v7441 = vpop.f32.mrf.mxu0
      %v7442 = vadd.f32 %v2572, %v7441
      %v7443 = vpop.f32.mrf.mxu0
      %7444 = vmatprep.mubr.bf16.mxu0 0
      %7445 = vmatmul.mubr.bf16.gmra.mxu0 %v7332
      %v7446 = vpop.f32.mrf.mxu0
      %v7447 = vadd.f32 %v2572, %v7446
      %v7448 = vpop.f32.mrf.mxu0
      %v7449 = vpop.f32.mrf.mxu0
      %v7450 = vadd.f32 %v2572, %v7449
      %v7451 = vpop.f32.mrf.mxu0
      %7452 = vmatprep.mubr.bf16.mxu0 0
      %7453 = vmatmul.mubr.bf16.gmra.mxu0 %v7335
      %v7454 = vpop.f32.mrf.mxu0
      %v7455 = vadd.f32 %v2572, %v7454
      %v7456 = vpop.f32.mrf.mxu0
      %v7457 = vpop.f32.mrf.mxu0
      %v7458 = vadd.f32 %v2572, %v7457
      %v7459 = vpop.f32.mrf.mxu0
      %7460 = vmatprep.mubr.bf16.mxu0 0
      %7461 = vmatmul.mubr.bf16.gmra.mxu0 %v7338
      %v7462 = vpop.f32.mrf.mxu0
      %v7463 = vadd.f32 %v2572, %v7462
      %v7464 = vpop.f32.mrf.mxu0
      %v7465 = vpop.f32.mrf.mxu0
      %v7466 = vadd.f32 %v2572, %v7465
      %v7467 = vpop.f32.mrf.mxu0
      %7468 = vmatprep.mubr.bf16.mxu0 0
      %7469 = vmatmul.mubr.bf16.gmra.mxu0 %v7341
      %v7470 = vpop.f32.mrf.mxu0
      %v7471 = vadd.f32 %v2572, %v7470
      %v7472 = vpop.f32.mrf.mxu0
      %v7473 = vpop.f32.mrf.mxu0
      %v7474 = vadd.f32 %v2572, %v7473
      %v7475 = vpop.f32.mrf.mxu0
      %7476 = vmatprep.mubr.bf16.mxu0 0
      %7477 = vmatmul.mubr.bf16.gmra.mxu0 %v7344
      %v7478 = vpop.f32.mrf.mxu0
      %v7479 = vadd.f32 %v2572, %v7478
      %v7480 = vpop.f32.mrf.mxu0
      %v7481 = vpop.f32.mrf.mxu0
      %v7482 = vadd.f32 %v2572, %v7481
      %v7483 = vpop.f32.mrf.mxu0
      %7484 = vmatprep.mubr.bf16.mxu0 0
      %7485 = vmatmul.mubr.bf16.gmra.mxu0 %v7347
      %v7486 = vpop.f32.mrf.mxu0
      %v7487 = vadd.f32 %v2572, %v7486
      %v7488 = vpop.f32.mrf.mxu0
      %v7489 = vpop.f32.mrf.mxu0
      %v7490 = vadd.f32 %v2572, %v7489
      %v7491 = vpop.f32.mrf.mxu0
      %7492 = vmatprep.mubr.bf16.mxu0 0
      %7493 = vmatmul.mubr.bf16.gmra.mxu0 %v7350
      %v7494 = vpop.f32.mrf.mxu0
      %v7495 = vadd.f32 %v2572, %v7494
      %v7496 = vpop.f32.mrf.mxu0
      %v7497 = vpop.f32.mrf.mxu0
      %v7498 = vadd.f32 %v2572, %v7497
      %v7499 = vpop.f32.mrf.mxu0
      %7500 = vmatprep.mubr.bf16.mxu0 0
      %7501 = vmatmul.mubr.bf16.gmra.mxu0 %v7353
      %v7502 = vpop.f32.mrf.mxu0
      %v7503 = vadd.f32 %v2572, %v7502
      %v7504 = vpop.f32.mrf.mxu0
      %v7505 = vpop.f32.mrf.mxu0
      %v7506 = vadd.f32 %v2572, %v7505
      %v7507 = vpop.f32.mrf.mxu0
      %7508 = vmatprep.mubr.bf16.mxu0 0
      %7509 = vmatmul.mubr.bf16.gmra.mxu0 %v7356
      %v7510 = vpop.f32.mrf.mxu0
      %v7511 = vadd.f32 %v2572, %v7510
      %v7512 = vpop.f32.mrf.mxu0
      %v7513 = vpop.f32.mrf.mxu0
      %v7514 = vadd.f32 %v2572, %v7513
      %v7515 = vpop.f32.mrf.mxu0
      %7516 = vmatprep.mubr.bf16.mxu0 0
      %7517 = vmatmul.mubr.bf16.gmra.mxu0 %v7359
      %v7518 = vpop.f32.mrf.mxu0
      %v7519 = vadd.f32 %v2572, %v7518
      %v7520 = vpop.f32.mrf.mxu0
      %v7521 = vpop.f32.mrf.mxu0
      %v7522 = vadd.f32 %v2572, %v7521
      %v7523 = vpop.f32.mrf.mxu0
      %7524 = vmatprep.mubr.bf16.mxu0 0
      %7525 = vmatmul.mubr.bf16.gmra.mxu0 %v7362
      %v7526 = vpop.f32.mrf.mxu0
      %v7527 = vadd.f32 %v2572, %v7526
      %v7528 = vpop.f32.mrf.mxu0
      %v7529 = vpop.f32.mrf.mxu0
      %v7530 = vadd.f32 %v2572, %v7529
      %v7531 = vpop.f32.mrf.mxu0
      %7532 = vdwg.mxu0
      %vm7533 = vcmp.gt.f32.partialorder %v7399, 0.0
      %vm7534 = vcmp.gt.f32.partialorder %v7402, 0.0
      %vm7535 = vcmp.gt.f32.partialorder %v7407, 0.0
      %vm7536 = vcmp.gt.f32.partialorder %v7410, 0.0
      %vm7537 = vcmp.gt.f32.partialorder %v7415, 0.0
      %vm7538 = vcmp.gt.f32.partialorder %v7418, 0.0
      %vm7539 = vcmp.gt.f32.partialorder %v7423, 0.0
      %vm7540 = vcmp.gt.f32.partialorder %v7426, 0.0
      %vm7541 = vcmp.gt.f32.partialorder %v7431, 0.0
      %vm7542 = vcmp.gt.f32.partialorder %v7434, 0.0
      %vm7543 = vcmp.gt.f32.partialorder %v7439, 0.0
      %vm7544 = vcmp.gt.f32.partialorder %v7442, 0.0
      %vm7545 = vcmp.gt.f32.partialorder %v7447, 0.0
      %vm7546 = vcmp.gt.f32.partialorder %v7450, 0.0
      %vm7547 = vcmp.gt.f32.partialorder %v7455, 0.0
      %vm7548 = vcmp.gt.f32.partialorder %v7458, 0.0
      %vm7549 = vcmp.gt.f32.partialorder %v7463, 0.0
      %vm7550 = vcmp.gt.f32.partialorder %v7466, 0.0
      %vm7551 = vcmp.gt.f32.partialorder %v7471, 0.0
      %vm7552 = vcmp.gt.f32.partialorder %v7474, 0.0
      %vm7553 = vcmp.gt.f32.partialorder %v7479, 0.0
      %vm7554 = vcmp.gt.f32.partialorder %v7482, 0.0
      %vm7555 = vcmp.gt.f32.partialorder %v7487, 0.0
      %vm7556 = vcmp.gt.f32.partialorder %v7490, 0.0
      %vm7557 = vcmp.gt.f32.partialorder %v7495, 0.0
      %vm7558 = vcmp.gt.f32.partialorder %v7498, 0.0
      %vm7559 = vcmp.gt.f32.partialorder %v7503, 0.0
      %vm7560 = vcmp.gt.f32.partialorder %v7506, 0.0
      %vm7561 = vcmp.gt.f32.partialorder %v7511, 0.0
      %vm7562 = vcmp.gt.f32.partialorder %v7514, 0.0
      %vm7563 = vcmp.gt.f32.partialorder %v7519, 0.0
      %vm7564 = vcmp.gt.f32.partialorder %v7522, 0.0
      %vm7565 = vcmp.gt.f32.partialorder %v7527, 0.0
      %vm7566 = vcmp.gt.f32.partialorder %v7530, 0.0
      %v7567 = vmul.f32 %v7399, -0.76766074
      %v7568 = vmul.f32 %v7402, -0.76766074
      %v7569 = vmul.f32 %v7407, -0.76766074
      %v7570 = vmul.f32 %v7410, -0.76766074
      %v7571 = vmul.f32 %v7415, -0.76766074
      %v7572 = vmul.f32 %v7418, -0.76766074
      %v7573 = vmul.f32 %v7423, -0.76766074
      %v7574 = vmul.f32 %v7426, -0.76766074
      %v7575 = vmul.f32 %v7431, -0.76766074
      %v7576 = vmul.f32 %v7434, -0.76766074
      %v7577 = vmul.f32 %v7439, -0.76766074
      %v7578 = vmul.f32 %v7442, -0.76766074
      %v7579 = vmul.f32 %v7447, -0.76766074
      %v7580 = vmul.f32 %v7450, -0.76766074
      %v7581 = vmul.f32 %v7455, -0.76766074
      %v7582 = vmul.f32 %v7458, -0.76766074
      %v7583 = vmul.f32 %v7463, -0.76766074
      %v7584 = vmul.f32 %v7466, -0.76766074
      %v7585 = vmul.f32 %v7471, -0.76766074
      %v7586 = vmul.f32 %v7474, -0.76766074
      %v7587 = vmul.f32 %v7479, -0.76766074
      %v7588 = vmul.f32 %v7482, -0.76766074
      %v7589 = vmul.f32 %v7487, -0.76766074
      %v7590 = vmul.f32 %v7490, -0.76766074
      %v7591 = vmul.f32 %v7495, -0.76766074
      %v7592 = vmul.f32 %v7498, -0.76766074
      %v7593 = vmul.f32 %v7503, -0.76766074
      %v7594 = vmul.f32 %v7506, -0.76766074
      %v7595 = vmul.f32 %v7511, -0.76766074
      %v7596 = vmul.f32 %v7514, -0.76766074
      %v7597 = vmul.f32 %v7519, -0.76766074
      %v7598 = vmul.f32 %v7522, -0.76766074
      %v7599 = vmul.f32 %v7527, -0.76766074
      %v7600 = vmul.f32 %v7530, -0.76766074
      %v7601 = vsel %vm7533, %v7399, %v7567
      %v7602 = vsel %vm7534, %v7402, %v7568
      %v7603 = vsel %vm7535, %v7407, %v7569
      %v7604 = vsel %vm7536, %v7410, %v7570
      %v7605 = vsel %vm7537, %v7415, %v7571
      %v7606 = vsel %vm7538, %v7418, %v7572
      %v7607 = vsel %vm7539, %v7423, %v7573
      %v7608 = vsel %vm7540, %v7426, %v7574
      %v7609 = vsel %vm7541, %v7431, %v7575
      %v7610 = vsel %vm7542, %v7434, %v7576
      %v7611 = vsel %vm7543, %v7439, %v7577
      %v7612 = vsel %vm7544, %v7442, %v7578
      %v7613 = vsel %vm7545, %v7447, %v7579
      %v7614 = vsel %vm7546, %v7450, %v7580
      %v7615 = vsel %vm7547, %v7455, %v7581
      %v7616 = vsel %vm7548, %v7458, %v7582
      %v7617 = vsel %vm7549, %v7463, %v7583
      %v7618 = vsel %vm7550, %v7466, %v7584
      %v7619 = vsel %vm7551, %v7471, %v7585
      %v7620 = vsel %vm7552, %v7474, %v7586
      %v7621 = vsel %vm7553, %v7479, %v7587
      %v7622 = vsel %vm7554, %v7482, %v7588
      %v7623 = vsel %vm7555, %v7487, %v7589
      %v7624 = vsel %vm7556, %v7490, %v7590
      %v7625 = vsel %vm7557, %v7495, %v7591
      %v7626 = vsel %vm7558, %v7498, %v7592
      %v7627 = vsel %vm7559, %v7503, %v7593
      %v7628 = vsel %vm7560, %v7506, %v7594
      %v7629 = vsel %vm7561, %v7511, %v7595
      %v7630 = vsel %vm7562, %v7514, %v7596
      %v7631 = vsel %vm7563, %v7519, %v7597
      %v7632 = vsel %vm7564, %v7522, %v7598
      %v7633 = vsel %vm7565, %v7527, %v7599
      %v7634 = vsel %vm7566, %v7530, %v7600
      %v7635 = vpack.c.bf16 %v7602, %v7601
      %v7636 = vpack.c.bf16 %v7604, %v7603
      %v7637 = vpack.c.bf16 %v7606, %v7605
      %v7638 = vpack.c.bf16 %v7608, %v7607
      %v7639 = vpack.c.bf16 %v7610, %v7609
      %v7640 = vpack.c.bf16 %v7612, %v7611
      %v7641 = vpack.c.bf16 %v7614, %v7613
      %v7642 = vpack.c.bf16 %v7616, %v7615
      %v7643 = vpack.c.bf16 %v7618, %v7617
      %v7644 = vpack.c.bf16 %v7620, %v7619
      %v7645 = vpack.c.bf16 %v7622, %v7621
      %v7646 = vpack.c.bf16 %v7624, %v7623
      %v7647 = vpack.c.bf16 %v7626, %v7625
      %v7648 = vpack.c.bf16 %v7628, %v7627
      %v7649 = vpack.c.bf16 %v7630, %v7629
      %v7650 = vpack.c.bf16 %v7632, %v7631
      %v7651 = vpack.c.bf16 %v7634, %v7633
      %v7653 = vsel %vm3016, %v7635, 0
      %v7656 = vsel %vm3016, %v7636, 0
      %v7659 = vsel %vm3016, %v7637, 0
      %v7662 = vsel %vm3016, %v7638, 0
      %v7665 = vsel %vm3016, %v7639, 0
      %v7668 = vsel %vm3016, %v7640, 0
      %v7671 = vsel %vm3016, %v7641, 0
      %v7674 = vsel %vm3016, %v7642, 0
      %v7677 = vsel %vm3016, %v7643, 0
      %v7680 = vsel %vm3016, %v7644, 0
      %v7683 = vsel %vm3016, %v7645, 0
      %v7686 = vsel %vm3016, %v7646, 0
      %v7689 = vsel %vm3016, %v7647, 0
      %v7692 = vsel %vm3016, %v7648, 0
      %v7695 = vsel %vm3016, %v7649, 0
      %v7698 = vsel %vm3016, %v7650, 0
      %v7701 = vsel %vm3016, %v7651, 0
      %7703 = vmatprep.subr.bf16.mxu0 0
      %7704 = vmatpush1.bf16.msra.mxu0 0
      %7705 = vmatprep.subr.bf16.mxu0 0
      %7706 = vmatpush1.bf16.msra.mxu0 0
      %7707 = vmatprep.subr.bf16.mxu0 0
      %7708 = vmatpush1.bf16.msra.mxu0 0
      %7709 = vmatprep.subr.bf16.mxu0 0
      %7710 = vmatpush1.bf16.msra.mxu0 0
      %7711 = vmatprep.subr.bf16.mxu0 0
      %7712 = vmatpush1.bf16.msra.mxu0 0
      %7713 = vmatprep.subr.bf16.mxu0 0
      %7714 = vmatpush1.bf16.msra.mxu0 0
      %7715 = vmatprep.subr.bf16.mxu0 0
      %7716 = vmatpush1.bf16.msra.mxu0 0
      %7717 = vmatprep.subr.bf16.mxu0 0
      %7718 = vmatpush1.bf16.msra.mxu0 %v3070
      %7719 = vmatprep.subr.bf16.mxu0 0
      %7720 = vmatpush2.bf16.msra.mxu0 0
      %7721 = vmatprep.subr.bf16.mxu0 0
      %7722 = vmatpush2.bf16.msra.mxu0 0
      %7723 = vmatprep.subr.bf16.mxu0 0
      %7724 = vmatpush2.bf16.msra.mxu0 0
      %7725 = vmatprep.subr.bf16.mxu0 0
      %7726 = vmatpush2.bf16.msra.mxu0 0
      %7727 = vmatprep.subr.bf16.mxu0 0
      %7728 = vmatpush2.bf16.msra.mxu0 0
      %7729 = vmatprep.subr.bf16.mxu0 0
      %7730 = vmatpush2.bf16.msra.mxu0 0
      %7731 = vmatprep.subr.bf16.mxu0 0
      %7732 = vmatpush2.bf16.msra.mxu0 0
      %7733 = vmatprep.subr.bf16.mxu0 0
      %7734 = vmatpush2.bf16.msra.mxu0 0
      %7735 = vmatprep.mubr.bf16.mxu0 0
      %7736 = vmatmul.mubr.bf16.gmra.mxu0 %v7653
      %v7737 = vpop.f32.mrf.mxu0
      %v7738 = vadd.f32 %v3009, %v7737
      %v7739 = vpop.f32.mrf.mxu0
      %v7740 = vpop.f32.mrf.mxu0
      %v7741 = vadd.f32 %v3009, %v7740
      %v7742 = vpop.f32.mrf.mxu0
      %7743 = vmatprep.mubr.bf16.mxu0 0
      %7744 = vmatmul.mubr.bf16.gmra.mxu0 %v7656
      %v7745 = vpop.f32.mrf.mxu0
      %v7746 = vadd.f32 %v3009, %v7745
      %v7747 = vpop.f32.mrf.mxu0
      %v7748 = vpop.f32.mrf.mxu0
      %v7749 = vadd.f32 %v3009, %v7748
      %v7750 = vpop.f32.mrf.mxu0
      %7751 = vmatprep.mubr.bf16.mxu0 0
      %7752 = vmatmul.mubr.bf16.gmra.mxu0 %v7659
      %v7753 = vpop.f32.mrf.mxu0
      %v7754 = vadd.f32 %v3009, %v7753
      %v7755 = vpop.f32.mrf.mxu0
      %v7756 = vpop.f32.mrf.mxu0
      %v7757 = vadd.f32 %v3009, %v7756
      %v7758 = vpop.f32.mrf.mxu0
      %7759 = vmatprep.mubr.bf16.mxu0 0
      %7760 = vmatmul.mubr.bf16.gmra.mxu0 %v7662
      %v7761 = vpop.f32.mrf.mxu0
      %v7762 = vadd.f32 %v3009, %v7761
      %v7763 = vpop.f32.mrf.mxu0
      %v7764 = vpop.f32.mrf.mxu0
      %v7765 = vadd.f32 %v3009, %v7764
      %v7766 = vpop.f32.mrf.mxu0
      %7767 = vmatprep.mubr.bf16.mxu0 0
      %7768 = vmatmul.mubr.bf16.gmra.mxu0 %v7665
      %v7769 = vpop.f32.mrf.mxu0
      %v7770 = vadd.f32 %v3009, %v7769
      %v7771 = vpop.f32.mrf.mxu0
      %v7772 = vpop.f32.mrf.mxu0
      %v7773 = vadd.f32 %v3009, %v7772
      %v7774 = vpop.f32.mrf.mxu0
      %7775 = vmatprep.mubr.bf16.mxu0 0
      %7776 = vmatmul.mubr.bf16.gmra.mxu0 %v7668
      %v7777 = vpop.f32.mrf.mxu0
      %v7778 = vadd.f32 %v3009, %v7777
      %v7779 = vpop.f32.mrf.mxu0
      %v7780 = vpop.f32.mrf.mxu0
      %v7781 = vadd.f32 %v3009, %v7780
      %v7782 = vpop.f32.mrf.mxu0
      %7783 = vmatprep.mubr.bf16.mxu0 0
      %7784 = vmatmul.mubr.bf16.gmra.mxu0 %v7671
      %v7785 = vpop.f32.mrf.mxu0
      %v7786 = vadd.f32 %v3009, %v7785
      %v7787 = vpop.f32.mrf.mxu0
      %v7788 = vpop.f32.mrf.mxu0
      %v7789 = vadd.f32 %v3009, %v7788
      %v7790 = vpop.f32.mrf.mxu0
      %7791 = vmatprep.mubr.bf16.mxu0 0
      %7792 = vmatmul.mubr.bf16.gmra.mxu0 %v7674
      %v7793 = vpop.f32.mrf.mxu0
      %v7794 = vadd.f32 %v3009, %v7793
      %v7795 = vpop.f32.mrf.mxu0
      %v7796 = vpop.f32.mrf.mxu0
      %v7797 = vadd.f32 %v3009, %v7796
      %v7798 = vpop.f32.mrf.mxu0
      %7799 = vmatprep.mubr.bf16.mxu0 0
      %7800 = vmatmul.mubr.bf16.gmra.mxu0 %v7677
      %v7801 = vpop.f32.mrf.mxu0
      %v7802 = vadd.f32 %v3009, %v7801
      %v7803 = vpop.f32.mrf.mxu0
      %v7804 = vpop.f32.mrf.mxu0
      %v7805 = vadd.f32 %v3009, %v7804
      %v7806 = vpop.f32.mrf.mxu0
      %7807 = vmatprep.mubr.bf16.mxu0 0
      %7808 = vmatmul.mubr.bf16.gmra.mxu0 %v7680
      %v7809 = vpop.f32.mrf.mxu0
      %v7810 = vadd.f32 %v3009, %v7809
      %v7811 = vpop.f32.mrf.mxu0
      %v7812 = vpop.f32.mrf.mxu0
      %v7813 = vadd.f32 %v3009, %v7812
      %v7814 = vpop.f32.mrf.mxu0
      %7815 = vmatprep.mubr.bf16.mxu0 0
      %7816 = vmatmul.mubr.bf16.gmra.mxu0 %v7683
      %v7817 = vpop.f32.mrf.mxu0
      %v7818 = vadd.f32 %v3009, %v7817
      %v7819 = vpop.f32.mrf.mxu0
      %v7820 = vpop.f32.mrf.mxu0
      %v7821 = vadd.f32 %v3009, %v7820
      %v7822 = vpop.f32.mrf.mxu0
      %7823 = vmatprep.mubr.bf16.mxu0 0
      %7824 = vmatmul.mubr.bf16.gmra.mxu0 %v7686
      %v7825 = vpop.f32.mrf.mxu0
      %v7826 = vadd.f32 %v3009, %v7825
      %v7827 = vpop.f32.mrf.mxu0
      %v7828 = vpop.f32.mrf.mxu0
      %v7829 = vadd.f32 %v3009, %v7828
      %v7830 = vpop.f32.mrf.mxu0
      %7831 = vmatprep.mubr.bf16.mxu0 0
      %7832 = vmatmul.mubr.bf16.gmra.mxu0 %v7689
      %v7833 = vpop.f32.mrf.mxu0
      %v7834 = vadd.f32 %v3009, %v7833
      %v7835 = vpop.f32.mrf.mxu0
      %v7836 = vpop.f32.mrf.mxu0
      %v7837 = vadd.f32 %v3009, %v7836
      %v7838 = vpop.f32.mrf.mxu0
      %7839 = vmatprep.mubr.bf16.mxu0 0
      %7840 = vmatmul.mubr.bf16.gmra.mxu0 %v7692
      %v7841 = vpop.f32.mrf.mxu0
      %v7842 = vadd.f32 %v3009, %v7841
      %v7843 = vpop.f32.mrf.mxu0
      %v7844 = vpop.f32.mrf.mxu0
      %v7845 = vadd.f32 %v3009, %v7844
      %v7846 = vpop.f32.mrf.mxu0
      %7847 = vmatprep.mubr.bf16.mxu0 0
      %7848 = vmatmul.mubr.bf16.gmra.mxu0 %v7695
      %v7849 = vpop.f32.mrf.mxu0
      %v7850 = vadd.f32 %v3009, %v7849
      %v7851 = vpop.f32.mrf.mxu0
      %v7852 = vpop.f32.mrf.mxu0
      %v7853 = vadd.f32 %v3009, %v7852
      %v7854 = vpop.f32.mrf.mxu0
      %7855 = vmatprep.mubr.bf16.mxu0 0
      %7856 = vmatmul.mubr.bf16.gmra.mxu0 %v7698
      %v7857 = vpop.f32.mrf.mxu0
      %v7858 = vadd.f32 %v3009, %v7857
      %v7859 = vpop.f32.mrf.mxu0
      %v7860 = vpop.f32.mrf.mxu0
      %v7861 = vadd.f32 %v3009, %v7860
      %v7862 = vpop.f32.mrf.mxu0
      %7863 = vmatprep.mubr.bf16.mxu0 0
      %7864 = vmatmul.mubr.bf16.gmra.mxu0 %v7701
      %v7865 = vpop.f32.mrf.mxu0
      %v7866 = vadd.f32 %v3009, %v7865
      %v7867 = vpop.f32.mrf.mxu0
      %v7868 = vpop.f32.mrf.mxu0
      %v7869 = vadd.f32 %v3009, %v7868
      %v7870 = vpop.f32.mrf.mxu0
      %7871 = vdwg.mxu0
      %vm7872 = vcmp.gt.f32.partialorder %v7738, 0.0
      %vm7873 = vcmp.gt.f32.partialorder %v7741, 0.0
      %vm7874 = vcmp.gt.f32.partialorder %v7746, 0.0
      %vm7875 = vcmp.gt.f32.partialorder %v7749, 0.0
      %vm7876 = vcmp.gt.f32.partialorder %v7754, 0.0
      %vm7877 = vcmp.gt.f32.partialorder %v7757, 0.0
      %vm7878 = vcmp.gt.f32.partialorder %v7762, 0.0
      %vm7879 = vcmp.gt.f32.partialorder %v7765, 0.0
      %vm7880 = vcmp.gt.f32.partialorder %v7770, 0.0
      %vm7881 = vcmp.gt.f32.partialorder %v7773, 0.0
      %vm7882 = vcmp.gt.f32.partialorder %v7778, 0.0
      %vm7883 = vcmp.gt.f32.partialorder %v7781, 0.0
      %vm7884 = vcmp.gt.f32.partialorder %v7786, 0.0
      %vm7885 = vcmp.gt.f32.partialorder %v7789, 0.0
      %vm7886 = vcmp.gt.f32.partialorder %v7794, 0.0
      %vm7887 = vcmp.gt.f32.partialorder %v7797, 0.0
      %vm7888 = vcmp.gt.f32.partialorder %v7802, 0.0
      %vm7889 = vcmp.gt.f32.partialorder %v7805, 0.0
      %vm7890 = vcmp.gt.f32.partialorder %v7810, 0.0
      %vm7891 = vcmp.gt.f32.partialorder %v7813, 0.0
      %vm7892 = vcmp.gt.f32.partialorder %v7818, 0.0
      %vm7893 = vcmp.gt.f32.partialorder %v7821, 0.0
      %vm7894 = vcmp.gt.f32.partialorder %v7826, 0.0
      %vm7895 = vcmp.gt.f32.partialorder %v7829, 0.0
      %vm7896 = vcmp.gt.f32.partialorder %v7834, 0.0
      %vm7897 = vcmp.gt.f32.partialorder %v7837, 0.0
      %vm7898 = vcmp.gt.f32.partialorder %v7842, 0.0
      %vm7899 = vcmp.gt.f32.partialorder %v7845, 0.0
      %vm7900 = vcmp.gt.f32.partialorder %v7850, 0.0
      %vm7901 = vcmp.gt.f32.partialorder %v7853, 0.0
      %vm7902 = vcmp.gt.f32.partialorder %v7858, 0.0
      %vm7903 = vcmp.gt.f32.partialorder %v7861, 0.0
      %vm7904 = vcmp.gt.f32.partialorder %v7866, 0.0
      %vm7905 = vcmp.gt.f32.partialorder %v7869, 0.0
      %v7906 = vmul.f32 %v7738, -0.76766074
      %v7907 = vmul.f32 %v7741, -0.76766074
      %v7908 = vmul.f32 %v7746, -0.76766074
      %v7909 = vmul.f32 %v7749, -0.76766074
      %v7910 = vmul.f32 %v7754, -0.76766074
      %v7911 = vmul.f32 %v7757, -0.76766074
      %v7912 = vmul.f32 %v7762, -0.76766074
      %v7913 = vmul.f32 %v7765, -0.76766074
      %v7914 = vmul.f32 %v7770, -0.76766074
      %v7915 = vmul.f32 %v7773, -0.76766074
      %v7916 = vmul.f32 %v7778, -0.76766074
      %v7917 = vmul.f32 %v7781, -0.76766074
      %v7918 = vmul.f32 %v7786, -0.76766074
      %v7919 = vmul.f32 %v7789, -0.76766074
      %v7920 = vmul.f32 %v7794, -0.76766074
      %v7921 = vmul.f32 %v7797, -0.76766074
      %v7922 = vmul.f32 %v7802, -0.76766074
      %v7923 = vmul.f32 %v7805, -0.76766074
      %v7924 = vmul.f32 %v7810, -0.76766074
      %v7925 = vmul.f32 %v7813, -0.76766074
      %v7926 = vmul.f32 %v7818, -0.76766074
      %v7927 = vmul.f32 %v7821, -0.76766074
      %v7928 = vmul.f32 %v7826, -0.76766074
      %v7929 = vmul.f32 %v7829, -0.76766074
      %v7930 = vmul.f32 %v7834, -0.76766074
      %v7931 = vmul.f32 %v7837, -0.76766074
      %v7932 = vmul.f32 %v7842, -0.76766074
      %v7933 = vmul.f32 %v7845, -0.76766074
      %v7934 = vmul.f32 %v7850, -0.76766074
      %v7935 = vmul.f32 %v7853, -0.76766074
      %v7936 = vmul.f32 %v7858, -0.76766074
      %v7937 = vmul.f32 %v7861, -0.76766074
      %v7938 = vmul.f32 %v7866, -0.76766074
      %v7939 = vmul.f32 %v7869, -0.76766074
      %v7940 = vsel %vm7872, %v7738, %v7906
      %v7941 = vsel %vm7873, %v7741, %v7907
      %v7942 = vsel %vm7874, %v7746, %v7908
      %v7943 = vsel %vm7875, %v7749, %v7909
      %v7944 = vsel %vm7876, %v7754, %v7910
      %v7945 = vsel %vm7877, %v7757, %v7911
      %v7946 = vsel %vm7878, %v7762, %v7912
      %v7947 = vsel %vm7879, %v7765, %v7913
      %v7948 = vsel %vm7880, %v7770, %v7914
      %v7949 = vsel %vm7881, %v7773, %v7915
      %v7950 = vsel %vm7882, %v7778, %v7916
      %v7951 = vsel %vm7883, %v7781, %v7917
      %v7952 = vsel %vm7884, %v7786, %v7918
      %v7953 = vsel %vm7885, %v7789, %v7919
      %v7954 = vsel %vm7886, %v7794, %v7920
      %v7955 = vsel %vm7887, %v7797, %v7921
      %v7956 = vsel %vm7888, %v7802, %v7922
      %v7957 = vsel %vm7889, %v7805, %v7923
      %v7958 = vsel %vm7890, %v7810, %v7924
      %v7959 = vsel %vm7891, %v7813, %v7925
      %v7960 = vsel %vm7892, %v7818, %v7926
      %v7961 = vsel %vm7893, %v7821, %v7927
      %v7962 = vsel %vm7894, %v7826, %v7928
      %v7963 = vsel %vm7895, %v7829, %v7929
      %v7964 = vsel %vm7896, %v7834, %v7930
      %v7965 = vsel %vm7897, %v7837, %v7931
      %v7966 = vsel %vm7898, %v7842, %v7932
      %v7967 = vsel %vm7899, %v7845, %v7933
      %v7968 = vsel %vm7900, %v7850, %v7934
      %v7969 = vsel %vm7901, %v7853, %v7935
      %v7970 = vsel %vm7902, %v7858, %v7936
      %v7971 = vsel %vm7903, %v7861, %v7937
      %v7972 = vsel %vm7904, %v7866, %v7938
      %v7973 = vsel %vm7905, %v7869, %v7939
      %s7974 = scalar_lea.vmem %s359, 1360
      %7975 = vst.msk [vmem:[%s7974] sm:$0xff] %vm3343, %v7940
      %7976 = vst.msk [vmem:[%s7974 + $0x8] sm:$0xff] %vm3343, %v7941
      %7977 = vst.msk [vmem:[%s7974 + $0x10] sm:$0xff] %vm3343, %v7942
      %7978 = vst.msk [vmem:[%s7974 + $0x18] sm:$0xff] %vm3343, %v7943
      %7979 = vst.msk [vmem:[%s7974 + $0x20] sm:$0xff] %vm3343, %v7944
      %7980 = vst.msk [vmem:[%s7974 + $0x28] sm:$0xff] %vm3343, %v7945
      %7981 = vst.msk [vmem:[%s7974 + $0x30] sm:$0xff] %vm3343, %v7946
      %7982 = vst.msk [vmem:[%s7974 + $0x38] sm:$0xff] %vm3343, %v7947
      %7983 = vst.msk [vmem:[%s7974 + $0x40] sm:$0xff] %vm3343, %v7948
      %7984 = vst.msk [vmem:[%s7974 + $0x48] sm:$0xff] %vm3343, %v7949
      %7985 = vst.msk [vmem:[%s7974 + $0x50] sm:$0xff] %vm3343, %v7950
      %7986 = vst.msk [vmem:[%s7974 + $0x58] sm:$0xff] %vm3343, %v7951
      %7987 = vst.msk [vmem:[%s7974 + $0x60] sm:$0xff] %vm3343, %v7952
      %7988 = vst.msk [vmem:[%s7974 + $0x68] sm:$0xff] %vm3343, %v7953
      %7989 = vst.msk [vmem:[%s7974 + $0x70] sm:$0xff] %vm3343, %v7954
      %7990 = vst.msk [vmem:[%s7974 + $0x78] sm:$0xff] %vm3343, %v7955
      %7991 = vst.msk [vmem:[%s7974 + $0x80] sm:$0xff] %vm3343, %v7956
      %7992 = vst.msk [vmem:[%s7974 + $0x88] sm:$0xff] %vm3343, %v7957
      %7993 = vst.msk [vmem:[%s7974 + $0x90] sm:$0xff] %vm3343, %v7958
      %7994 = vst.msk [vmem:[%s7974 + $0x98] sm:$0xff] %vm3343, %v7959
      %7995 = vst.msk [vmem:[%s7974 + $0xa0] sm:$0xff] %vm3343, %v7960
      %7996 = vst.msk [vmem:[%s7974 + $0xa8] sm:$0xff] %vm3343, %v7961
      %7997 = vst.msk [vmem:[%s7974 + $0xb0] sm:$0xff] %vm3343, %v7962
      %7998 = vst.msk [vmem:[%s7974 + $0xb8] sm:$0xff] %vm3343, %v7963
      %7999 = vst.msk [vmem:[%s7974 + $0xc0] sm:$0xff] %vm3343, %v7964
      %8000 = vst.msk [vmem:[%s7974 + $0xc8] sm:$0xff] %vm3343, %v7965
      %8001 = vst.msk [vmem:[%s7974 + $0xd0] sm:$0xff] %vm3343, %v7966
      %8002 = vst.msk [vmem:[%s7974 + $0xd8] sm:$0xff] %vm3343, %v7967
      %8003 = vst.msk [vmem:[%s7974 + $0xe0] sm:$0xff] %vm3343, %v7968
      %8004 = vst.msk [vmem:[%s7974 + $0xe8] sm:$0xff] %vm3343, %v7969
      %8005 = vst.msk [vmem:[%s7974 + $0xf0] sm:$0xff] %vm3343, %v7970
      %8006 = vst.msk [vmem:[%s7974 + $0xf8] sm:$0xff] %vm3343, %v7971
      %8007 = vst.msk [vmem:[%s7974 + $0x100] sm:$0xff] %vm3343, %v7972
      %8008 = vst.msk [vmem:[%s7974 + $0x108] sm:$0xff] %vm3343, %v7973
      %v8009 = vld [vmem:[#allocation3 + $0x8] sm:$0xf]
      %v8010 = vld [vmem:[#allocation3 + $0xc] sm:$0xf]
      %v8011 = vld [vmem:[#allocation3 + $0x10] sm:$0xf]
      %v8012 = vld [vmem:[#allocation3 + $0x14] sm:$0xf]
      %v8013 = vld [vmem:[#allocation3 + $0x18] sm:$0xf]
      %v8014 = vld [vmem:[#allocation3 + $0x1c] sm:$0xf]
      %v8015 = vld [vmem:[#allocation3 + $0x20] sm:$0xf]
      %v8016 = vld [vmem:[#allocation3 + $0x24] sm:$0xf]
      %v8017 = vld [vmem:[#allocation3 + $0x28] sm:$0xf]
      %v8018 = vld [vmem:[#allocation3 + $0x2c] sm:$0xf]
      %v8019 = vld [vmem:[#allocation3 + $0x30] sm:$0xf]
      %v8020 = vld [vmem:[#allocation3 + $0x34] sm:$0xf]
      %v8021 = vld [vmem:[#allocation3 + $0x38] sm:$0xf]
      %v8022 = vld [vmem:[#allocation3 + $0x3c] sm:$0xf]
      %v8023 = vld [vmem:[#allocation3 + $0x40] sm:$0xf]
      %v8024 = vld [vmem:[#allocation3 + $0x44] sm:$0xf]
      %v8025 = vld [vmem:[#allocation3 + $0x48] sm:$0xf]
      %v8026 = vld [vmem:[#allocation3 + $0x4c] sm:$0xf]
      %v8027 = vld [vmem:[#allocation3 + $0x50] sm:$0xf]
      %v8028 = vld [vmem:[#allocation3 + $0x54] sm:$0xf]
      %v8029 = vld [vmem:[#allocation3 + $0x58] sm:$0xf]
      %v8030 = vld [vmem:[#allocation3 + $0x5c] sm:$0xf]
      %v8031 = vld [vmem:[#allocation3 + $0x60] sm:$0xf]
      %v8032 = vld [vmem:[#allocation3 + $0x64] sm:$0xf]
      %v8033 = vld [vmem:[#allocation3 + $0x68] sm:$0xf]
      %v8034 = vld [vmem:[#allocation3 + $0x6c] sm:$0xf]
      %v8035 = vld [vmem:[#allocation3 + $0x70] sm:$0xf]
      %v8036 = vld [vmem:[#allocation3 + $0x74] sm:$0xf]
      %v8037 = vld [vmem:[#allocation3 + $0x78] sm:$0xf]
      %v8038 = vld [vmem:[#allocation3 + $0x7c] sm:$0xf]
      %v8039 = vld [vmem:[#allocation3 + $0x80] sm:$0xf]
      %v8040 = vld [vmem:[#allocation3 + $0x84] sm:$0xf]
      %v8041 = vld [vmem:[#allocation3 + $0x88] sm:$0xf]
      %v8042 = vld [vmem:[#allocation3 + $0x8c] sm:$0xf]
      %v8043 = vld [vmem:[#allocation3 + $0x90] sm:$0x1]
      %s8044 = scalar_lea.vmem %s6, 48
      %v8045 = vld [vmem:[%s8044] sm:$0xf]
      %v8046 = vld [vmem:[%s8044 + $0x4] sm:$0xf]
      %v8082 = vunpack.c.l.b16 %v8009
      %v8083 = vunpack.c.l.b16 %v8010
      %v8084 = vunpack.c.l.b16 %v8011
      %v8085 = vunpack.c.l.b16 %v8012
      %v8086 = vunpack.c.l.b16 %v8013
      %v8087 = vunpack.c.l.b16 %v8014
      %v8088 = vunpack.c.l.b16 %v8015
      %v8089 = vunpack.c.l.b16 %v8016
      %v8090 = vunpack.c.l.b16 %v8017
      %v8091 = vunpack.c.l.b16 %v8018
      %v8092 = vunpack.c.l.b16 %v8019
      %v8093 = vunpack.c.l.b16 %v8020
      %v8094 = vunpack.c.l.b16 %v8021
      %v8095 = vunpack.c.l.b16 %v8022
      %v8096 = vunpack.c.l.b16 %v8023
      %v8097 = vunpack.c.l.b16 %v8024
      %v8098 = vunpack.c.l.b16 %v8025
      %v8099 = vunpack.c.l.b16 %v8026
      %v8100 = vunpack.c.l.b16 %v8027
      %v8101 = vunpack.c.l.b16 %v8028
      %v8102 = vunpack.c.l.b16 %v8029
      %v8103 = vunpack.c.l.b16 %v8030
      %v8104 = vunpack.c.l.b16 %v8031
      %v8105 = vunpack.c.l.b16 %v8032
      %v8106 = vunpack.c.l.b16 %v8033
      %v8107 = vunpack.c.l.b16 %v8034
      %v8108 = vunpack.c.l.b16 %v8035
      %v8109 = vunpack.c.l.b16 %v8036
      %v8110 = vunpack.c.l.b16 %v8037
      %v8111 = vunpack.c.l.b16 %v8038
      %v8112 = vunpack.c.l.b16 %v8039
      %v8113 = vunpack.c.l.b16 %v8040
      %v8114 = vunpack.c.l.b16 %v8041
      %v8115 = vunpack.c.l.b16 %v8042
      %v8116 = vunpack.c.l.b16 %v8043
      %v8117 = vpack.c.b16 %v8083, %v8082
      %v8118 = vpack.c.b16 %v8085, %v8084
      %v8119 = vpack.c.b16 %v8087, %v8086
      %v8120 = vpack.c.b16 %v8089, %v8088
      %v8121 = vpack.c.b16 %v8091, %v8090
      %v8122 = vpack.c.b16 %v8093, %v8092
      %v8123 = vpack.c.b16 %v8095, %v8094
      %v8124 = vpack.c.b16 %v8097, %v8096
      %v8125 = vpack.c.b16 %v8099, %v8098
      %v8126 = vpack.c.b16 %v8101, %v8100
      %v8127 = vpack.c.b16 %v8103, %v8102
      %v8128 = vpack.c.b16 %v8105, %v8104
      %v8129 = vpack.c.b16 %v8107, %v8106
      %v8130 = vpack.c.b16 %v8109, %v8108
      %v8131 = vpack.c.b16 %v8111, %v8110
      %v8132 = vpack.c.b16 %v8113, %v8112
      %v8133 = vpack.c.b16 %v8115, %v8114
      %v8134 = vpack.c.b16 %v8116, %v8116
      %v8136 = vshrl.u32 %v8117, 16
      %v8138 = vshll.u32 %v8117, 16
      %v8140 = vrot.slane %v8138, 1
      %v8141 = vor.u32 %v8136, %v8140
      %v8143 = vshll.u32 %v8118, 16
      %v8145 = vrot.slane %v8143, 1
      %v8146 = vsel %vm1108, %v8141, %v8145
      %v8147 = vshrl.u32 %v8118, 16
      %v8149 = vor.u32 %v8147, %v8145
      %v8151 = vshll.u32 %v8119, 16
      %v8153 = vrot.slane %v8151, 1
      %v8154 = vsel %vm1108, %v8149, %v8153
      %v8155 = vshrl.u32 %v8119, 16
      %v8157 = vor.u32 %v8155, %v8153
      %v8159 = vshll.u32 %v8120, 16
      %v8161 = vrot.slane %v8159, 1
      %v8162 = vsel %vm1108, %v8157, %v8161
      %v8163 = vshrl.u32 %v8120, 16
      %v8165 = vor.u32 %v8163, %v8161
      %v8167 = vshll.u32 %v8121, 16
      %v8169 = vrot.slane %v8167, 1
      %v8170 = vsel %vm1108, %v8165, %v8169
      %v8171 = vshrl.u32 %v8121, 16
      %v8173 = vor.u32 %v8171, %v8169
      %v8175 = vshll.u32 %v8122, 16
      %v8177 = vrot.slane %v8175, 1
      %v8178 = vsel %vm1108, %v8173, %v8177
      %v8179 = vshrl.u32 %v8122, 16
      %v8181 = vor.u32 %v8179, %v8177
      %v8183 = vshll.u32 %v8123, 16
      %v8185 = vrot.slane %v8183, 1
      %v8186 = vsel %vm1108, %v8181, %v8185
      %v8187 = vshrl.u32 %v8123, 16
      %v8189 = vor.u32 %v8187, %v8185
      %v8191 = vshll.u32 %v8124, 16
      %v8193 = vrot.slane %v8191, 1
      %v8194 = vsel %vm1108, %v8189, %v8193
      %v8195 = vshrl.u32 %v8124, 16
      %v8197 = vor.u32 %v8195, %v8193
      %v8199 = vshll.u32 %v8125, 16
      %v8201 = vrot.slane %v8199, 1
      %v8202 = vsel %vm1108, %v8197, %v8201
      %v8203 = vshrl.u32 %v8125, 16
      %v8205 = vor.u32 %v8203, %v8201
      %v8207 = vshll.u32 %v8126, 16
      %v8209 = vrot.slane %v8207, 1
      %v8210 = vsel %vm1108, %v8205, %v8209
      %v8211 = vshrl.u32 %v8126, 16
      %v8213 = vor.u32 %v8211, %v8209
      %v8215 = vshll.u32 %v8127, 16
      %v8217 = vrot.slane %v8215, 1
      %v8218 = vsel %vm1108, %v8213, %v8217
      %v8219 = vshrl.u32 %v8127, 16
      %v8221 = vor.u32 %v8219, %v8217
      %v8223 = vshll.u32 %v8128, 16
      %v8225 = vrot.slane %v8223, 1
      %v8226 = vsel %vm1108, %v8221, %v8225
      %v8227 = vshrl.u32 %v8128, 16
      %v8229 = vor.u32 %v8227, %v8225
      %v8231 = vshll.u32 %v8129, 16
      %v8233 = vrot.slane %v8231, 1
      %v8234 = vsel %vm1108, %v8229, %v8233
      %v8235 = vshrl.u32 %v8129, 16
      %v8237 = vor.u32 %v8235, %v8233
      %v8239 = vshll.u32 %v8130, 16
      %v8241 = vrot.slane %v8239, 1
      %v8242 = vsel %vm1108, %v8237, %v8241
      %v8243 = vshrl.u32 %v8130, 16
      %v8245 = vor.u32 %v8243, %v8241
      %v8247 = vshll.u32 %v8131, 16
      %v8249 = vrot.slane %v8247, 1
      %v8250 = vsel %vm1108, %v8245, %v8249
      %v8251 = vshrl.u32 %v8131, 16
      %v8253 = vor.u32 %v8251, %v8249
      %v8255 = vshll.u32 %v8132, 16
      %v8257 = vrot.slane %v8255, 1
      %v8258 = vsel %vm1108, %v8253, %v8257
      %v8259 = vshrl.u32 %v8132, 16
      %v8261 = vor.u32 %v8259, %v8257
      %v8263 = vshll.u32 %v8133, 16
      %v8265 = vrot.slane %v8263, 1
      %v8266 = vsel %vm1108, %v8261, %v8265
      %v8267 = vshrl.u32 %v8133, 16
      %v8269 = vor.u32 %v8267, %v8265
      %v8271 = vshll.u32 %v8134, 16
      %v8273 = vrot.slane %v8271, 1
      %v8274 = vsel %vm1108, %v8269, %v8273
      %v8277 = vunpack.c.l.b16 %v8045
      %v8278 = vunpack.c.l.b16 %v8046
      %v8279 = vpack.c.b16 %v8278, %v8277
      %v8282 = vsel %vm2665, %v8146, 0
      %v8285 = vsel %vm2665, %v8154, 0
      %v8288 = vsel %vm2665, %v8162, 0
      %v8291 = vsel %vm2665, %v8170, 0
      %v8294 = vsel %vm2665, %v8178, 0
      %v8297 = vsel %vm2665, %v8186, 0
      %v8300 = vsel %vm2665, %v8194, 0
      %v8303 = vsel %vm2665, %v8202, 0
      %v8306 = vsel %vm2665, %v8210, 0
      %v8309 = vsel %vm2665, %v8218, 0
      %v8312 = vsel %vm2665, %v8226, 0
      %v8315 = vsel %vm2665, %v8234, 0
      %v8318 = vsel %vm2665, %v8242, 0
      %v8321 = vsel %vm2665, %v8250, 0
      %v8324 = vsel %vm2665, %v8258, 0
      %v8327 = vsel %vm2665, %v8266, 0
      %v8330 = vsel %vm2665, %v8274, 0
      %8332 = vmatprep.subr.bf16.mxu0 0
      %8333 = vmatpush1.bf16.msra.mxu0 0
      %8334 = vmatprep.subr.bf16.mxu0 0
      %8335 = vmatpush1.bf16.msra.mxu0 0
      %8336 = vmatprep.subr.bf16.mxu0 0
      %8337 = vmatpush1.bf16.msra.mxu0 0
      %8338 = vmatprep.subr.bf16.mxu0 0
      %8339 = vmatpush1.bf16.msra.mxu0 0
      %8340 = vmatprep.subr.bf16.mxu0 0
      %8341 = vmatpush1.bf16.msra.mxu0 0
      %8342 = vmatprep.subr.bf16.mxu0 0
      %8343 = vmatpush1.bf16.msra.mxu0 0
      %8344 = vmatprep.subr.bf16.mxu0 0
      %8345 = vmatpush1.bf16.msra.mxu0 0
      %8346 = vmatprep.subr.bf16.mxu0 0
      %8347 = vmatpush1.bf16.msra.mxu0 %v8279
      %8348 = vmatprep.subr.bf16.mxu0 0
      %8349 = vmatpush2.bf16.msra.mxu0 0
      %8350 = vmatprep.subr.bf16.mxu0 0
      %8351 = vmatpush2.bf16.msra.mxu0 0
      %8352 = vmatprep.subr.bf16.mxu0 0
      %8353 = vmatpush2.bf16.msra.mxu0 0
      %8354 = vmatprep.subr.bf16.mxu0 0
      %8355 = vmatpush2.bf16.msra.mxu0 0
      %8356 = vmatprep.subr.bf16.mxu0 0
      %8357 = vmatpush2.bf16.msra.mxu0 0
      %8358 = vmatprep.subr.bf16.mxu0 0
      %8359 = vmatpush2.bf16.msra.mxu0 0
      %8360 = vmatprep.subr.bf16.mxu0 0
      %8361 = vmatpush2.bf16.msra.mxu0 0
      %8362 = vmatprep.subr.bf16.mxu0 0
      %8363 = vmatpush2.bf16.msra.mxu0 0
      %8364 = vmatprep.mubr.bf16.mxu0 0
      %8365 = vmatmul.mubr.bf16.gmra.mxu0 %v8282
      %v8366 = vpop.f32.mrf.mxu0
      %v8367 = vadd.f32 %v2572, %v8366
      %v8368 = vpop.f32.mrf.mxu0
      %v8369 = vpop.f32.mrf.mxu0
      %v8370 = vadd.f32 %v2572, %v8369
      %v8371 = vpop.f32.mrf.mxu0
      %8372 = vmatprep.mubr.bf16.mxu0 0
      %8373 = vmatmul.mubr.bf16.gmra.mxu0 %v8285
      %v8374 = vpop.f32.mrf.mxu0
      %v8375 = vadd.f32 %v2572, %v8374
      %v8376 = vpop.f32.mrf.mxu0
      %v8377 = vpop.f32.mrf.mxu0
      %v8378 = vadd.f32 %v2572, %v8377
      %v8379 = vpop.f32.mrf.mxu0
      %8380 = vmatprep.mubr.bf16.mxu0 0
      %8381 = vmatmul.mubr.bf16.gmra.mxu0 %v8288
      %v8382 = vpop.f32.mrf.mxu0
      %v8383 = vadd.f32 %v2572, %v8382
      %v8384 = vpop.f32.mrf.mxu0
      %v8385 = vpop.f32.mrf.mxu0
      %v8386 = vadd.f32 %v2572, %v8385
      %v8387 = vpop.f32.mrf.mxu0
      %8388 = vmatprep.mubr.bf16.mxu0 0
      %8389 = vmatmul.mubr.bf16.gmra.mxu0 %v8291
      %v8390 = vpop.f32.mrf.mxu0
      %v8391 = vadd.f32 %v2572, %v8390
      %v8392 = vpop.f32.mrf.mxu0
      %v8393 = vpop.f32.mrf.mxu0
      %v8394 = vadd.f32 %v2572, %v8393
      %v8395 = vpop.f32.mrf.mxu0
      %8396 = vmatprep.mubr.bf16.mxu0 0
      %8397 = vmatmul.mubr.bf16.gmra.mxu0 %v8294
      %v8398 = vpop.f32.mrf.mxu0
      %v8399 = vadd.f32 %v2572, %v8398
      %v8400 = vpop.f32.mrf.mxu0
      %v8401 = vpop.f32.mrf.mxu0
      %v8402 = vadd.f32 %v2572, %v8401
      %v8403 = vpop.f32.mrf.mxu0
      %8404 = vmatprep.mubr.bf16.mxu0 0
      %8405 = vmatmul.mubr.bf16.gmra.mxu0 %v8297
      %v8406 = vpop.f32.mrf.mxu0
      %v8407 = vadd.f32 %v2572, %v8406
      %v8408 = vpop.f32.mrf.mxu0
      %v8409 = vpop.f32.mrf.mxu0
      %v8410 = vadd.f32 %v2572, %v8409
      %v8411 = vpop.f32.mrf.mxu0
      %8412 = vmatprep.mubr.bf16.mxu0 0
      %8413 = vmatmul.mubr.bf16.gmra.mxu0 %v8300
      %v8414 = vpop.f32.mrf.mxu0
      %v8415 = vadd.f32 %v2572, %v8414
      %v8416 = vpop.f32.mrf.mxu0
      %v8417 = vpop.f32.mrf.mxu0
      %v8418 = vadd.f32 %v2572, %v8417
      %v8419 = vpop.f32.mrf.mxu0
      %8420 = vmatprep.mubr.bf16.mxu0 0
      %8421 = vmatmul.mubr.bf16.gmra.mxu0 %v8303
      %v8422 = vpop.f32.mrf.mxu0
      %v8423 = vadd.f32 %v2572, %v8422
      %v8424 = vpop.f32.mrf.mxu0
      %v8425 = vpop.f32.mrf.mxu0
      %v8426 = vadd.f32 %v2572, %v8425
      %v8427 = vpop.f32.mrf.mxu0
      %8428 = vmatprep.mubr.bf16.mxu0 0
      %8429 = vmatmul.mubr.bf16.gmra.mxu0 %v8306
      %v8430 = vpop.f32.mrf.mxu0
      %v8431 = vadd.f32 %v2572, %v8430
      %v8432 = vpop.f32.mrf.mxu0
      %v8433 = vpop.f32.mrf.mxu0
      %v8434 = vadd.f32 %v2572, %v8433
      %v8435 = vpop.f32.mrf.mxu0
      %8436 = vmatprep.mubr.bf16.mxu0 0
      %8437 = vmatmul.mubr.bf16.gmra.mxu0 %v8309
      %v8438 = vpop.f32.mrf.mxu0
      %v8439 = vadd.f32 %v2572, %v8438
      %v8440 = vpop.f32.mrf.mxu0
      %v8441 = vpop.f32.mrf.mxu0
      %v8442 = vadd.f32 %v2572, %v8441
      %v8443 = vpop.f32.mrf.mxu0
      %8444 = vmatprep.mubr.bf16.mxu0 0
      %8445 = vmatmul.mubr.bf16.gmra.mxu0 %v8312
      %v8446 = vpop.f32.mrf.mxu0
      %v8447 = vadd.f32 %v2572, %v8446
      %v8448 = vpop.f32.mrf.mxu0
      %v8449 = vpop.f32.mrf.mxu0
      %v8450 = vadd.f32 %v2572, %v8449
      %v8451 = vpop.f32.mrf.mxu0
      %8452 = vmatprep.mubr.bf16.mxu0 0
      %8453 = vmatmul.mubr.bf16.gmra.mxu0 %v8315
      %v8454 = vpop.f32.mrf.mxu0
      %v8455 = vadd.f32 %v2572, %v8454
      %v8456 = vpop.f32.mrf.mxu0
      %v8457 = vpop.f32.mrf.mxu0
      %v8458 = vadd.f32 %v2572, %v8457
      %v8459 = vpop.f32.mrf.mxu0
      %8460 = vmatprep.mubr.bf16.mxu0 0
      %8461 = vmatmul.mubr.bf16.gmra.mxu0 %v8318
      %v8462 = vpop.f32.mrf.mxu0
      %v8463 = vadd.f32 %v2572, %v8462
      %v8464 = vpop.f32.mrf.mxu0
      %v8465 = vpop.f32.mrf.mxu0
      %v8466 = vadd.f32 %v2572, %v8465
      %v8467 = vpop.f32.mrf.mxu0
      %8468 = vmatprep.mubr.bf16.mxu0 0
      %8469 = vmatmul.mubr.bf16.gmra.mxu0 %v8321
      %v8470 = vpop.f32.mrf.mxu0
      %v8471 = vadd.f32 %v2572, %v8470
      %v8472 = vpop.f32.mrf.mxu0
      %v8473 = vpop.f32.mrf.mxu0
      %v8474 = vadd.f32 %v2572, %v8473
      %v8475 = vpop.f32.mrf.mxu0
      %8476 = vmatprep.mubr.bf16.mxu0 0
      %8477 = vmatmul.mubr.bf16.gmra.mxu0 %v8324
      %v8478 = vpop.f32.mrf.mxu0
      %v8479 = vadd.f32 %v2572, %v8478
      %v8480 = vpop.f32.mrf.mxu0
      %v8481 = vpop.f32.mrf.mxu0
      %v8482 = vadd.f32 %v2572, %v8481
      %v8483 = vpop.f32.mrf.mxu0
      %8484 = vmatprep.mubr.bf16.mxu0 0
      %8485 = vmatmul.mubr.bf16.gmra.mxu0 %v8327
      %v8486 = vpop.f32.mrf.mxu0
      %v8487 = vadd.f32 %v2572, %v8486
      %v8488 = vpop.f32.mrf.mxu0
      %v8489 = vpop.f32.mrf.mxu0
      %v8490 = vadd.f32 %v2572, %v8489
      %v8491 = vpop.f32.mrf.mxu0
      %8492 = vmatprep.mubr.bf16.mxu0 0
      %8493 = vmatmul.mubr.bf16.gmra.mxu0 %v8330
      %v8494 = vpop.f32.mrf.mxu0
      %v8495 = vadd.f32 %v2572, %v8494
      %v8496 = vpop.f32.mrf.mxu0
      %v8497 = vpop.f32.mrf.mxu0
      %v8498 = vadd.f32 %v2572, %v8497
      %v8499 = vpop.f32.mrf.mxu0
      %8500 = vdwg.mxu0
      %vm8501 = vcmp.gt.f32.partialorder %v8367, 0.0
      %vm8502 = vcmp.gt.f32.partialorder %v8370, 0.0
      %vm8503 = vcmp.gt.f32.partialorder %v8375, 0.0
      %vm8504 = vcmp.gt.f32.partialorder %v8378, 0.0
      %vm8505 = vcmp.gt.f32.partialorder %v8383, 0.0
      %vm8506 = vcmp.gt.f32.partialorder %v8386, 0.0
      %vm8507 = vcmp.gt.f32.partialorder %v8391, 0.0
      %vm8508 = vcmp.gt.f32.partialorder %v8394, 0.0
      %vm8509 = vcmp.gt.f32.partialorder %v8399, 0.0
      %vm8510 = vcmp.gt.f32.partialorder %v8402, 0.0
      %vm8511 = vcmp.gt.f32.partialorder %v8407, 0.0
      %vm8512 = vcmp.gt.f32.partialorder %v8410, 0.0
      %vm8513 = vcmp.gt.f32.partialorder %v8415, 0.0
      %vm8514 = vcmp.gt.f32.partialorder %v8418, 0.0
      %vm8515 = vcmp.gt.f32.partialorder %v8423, 0.0
      %vm8516 = vcmp.gt.f32.partialorder %v8426, 0.0
      %vm8517 = vcmp.gt.f32.partialorder %v8431, 0.0
      %vm8518 = vcmp.gt.f32.partialorder %v8434, 0.0
      %vm8519 = vcmp.gt.f32.partialorder %v8439, 0.0
      %vm8520 = vcmp.gt.f32.partialorder %v8442, 0.0
      %vm8521 = vcmp.gt.f32.partialorder %v8447, 0.0
      %vm8522 = vcmp.gt.f32.partialorder %v8450, 0.0
      %vm8523 = vcmp.gt.f32.partialorder %v8455, 0.0
      %vm8524 = vcmp.gt.f32.partialorder %v8458, 0.0
      %vm8525 = vcmp.gt.f32.partialorder %v8463, 0.0
      %vm8526 = vcmp.gt.f32.partialorder %v8466, 0.0
      %vm8527 = vcmp.gt.f32.partialorder %v8471, 0.0
      %vm8528 = vcmp.gt.f32.partialorder %v8474, 0.0
      %vm8529 = vcmp.gt.f32.partialorder %v8479, 0.0
      %vm8530 = vcmp.gt.f32.partialorder %v8482, 0.0
      %vm8531 = vcmp.gt.f32.partialorder %v8487, 0.0
      %vm8532 = vcmp.gt.f32.partialorder %v8490, 0.0
      %vm8533 = vcmp.gt.f32.partialorder %v8495, 0.0
      %vm8534 = vcmp.gt.f32.partialorder %v8498, 0.0
      %v8535 = vmul.f32 %v8367, -0.76766074
      %v8536 = vmul.f32 %v8370, -0.76766074
      %v8537 = vmul.f32 %v8375, -0.76766074
      %v8538 = vmul.f32 %v8378, -0.76766074
      %v8539 = vmul.f32 %v8383, -0.76766074
      %v8540 = vmul.f32 %v8386, -0.76766074
      %v8541 = vmul.f32 %v8391, -0.76766074
      %v8542 = vmul.f32 %v8394, -0.76766074
      %v8543 = vmul.f32 %v8399, -0.76766074
      %v8544 = vmul.f32 %v8402, -0.76766074
      %v8545 = vmul.f32 %v8407, -0.76766074
      %v8546 = vmul.f32 %v8410, -0.76766074
      %v8547 = vmul.f32 %v8415, -0.76766074
      %v8548 = vmul.f32 %v8418, -0.76766074
      %v8549 = vmul.f32 %v8423, -0.76766074
      %v8550 = vmul.f32 %v8426, -0.76766074
      %v8551 = vmul.f32 %v8431, -0.76766074
      %v8552 = vmul.f32 %v8434, -0.76766074
      %v8553 = vmul.f32 %v8439, -0.76766074
      %v8554 = vmul.f32 %v8442, -0.76766074
      %v8555 = vmul.f32 %v8447, -0.76766074
      %v8556 = vmul.f32 %v8450, -0.76766074
      %v8557 = vmul.f32 %v8455, -0.76766074
      %v8558 = vmul.f32 %v8458, -0.76766074
      %v8559 = vmul.f32 %v8463, -0.76766074
      %v8560 = vmul.f32 %v8466, -0.76766074
      %v8561 = vmul.f32 %v8471, -0.76766074
      %v8562 = vmul.f32 %v8474, -0.76766074
      %v8563 = vmul.f32 %v8479, -0.76766074
      %v8564 = vmul.f32 %v8482, -0.76766074
      %v8565 = vmul.f32 %v8487, -0.76766074
      %v8566 = vmul.f32 %v8490, -0.76766074
      %v8567 = vmul.f32 %v8495, -0.76766074
      %v8568 = vmul.f32 %v8498, -0.76766074
      %v8569 = vsel %vm8501, %v8367, %v8535
      %v8570 = vsel %vm8502, %v8370, %v8536
      %v8571 = vsel %vm8503, %v8375, %v8537
      %v8572 = vsel %vm8504, %v8378, %v8538
      %v8573 = vsel %vm8505, %v8383, %v8539
      %v8574 = vsel %vm8506, %v8386, %v8540
      %v8575 = vsel %vm8507, %v8391, %v8541
      %v8576 = vsel %vm8508, %v8394, %v8542
      %v8577 = vsel %vm8509, %v8399, %v8543
      %v8578 = vsel %vm8510, %v8402, %v8544
      %v8579 = vsel %vm8511, %v8407, %v8545
      %v8580 = vsel %vm8512, %v8410, %v8546
      %v8581 = vsel %vm8513, %v8415, %v8547
      %v8582 = vsel %vm8514, %v8418, %v8548
      %v8583 = vsel %vm8515, %v8423, %v8549
      %v8584 = vsel %vm8516, %v8426, %v8550
      %v8585 = vsel %vm8517, %v8431, %v8551
      %v8586 = vsel %vm8518, %v8434, %v8552
      %v8587 = vsel %vm8519, %v8439, %v8553
      %v8588 = vsel %vm8520, %v8442, %v8554
      %v8589 = vsel %vm8521, %v8447, %v8555
      %v8590 = vsel %vm8522, %v8450, %v8556
      %v8591 = vsel %vm8523, %v8455, %v8557
      %v8592 = vsel %vm8524, %v8458, %v8558
      %v8593 = vsel %vm8525, %v8463, %v8559
      %v8594 = vsel %vm8526, %v8466, %v8560
      %v8595 = vsel %vm8527, %v8471, %v8561
      %v8596 = vsel %vm8528, %v8474, %v8562
      %v8597 = vsel %vm8529, %v8479, %v8563
      %v8598 = vsel %vm8530, %v8482, %v8564
      %v8599 = vsel %vm8531, %v8487, %v8565
      %v8600 = vsel %vm8532, %v8490, %v8566
      %v8601 = vsel %vm8533, %v8495, %v8567
      %v8602 = vsel %vm8534, %v8498, %v8568
      %v8603 = vpack.c.bf16 %v8570, %v8569
      %v8604 = vpack.c.bf16 %v8572, %v8571
      %v8605 = vpack.c.bf16 %v8574, %v8573
      %v8606 = vpack.c.bf16 %v8576, %v8575
      %v8607 = vpack.c.bf16 %v8578, %v8577
      %v8608 = vpack.c.bf16 %v8580, %v8579
      %v8609 = vpack.c.bf16 %v8582, %v8581
      %v8610 = vpack.c.bf16 %v8584, %v8583
      %v8611 = vpack.c.bf16 %v8586, %v8585
      %v8612 = vpack.c.bf16 %v8588, %v8587
      %v8613 = vpack.c.bf16 %v8590, %v8589
      %v8614 = vpack.c.bf16 %v8592, %v8591
      %v8615 = vpack.c.bf16 %v8594, %v8593
      %v8616 = vpack.c.bf16 %v8596, %v8595
      %v8617 = vpack.c.bf16 %v8598, %v8597
      %v8618 = vpack.c.bf16 %v8600, %v8599
      %v8619 = vpack.c.bf16 %v8602, %v8601
      %v8621 = vsel %vm3016, %v8603, 0
      %v8624 = vsel %vm3016, %v8604, 0
      %v8627 = vsel %vm3016, %v8605, 0
      %v8630 = vsel %vm3016, %v8606, 0
      %v8633 = vsel %vm3016, %v8607, 0
      %v8636 = vsel %vm3016, %v8608, 0
      %v8639 = vsel %vm3016, %v8609, 0
      %v8642 = vsel %vm3016, %v8610, 0
      %v8645 = vsel %vm3016, %v8611, 0
      %v8648 = vsel %vm3016, %v8612, 0
      %v8651 = vsel %vm3016, %v8613, 0
      %v8654 = vsel %vm3016, %v8614, 0
      %v8657 = vsel %vm3016, %v8615, 0
      %v8660 = vsel %vm3016, %v8616, 0
      %v8663 = vsel %vm3016, %v8617, 0
      %v8666 = vsel %vm3016, %v8618, 0
      %v8669 = vsel %vm3016, %v8619, 0
      %8671 = vmatprep.subr.bf16.mxu0 0
      %8672 = vmatpush1.bf16.msra.mxu0 0
      %8673 = vmatprep.subr.bf16.mxu0 0
      %8674 = vmatpush1.bf16.msra.mxu0 0
      %8675 = vmatprep.subr.bf16.mxu0 0
      %8676 = vmatpush1.bf16.msra.mxu0 0
      %8677 = vmatprep.subr.bf16.mxu0 0
      %8678 = vmatpush1.bf16.msra.mxu0 0
      %8679 = vmatprep.subr.bf16.mxu0 0
      %8680 = vmatpush1.bf16.msra.mxu0 0
      %8681 = vmatprep.subr.bf16.mxu0 0
      %8682 = vmatpush1.bf16.msra.mxu0 0
      %8683 = vmatprep.subr.bf16.mxu0 0
      %8684 = vmatpush1.bf16.msra.mxu0 0
      %8685 = vmatprep.subr.bf16.mxu0 0
      %8686 = vmatpush1.bf16.msra.mxu0 %v3070
      %8687 = vmatprep.subr.bf16.mxu0 0
      %8688 = vmatpush2.bf16.msra.mxu0 0
      %8689 = vmatprep.subr.bf16.mxu0 0
      %8690 = vmatpush2.bf16.msra.mxu0 0
      %8691 = vmatprep.subr.bf16.mxu0 0
      %8692 = vmatpush2.bf16.msra.mxu0 0
      %8693 = vmatprep.subr.bf16.mxu0 0
      %8694 = vmatpush2.bf16.msra.mxu0 0
      %8695 = vmatprep.subr.bf16.mxu0 0
      %8696 = vmatpush2.bf16.msra.mxu0 0
      %8697 = vmatprep.subr.bf16.mxu0 0
      %8698 = vmatpush2.bf16.msra.mxu0 0
      %8699 = vmatprep.subr.bf16.mxu0 0
      %8700 = vmatpush2.bf16.msra.mxu0 0
      %8701 = vmatprep.subr.bf16.mxu0 0
      %8702 = vmatpush2.bf16.msra.mxu0 0
      %8703 = vmatprep.mubr.bf16.mxu0 0
      %8704 = vmatmul.mubr.bf16.gmra.mxu0 %v8621
      %v8705 = vpop.f32.mrf.mxu0
      %v8706 = vadd.f32 %v3009, %v8705
      %v8707 = vpop.f32.mrf.mxu0
      %v8708 = vpop.f32.mrf.mxu0
      %v8709 = vadd.f32 %v3009, %v8708
      %v8710 = vpop.f32.mrf.mxu0
      %8711 = vmatprep.mubr.bf16.mxu0 0
      %8712 = vmatmul.mubr.bf16.gmra.mxu0 %v8624
      %v8713 = vpop.f32.mrf.mxu0
      %v8714 = vadd.f32 %v3009, %v8713
      %v8715 = vpop.f32.mrf.mxu0
      %v8716 = vpop.f32.mrf.mxu0
      %v8717 = vadd.f32 %v3009, %v8716
      %v8718 = vpop.f32.mrf.mxu0
      %8719 = vmatprep.mubr.bf16.mxu0 0
      %8720 = vmatmul.mubr.bf16.gmra.mxu0 %v8627
      %v8721 = vpop.f32.mrf.mxu0
      %v8722 = vadd.f32 %v3009, %v8721
      %v8723 = vpop.f32.mrf.mxu0
      %v8724 = vpop.f32.mrf.mxu0
      %v8725 = vadd.f32 %v3009, %v8724
      %v8726 = vpop.f32.mrf.mxu0
      %8727 = vmatprep.mubr.bf16.mxu0 0
      %8728 = vmatmul.mubr.bf16.gmra.mxu0 %v8630
      %v8729 = vpop.f32.mrf.mxu0
      %v8730 = vadd.f32 %v3009, %v8729
      %v8731 = vpop.f32.mrf.mxu0
      %v8732 = vpop.f32.mrf.mxu0
      %v8733 = vadd.f32 %v3009, %v8732
      %v8734 = vpop.f32.mrf.mxu0
      %8735 = vmatprep.mubr.bf16.mxu0 0
      %8736 = vmatmul.mubr.bf16.gmra.mxu0 %v8633
      %v8737 = vpop.f32.mrf.mxu0
      %v8738 = vadd.f32 %v3009, %v8737
      %v8739 = vpop.f32.mrf.mxu0
      %v8740 = vpop.f32.mrf.mxu0
      %v8741 = vadd.f32 %v3009, %v8740
      %v8742 = vpop.f32.mrf.mxu0
      %8743 = vmatprep.mubr.bf16.mxu0 0
      %8744 = vmatmul.mubr.bf16.gmra.mxu0 %v8636
      %v8745 = vpop.f32.mrf.mxu0
      %v8746 = vadd.f32 %v3009, %v8745
      %v8747 = vpop.f32.mrf.mxu0
      %v8748 = vpop.f32.mrf.mxu0
      %v8749 = vadd.f32 %v3009, %v8748
      %v8750 = vpop.f32.mrf.mxu0
      %8751 = vmatprep.mubr.bf16.mxu0 0
      %8752 = vmatmul.mubr.bf16.gmra.mxu0 %v8639
      %v8753 = vpop.f32.mrf.mxu0
      %v8754 = vadd.f32 %v3009, %v8753
      %v8755 = vpop.f32.mrf.mxu0
      %v8756 = vpop.f32.mrf.mxu0
      %v8757 = vadd.f32 %v3009, %v8756
      %v8758 = vpop.f32.mrf.mxu0
      %8759 = vmatprep.mubr.bf16.mxu0 0
      %8760 = vmatmul.mubr.bf16.gmra.mxu0 %v8642
      %v8761 = vpop.f32.mrf.mxu0
      %v8762 = vadd.f32 %v3009, %v8761
      %v8763 = vpop.f32.mrf.mxu0
      %v8764 = vpop.f32.mrf.mxu0
      %v8765 = vadd.f32 %v3009, %v8764
      %v8766 = vpop.f32.mrf.mxu0
      %8767 = vmatprep.mubr.bf16.mxu0 0
      %8768 = vmatmul.mubr.bf16.gmra.mxu0 %v8645
      %v8769 = vpop.f32.mrf.mxu0
      %v8770 = vadd.f32 %v3009, %v8769
      %v8771 = vpop.f32.mrf.mxu0
      %v8772 = vpop.f32.mrf.mxu0
      %v8773 = vadd.f32 %v3009, %v8772
      %v8774 = vpop.f32.mrf.mxu0
      %8775 = vmatprep.mubr.bf16.mxu0 0
      %8776 = vmatmul.mubr.bf16.gmra.mxu0 %v8648
      %v8777 = vpop.f32.mrf.mxu0
      %v8778 = vadd.f32 %v3009, %v8777
      %v8779 = vpop.f32.mrf.mxu0
      %v8780 = vpop.f32.mrf.mxu0
      %v8781 = vadd.f32 %v3009, %v8780
      %v8782 = vpop.f32.mrf.mxu0
      %8783 = vmatprep.mubr.bf16.mxu0 0
      %8784 = vmatmul.mubr.bf16.gmra.mxu0 %v8651
      %v8785 = vpop.f32.mrf.mxu0
      %v8786 = vadd.f32 %v3009, %v8785
      %v8787 = vpop.f32.mrf.mxu0
      %v8788 = vpop.f32.mrf.mxu0
      %v8789 = vadd.f32 %v3009, %v8788
      %v8790 = vpop.f32.mrf.mxu0
      %8791 = vmatprep.mubr.bf16.mxu0 0
      %8792 = vmatmul.mubr.bf16.gmra.mxu0 %v8654
      %v8793 = vpop.f32.mrf.mxu0
      %v8794 = vadd.f32 %v3009, %v8793
      %v8795 = vpop.f32.mrf.mxu0
      %v8796 = vpop.f32.mrf.mxu0
      %v8797 = vadd.f32 %v3009, %v8796
      %v8798 = vpop.f32.mrf.mxu0
      %8799 = vmatprep.mubr.bf16.mxu0 0
      %8800 = vmatmul.mubr.bf16.gmra.mxu0 %v8657
      %v8801 = vpop.f32.mrf.mxu0
      %v8802 = vadd.f32 %v3009, %v8801
      %v8803 = vpop.f32.mrf.mxu0
      %v8804 = vpop.f32.mrf.mxu0
      %v8805 = vadd.f32 %v3009, %v8804
      %v8806 = vpop.f32.mrf.mxu0
      %8807 = vmatprep.mubr.bf16.mxu0 0
      %8808 = vmatmul.mubr.bf16.gmra.mxu0 %v8660
      %v8809 = vpop.f32.mrf.mxu0
      %v8810 = vadd.f32 %v3009, %v8809
      %v8811 = vpop.f32.mrf.mxu0
      %v8812 = vpop.f32.mrf.mxu0
      %v8813 = vadd.f32 %v3009, %v8812
      %v8814 = vpop.f32.mrf.mxu0
      %8815 = vmatprep.mubr.bf16.mxu0 0
      %8816 = vmatmul.mubr.bf16.gmra.mxu0 %v8663
      %v8817 = vpop.f32.mrf.mxu0
      %v8818 = vadd.f32 %v3009, %v8817
      %v8819 = vpop.f32.mrf.mxu0
      %v8820 = vpop.f32.mrf.mxu0
      %v8821 = vadd.f32 %v3009, %v8820
      %v8822 = vpop.f32.mrf.mxu0
      %8823 = vmatprep.mubr.bf16.mxu0 0
      %8824 = vmatmul.mubr.bf16.gmra.mxu0 %v8666
      %v8825 = vpop.f32.mrf.mxu0
      %v8826 = vadd.f32 %v3009, %v8825
      %v8827 = vpop.f32.mrf.mxu0
      %v8828 = vpop.f32.mrf.mxu0
      %v8829 = vadd.f32 %v3009, %v8828
      %v8830 = vpop.f32.mrf.mxu0
      %8831 = vmatprep.mubr.bf16.mxu0 0
      %8832 = vmatmul.mubr.bf16.gmra.mxu0 %v8669
      %v8833 = vpop.f32.mrf.mxu0
      %v8834 = vadd.f32 %v3009, %v8833
      %v8835 = vpop.f32.mrf.mxu0
      %v8836 = vpop.f32.mrf.mxu0
      %v8837 = vadd.f32 %v3009, %v8836
      %v8838 = vpop.f32.mrf.mxu0
      %8839 = vdwg.mxu0
      %vm8840 = vcmp.gt.f32.partialorder %v8706, 0.0
      %vm8841 = vcmp.gt.f32.partialorder %v8709, 0.0
      %vm8842 = vcmp.gt.f32.partialorder %v8714, 0.0
      %vm8843 = vcmp.gt.f32.partialorder %v8717, 0.0
      %vm8844 = vcmp.gt.f32.partialorder %v8722, 0.0
      %vm8845 = vcmp.gt.f32.partialorder %v8725, 0.0
      %vm8846 = vcmp.gt.f32.partialorder %v8730, 0.0
      %vm8847 = vcmp.gt.f32.partialorder %v8733, 0.0
      %vm8848 = vcmp.gt.f32.partialorder %v8738, 0.0
      %vm8849 = vcmp.gt.f32.partialorder %v8741, 0.0
      %vm8850 = vcmp.gt.f32.partialorder %v8746, 0.0
      %vm8851 = vcmp.gt.f32.partialorder %v8749, 0.0
      %vm8852 = vcmp.gt.f32.partialorder %v8754, 0.0
      %vm8853 = vcmp.gt.f32.partialorder %v8757, 0.0
      %vm8854 = vcmp.gt.f32.partialorder %v8762, 0.0
      %vm8855 = vcmp.gt.f32.partialorder %v8765, 0.0
      %vm8856 = vcmp.gt.f32.partialorder %v8770, 0.0
      %vm8857 = vcmp.gt.f32.partialorder %v8773, 0.0
      %vm8858 = vcmp.gt.f32.partialorder %v8778, 0.0
      %vm8859 = vcmp.gt.f32.partialorder %v8781, 0.0
      %vm8860 = vcmp.gt.f32.partialorder %v8786, 0.0
      %vm8861 = vcmp.gt.f32.partialorder %v8789, 0.0
      %vm8862 = vcmp.gt.f32.partialorder %v8794, 0.0
      %vm8863 = vcmp.gt.f32.partialorder %v8797, 0.0
      %vm8864 = vcmp.gt.f32.partialorder %v8802, 0.0
      %vm8865 = vcmp.gt.f32.partialorder %v8805, 0.0
      %vm8866 = vcmp.gt.f32.partialorder %v8810, 0.0
      %vm8867 = vcmp.gt.f32.partialorder %v8813, 0.0
      %vm8868 = vcmp.gt.f32.partialorder %v8818, 0.0
      %vm8869 = vcmp.gt.f32.partialorder %v8821, 0.0
      %vm8870 = vcmp.gt.f32.partialorder %v8826, 0.0
      %vm8871 = vcmp.gt.f32.partialorder %v8829, 0.0
      %vm8872 = vcmp.gt.f32.partialorder %v8834, 0.0
      %vm8873 = vcmp.gt.f32.partialorder %v8837, 0.0
      %v8874 = vmul.f32 %v8706, -0.76766074
      %v8875 = vmul.f32 %v8709, -0.76766074
      %v8876 = vmul.f32 %v8714, -0.76766074
      %v8877 = vmul.f32 %v8717, -0.76766074
      %v8878 = vmul.f32 %v8722, -0.76766074
      %v8879 = vmul.f32 %v8725, -0.76766074
      %v8880 = vmul.f32 %v8730, -0.76766074
      %v8881 = vmul.f32 %v8733, -0.76766074
      %v8882 = vmul.f32 %v8738, -0.76766074
      %v8883 = vmul.f32 %v8741, -0.76766074
      %v8884 = vmul.f32 %v8746, -0.76766074
      %v8885 = vmul.f32 %v8749, -0.76766074
      %v8886 = vmul.f32 %v8754, -0.76766074
      %v8887 = vmul.f32 %v8757, -0.76766074
      %v8888 = vmul.f32 %v8762, -0.76766074
      %v8889 = vmul.f32 %v8765, -0.76766074
      %v8890 = vmul.f32 %v8770, -0.76766074
      %v8891 = vmul.f32 %v8773, -0.76766074
      %v8892 = vmul.f32 %v8778, -0.76766074
      %v8893 = vmul.f32 %v8781, -0.76766074
      %v8894 = vmul.f32 %v8786, -0.76766074
      %v8895 = vmul.f32 %v8789, -0.76766074
      %v8896 = vmul.f32 %v8794, -0.76766074
      %v8897 = vmul.f32 %v8797, -0.76766074
      %v8898 = vmul.f32 %v8802, -0.76766074
      %v8899 = vmul.f32 %v8805, -0.76766074
      %v8900 = vmul.f32 %v8810, -0.76766074
      %v8901 = vmul.f32 %v8813, -0.76766074
      %v8902 = vmul.f32 %v8818, -0.76766074
      %v8903 = vmul.f32 %v8821, -0.76766074
      %v8904 = vmul.f32 %v8826, -0.76766074
      %v8905 = vmul.f32 %v8829, -0.76766074
      %v8906 = vmul.f32 %v8834, -0.76766074
      %v8907 = vmul.f32 %v8837, -0.76766074
      %v8908 = vsel %vm8840, %v8706, %v8874
      %v8909 = vsel %vm8841, %v8709, %v8875
      %v8910 = vsel %vm8842, %v8714, %v8876
      %v8911 = vsel %vm8843, %v8717, %v8877
      %v8912 = vsel %vm8844, %v8722, %v8878
      %v8913 = vsel %vm8845, %v8725, %v8879
      %v8914 = vsel %vm8846, %v8730, %v8880
      %v8915 = vsel %vm8847, %v8733, %v8881
      %v8916 = vsel %vm8848, %v8738, %v8882
      %v8917 = vsel %vm8849, %v8741, %v8883
      %v8918 = vsel %vm8850, %v8746, %v8884
      %v8919 = vsel %vm8851, %v8749, %v8885
      %v8920 = vsel %vm8852, %v8754, %v8886
      %v8921 = vsel %vm8853, %v8757, %v8887
      %v8922 = vsel %vm8854, %v8762, %v8888
      %v8923 = vsel %vm8855, %v8765, %v8889
      %v8924 = vsel %vm8856, %v8770, %v8890
      %v8925 = vsel %vm8857, %v8773, %v8891
      %v8926 = vsel %vm8858, %v8778, %v8892
      %v8927 = vsel %vm8859, %v8781, %v8893
      %v8928 = vsel %vm8860, %v8786, %v8894
      %v8929 = vsel %vm8861, %v8789, %v8895
      %v8930 = vsel %vm8862, %v8794, %v8896
      %v8931 = vsel %vm8863, %v8797, %v8897
      %v8932 = vsel %vm8864, %v8802, %v8898
      %v8933 = vsel %vm8865, %v8805, %v8899
      %v8934 = vsel %vm8866, %v8810, %v8900
      %v8935 = vsel %vm8867, %v8813, %v8901
      %v8936 = vsel %vm8868, %v8818, %v8902
      %v8937 = vsel %vm8869, %v8821, %v8903
      %v8938 = vsel %vm8870, %v8826, %v8904
      %v8939 = vsel %vm8871, %v8829, %v8905
      %v8940 = vsel %vm8872, %v8834, %v8906
      %v8941 = vsel %vm8873, %v8837, %v8907
      %s8942 = scalar_lea.vmem %s359, 1632
      %8943 = vst.msk [vmem:[%s8942] sm:$0xff] %vm3343, %v8908
      %8944 = vst.msk [vmem:[%s8942 + $0x8] sm:$0xff] %vm3343, %v8909
      %8945 = vst.msk [vmem:[%s8942 + $0x10] sm:$0xff] %vm3343, %v8910
      %8946 = vst.msk [vmem:[%s8942 + $0x18] sm:$0xff] %vm3343, %v8911
      %8947 = vst.msk [vmem:[%s8942 + $0x20] sm:$0xff] %vm3343, %v8912
      %8948 = vst.msk [vmem:[%s8942 + $0x28] sm:$0xff] %vm3343, %v8913
      %8949 = vst.msk [vmem:[%s8942 + $0x30] sm:$0xff] %vm3343, %v8914
      %8950 = vst.msk [vmem:[%s8942 + $0x38] sm:$0xff] %vm3343, %v8915
      %8951 = vst.msk [vmem:[%s8942 + $0x40] sm:$0xff] %vm3343, %v8916
      %8952 = vst.msk [vmem:[%s8942 + $0x48] sm:$0xff] %vm3343, %v8917
      %8953 = vst.msk [vmem:[%s8942 + $0x50] sm:$0xff] %vm3343, %v8918
      %8954 = vst.msk [vmem:[%s8942 + $0x58] sm:$0xff] %vm3343, %v8919
      %8955 = vst.msk [vmem:[%s8942 + $0x60] sm:$0xff] %vm3343, %v8920
      %8956 = vst.msk [vmem:[%s8942 + $0x68] sm:$0xff] %vm3343, %v8921
      %8957 = vst.msk [vmem:[%s8942 + $0x70] sm:$0xff] %vm3343, %v8922
      %8958 = vst.msk [vmem:[%s8942 + $0x78] sm:$0xff] %vm3343, %v8923
      %8959 = vst.msk [vmem:[%s8942 + $0x80] sm:$0xff] %vm3343, %v8924
      %8960 = vst.msk [vmem:[%s8942 + $0x88] sm:$0xff] %vm3343, %v8925
      %8961 = vst.msk [vmem:[%s8942 + $0x90] sm:$0xff] %vm3343, %v8926
      %8962 = vst.msk [vmem:[%s8942 + $0x98] sm:$0xff] %vm3343, %v8927
      %8963 = vst.msk [vmem:[%s8942 + $0xa0] sm:$0xff] %vm3343, %v8928
      %8964 = vst.msk [vmem:[%s8942 + $0xa8] sm:$0xff] %vm3343, %v8929
      %8965 = vst.msk [vmem:[%s8942 + $0xb0] sm:$0xff] %vm3343, %v8930
      %8966 = vst.msk [vmem:[%s8942 + $0xb8] sm:$0xff] %vm3343, %v8931
      %8967 = vst.msk [vmem:[%s8942 + $0xc0] sm:$0xff] %vm3343, %v8932
      %8968 = vst.msk [vmem:[%s8942 + $0xc8] sm:$0xff] %vm3343, %v8933
      %8969 = vst.msk [vmem:[%s8942 + $0xd0] sm:$0xff] %vm3343, %v8934
      %8970 = vst.msk [vmem:[%s8942 + $0xd8] sm:$0xff] %vm3343, %v8935
      %8971 = vst.msk [vmem:[%s8942 + $0xe0] sm:$0xff] %vm3343, %v8936
      %8972 = vst.msk [vmem:[%s8942 + $0xe8] sm:$0xff] %vm3343, %v8937
      %8973 = vst.msk [vmem:[%s8942 + $0xf0] sm:$0xff] %vm3343, %v8938
      %8974 = vst.msk [vmem:[%s8942 + $0xf8] sm:$0xff] %vm3343, %v8939
      %8975 = vst.msk [vmem:[%s8942 + $0x100] sm:$0xff] %vm3343, %v8940
      %8976 = vst.msk [vmem:[%s8942 + $0x108] sm:$0xff] %vm3343, %v8941
      %v8977 = vld [vmem:[#allocation3 + $0x8] sm:$0xe]
      %v8978 = vld [vmem:[#allocation3 + $0xc] sm:$0xf]
      %v8979 = vld [vmem:[#allocation3 + $0x10] sm:$0xf]
      %v8980 = vld [vmem:[#allocation3 + $0x14] sm:$0xf]
      %v8981 = vld [vmem:[#allocation3 + $0x18] sm:$0xf]
      %v8982 = vld [vmem:[#allocation3 + $0x1c] sm:$0xf]
      %v8983 = vld [vmem:[#allocation3 + $0x20] sm:$0xf]
      %v8984 = vld [vmem:[#allocation3 + $0x24] sm:$0xf]
      %v8985 = vld [vmem:[#allocation3 + $0x28] sm:$0xf]
      %v8986 = vld [vmem:[#allocation3 + $0x2c] sm:$0xf]
      %v8987 = vld [vmem:[#allocation3 + $0x30] sm:$0xf]
      %v8988 = vld [vmem:[#allocation3 + $0x34] sm:$0xf]
      %v8989 = vld [vmem:[#allocation3 + $0x38] sm:$0xf]
      %v8990 = vld [vmem:[#allocation3 + $0x3c] sm:$0xf]
      %v8991 = vld [vmem:[#allocation3 + $0x40] sm:$0xf]
      %v8992 = vld [vmem:[#allocation3 + $0x44] sm:$0xf]
      %v8993 = vld [vmem:[#allocation3 + $0x48] sm:$0xf]
      %v8994 = vld [vmem:[#allocation3 + $0x4c] sm:$0xf]
      %v8995 = vld [vmem:[#allocation3 + $0x50] sm:$0xf]
      %v8996 = vld [vmem:[#allocation3 + $0x54] sm:$0xf]
      %v8997 = vld [vmem:[#allocation3 + $0x58] sm:$0xf]
      %v8998 = vld [vmem:[#allocation3 + $0x5c] sm:$0xf]
      %v8999 = vld [vmem:[#allocation3 + $0x60] sm:$0xf]
      %v9000 = vld [vmem:[#allocation3 + $0x64] sm:$0xf]
      %v9001 = vld [vmem:[#allocation3 + $0x68] sm:$0xf]
      %v9002 = vld [vmem:[#allocation3 + $0x6c] sm:$0xf]
      %v9003 = vld [vmem:[#allocation3 + $0x70] sm:$0xf]
      %v9004 = vld [vmem:[#allocation3 + $0x74] sm:$0xf]
      %v9005 = vld [vmem:[#allocation3 + $0x78] sm:$0xf]
      %v9006 = vld [vmem:[#allocation3 + $0x7c] sm:$0xf]
      %v9007 = vld [vmem:[#allocation3 + $0x80] sm:$0xf]
      %v9008 = vld [vmem:[#allocation3 + $0x84] sm:$0xf]
      %v9009 = vld [vmem:[#allocation3 + $0x88] sm:$0xf]
      %v9010 = vld [vmem:[#allocation3 + $0x8c] sm:$0xf]
      %v9011 = vld [vmem:[#allocation3 + $0x90] sm:$0x1]
      %s9012 = scalar_lea.vmem %s6, 56
      %v9013 = vld [vmem:[%s9012] sm:$0xf]
      %v9014 = vld [vmem:[%s9012 + $0x4] sm:$0xf]
      %v9050 = vunpack.c.l.b16 %v8977
      %v9051 = vunpack.c.l.b16 %v8978
      %v9052 = vunpack.c.l.b16 %v8979
      %v9053 = vunpack.c.l.b16 %v8980
      %v9054 = vunpack.c.l.b16 %v8981
      %v9055 = vunpack.c.l.b16 %v8982
      %v9056 = vunpack.c.l.b16 %v8983
      %v9057 = vunpack.c.l.b16 %v8984
      %v9058 = vunpack.c.l.b16 %v8985
      %v9059 = vunpack.c.l.b16 %v8986
      %v9060 = vunpack.c.l.b16 %v8987
      %v9061 = vunpack.c.l.b16 %v8988
      %v9062 = vunpack.c.l.b16 %v8989
      %v9063 = vunpack.c.l.b16 %v8990
      %v9064 = vunpack.c.l.b16 %v8991
      %v9065 = vunpack.c.l.b16 %v8992
      %v9066 = vunpack.c.l.b16 %v8993
      %v9067 = vunpack.c.l.b16 %v8994
      %v9068 = vunpack.c.l.b16 %v8995
      %v9069 = vunpack.c.l.b16 %v8996
      %v9070 = vunpack.c.l.b16 %v8997
      %v9071 = vunpack.c.l.b16 %v8998
      %v9072 = vunpack.c.l.b16 %v8999
      %v9073 = vunpack.c.l.b16 %v9000
      %v9074 = vunpack.c.l.b16 %v9001
      %v9075 = vunpack.c.l.b16 %v9002
      %v9076 = vunpack.c.l.b16 %v9003
      %v9077 = vunpack.c.l.b16 %v9004
      %v9078 = vunpack.c.l.b16 %v9005
      %v9079 = vunpack.c.l.b16 %v9006
      %v9080 = vunpack.c.l.b16 %v9007
      %v9081 = vunpack.c.l.b16 %v9008
      %v9082 = vunpack.c.l.b16 %v9009
      %v9083 = vunpack.c.l.b16 %v9010
      %v9084 = vunpack.c.l.b16 %v9011
      %v9085 = vpack.c.b16 %v9051, %v9050
      %v9086 = vpack.c.b16 %v9053, %v9052
      %v9087 = vpack.c.b16 %v9055, %v9054
      %v9088 = vpack.c.b16 %v9057, %v9056
      %v9089 = vpack.c.b16 %v9059, %v9058
      %v9090 = vpack.c.b16 %v9061, %v9060
      %v9091 = vpack.c.b16 %v9063, %v9062
      %v9092 = vpack.c.b16 %v9065, %v9064
      %v9093 = vpack.c.b16 %v9067, %v9066
      %v9094 = vpack.c.b16 %v9069, %v9068
      %v9095 = vpack.c.b16 %v9071, %v9070
      %v9096 = vpack.c.b16 %v9073, %v9072
      %v9097 = vpack.c.b16 %v9075, %v9074
      %v9098 = vpack.c.b16 %v9077, %v9076
      %v9099 = vpack.c.b16 %v9079, %v9078
      %v9100 = vpack.c.b16 %v9081, %v9080
      %v9101 = vpack.c.b16 %v9083, %v9082
      %v9102 = vpack.c.b16 %v9084, %v9084
      %v9103 = vrot.slane %v9085, 1
      %v9104 = vrot.slane %v9086, 1
      %v9105 = vsel %vm6408, %v9103, %v9104
      %v9106 = vrot.slane %v9087, 1
      %v9107 = vsel %vm6408, %v9104, %v9106
      %v9108 = vrot.slane %v9088, 1
      %v9109 = vsel %vm6408, %v9106, %v9108
      %v9110 = vrot.slane %v9089, 1
      %v9111 = vsel %vm6408, %v9108, %v9110
      %v9112 = vrot.slane %v9090, 1
      %v9113 = vsel %vm6408, %v9110, %v9112
      %v9114 = vrot.slane %v9091, 1
      %v9115 = vsel %vm6408, %v9112, %v9114
      %v9116 = vrot.slane %v9092, 1
      %v9117 = vsel %vm6408, %v9114, %v9116
      %v9118 = vrot.slane %v9093, 1
      %v9119 = vsel %vm6408, %v9116, %v9118
      %v9120 = vrot.slane %v9094, 1
      %v9121 = vsel %vm6408, %v9118, %v9120
      %v9122 = vrot.slane %v9095, 1
      %v9123 = vsel %vm6408, %v9120, %v9122
      %v9124 = vrot.slane %v9096, 1
      %v9125 = vsel %vm6408, %v9122, %v9124
      %v9126 = vrot.slane %v9097, 1
      %v9127 = vsel %vm6408, %v9124, %v9126
      %v9128 = vrot.slane %v9098, 1
      %v9129 = vsel %vm6408, %v9126, %v9128
      %v9130 = vrot.slane %v9099, 1
      %v9131 = vsel %vm6408, %v9128, %v9130
      %v9132 = vrot.slane %v9100, 1
      %v9133 = vsel %vm6408, %v9130, %v9132
      %v9134 = vrot.slane %v9101, 1
      %v9135 = vsel %vm6408, %v9132, %v9134
      %v9136 = vrot.slane %v9102, 1
      %v9137 = vsel %vm6408, %v9134, %v9136
      %v9140 = vunpack.c.l.b16 %v9013
      %v9141 = vunpack.c.l.b16 %v9014
      %v9142 = vpack.c.b16 %v9141, %v9140
      %v9145 = vsel %vm2665, %v9105, 0
      %v9148 = vsel %vm2665, %v9107, 0
      %v9151 = vsel %vm2665, %v9109, 0
      %v9154 = vsel %vm2665, %v9111, 0
      %v9157 = vsel %vm2665, %v9113, 0
      %v9160 = vsel %vm2665, %v9115, 0
      %v9163 = vsel %vm2665, %v9117, 0
      %v9166 = vsel %vm2665, %v9119, 0
      %v9169 = vsel %vm2665, %v9121, 0
      %v9172 = vsel %vm2665, %v9123, 0
      %v9175 = vsel %vm2665, %v9125, 0
      %v9178 = vsel %vm2665, %v9127, 0
      %v9181 = vsel %vm2665, %v9129, 0
      %v9184 = vsel %vm2665, %v9131, 0
      %v9187 = vsel %vm2665, %v9133, 0
      %v9190 = vsel %vm2665, %v9135, 0
      %v9193 = vsel %vm2665, %v9137, 0
      %9195 = vmatprep.subr.bf16.mxu0 0
      %9196 = vmatpush1.bf16.msra.mxu0 0
      %9197 = vmatprep.subr.bf16.mxu0 0
      %9198 = vmatpush1.bf16.msra.mxu0 0
      %9199 = vmatprep.subr.bf16.mxu0 0
      %9200 = vmatpush1.bf16.msra.mxu0 0
      %9201 = vmatprep.subr.bf16.mxu0 0
      %9202 = vmatpush1.bf16.msra.mxu0 0
      %9203 = vmatprep.subr.bf16.mxu0 0
      %9204 = vmatpush1.bf16.msra.mxu0 0
      %9205 = vmatprep.subr.bf16.mxu0 0
      %9206 = vmatpush1.bf16.msra.mxu0 0
      %9207 = vmatprep.subr.bf16.mxu0 0
      %9208 = vmatpush1.bf16.msra.mxu0 0
      %9209 = vmatprep.subr.bf16.mxu0 0
      %9210 = vmatpush1.bf16.msra.mxu0 %v9142
      %9211 = vmatprep.subr.bf16.mxu0 0
      %9212 = vmatpush2.bf16.msra.mxu0 0
      %9213 = vmatprep.subr.bf16.mxu0 0
      %9214 = vmatpush2.bf16.msra.mxu0 0
      %9215 = vmatprep.subr.bf16.mxu0 0
      %9216 = vmatpush2.bf16.msra.mxu0 0
      %9217 = vmatprep.subr.bf16.mxu0 0
      %9218 = vmatpush2.bf16.msra.mxu0 0
      %9219 = vmatprep.subr.bf16.mxu0 0
      %9220 = vmatpush2.bf16.msra.mxu0 0
      %9221 = vmatprep.subr.bf16.mxu0 0
      %9222 = vmatpush2.bf16.msra.mxu0 0
      %9223 = vmatprep.subr.bf16.mxu0 0
      %9224 = vmatpush2.bf16.msra.mxu0 0
      %9225 = vmatprep.subr.bf16.mxu0 0
      %9226 = vmatpush2.bf16.msra.mxu0 0
      %9227 = vmatprep.mubr.bf16.mxu0 0
      %9228 = vmatmul.mubr.bf16.gmra.mxu0 %v9145
      %v9229 = vpop.f32.mrf.mxu0
      %v9230 = vadd.f32 %v2572, %v9229
      %v9231 = vpop.f32.mrf.mxu0
      %v9232 = vpop.f32.mrf.mxu0
      %v9233 = vadd.f32 %v2572, %v9232
      %v9234 = vpop.f32.mrf.mxu0
      %9235 = vmatprep.mubr.bf16.mxu0 0
      %9236 = vmatmul.mubr.bf16.gmra.mxu0 %v9148
      %v9237 = vpop.f32.mrf.mxu0
      %v9238 = vadd.f32 %v2572, %v9237
      %v9239 = vpop.f32.mrf.mxu0
      %v9240 = vpop.f32.mrf.mxu0
      %v9241 = vadd.f32 %v2572, %v9240
      %v9242 = vpop.f32.mrf.mxu0
      %9243 = vmatprep.mubr.bf16.mxu0 0
      %9244 = vmatmul.mubr.bf16.gmra.mxu0 %v9151
      %v9245 = vpop.f32.mrf.mxu0
      %v9246 = vadd.f32 %v2572, %v9245
      %v9247 = vpop.f32.mrf.mxu0
      %v9248 = vpop.f32.mrf.mxu0
      %v9249 = vadd.f32 %v2572, %v9248
      %v9250 = vpop.f32.mrf.mxu0
      %9251 = vmatprep.mubr.bf16.mxu0 0
      %9252 = vmatmul.mubr.bf16.gmra.mxu0 %v9154
      %v9253 = vpop.f32.mrf.mxu0
      %v9254 = vadd.f32 %v2572, %v9253
      %v9255 = vpop.f32.mrf.mxu0
      %v9256 = vpop.f32.mrf.mxu0
      %v9257 = vadd.f32 %v2572, %v9256
      %v9258 = vpop.f32.mrf.mxu0
      %9259 = vmatprep.mubr.bf16.mxu0 0
      %9260 = vmatmul.mubr.bf16.gmra.mxu0 %v9157
      %v9261 = vpop.f32.mrf.mxu0
      %v9262 = vadd.f32 %v2572, %v9261
      %v9263 = vpop.f32.mrf.mxu0
      %v9264 = vpop.f32.mrf.mxu0
      %v9265 = vadd.f32 %v2572, %v9264
      %v9266 = vpop.f32.mrf.mxu0
      %9267 = vmatprep.mubr.bf16.mxu0 0
      %9268 = vmatmul.mubr.bf16.gmra.mxu0 %v9160
      %v9269 = vpop.f32.mrf.mxu0
      %v9270 = vadd.f32 %v2572, %v9269
      %v9271 = vpop.f32.mrf.mxu0
      %v9272 = vpop.f32.mrf.mxu0
      %v9273 = vadd.f32 %v2572, %v9272
      %v9274 = vpop.f32.mrf.mxu0
      %9275 = vmatprep.mubr.bf16.mxu0 0
      %9276 = vmatmul.mubr.bf16.gmra.mxu0 %v9163
      %v9277 = vpop.f32.mrf.mxu0
      %v9278 = vadd.f32 %v2572, %v9277
      %v9279 = vpop.f32.mrf.mxu0
      %v9280 = vpop.f32.mrf.mxu0
      %v9281 = vadd.f32 %v2572, %v9280
      %v9282 = vpop.f32.mrf.mxu0
      %9283 = vmatprep.mubr.bf16.mxu0 0
      %9284 = vmatmul.mubr.bf16.gmra.mxu0 %v9166
      %v9285 = vpop.f32.mrf.mxu0
      %v9286 = vadd.f32 %v2572, %v9285
      %v9287 = vpop.f32.mrf.mxu0
      %v9288 = vpop.f32.mrf.mxu0
      %v9289 = vadd.f32 %v2572, %v9288
      %v9290 = vpop.f32.mrf.mxu0
      %9291 = vmatprep.mubr.bf16.mxu0 0
      %9292 = vmatmul.mubr.bf16.gmra.mxu0 %v9169
      %v9293 = vpop.f32.mrf.mxu0
      %v9294 = vadd.f32 %v2572, %v9293
      %v9295 = vpop.f32.mrf.mxu0
      %v9296 = vpop.f32.mrf.mxu0
      %v9297 = vadd.f32 %v2572, %v9296
      %v9298 = vpop.f32.mrf.mxu0
      %9299 = vmatprep.mubr.bf16.mxu0 0
      %9300 = vmatmul.mubr.bf16.gmra.mxu0 %v9172
      %v9301 = vpop.f32.mrf.mxu0
      %v9302 = vadd.f32 %v2572, %v9301
      %v9303 = vpop.f32.mrf.mxu0
      %v9304 = vpop.f32.mrf.mxu0
      %v9305 = vadd.f32 %v2572, %v9304
      %v9306 = vpop.f32.mrf.mxu0
      %9307 = vmatprep.mubr.bf16.mxu0 0
      %9308 = vmatmul.mubr.bf16.gmra.mxu0 %v9175
      %v9309 = vpop.f32.mrf.mxu0
      %v9310 = vadd.f32 %v2572, %v9309
      %v9311 = vpop.f32.mrf.mxu0
      %v9312 = vpop.f32.mrf.mxu0
      %v9313 = vadd.f32 %v2572, %v9312
      %v9314 = vpop.f32.mrf.mxu0
      %9315 = vmatprep.mubr.bf16.mxu0 0
      %9316 = vmatmul.mubr.bf16.gmra.mxu0 %v9178
      %v9317 = vpop.f32.mrf.mxu0
      %v9318 = vadd.f32 %v2572, %v9317
      %v9319 = vpop.f32.mrf.mxu0
      %v9320 = vpop.f32.mrf.mxu0
      %v9321 = vadd.f32 %v2572, %v9320
      %v9322 = vpop.f32.mrf.mxu0
      %9323 = vmatprep.mubr.bf16.mxu0 0
      %9324 = vmatmul.mubr.bf16.gmra.mxu0 %v9181
      %v9325 = vpop.f32.mrf.mxu0
      %v9326 = vadd.f32 %v2572, %v9325
      %v9327 = vpop.f32.mrf.mxu0
      %v9328 = vpop.f32.mrf.mxu0
      %v9329 = vadd.f32 %v2572, %v9328
      %v9330 = vpop.f32.mrf.mxu0
      %9331 = vmatprep.mubr.bf16.mxu0 0
      %9332 = vmatmul.mubr.bf16.gmra.mxu0 %v9184
      %v9333 = vpop.f32.mrf.mxu0
      %v9334 = vadd.f32 %v2572, %v9333
      %v9335 = vpop.f32.mrf.mxu0
      %v9336 = vpop.f32.mrf.mxu0
      %v9337 = vadd.f32 %v2572, %v9336
      %v9338 = vpop.f32.mrf.mxu0
      %9339 = vmatprep.mubr.bf16.mxu0 0
      %9340 = vmatmul.mubr.bf16.gmra.mxu0 %v9187
      %v9341 = vpop.f32.mrf.mxu0
      %v9342 = vadd.f32 %v2572, %v9341
      %v9343 = vpop.f32.mrf.mxu0
      %v9344 = vpop.f32.mrf.mxu0
      %v9345 = vadd.f32 %v2572, %v9344
      %v9346 = vpop.f32.mrf.mxu0
      %9347 = vmatprep.mubr.bf16.mxu0 0
      %9348 = vmatmul.mubr.bf16.gmra.mxu0 %v9190
      %v9349 = vpop.f32.mrf.mxu0
      %v9350 = vadd.f32 %v2572, %v9349
      %v9351 = vpop.f32.mrf.mxu0
      %v9352 = vpop.f32.mrf.mxu0
      %v9353 = vadd.f32 %v2572, %v9352
      %v9354 = vpop.f32.mrf.mxu0
      %9355 = vmatprep.mubr.bf16.mxu0 0
      %9356 = vmatmul.mubr.bf16.gmra.mxu0 %v9193
      %v9357 = vpop.f32.mrf.mxu0
      %v9358 = vadd.f32 %v2572, %v9357
      %v9359 = vpop.f32.mrf.mxu0
      %v9360 = vpop.f32.mrf.mxu0
      %v9361 = vadd.f32 %v2572, %v9360
      %v9362 = vpop.f32.mrf.mxu0
      %9363 = vdwg.mxu0
      %vm9364 = vcmp.gt.f32.partialorder %v9230, 0.0
      %vm9365 = vcmp.gt.f32.partialorder %v9233, 0.0
      %vm9366 = vcmp.gt.f32.partialorder %v9238, 0.0
      %vm9367 = vcmp.gt.f32.partialorder %v9241, 0.0
      %vm9368 = vcmp.gt.f32.partialorder %v9246, 0.0
      %vm9369 = vcmp.gt.f32.partialorder %v9249, 0.0
      %vm9370 = vcmp.gt.f32.partialorder %v9254, 0.0
      %vm9371 = vcmp.gt.f32.partialorder %v9257, 0.0
      %vm9372 = vcmp.gt.f32.partialorder %v9262, 0.0
      %vm9373 = vcmp.gt.f32.partialorder %v9265, 0.0
      %vm9374 = vcmp.gt.f32.partialorder %v9270, 0.0
      %vm9375 = vcmp.gt.f32.partialorder %v9273, 0.0
      %vm9376 = vcmp.gt.f32.partialorder %v9278, 0.0
      %vm9377 = vcmp.gt.f32.partialorder %v9281, 0.0
      %vm9378 = vcmp.gt.f32.partialorder %v9286, 0.0
      %vm9379 = vcmp.gt.f32.partialorder %v9289, 0.0
      %vm9380 = vcmp.gt.f32.partialorder %v9294, 0.0
      %vm9381 = vcmp.gt.f32.partialorder %v9297, 0.0
      %vm9382 = vcmp.gt.f32.partialorder %v9302, 0.0
      %vm9383 = vcmp.gt.f32.partialorder %v9305, 0.0
      %vm9384 = vcmp.gt.f32.partialorder %v9310, 0.0
      %vm9385 = vcmp.gt.f32.partialorder %v9313, 0.0
      %vm9386 = vcmp.gt.f32.partialorder %v9318, 0.0
      %vm9387 = vcmp.gt.f32.partialorder %v9321, 0.0
      %vm9388 = vcmp.gt.f32.partialorder %v9326, 0.0
      %vm9389 = vcmp.gt.f32.partialorder %v9329, 0.0
      %vm9390 = vcmp.gt.f32.partialorder %v9334, 0.0
      %vm9391 = vcmp.gt.f32.partialorder %v9337, 0.0
      %vm9392 = vcmp.gt.f32.partialorder %v9342, 0.0
      %vm9393 = vcmp.gt.f32.partialorder %v9345, 0.0
      %vm9394 = vcmp.gt.f32.partialorder %v9350, 0.0
      %vm9395 = vcmp.gt.f32.partialorder %v9353, 0.0
      %vm9396 = vcmp.gt.f32.partialorder %v9358, 0.0
      %vm9397 = vcmp.gt.f32.partialorder %v9361, 0.0
      %v9398 = vmul.f32 %v9230, -0.76766074
      %v9399 = vmul.f32 %v9233, -0.76766074
      %v9400 = vmul.f32 %v9238, -0.76766074
      %v9401 = vmul.f32 %v9241, -0.76766074
      %v9402 = vmul.f32 %v9246, -0.76766074
      %v9403 = vmul.f32 %v9249, -0.76766074
      %v9404 = vmul.f32 %v9254, -0.76766074
      %v9405 = vmul.f32 %v9257, -0.76766074
      %v9406 = vmul.f32 %v9262, -0.76766074
      %v9407 = vmul.f32 %v9265, -0.76766074
      %v9408 = vmul.f32 %v9270, -0.76766074
      %v9409 = vmul.f32 %v9273, -0.76766074
      %v9410 = vmul.f32 %v9278, -0.76766074
      %v9411 = vmul.f32 %v9281, -0.76766074
      %v9412 = vmul.f32 %v9286, -0.76766074
      %v9413 = vmul.f32 %v9289, -0.76766074
      %v9414 = vmul.f32 %v9294, -0.76766074
      %v9415 = vmul.f32 %v9297, -0.76766074
      %v9416 = vmul.f32 %v9302, -0.76766074
      %v9417 = vmul.f32 %v9305, -0.76766074
      %v9418 = vmul.f32 %v9310, -0.76766074
      %v9419 = vmul.f32 %v9313, -0.76766074
      %v9420 = vmul.f32 %v9318, -0.76766074
      %v9421 = vmul.f32 %v9321, -0.76766074
      %v9422 = vmul.f32 %v9326, -0.76766074
      %v9423 = vmul.f32 %v9329, -0.76766074
      %v9424 = vmul.f32 %v9334, -0.76766074
      %v9425 = vmul.f32 %v9337, -0.76766074
      %v9426 = vmul.f32 %v9342, -0.76766074
      %v9427 = vmul.f32 %v9345, -0.76766074
      %v9428 = vmul.f32 %v9350, -0.76766074
      %v9429 = vmul.f32 %v9353, -0.76766074
      %v9430 = vmul.f32 %v9358, -0.76766074
      %v9431 = vmul.f32 %v9361, -0.76766074
      %v9432 = vsel %vm9364, %v9230, %v9398
      %v9433 = vsel %vm9365, %v9233, %v9399
      %v9434 = vsel %vm9366, %v9238, %v9400
      %v9435 = vsel %vm9367, %v9241, %v9401
      %v9436 = vsel %vm9368, %v9246, %v9402
      %v9437 = vsel %vm9369, %v9249, %v9403
      %v9438 = vsel %vm9370, %v9254, %v9404
      %v9439 = vsel %vm9371, %v9257, %v9405
      %v9440 = vsel %vm9372, %v9262, %v9406
      %v9441 = vsel %vm9373, %v9265, %v9407
      %v9442 = vsel %vm9374, %v9270, %v9408
      %v9443 = vsel %vm9375, %v9273, %v9409
      %v9444 = vsel %vm9376, %v9278, %v9410
      %v9445 = vsel %vm9377, %v9281, %v9411
      %v9446 = vsel %vm9378, %v9286, %v9412
      %v9447 = vsel %vm9379, %v9289, %v9413
      %v9448 = vsel %vm9380, %v9294, %v9414
      %v9449 = vsel %vm9381, %v9297, %v9415
      %v9450 = vsel %vm9382, %v9302, %v9416
      %v9451 = vsel %vm9383, %v9305, %v9417
      %v9452 = vsel %vm9384, %v9310, %v9418
      %v9453 = vsel %vm9385, %v9313, %v9419
      %v9454 = vsel %vm9386, %v9318, %v9420
      %v9455 = vsel %vm9387, %v9321, %v9421
      %v9456 = vsel %vm9388, %v9326, %v9422
      %v9457 = vsel %vm9389, %v9329, %v9423
      %v9458 = vsel %vm9390, %v9334, %v9424
      %v9459 = vsel %vm9391, %v9337, %v9425
      %v9460 = vsel %vm9392, %v9342, %v9426
      %v9461 = vsel %vm9393, %v9345, %v9427
      %v9462 = vsel %vm9394, %v9350, %v9428
      %v9463 = vsel %vm9395, %v9353, %v9429
      %v9464 = vsel %vm9396, %v9358, %v9430
      %v9465 = vsel %vm9397, %v9361, %v9431
      %v9466 = vpack.c.bf16 %v9433, %v9432
      %v9467 = vpack.c.bf16 %v9435, %v9434
      %v9468 = vpack.c.bf16 %v9437, %v9436
      %v9469 = vpack.c.bf16 %v9439, %v9438
      %v9470 = vpack.c.bf16 %v9441, %v9440
      %v9471 = vpack.c.bf16 %v9443, %v9442
      %v9472 = vpack.c.bf16 %v9445, %v9444
      %v9473 = vpack.c.bf16 %v9447, %v9446
      %v9474 = vpack.c.bf16 %v9449, %v9448
      %v9475 = vpack.c.bf16 %v9451, %v9450
      %v9476 = vpack.c.bf16 %v9453, %v9452
      %v9477 = vpack.c.bf16 %v9455, %v9454
      %v9478 = vpack.c.bf16 %v9457, %v9456
      %v9479 = vpack.c.bf16 %v9459, %v9458
      %v9480 = vpack.c.bf16 %v9461, %v9460
      %v9481 = vpack.c.bf16 %v9463, %v9462
      %v9482 = vpack.c.bf16 %v9465, %v9464
      %v9484 = vsel %vm3016, %v9466, 0
      %v9487 = vsel %vm3016, %v9467, 0
      %v9490 = vsel %vm3016, %v9468, 0
      %v9493 = vsel %vm3016, %v9469, 0
      %v9496 = vsel %vm3016, %v9470, 0
      %v9499 = vsel %vm3016, %v9471, 0
      %v9502 = vsel %vm3016, %v9472, 0
      %v9505 = vsel %vm3016, %v9473, 0
      %v9508 = vsel %vm3016, %v9474, 0
      %v9511 = vsel %vm3016, %v9475, 0
      %v9514 = vsel %vm3016, %v9476, 0
      %v9517 = vsel %vm3016, %v9477, 0
      %v9520 = vsel %vm3016, %v9478, 0
      %v9523 = vsel %vm3016, %v9479, 0
      %v9526 = vsel %vm3016, %v9480, 0
      %v9529 = vsel %vm3016, %v9481, 0
      %v9532 = vsel %vm3016, %v9482, 0
      %9534 = vmatprep.subr.bf16.mxu0 0
      %9535 = vmatpush1.bf16.msra.mxu0 0
      %9536 = vmatprep.subr.bf16.mxu0 0
      %9537 = vmatpush1.bf16.msra.mxu0 0
      %9538 = vmatprep.subr.bf16.mxu0 0
      %9539 = vmatpush1.bf16.msra.mxu0 0
      %9540 = vmatprep.subr.bf16.mxu0 0
      %9541 = vmatpush1.bf16.msra.mxu0 0
      %9542 = vmatprep.subr.bf16.mxu0 0
      %9543 = vmatpush1.bf16.msra.mxu0 0
      %9544 = vmatprep.subr.bf16.mxu0 0
      %9545 = vmatpush1.bf16.msra.mxu0 0
      %9546 = vmatprep.subr.bf16.mxu0 0
      %9547 = vmatpush1.bf16.msra.mxu0 0
      %9548 = vmatprep.subr.bf16.mxu0 0
      %9549 = vmatpush1.bf16.msra.mxu0 %v3070
      %9550 = vmatprep.subr.bf16.mxu0 0
      %9551 = vmatpush2.bf16.msra.mxu0 0
      %9552 = vmatprep.subr.bf16.mxu0 0
      %9553 = vmatpush2.bf16.msra.mxu0 0
      %9554 = vmatprep.subr.bf16.mxu0 0
      %9555 = vmatpush2.bf16.msra.mxu0 0
      %9556 = vmatprep.subr.bf16.mxu0 0
      %9557 = vmatpush2.bf16.msra.mxu0 0
      %9558 = vmatprep.subr.bf16.mxu0 0
      %9559 = vmatpush2.bf16.msra.mxu0 0
      %9560 = vmatprep.subr.bf16.mxu0 0
      %9561 = vmatpush2.bf16.msra.mxu0 0
      %9562 = vmatprep.subr.bf16.mxu0 0
      %9563 = vmatpush2.bf16.msra.mxu0 0
      %9564 = vmatprep.subr.bf16.mxu0 0
      %9565 = vmatpush2.bf16.msra.mxu0 0
      %9566 = vmatprep.mubr.bf16.mxu0 0
      %9567 = vmatmul.mubr.bf16.gmra.mxu0 %v9484
      %v9568 = vpop.f32.mrf.mxu0
      %v9569 = vadd.f32 %v3009, %v9568
      %v9570 = vpop.f32.mrf.mxu0
      %v9571 = vpop.f32.mrf.mxu0
      %v9572 = vadd.f32 %v3009, %v9571
      %v9573 = vpop.f32.mrf.mxu0
      %9574 = vmatprep.mubr.bf16.mxu0 0
      %9575 = vmatmul.mubr.bf16.gmra.mxu0 %v9487
      %v9576 = vpop.f32.mrf.mxu0
      %v9577 = vadd.f32 %v3009, %v9576
      %v9578 = vpop.f32.mrf.mxu0
      %v9579 = vpop.f32.mrf.mxu0
      %v9580 = vadd.f32 %v3009, %v9579
      %v9581 = vpop.f32.mrf.mxu0
      %9582 = vmatprep.mubr.bf16.mxu0 0
      %9583 = vmatmul.mubr.bf16.gmra.mxu0 %v9490
      %v9584 = vpop.f32.mrf.mxu0
      %v9585 = vadd.f32 %v3009, %v9584
      %v9586 = vpop.f32.mrf.mxu0
      %v9587 = vpop.f32.mrf.mxu0
      %v9588 = vadd.f32 %v3009, %v9587
      %v9589 = vpop.f32.mrf.mxu0
      %9590 = vmatprep.mubr.bf16.mxu0 0
      %9591 = vmatmul.mubr.bf16.gmra.mxu0 %v9493
      %v9592 = vpop.f32.mrf.mxu0
      %v9593 = vadd.f32 %v3009, %v9592
      %v9594 = vpop.f32.mrf.mxu0
      %v9595 = vpop.f32.mrf.mxu0
      %v9596 = vadd.f32 %v3009, %v9595
      %v9597 = vpop.f32.mrf.mxu0
      %9598 = vmatprep.mubr.bf16.mxu0 0
      %9599 = vmatmul.mubr.bf16.gmra.mxu0 %v9496
      %v9600 = vpop.f32.mrf.mxu0
      %v9601 = vadd.f32 %v3009, %v9600
      %v9602 = vpop.f32.mrf.mxu0
      %v9603 = vpop.f32.mrf.mxu0
      %v9604 = vadd.f32 %v3009, %v9603
      %v9605 = vpop.f32.mrf.mxu0
      %9606 = vmatprep.mubr.bf16.mxu0 0
      %9607 = vmatmul.mubr.bf16.gmra.mxu0 %v9499
      %v9608 = vpop.f32.mrf.mxu0
      %v9609 = vadd.f32 %v3009, %v9608
      %v9610 = vpop.f32.mrf.mxu0
      %v9611 = vpop.f32.mrf.mxu0
      %v9612 = vadd.f32 %v3009, %v9611
      %v9613 = vpop.f32.mrf.mxu0
      %9614 = vmatprep.mubr.bf16.mxu0 0
      %9615 = vmatmul.mubr.bf16.gmra.mxu0 %v9502
      %v9616 = vpop.f32.mrf.mxu0
      %v9617 = vadd.f32 %v3009, %v9616
      %v9618 = vpop.f32.mrf.mxu0
      %v9619 = vpop.f32.mrf.mxu0
      %v9620 = vadd.f32 %v3009, %v9619
      %v9621 = vpop.f32.mrf.mxu0
      %9622 = vmatprep.mubr.bf16.mxu0 0
      %9623 = vmatmul.mubr.bf16.gmra.mxu0 %v9505
      %v9624 = vpop.f32.mrf.mxu0
      %v9625 = vadd.f32 %v3009, %v9624
      %v9626 = vpop.f32.mrf.mxu0
      %v9627 = vpop.f32.mrf.mxu0
      %v9628 = vadd.f32 %v3009, %v9627
      %v9629 = vpop.f32.mrf.mxu0
      %9630 = vmatprep.mubr.bf16.mxu0 0
      %9631 = vmatmul.mubr.bf16.gmra.mxu0 %v9508
      %v9632 = vpop.f32.mrf.mxu0
      %v9633 = vadd.f32 %v3009, %v9632
      %v9634 = vpop.f32.mrf.mxu0
      %v9635 = vpop.f32.mrf.mxu0
      %v9636 = vadd.f32 %v3009, %v9635
      %v9637 = vpop.f32.mrf.mxu0
      %9638 = vmatprep.mubr.bf16.mxu0 0
      %9639 = vmatmul.mubr.bf16.gmra.mxu0 %v9511
      %v9640 = vpop.f32.mrf.mxu0
      %v9641 = vadd.f32 %v3009, %v9640
      %v9642 = vpop.f32.mrf.mxu0
      %v9643 = vpop.f32.mrf.mxu0
      %v9644 = vadd.f32 %v3009, %v9643
      %v9645 = vpop.f32.mrf.mxu0
      %9646 = vmatprep.mubr.bf16.mxu0 0
      %9647 = vmatmul.mubr.bf16.gmra.mxu0 %v9514
      %v9648 = vpop.f32.mrf.mxu0
      %v9649 = vadd.f32 %v3009, %v9648
      %v9650 = vpop.f32.mrf.mxu0
      %v9651 = vpop.f32.mrf.mxu0
      %v9652 = vadd.f32 %v3009, %v9651
      %v9653 = vpop.f32.mrf.mxu0
      %9654 = vmatprep.mubr.bf16.mxu0 0
      %9655 = vmatmul.mubr.bf16.gmra.mxu0 %v9517
      %v9656 = vpop.f32.mrf.mxu0
      %v9657 = vadd.f32 %v3009, %v9656
      %v9658 = vpop.f32.mrf.mxu0
      %v9659 = vpop.f32.mrf.mxu0
      %v9660 = vadd.f32 %v3009, %v9659
      %v9661 = vpop.f32.mrf.mxu0
      %9662 = vmatprep.mubr.bf16.mxu0 0
      %9663 = vmatmul.mubr.bf16.gmra.mxu0 %v9520
      %v9664 = vpop.f32.mrf.mxu0
      %v9665 = vadd.f32 %v3009, %v9664
      %v9666 = vpop.f32.mrf.mxu0
      %v9667 = vpop.f32.mrf.mxu0
      %v9668 = vadd.f32 %v3009, %v9667
      %v9669 = vpop.f32.mrf.mxu0
      %9670 = vmatprep.mubr.bf16.mxu0 0
      %9671 = vmatmul.mubr.bf16.gmra.mxu0 %v9523
      %v9672 = vpop.f32.mrf.mxu0
      %v9673 = vadd.f32 %v3009, %v9672
      %v9674 = vpop.f32.mrf.mxu0
      %v9675 = vpop.f32.mrf.mxu0
      %v9676 = vadd.f32 %v3009, %v9675
      %v9677 = vpop.f32.mrf.mxu0
      %9678 = vmatprep.mubr.bf16.mxu0 0
      %9679 = vmatmul.mubr.bf16.gmra.mxu0 %v9526
      %v9680 = vpop.f32.mrf.mxu0
      %v9681 = vadd.f32 %v3009, %v9680
      %v9682 = vpop.f32.mrf.mxu0
      %v9683 = vpop.f32.mrf.mxu0
      %v9684 = vadd.f32 %v3009, %v9683
      %v9685 = vpop.f32.mrf.mxu0
      %9686 = vmatprep.mubr.bf16.mxu0 0
      %9687 = vmatmul.mubr.bf16.gmra.mxu0 %v9529
      %v9688 = vpop.f32.mrf.mxu0
      %v9689 = vadd.f32 %v3009, %v9688
      %v9690 = vpop.f32.mrf.mxu0
      %v9691 = vpop.f32.mrf.mxu0
      %v9692 = vadd.f32 %v3009, %v9691
      %v9693 = vpop.f32.mrf.mxu0
      %9694 = vmatprep.mubr.bf16.mxu0 0
      %9695 = vmatmul.mubr.bf16.gmra.mxu0 %v9532
      %v9696 = vpop.f32.mrf.mxu0
      %v9697 = vadd.f32 %v3009, %v9696
      %v9698 = vpop.f32.mrf.mxu0
      %v9699 = vpop.f32.mrf.mxu0
      %v9700 = vadd.f32 %v3009, %v9699
      %v9701 = vpop.f32.mrf.mxu0
      %9702 = vdwg.mxu0
      %vm9703 = vcmp.gt.f32.partialorder %v9569, 0.0
      %vm9704 = vcmp.gt.f32.partialorder %v9572, 0.0
      %vm9705 = vcmp.gt.f32.partialorder %v9577, 0.0
      %vm9706 = vcmp.gt.f32.partialorder %v9580, 0.0
      %vm9707 = vcmp.gt.f32.partialorder %v9585, 0.0
      %vm9708 = vcmp.gt.f32.partialorder %v9588, 0.0
      %vm9709 = vcmp.gt.f32.partialorder %v9593, 0.0
      %vm9710 = vcmp.gt.f32.partialorder %v9596, 0.0
      %vm9711 = vcmp.gt.f32.partialorder %v9601, 0.0
      %vm9712 = vcmp.gt.f32.partialorder %v9604, 0.0
      %vm9713 = vcmp.gt.f32.partialorder %v9609, 0.0
      %vm9714 = vcmp.gt.f32.partialorder %v9612, 0.0
      %vm9715 = vcmp.gt.f32.partialorder %v9617, 0.0
      %vm9716 = vcmp.gt.f32.partialorder %v9620, 0.0
      %vm9717 = vcmp.gt.f32.partialorder %v9625, 0.0
      %vm9718 = vcmp.gt.f32.partialorder %v9628, 0.0
      %vm9719 = vcmp.gt.f32.partialorder %v9633, 0.0
      %vm9720 = vcmp.gt.f32.partialorder %v9636, 0.0
      %vm9721 = vcmp.gt.f32.partialorder %v9641, 0.0
      %vm9722 = vcmp.gt.f32.partialorder %v9644, 0.0
      %vm9723 = vcmp.gt.f32.partialorder %v9649, 0.0
      %vm9724 = vcmp.gt.f32.partialorder %v9652, 0.0
      %vm9725 = vcmp.gt.f32.partialorder %v9657, 0.0
      %vm9726 = vcmp.gt.f32.partialorder %v9660, 0.0
      %vm9727 = vcmp.gt.f32.partialorder %v9665, 0.0
      %vm9728 = vcmp.gt.f32.partialorder %v9668, 0.0
      %vm9729 = vcmp.gt.f32.partialorder %v9673, 0.0
      %vm9730 = vcmp.gt.f32.partialorder %v9676, 0.0
      %vm9731 = vcmp.gt.f32.partialorder %v9681, 0.0
      %vm9732 = vcmp.gt.f32.partialorder %v9684, 0.0
      %vm9733 = vcmp.gt.f32.partialorder %v9689, 0.0
      %vm9734 = vcmp.gt.f32.partialorder %v9692, 0.0
      %vm9735 = vcmp.gt.f32.partialorder %v9697, 0.0
      %vm9736 = vcmp.gt.f32.partialorder %v9700, 0.0
      %v9737 = vmul.f32 %v9569, -0.76766074
      %v9738 = vmul.f32 %v9572, -0.76766074
      %v9739 = vmul.f32 %v9577, -0.76766074
      %v9740 = vmul.f32 %v9580, -0.76766074
      %v9741 = vmul.f32 %v9585, -0.76766074
      %v9742 = vmul.f32 %v9588, -0.76766074
      %v9743 = vmul.f32 %v9593, -0.76766074
      %v9744 = vmul.f32 %v9596, -0.76766074
      %v9745 = vmul.f32 %v9601, -0.76766074
      %v9746 = vmul.f32 %v9604, -0.76766074
      %v9747 = vmul.f32 %v9609, -0.76766074
      %v9748 = vmul.f32 %v9612, -0.76766074
      %v9749 = vmul.f32 %v9617, -0.76766074
      %v9750 = vmul.f32 %v9620, -0.76766074
      %v9751 = vmul.f32 %v9625, -0.76766074
      %v9752 = vmul.f32 %v9628, -0.76766074
      %v9753 = vmul.f32 %v9633, -0.76766074
      %v9754 = vmul.f32 %v9636, -0.76766074
      %v9755 = vmul.f32 %v9641, -0.76766074
      %v9756 = vmul.f32 %v9644, -0.76766074
      %v9757 = vmul.f32 %v9649, -0.76766074
      %v9758 = vmul.f32 %v9652, -0.76766074
      %v9759 = vmul.f32 %v9657, -0.76766074
      %v9760 = vmul.f32 %v9660, -0.76766074
      %v9761 = vmul.f32 %v9665, -0.76766074
      %v9762 = vmul.f32 %v9668, -0.76766074
      %v9763 = vmul.f32 %v9673, -0.76766074
      %v9764 = vmul.f32 %v9676, -0.76766074
      %v9765 = vmul.f32 %v9681, -0.76766074
      %v9766 = vmul.f32 %v9684, -0.76766074
      %v9767 = vmul.f32 %v9689, -0.76766074
      %v9768 = vmul.f32 %v9692, -0.76766074
      %v9769 = vmul.f32 %v9697, -0.76766074
      %v9770 = vmul.f32 %v9700, -0.76766074
      %v9771 = vsel %vm9703, %v9569, %v9737
      %v9772 = vsel %vm9704, %v9572, %v9738
      %v9773 = vsel %vm9705, %v9577, %v9739
      %v9774 = vsel %vm9706, %v9580, %v9740
      %v9775 = vsel %vm9707, %v9585, %v9741
      %v9776 = vsel %vm9708, %v9588, %v9742
      %v9777 = vsel %vm9709, %v9593, %v9743
      %v9778 = vsel %vm9710, %v9596, %v9744
      %v9779 = vsel %vm9711, %v9601, %v9745
      %v9780 = vsel %vm9712, %v9604, %v9746
      %v9781 = vsel %vm9713, %v9609, %v9747
      %v9782 = vsel %vm9714, %v9612, %v9748
      %v9783 = vsel %vm9715, %v9617, %v9749
      %v9784 = vsel %vm9716, %v9620, %v9750
      %v9785 = vsel %vm9717, %v9625, %v9751
      %v9786 = vsel %vm9718, %v9628, %v9752
      %v9787 = vsel %vm9719, %v9633, %v9753
      %v9788 = vsel %vm9720, %v9636, %v9754
      %v9789 = vsel %vm9721, %v9641, %v9755
      %v9790 = vsel %vm9722, %v9644, %v9756
      %v9791 = vsel %vm9723, %v9649, %v9757
      %v9792 = vsel %vm9724, %v9652, %v9758
      %v9793 = vsel %vm9725, %v9657, %v9759
      %v9794 = vsel %vm9726, %v9660, %v9760
      %v9795 = vsel %vm9727, %v9665, %v9761
      %v9796 = vsel %vm9728, %v9668, %v9762
      %v9797 = vsel %vm9729, %v9673, %v9763
      %v9798 = vsel %vm9730, %v9676, %v9764
      %v9799 = vsel %vm9731, %v9681, %v9765
      %v9800 = vsel %vm9732, %v9684, %v9766
      %v9801 = vsel %vm9733, %v9689, %v9767
      %v9802 = vsel %vm9734, %v9692, %v9768
      %v9803 = vsel %vm9735, %v9697, %v9769
      %v9804 = vsel %vm9736, %v9700, %v9770
      %s9805 = scalar_lea.vmem %s359, 1904
      %9806 = vst.msk [vmem:[%s9805] sm:$0xff] %vm3343, %v9771
      %9807 = vst.msk [vmem:[%s9805 + $0x8] sm:$0xff] %vm3343, %v9772
      %9808 = vst.msk [vmem:[%s9805 + $0x10] sm:$0xff] %vm3343, %v9773
      %9809 = vst.msk [vmem:[%s9805 + $0x18] sm:$0xff] %vm3343, %v9774
      %9810 = vst.msk [vmem:[%s9805 + $0x20] sm:$0xff] %vm3343, %v9775
      %9811 = vst.msk [vmem:[%s9805 + $0x28] sm:$0xff] %vm3343, %v9776
      %9812 = vst.msk [vmem:[%s9805 + $0x30] sm:$0xff] %vm3343, %v9777
      %9813 = vst.msk [vmem:[%s9805 + $0x38] sm:$0xff] %vm3343, %v9778
      %9814 = vst.msk [vmem:[%s9805 + $0x40] sm:$0xff] %vm3343, %v9779
      %9815 = vst.msk [vmem:[%s9805 + $0x48] sm:$0xff] %vm3343, %v9780
      %9816 = vst.msk [vmem:[%s9805 + $0x50] sm:$0xff] %vm3343, %v9781
      %9817 = vst.msk [vmem:[%s9805 + $0x58] sm:$0xff] %vm3343, %v9782
      %9818 = vst.msk [vmem:[%s9805 + $0x60] sm:$0xff] %vm3343, %v9783
      %9819 = vst.msk [vmem:[%s9805 + $0x68] sm:$0xff] %vm3343, %v9784
      %9820 = vst.msk [vmem:[%s9805 + $0x70] sm:$0xff] %vm3343, %v9785
      %9821 = vst.msk [vmem:[%s9805 + $0x78] sm:$0xff] %vm3343, %v9786
      %9822 = vst.msk [vmem:[%s9805 + $0x80] sm:$0xff] %vm3343, %v9787
      %9823 = vst.msk [vmem:[%s9805 + $0x88] sm:$0xff] %vm3343, %v9788
      %9824 = vst.msk [vmem:[%s9805 + $0x90] sm:$0xff] %vm3343, %v9789
      %9825 = vst.msk [vmem:[%s9805 + $0x98] sm:$0xff] %vm3343, %v9790
      %9826 = vst.msk [vmem:[%s9805 + $0xa0] sm:$0xff] %vm3343, %v9791
      %9827 = vst.msk [vmem:[%s9805 + $0xa8] sm:$0xff] %vm3343, %v9792
      %9828 = vst.msk [vmem:[%s9805 + $0xb0] sm:$0xff] %vm3343, %v9793
      %9829 = vst.msk [vmem:[%s9805 + $0xb8] sm:$0xff] %vm3343, %v9794
      %9830 = vst.msk [vmem:[%s9805 + $0xc0] sm:$0xff] %vm3343, %v9795
      %9831 = vst.msk [vmem:[%s9805 + $0xc8] sm:$0xff] %vm3343, %v9796
      %9832 = vst.msk [vmem:[%s9805 + $0xd0] sm:$0xff] %vm3343, %v9797
      %9833 = vst.msk [vmem:[%s9805 + $0xd8] sm:$0xff] %vm3343, %v9798
      %9834 = vst.msk [vmem:[%s9805 + $0xe0] sm:$0xff] %vm3343, %v9799
      %9835 = vst.msk [vmem:[%s9805 + $0xe8] sm:$0xff] %vm3343, %v9800
      %9836 = vst.msk [vmem:[%s9805 + $0xf0] sm:$0xff] %vm3343, %v9801
      %9837 = vst.msk [vmem:[%s9805 + $0xf8] sm:$0xff] %vm3343, %v9802
      %9838 = vst.msk [vmem:[%s9805 + $0x100] sm:$0xff] %vm3343, %v9803
      %9839 = vst.msk [vmem:[%s9805 + $0x108] sm:$0xff] %vm3343, %v9804
      %v9840 = vld [vmem:[#allocation3 + $0x8] sm:$0xe]
      %v9841 = vld [vmem:[#allocation3 + $0xc] sm:$0xf]
      %v9842 = vld [vmem:[#allocation3 + $0x10] sm:$0xf]
      %v9843 = vld [vmem:[#allocation3 + $0x14] sm:$0xf]
      %v9844 = vld [vmem:[#allocation3 + $0x18] sm:$0xf]
      %v9845 = vld [vmem:[#allocation3 + $0x1c] sm:$0xf]
      %v9846 = vld [vmem:[#allocation3 + $0x20] sm:$0xf]
      %v9847 = vld [vmem:[#allocation3 + $0x24] sm:$0xf]
      %v9848 = vld [vmem:[#allocation3 + $0x28] sm:$0xf]
      %v9849 = vld [vmem:[#allocation3 + $0x2c] sm:$0xf]
      %v9850 = vld [vmem:[#allocation3 + $0x30] sm:$0xf]
      %v9851 = vld [vmem:[#allocation3 + $0x34] sm:$0xf]
      %v9852 = vld [vmem:[#allocation3 + $0x38] sm:$0xf]
      %v9853 = vld [vmem:[#allocation3 + $0x3c] sm:$0xf]
      %v9854 = vld [vmem:[#allocation3 + $0x40] sm:$0xf]
      %v9855 = vld [vmem:[#allocation3 + $0x44] sm:$0xf]
      %v9856 = vld [vmem:[#allocation3 + $0x48] sm:$0xf]
      %v9857 = vld [vmem:[#allocation3 + $0x4c] sm:$0xf]
      %v9858 = vld [vmem:[#allocation3 + $0x50] sm:$0xf]
      %v9859 = vld [vmem:[#allocation3 + $0x54] sm:$0xf]
      %v9860 = vld [vmem:[#allocation3 + $0x58] sm:$0xf]
      %v9861 = vld [vmem:[#allocation3 + $0x5c] sm:$0xf]
      %v9862 = vld [vmem:[#allocation3 + $0x60] sm:$0xf]
      %v9863 = vld [vmem:[#allocation3 + $0x64] sm:$0xf]
      %v9864 = vld [vmem:[#allocation3 + $0x68] sm:$0xf]
      %v9865 = vld [vmem:[#allocation3 + $0x6c] sm:$0xf]
      %v9866 = vld [vmem:[#allocation3 + $0x70] sm:$0xf]
      %v9867 = vld [vmem:[#allocation3 + $0x74] sm:$0xf]
      %v9868 = vld [vmem:[#allocation3 + $0x78] sm:$0xf]
      %v9869 = vld [vmem:[#allocation3 + $0x7c] sm:$0xf]
      %v9870 = vld [vmem:[#allocation3 + $0x80] sm:$0xf]
      %v9871 = vld [vmem:[#allocation3 + $0x84] sm:$0xf]
      %v9872 = vld [vmem:[#allocation3 + $0x88] sm:$0xf]
      %v9873 = vld [vmem:[#allocation3 + $0x8c] sm:$0xf]
      %v9874 = vld [vmem:[#allocation3 + $0x90] sm:$0x1]
      %s9875 = scalar_lea.vmem %s6, 64
      %v9876 = vld [vmem:[%s9875] sm:$0xf]
      %v9877 = vld [vmem:[%s9875 + $0x4] sm:$0xf]
      %v9913 = vunpack.c.l.b16 %v9840
      %v9914 = vunpack.c.l.b16 %v9841
      %v9915 = vunpack.c.l.b16 %v9842
      %v9916 = vunpack.c.l.b16 %v9843
      %v9917 = vunpack.c.l.b16 %v9844
      %v9918 = vunpack.c.l.b16 %v9845
      %v9919 = vunpack.c.l.b16 %v9846
      %v9920 = vunpack.c.l.b16 %v9847
      %v9921 = vunpack.c.l.b16 %v9848
      %v9922 = vunpack.c.l.b16 %v9849
      %v9923 = vunpack.c.l.b16 %v9850
      %v9924 = vunpack.c.l.b16 %v9851
      %v9925 = vunpack.c.l.b16 %v9852
      %v9926 = vunpack.c.l.b16 %v9853
      %v9927 = vunpack.c.l.b16 %v9854
      %v9928 = vunpack.c.l.b16 %v9855
      %v9929 = vunpack.c.l.b16 %v9856
      %v9930 = vunpack.c.l.b16 %v9857
      %v9931 = vunpack.c.l.b16 %v9858
      %v9932 = vunpack.c.l.b16 %v9859
      %v9933 = vunpack.c.l.b16 %v9860
      %v9934 = vunpack.c.l.b16 %v9861
      %v9935 = vunpack.c.l.b16 %v9862
      %v9936 = vunpack.c.l.b16 %v9863
      %v9937 = vunpack.c.l.b16 %v9864
      %v9938 = vunpack.c.l.b16 %v9865
      %v9939 = vunpack.c.l.b16 %v9866
      %v9940 = vunpack.c.l.b16 %v9867
      %v9941 = vunpack.c.l.b16 %v9868
      %v9942 = vunpack.c.l.b16 %v9869
      %v9943 = vunpack.c.l.b16 %v9870
      %v9944 = vunpack.c.l.b16 %v9871
      %v9945 = vunpack.c.l.b16 %v9872
      %v9946 = vunpack.c.l.b16 %v9873
      %v9947 = vunpack.c.l.b16 %v9874
      %v9948 = vpack.c.b16 %v9914, %v9913
      %v9949 = vpack.c.b16 %v9916, %v9915
      %v9950 = vpack.c.b16 %v9918, %v9917
      %v9951 = vpack.c.b16 %v9920, %v9919
      %v9952 = vpack.c.b16 %v9922, %v9921
      %v9953 = vpack.c.b16 %v9924, %v9923
      %v9954 = vpack.c.b16 %v9926, %v9925
      %v9955 = vpack.c.b16 %v9928, %v9927
      %v9956 = vpack.c.b16 %v9930, %v9929
      %v9957 = vpack.c.b16 %v9932, %v9931
      %v9958 = vpack.c.b16 %v9934, %v9933
      %v9959 = vpack.c.b16 %v9936, %v9935
      %v9960 = vpack.c.b16 %v9938, %v9937
      %v9961 = vpack.c.b16 %v9940, %v9939
      %v9962 = vpack.c.b16 %v9942, %v9941
      %v9963 = vpack.c.b16 %v9944, %v9943
      %v9964 = vpack.c.b16 %v9946, %v9945
      %v9965 = vpack.c.b16 %v9947, %v9947
      %v9966 = vrot.slane %v9948, 1
      %v9967 = vrot.slane %v9949, 1
      %v9968 = vsel %vm6408, %v9966, %v9967
      %v9969 = vrot.slane %v9950, 1
      %v9970 = vsel %vm6408, %v9967, %v9969
      %v9971 = vrot.slane %v9951, 1
      %v9972 = vsel %vm6408, %v9969, %v9971
      %v9973 = vrot.slane %v9952, 1
      %v9974 = vsel %vm6408, %v9971, %v9973
      %v9975 = vrot.slane %v9953, 1
      %v9976 = vsel %vm6408, %v9973, %v9975
      %v9977 = vrot.slane %v9954, 1
      %v9978 = vsel %vm6408, %v9975, %v9977
      %v9979 = vrot.slane %v9955, 1
      %v9980 = vsel %vm6408, %v9977, %v9979
      %v9981 = vrot.slane %v9956, 1
      %v9982 = vsel %vm6408, %v9979, %v9981
      %v9983 = vrot.slane %v9957, 1
      %v9984 = vsel %vm6408, %v9981, %v9983
      %v9985 = vrot.slane %v9958, 1
      %v9986 = vsel %vm6408, %v9983, %v9985
      %v9987 = vrot.slane %v9959, 1
      %v9988 = vsel %vm6408, %v9985, %v9987
      %v9989 = vrot.slane %v9960, 1
      %v9990 = vsel %vm6408, %v9987, %v9989
      %v9991 = vrot.slane %v9961, 1
      %v9992 = vsel %vm6408, %v9989, %v9991
      %v9993 = vrot.slane %v9962, 1
      %v9994 = vsel %vm6408, %v9991, %v9993
      %v9995 = vrot.slane %v9963, 1
      %v9996 = vsel %vm6408, %v9993, %v9995
      %v9997 = vrot.slane %v9964, 1
      %v9998 = vsel %vm6408, %v9995, %v9997
      %v9999 = vrot.slane %v9965, 1
      %v10000 = vsel %vm6408, %v9997, %v9999
      %v10003 = vunpack.c.l.b16 %v9876
      %v10004 = vunpack.c.l.b16 %v9877
      %v10005 = vpack.c.b16 %v10004, %v10003
      %v10008 = vsel %vm2665, %v9968, 0
      %v10011 = vsel %vm2665, %v9970, 0
      %v10014 = vsel %vm2665, %v9972, 0
      %v10017 = vsel %vm2665, %v9974, 0
      %v10020 = vsel %vm2665, %v9976, 0
      %v10023 = vsel %vm2665, %v9978, 0
      %v10026 = vsel %vm2665, %v9980, 0
      %v10029 = vsel %vm2665, %v9982, 0
      %v10032 = vsel %vm2665, %v9984, 0
      %v10035 = vsel %vm2665, %v9986, 0
      %v10038 = vsel %vm2665, %v9988, 0
      %v10041 = vsel %vm2665, %v9990, 0
      %v10044 = vsel %vm2665, %v9992, 0
      %v10047 = vsel %vm2665, %v9994, 0
      %v10050 = vsel %vm2665, %v9996, 0
      %v10053 = vsel %vm2665, %v9998, 0
      %v10056 = vsel %vm2665, %v10000, 0
      %10058 = vmatprep.subr.bf16.mxu0 0
      %10059 = vmatpush1.bf16.msra.mxu0 0
      %10060 = vmatprep.subr.bf16.mxu0 0
      %10061 = vmatpush1.bf16.msra.mxu0 0
      %10062 = vmatprep.subr.bf16.mxu0 0
      %10063 = vmatpush1.bf16.msra.mxu0 0
      %10064 = vmatprep.subr.bf16.mxu0 0
      %10065 = vmatpush1.bf16.msra.mxu0 0
      %10066 = vmatprep.subr.bf16.mxu0 0
      %10067 = vmatpush1.bf16.msra.mxu0 0
      %10068 = vmatprep.subr.bf16.mxu0 0
      %10069 = vmatpush1.bf16.msra.mxu0 0
      %10070 = vmatprep.subr.bf16.mxu0 0
      %10071 = vmatpush1.bf16.msra.mxu0 0
      %10072 = vmatprep.subr.bf16.mxu0 0
      %10073 = vmatpush1.bf16.msra.mxu0 %v10005
      %10074 = vmatprep.subr.bf16.mxu0 0
      %10075 = vmatpush2.bf16.msra.mxu0 0
      %10076 = vmatprep.subr.bf16.mxu0 0
      %10077 = vmatpush2.bf16.msra.mxu0 0
      %10078 = vmatprep.subr.bf16.mxu0 0
      %10079 = vmatpush2.bf16.msra.mxu0 0
      %10080 = vmatprep.subr.bf16.mxu0 0
      %10081 = vmatpush2.bf16.msra.mxu0 0
      %10082 = vmatprep.subr.bf16.mxu0 0
      %10083 = vmatpush2.bf16.msra.mxu0 0
      %10084 = vmatprep.subr.bf16.mxu0 0
      %10085 = vmatpush2.bf16.msra.mxu0 0
      %10086 = vmatprep.subr.bf16.mxu0 0
      %10087 = vmatpush2.bf16.msra.mxu0 0
      %10088 = vmatprep.subr.bf16.mxu0 0
      %10089 = vmatpush2.bf16.msra.mxu0 0
      %10090 = vmatprep.mubr.bf16.mxu0 0
      %10091 = vmatmul.mubr.bf16.gmra.mxu0 %v10008
      %v10092 = vpop.f32.mrf.mxu0
      %v10093 = vadd.f32 %v2572, %v10092
      %v10094 = vpop.f32.mrf.mxu0
      %v10095 = vpop.f32.mrf.mxu0
      %v10096 = vadd.f32 %v2572, %v10095
      %v10097 = vpop.f32.mrf.mxu0
      %10098 = vmatprep.mubr.bf16.mxu0 0
      %10099 = vmatmul.mubr.bf16.gmra.mxu0 %v10011
      %v10100 = vpop.f32.mrf.mxu0
      %v10101 = vadd.f32 %v2572, %v10100
      %v10102 = vpop.f32.mrf.mxu0
      %v10103 = vpop.f32.mrf.mxu0
      %v10104 = vadd.f32 %v2572, %v10103
      %v10105 = vpop.f32.mrf.mxu0
      %10106 = vmatprep.mubr.bf16.mxu0 0
      %10107 = vmatmul.mubr.bf16.gmra.mxu0 %v10014
      %v10108 = vpop.f32.mrf.mxu0
      %v10109 = vadd.f32 %v2572, %v10108
      %v10110 = vpop.f32.mrf.mxu0
      %v10111 = vpop.f32.mrf.mxu0
      %v10112 = vadd.f32 %v2572, %v10111
      %v10113 = vpop.f32.mrf.mxu0
      %10114 = vmatprep.mubr.bf16.mxu0 0
      %10115 = vmatmul.mubr.bf16.gmra.mxu0 %v10017
      %v10116 = vpop.f32.mrf.mxu0
      %v10117 = vadd.f32 %v2572, %v10116
      %v10118 = vpop.f32.mrf.mxu0
      %v10119 = vpop.f32.mrf.mxu0
      %v10120 = vadd.f32 %v2572, %v10119
      %v10121 = vpop.f32.mrf.mxu0
      %10122 = vmatprep.mubr.bf16.mxu0 0
      %10123 = vmatmul.mubr.bf16.gmra.mxu0 %v10020
      %v10124 = vpop.f32.mrf.mxu0
      %v10125 = vadd.f32 %v2572, %v10124
      %v10126 = vpop.f32.mrf.mxu0
      %v10127 = vpop.f32.mrf.mxu0
      %v10128 = vadd.f32 %v2572, %v10127
      %v10129 = vpop.f32.mrf.mxu0
      %10130 = vmatprep.mubr.bf16.mxu0 0
      %10131 = vmatmul.mubr.bf16.gmra.mxu0 %v10023
      %v10132 = vpop.f32.mrf.mxu0
      %v10133 = vadd.f32 %v2572, %v10132
      %v10134 = vpop.f32.mrf.mxu0
      %v10135 = vpop.f32.mrf.mxu0
      %v10136 = vadd.f32 %v2572, %v10135
      %v10137 = vpop.f32.mrf.mxu0
      %10138 = vmatprep.mubr.bf16.mxu0 0
      %10139 = vmatmul.mubr.bf16.gmra.mxu0 %v10026
      %v10140 = vpop.f32.mrf.mxu0
      %v10141 = vadd.f32 %v2572, %v10140
      %v10142 = vpop.f32.mrf.mxu0
      %v10143 = vpop.f32.mrf.mxu0
      %v10144 = vadd.f32 %v2572, %v10143
      %v10145 = vpop.f32.mrf.mxu0
      %10146 = vmatprep.mubr.bf16.mxu0 0
      %10147 = vmatmul.mubr.bf16.gmra.mxu0 %v10029
      %v10148 = vpop.f32.mrf.mxu0
      %v10149 = vadd.f32 %v2572, %v10148
      %v10150 = vpop.f32.mrf.mxu0
      %v10151 = vpop.f32.mrf.mxu0
      %v10152 = vadd.f32 %v2572, %v10151
      %v10153 = vpop.f32.mrf.mxu0
      %10154 = vmatprep.mubr.bf16.mxu0 0
      %10155 = vmatmul.mubr.bf16.gmra.mxu0 %v10032
      %v10156 = vpop.f32.mrf.mxu0
      %v10157 = vadd.f32 %v2572, %v10156
      %v10158 = vpop.f32.mrf.mxu0
      %v10159 = vpop.f32.mrf.mxu0
      %v10160 = vadd.f32 %v2572, %v10159
      %v10161 = vpop.f32.mrf.mxu0
      %10162 = vmatprep.mubr.bf16.mxu0 0
      %10163 = vmatmul.mubr.bf16.gmra.mxu0 %v10035
      %v10164 = vpop.f32.mrf.mxu0
      %v10165 = vadd.f32 %v2572, %v10164
      %v10166 = vpop.f32.mrf.mxu0
      %v10167 = vpop.f32.mrf.mxu0
      %v10168 = vadd.f32 %v2572, %v10167
      %v10169 = vpop.f32.mrf.mxu0
      %10170 = vmatprep.mubr.bf16.mxu0 0
      %10171 = vmatmul.mubr.bf16.gmra.mxu0 %v10038
      %v10172 = vpop.f32.mrf.mxu0
      %v10173 = vadd.f32 %v2572, %v10172
      %v10174 = vpop.f32.mrf.mxu0
      %v10175 = vpop.f32.mrf.mxu0
      %v10176 = vadd.f32 %v2572, %v10175
      %v10177 = vpop.f32.mrf.mxu0
      %10178 = vmatprep.mubr.bf16.mxu0 0
      %10179 = vmatmul.mubr.bf16.gmra.mxu0 %v10041
      %v10180 = vpop.f32.mrf.mxu0
      %v10181 = vadd.f32 %v2572, %v10180
      %v10182 = vpop.f32.mrf.mxu0
      %v10183 = vpop.f32.mrf.mxu0
      %v10184 = vadd.f32 %v2572, %v10183
      %v10185 = vpop.f32.mrf.mxu0
      %10186 = vmatprep.mubr.bf16.mxu0 0
      %10187 = vmatmul.mubr.bf16.gmra.mxu0 %v10044
      %v10188 = vpop.f32.mrf.mxu0
      %v10189 = vadd.f32 %v2572, %v10188
      %v10190 = vpop.f32.mrf.mxu0
      %v10191 = vpop.f32.mrf.mxu0
      %v10192 = vadd.f32 %v2572, %v10191
      %v10193 = vpop.f32.mrf.mxu0
      %10194 = vmatprep.mubr.bf16.mxu0 0
      %10195 = vmatmul.mubr.bf16.gmra.mxu0 %v10047
      %v10196 = vpop.f32.mrf.mxu0
      %v10197 = vadd.f32 %v2572, %v10196
      %v10198 = vpop.f32.mrf.mxu0
      %v10199 = vpop.f32.mrf.mxu0
      %v10200 = vadd.f32 %v2572, %v10199
      %v10201 = vpop.f32.mrf.mxu0
      %10202 = vmatprep.mubr.bf16.mxu0 0
      %10203 = vmatmul.mubr.bf16.gmra.mxu0 %v10050
      %v10204 = vpop.f32.mrf.mxu0
      %v10205 = vadd.f32 %v2572, %v10204
      %v10206 = vpop.f32.mrf.mxu0
      %v10207 = vpop.f32.mrf.mxu0
      %v10208 = vadd.f32 %v2572, %v10207
      %v10209 = vpop.f32.mrf.mxu0
      %10210 = vmatprep.mubr.bf16.mxu0 0
      %10211 = vmatmul.mubr.bf16.gmra.mxu0 %v10053
      %v10212 = vpop.f32.mrf.mxu0
      %v10213 = vadd.f32 %v2572, %v10212
      %v10214 = vpop.f32.mrf.mxu0
      %v10215 = vpop.f32.mrf.mxu0
      %v10216 = vadd.f32 %v2572, %v10215
      %v10217 = vpop.f32.mrf.mxu0
      %10218 = vmatprep.mubr.bf16.mxu0 0
      %10219 = vmatmul.mubr.bf16.gmra.mxu0 %v10056
      %v10220 = vpop.f32.mrf.mxu0
      %v10221 = vadd.f32 %v2572, %v10220
      %v10222 = vpop.f32.mrf.mxu0
      %v10223 = vpop.f32.mrf.mxu0
      %v10224 = vadd.f32 %v2572, %v10223
      %v10225 = vpop.f32.mrf.mxu0
      %10226 = vdwg.mxu0
      %vm10227 = vcmp.gt.f32.partialorder %v10093, 0.0
      %vm10228 = vcmp.gt.f32.partialorder %v10096, 0.0
      %vm10229 = vcmp.gt.f32.partialorder %v10101, 0.0
      %vm10230 = vcmp.gt.f32.partialorder %v10104, 0.0
      %vm10231 = vcmp.gt.f32.partialorder %v10109, 0.0
      %vm10232 = vcmp.gt.f32.partialorder %v10112, 0.0
      %vm10233 = vcmp.gt.f32.partialorder %v10117, 0.0
      %vm10234 = vcmp.gt.f32.partialorder %v10120, 0.0
      %vm10235 = vcmp.gt.f32.partialorder %v10125, 0.0
      %vm10236 = vcmp.gt.f32.partialorder %v10128, 0.0
      %vm10237 = vcmp.gt.f32.partialorder %v10133, 0.0
      %vm10238 = vcmp.gt.f32.partialorder %v10136, 0.0
      %vm10239 = vcmp.gt.f32.partialorder %v10141, 0.0
      %vm10240 = vcmp.gt.f32.partialorder %v10144, 0.0
      %vm10241 = vcmp.gt.f32.partialorder %v10149, 0.0
      %vm10242 = vcmp.gt.f32.partialorder %v10152, 0.0
      %vm10243 = vcmp.gt.f32.partialorder %v10157, 0.0
      %vm10244 = vcmp.gt.f32.partialorder %v10160, 0.0
      %vm10245 = vcmp.gt.f32.partialorder %v10165, 0.0
      %vm10246 = vcmp.gt.f32.partialorder %v10168, 0.0
      %vm10247 = vcmp.gt.f32.partialorder %v10173, 0.0
      %vm10248 = vcmp.gt.f32.partialorder %v10176, 0.0
      %vm10249 = vcmp.gt.f32.partialorder %v10181, 0.0
      %vm10250 = vcmp.gt.f32.partialorder %v10184, 0.0
      %vm10251 = vcmp.gt.f32.partialorder %v10189, 0.0
      %vm10252 = vcmp.gt.f32.partialorder %v10192, 0.0
      %vm10253 = vcmp.gt.f32.partialorder %v10197, 0.0
      %vm10254 = vcmp.gt.f32.partialorder %v10200, 0.0
      %vm10255 = vcmp.gt.f32.partialorder %v10205, 0.0
      %vm10256 = vcmp.gt.f32.partialorder %v10208, 0.0
      %vm10257 = vcmp.gt.f32.partialorder %v10213, 0.0
      %vm10258 = vcmp.gt.f32.partialorder %v10216, 0.0
      %vm10259 = vcmp.gt.f32.partialorder %v10221, 0.0
      %vm10260 = vcmp.gt.f32.partialorder %v10224, 0.0
      %v10261 = vmul.f32 %v10093, -0.76766074
      %v10262 = vmul.f32 %v10096, -0.76766074
      %v10263 = vmul.f32 %v10101, -0.76766074
      %v10264 = vmul.f32 %v10104, -0.76766074
      %v10265 = vmul.f32 %v10109, -0.76766074
      %v10266 = vmul.f32 %v10112, -0.76766074
      %v10267 = vmul.f32 %v10117, -0.76766074
      %v10268 = vmul.f32 %v10120, -0.76766074
      %v10269 = vmul.f32 %v10125, -0.76766074
      %v10270 = vmul.f32 %v10128, -0.76766074
      %v10271 = vmul.f32 %v10133, -0.76766074
      %v10272 = vmul.f32 %v10136, -0.76766074
      %v10273 = vmul.f32 %v10141, -0.76766074
      %v10274 = vmul.f32 %v10144, -0.76766074
      %v10275 = vmul.f32 %v10149, -0.76766074
      %v10276 = vmul.f32 %v10152, -0.76766074
      %v10277 = vmul.f32 %v10157, -0.76766074
      %v10278 = vmul.f32 %v10160, -0.76766074
      %v10279 = vmul.f32 %v10165, -0.76766074
      %v10280 = vmul.f32 %v10168, -0.76766074
      %v10281 = vmul.f32 %v10173, -0.76766074
      %v10282 = vmul.f32 %v10176, -0.76766074
      %v10283 = vmul.f32 %v10181, -0.76766074
      %v10284 = vmul.f32 %v10184, -0.76766074
      %v10285 = vmul.f32 %v10189, -0.76766074
      %v10286 = vmul.f32 %v10192, -0.76766074
      %v10287 = vmul.f32 %v10197, -0.76766074
      %v10288 = vmul.f32 %v10200, -0.76766074
      %v10289 = vmul.f32 %v10205, -0.76766074
      %v10290 = vmul.f32 %v10208, -0.76766074
      %v10291 = vmul.f32 %v10213, -0.76766074
      %v10292 = vmul.f32 %v10216, -0.76766074
      %v10293 = vmul.f32 %v10221, -0.76766074
      %v10294 = vmul.f32 %v10224, -0.76766074
      %v10295 = vsel %vm10227, %v10093, %v10261
      %v10296 = vsel %vm10228, %v10096, %v10262
      %v10297 = vsel %vm10229, %v10101, %v10263
      %v10298 = vsel %vm10230, %v10104, %v10264
      %v10299 = vsel %vm10231, %v10109, %v10265
      %v10300 = vsel %vm10232, %v10112, %v10266
      %v10301 = vsel %vm10233, %v10117, %v10267
      %v10302 = vsel %vm10234, %v10120, %v10268
      %v10303 = vsel %vm10235, %v10125, %v10269
      %v10304 = vsel %vm10236, %v10128, %v10270
      %v10305 = vsel %vm10237, %v10133, %v10271
      %v10306 = vsel %vm10238, %v10136, %v10272
      %v10307 = vsel %vm10239, %v10141, %v10273
      %v10308 = vsel %vm10240, %v10144, %v10274
      %v10309 = vsel %vm10241, %v10149, %v10275
      %v10310 = vsel %vm10242, %v10152, %v10276
      %v10311 = vsel %vm10243, %v10157, %v10277
      %v10312 = vsel %vm10244, %v10160, %v10278
      %v10313 = vsel %vm10245, %v10165, %v10279
      %v10314 = vsel %vm10246, %v10168, %v10280
      %v10315 = vsel %vm10247, %v10173, %v10281
      %v10316 = vsel %vm10248, %v10176, %v10282
      %v10317 = vsel %vm10249, %v10181, %v10283
      %v10318 = vsel %vm10250, %v10184, %v10284
      %v10319 = vsel %vm10251, %v10189, %v10285
      %v10320 = vsel %vm10252, %v10192, %v10286
      %v10321 = vsel %vm10253, %v10197, %v10287
      %v10322 = vsel %vm10254, %v10200, %v10288
      %v10323 = vsel %vm10255, %v10205, %v10289
      %v10324 = vsel %vm10256, %v10208, %v10290
      %v10325 = vsel %vm10257, %v10213, %v10291
      %v10326 = vsel %vm10258, %v10216, %v10292
      %v10327 = vsel %vm10259, %v10221, %v10293
      %v10328 = vsel %vm10260, %v10224, %v10294
      %v10329 = vpack.c.bf16 %v10296, %v10295
      %v10330 = vpack.c.bf16 %v10298, %v10297
      %v10331 = vpack.c.bf16 %v10300, %v10299
      %v10332 = vpack.c.bf16 %v10302, %v10301
      %v10333 = vpack.c.bf16 %v10304, %v10303
      %v10334 = vpack.c.bf16 %v10306, %v10305
      %v10335 = vpack.c.bf16 %v10308, %v10307
      %v10336 = vpack.c.bf16 %v10310, %v10309
      %v10337 = vpack.c.bf16 %v10312, %v10311
      %v10338 = vpack.c.bf16 %v10314, %v10313
      %v10339 = vpack.c.bf16 %v10316, %v10315
      %v10340 = vpack.c.bf16 %v10318, %v10317
      %v10341 = vpack.c.bf16 %v10320, %v10319
      %v10342 = vpack.c.bf16 %v10322, %v10321
      %v10343 = vpack.c.bf16 %v10324, %v10323
      %v10344 = vpack.c.bf16 %v10326, %v10325
      %v10345 = vpack.c.bf16 %v10328, %v10327
      %v10347 = vsel %vm3016, %v10329, 0
      %v10350 = vsel %vm3016, %v10330, 0
      %v10353 = vsel %vm3016, %v10331, 0
      %v10356 = vsel %vm3016, %v10332, 0
      %v10359 = vsel %vm3016, %v10333, 0
      %v10362 = vsel %vm3016, %v10334, 0
      %v10365 = vsel %vm3016, %v10335, 0
      %v10368 = vsel %vm3016, %v10336, 0
      %v10371 = vsel %vm3016, %v10337, 0
      %v10374 = vsel %vm3016, %v10338, 0
      %v10377 = vsel %vm3016, %v10339, 0
      %v10380 = vsel %vm3016, %v10340, 0
      %v10383 = vsel %vm3016, %v10341, 0
      %v10386 = vsel %vm3016, %v10342, 0
      %v10389 = vsel %vm3016, %v10343, 0
      %v10392 = vsel %vm3016, %v10344, 0
      %v10395 = vsel %vm3016, %v10345, 0
      %10397 = vmatprep.subr.bf16.mxu0 0
      %10398 = vmatpush1.bf16.msra.mxu0 0
      %10399 = vmatprep.subr.bf16.mxu0 0
      %10400 = vmatpush1.bf16.msra.mxu0 0
      %10401 = vmatprep.subr.bf16.mxu0 0
      %10402 = vmatpush1.bf16.msra.mxu0 0
      %10403 = vmatprep.subr.bf16.mxu0 0
      %10404 = vmatpush1.bf16.msra.mxu0 0
      %10405 = vmatprep.subr.bf16.mxu0 0
      %10406 = vmatpush1.bf16.msra.mxu0 0
      %10407 = vmatprep.subr.bf16.mxu0 0
      %10408 = vmatpush1.bf16.msra.mxu0 0
      %10409 = vmatprep.subr.bf16.mxu0 0
      %10410 = vmatpush1.bf16.msra.mxu0 0
      %10411 = vmatprep.subr.bf16.mxu0 0
      %10412 = vmatpush1.bf16.msra.mxu0 %v3070
      %10413 = vmatprep.subr.bf16.mxu0 0
      %10414 = vmatpush2.bf16.msra.mxu0 0
      %10415 = vmatprep.subr.bf16.mxu0 0
      %10416 = vmatpush2.bf16.msra.mxu0 0
      %10417 = vmatprep.subr.bf16.mxu0 0
      %10418 = vmatpush2.bf16.msra.mxu0 0
      %10419 = vmatprep.subr.bf16.mxu0 0
      %10420 = vmatpush2.bf16.msra.mxu0 0
      %10421 = vmatprep.subr.bf16.mxu0 0
      %10422 = vmatpush2.bf16.msra.mxu0 0
      %10423 = vmatprep.subr.bf16.mxu0 0
      %10424 = vmatpush2.bf16.msra.mxu0 0
      %10425 = vmatprep.subr.bf16.mxu0 0
      %10426 = vmatpush2.bf16.msra.mxu0 0
      %10427 = vmatprep.subr.bf16.mxu0 0
      %10428 = vmatpush2.bf16.msra.mxu0 0
      %10429 = vmatprep.mubr.bf16.mxu0 0
      %10430 = vmatmul.mubr.bf16.gmra.mxu0 %v10347
      %v10431 = vpop.f32.mrf.mxu0
      %v10432 = vadd.f32 %v3009, %v10431
      %v10433 = vpop.f32.mrf.mxu0
      %v10434 = vpop.f32.mrf.mxu0
      %v10435 = vadd.f32 %v3009, %v10434
      %v10436 = vpop.f32.mrf.mxu0
      %10437 = vmatprep.mubr.bf16.mxu0 0
      %10438 = vmatmul.mubr.bf16.gmra.mxu0 %v10350
      %v10439 = vpop.f32.mrf.mxu0
      %v10440 = vadd.f32 %v3009, %v10439
      %v10441 = vpop.f32.mrf.mxu0
      %v10442 = vpop.f32.mrf.mxu0
      %v10443 = vadd.f32 %v3009, %v10442
      %v10444 = vpop.f32.mrf.mxu0
      %10445 = vmatprep.mubr.bf16.mxu0 0
      %10446 = vmatmul.mubr.bf16.gmra.mxu0 %v10353
      %v10447 = vpop.f32.mrf.mxu0
      %v10448 = vadd.f32 %v3009, %v10447
      %v10449 = vpop.f32.mrf.mxu0
      %v10450 = vpop.f32.mrf.mxu0
      %v10451 = vadd.f32 %v3009, %v10450
      %v10452 = vpop.f32.mrf.mxu0
      %10453 = vmatprep.mubr.bf16.mxu0 0
      %10454 = vmatmul.mubr.bf16.gmra.mxu0 %v10356
      %v10455 = vpop.f32.mrf.mxu0
      %v10456 = vadd.f32 %v3009, %v10455
      %v10457 = vpop.f32.mrf.mxu0
      %v10458 = vpop.f32.mrf.mxu0
      %v10459 = vadd.f32 %v3009, %v10458
      %v10460 = vpop.f32.mrf.mxu0
      %10461 = vmatprep.mubr.bf16.mxu0 0
      %10462 = vmatmul.mubr.bf16.gmra.mxu0 %v10359
      %v10463 = vpop.f32.mrf.mxu0
      %v10464 = vadd.f32 %v3009, %v10463
      %v10465 = vpop.f32.mrf.mxu0
      %v10466 = vpop.f32.mrf.mxu0
      %v10467 = vadd.f32 %v3009, %v10466
      %v10468 = vpop.f32.mrf.mxu0
      %10469 = vmatprep.mubr.bf16.mxu0 0
      %10470 = vmatmul.mubr.bf16.gmra.mxu0 %v10362
      %v10471 = vpop.f32.mrf.mxu0
      %v10472 = vadd.f32 %v3009, %v10471
      %v10473 = vpop.f32.mrf.mxu0
      %v10474 = vpop.f32.mrf.mxu0
      %v10475 = vadd.f32 %v3009, %v10474
      %v10476 = vpop.f32.mrf.mxu0
      %10477 = vmatprep.mubr.bf16.mxu0 0
      %10478 = vmatmul.mubr.bf16.gmra.mxu0 %v10365
      %v10479 = vpop.f32.mrf.mxu0
      %v10480 = vadd.f32 %v3009, %v10479
      %v10481 = vpop.f32.mrf.mxu0
      %v10482 = vpop.f32.mrf.mxu0
      %v10483 = vadd.f32 %v3009, %v10482
      %v10484 = vpop.f32.mrf.mxu0
      %10485 = vmatprep.mubr.bf16.mxu0 0
      %10486 = vmatmul.mubr.bf16.gmra.mxu0 %v10368
      %v10487 = vpop.f32.mrf.mxu0
      %v10488 = vadd.f32 %v3009, %v10487
      %v10489 = vpop.f32.mrf.mxu0
      %v10490 = vpop.f32.mrf.mxu0
      %v10491 = vadd.f32 %v3009, %v10490
      %v10492 = vpop.f32.mrf.mxu0
      %10493 = vmatprep.mubr.bf16.mxu0 0
      %10494 = vmatmul.mubr.bf16.gmra.mxu0 %v10371
      %v10495 = vpop.f32.mrf.mxu0
      %v10496 = vadd.f32 %v3009, %v10495
      %v10497 = vpop.f32.mrf.mxu0
      %v10498 = vpop.f32.mrf.mxu0
      %v10499 = vadd.f32 %v3009, %v10498
      %v10500 = vpop.f32.mrf.mxu0
      %10501 = vmatprep.mubr.bf16.mxu0 0
      %10502 = vmatmul.mubr.bf16.gmra.mxu0 %v10374
      %v10503 = vpop.f32.mrf.mxu0
      %v10504 = vadd.f32 %v3009, %v10503
      %v10505 = vpop.f32.mrf.mxu0
      %v10506 = vpop.f32.mrf.mxu0
      %v10507 = vadd.f32 %v3009, %v10506
      %v10508 = vpop.f32.mrf.mxu0
      %10509 = vmatprep.mubr.bf16.mxu0 0
      %10510 = vmatmul.mubr.bf16.gmra.mxu0 %v10377
      %v10511 = vpop.f32.mrf.mxu0
      %v10512 = vadd.f32 %v3009, %v10511
      %v10513 = vpop.f32.mrf.mxu0
      %v10514 = vpop.f32.mrf.mxu0
      %v10515 = vadd.f32 %v3009, %v10514
      %v10516 = vpop.f32.mrf.mxu0
      %10517 = vmatprep.mubr.bf16.mxu0 0
      %10518 = vmatmul.mubr.bf16.gmra.mxu0 %v10380
      %v10519 = vpop.f32.mrf.mxu0
      %v10520 = vadd.f32 %v3009, %v10519
      %v10521 = vpop.f32.mrf.mxu0
      %v10522 = vpop.f32.mrf.mxu0
      %v10523 = vadd.f32 %v3009, %v10522
      %v10524 = vpop.f32.mrf.mxu0
      %10525 = vmatprep.mubr.bf16.mxu0 0
      %10526 = vmatmul.mubr.bf16.gmra.mxu0 %v10383
      %v10527 = vpop.f32.mrf.mxu0
      %v10528 = vadd.f32 %v3009, %v10527
      %v10529 = vpop.f32.mrf.mxu0
      %v10530 = vpop.f32.mrf.mxu0
      %v10531 = vadd.f32 %v3009, %v10530
      %v10532 = vpop.f32.mrf.mxu0
      %10533 = vmatprep.mubr.bf16.mxu0 0
      %10534 = vmatmul.mubr.bf16.gmra.mxu0 %v10386
      %v10535 = vpop.f32.mrf.mxu0
      %v10536 = vadd.f32 %v3009, %v10535
      %v10537 = vpop.f32.mrf.mxu0
      %v10538 = vpop.f32.mrf.mxu0
      %v10539 = vadd.f32 %v3009, %v10538
      %v10540 = vpop.f32.mrf.mxu0
      %10541 = vmatprep.mubr.bf16.mxu0 0
      %10542 = vmatmul.mubr.bf16.gmra.mxu0 %v10389
      %v10543 = vpop.f32.mrf.mxu0
      %v10544 = vadd.f32 %v3009, %v10543
      %v10545 = vpop.f32.mrf.mxu0
      %v10546 = vpop.f32.mrf.mxu0
      %v10547 = vadd.f32 %v3009, %v10546
      %v10548 = vpop.f32.mrf.mxu0
      %10549 = vmatprep.mubr.bf16.mxu0 0
      %10550 = vmatmul.mubr.bf16.gmra.mxu0 %v10392
      %v10551 = vpop.f32.mrf.mxu0
      %v10552 = vadd.f32 %v3009, %v10551
      %v10553 = vpop.f32.mrf.mxu0
      %v10554 = vpop.f32.mrf.mxu0
      %v10555 = vadd.f32 %v3009, %v10554
      %v10556 = vpop.f32.mrf.mxu0
      %10557 = vmatprep.mubr.bf16.mxu0 0
      %10558 = vmatmul.mubr.bf16.gmra.mxu0 %v10395
      %v10559 = vpop.f32.mrf.mxu0
      %v10560 = vadd.f32 %v3009, %v10559
      %v10561 = vpop.f32.mrf.mxu0
      %v10562 = vpop.f32.mrf.mxu0
      %v10563 = vadd.f32 %v3009, %v10562
      %v10564 = vpop.f32.mrf.mxu0
      %10565 = vdwg.mxu0
      %vm10566 = vcmp.gt.f32.partialorder %v10432, 0.0
      %vm10567 = vcmp.gt.f32.partialorder %v10435, 0.0
      %vm10568 = vcmp.gt.f32.partialorder %v10440, 0.0
      %vm10569 = vcmp.gt.f32.partialorder %v10443, 0.0
      %vm10570 = vcmp.gt.f32.partialorder %v10448, 0.0
      %vm10571 = vcmp.gt.f32.partialorder %v10451, 0.0
      %vm10572 = vcmp.gt.f32.partialorder %v10456, 0.0
      %vm10573 = vcmp.gt.f32.partialorder %v10459, 0.0
      %vm10574 = vcmp.gt.f32.partialorder %v10464, 0.0
      %vm10575 = vcmp.gt.f32.partialorder %v10467, 0.0
      %vm10576 = vcmp.gt.f32.partialorder %v10472, 0.0
      %vm10577 = vcmp.gt.f32.partialorder %v10475, 0.0
      %vm10578 = vcmp.gt.f32.partialorder %v10480, 0.0
      %vm10579 = vcmp.gt.f32.partialorder %v10483, 0.0
      %vm10580 = vcmp.gt.f32.partialorder %v10488, 0.0
      %vm10581 = vcmp.gt.f32.partialorder %v10491, 0.0
      %vm10582 = vcmp.gt.f32.partialorder %v10496, 0.0
      %vm10583 = vcmp.gt.f32.partialorder %v10499, 0.0
      %vm10584 = vcmp.gt.f32.partialorder %v10504, 0.0
      %vm10585 = vcmp.gt.f32.partialorder %v10507, 0.0
      %vm10586 = vcmp.gt.f32.partialorder %v10512, 0.0
      %vm10587 = vcmp.gt.f32.partialorder %v10515, 0.0
      %vm10588 = vcmp.gt.f32.partialorder %v10520, 0.0
      %vm10589 = vcmp.gt.f32.partialorder %v10523, 0.0
      %vm10590 = vcmp.gt.f32.partialorder %v10528, 0.0
      %vm10591 = vcmp.gt.f32.partialorder %v10531, 0.0
      %vm10592 = vcmp.gt.f32.partialorder %v10536, 0.0
      %vm10593 = vcmp.gt.f32.partialorder %v10539, 0.0
      %vm10594 = vcmp.gt.f32.partialorder %v10544, 0.0
      %vm10595 = vcmp.gt.f32.partialorder %v10547, 0.0
      %vm10596 = vcmp.gt.f32.partialorder %v10552, 0.0
      %vm10597 = vcmp.gt.f32.partialorder %v10555, 0.0
      %vm10598 = vcmp.gt.f32.partialorder %v10560, 0.0
      %vm10599 = vcmp.gt.f32.partialorder %v10563, 0.0
      %v10600 = vmul.f32 %v10432, -0.76766074
      %v10601 = vmul.f32 %v10435, -0.76766074
      %v10602 = vmul.f32 %v10440, -0.76766074
      %v10603 = vmul.f32 %v10443, -0.76766074
      %v10604 = vmul.f32 %v10448, -0.76766074
      %v10605 = vmul.f32 %v10451, -0.76766074
      %v10606 = vmul.f32 %v10456, -0.76766074
      %v10607 = vmul.f32 %v10459, -0.76766074
      %v10608 = vmul.f32 %v10464, -0.76766074
      %v10609 = vmul.f32 %v10467, -0.76766074
      %v10610 = vmul.f32 %v10472, -0.76766074
      %v10611 = vmul.f32 %v10475, -0.76766074
      %v10612 = vmul.f32 %v10480, -0.76766074
      %v10613 = vmul.f32 %v10483, -0.76766074
      %v10614 = vmul.f32 %v10488, -0.76766074
      %v10615 = vmul.f32 %v10491, -0.76766074
      %v10616 = vmul.f32 %v10496, -0.76766074
      %v10617 = vmul.f32 %v10499, -0.76766074
      %v10618 = vmul.f32 %v10504, -0.76766074
      %v10619 = vmul.f32 %v10507, -0.76766074
      %v10620 = vmul.f32 %v10512, -0.76766074
      %v10621 = vmul.f32 %v10515, -0.76766074
      %v10622 = vmul.f32 %v10520, -0.76766074
      %v10623 = vmul.f32 %v10523, -0.76766074
      %v10624 = vmul.f32 %v10528, -0.76766074
      %v10625 = vmul.f32 %v10531, -0.76766074
      %v10626 = vmul.f32 %v10536, -0.76766074
      %v10627 = vmul.f32 %v10539, -0.76766074
      %v10628 = vmul.f32 %v10544, -0.76766074
      %v10629 = vmul.f32 %v10547, -0.76766074
      %v10630 = vmul.f32 %v10552, -0.76766074
      %v10631 = vmul.f32 %v10555, -0.76766074
      %v10632 = vmul.f32 %v10560, -0.76766074
      %v10633 = vmul.f32 %v10563, -0.76766074
      %v10634 = vsel %vm10566, %v10432, %v10600
      %v10635 = vsel %vm10567, %v10435, %v10601
      %v10636 = vsel %vm10568, %v10440, %v10602
      %v10637 = vsel %vm10569, %v10443, %v10603
      %v10638 = vsel %vm10570, %v10448, %v10604
      %v10639 = vsel %vm10571, %v10451, %v10605
      %v10640 = vsel %vm10572, %v10456, %v10606
      %v10641 = vsel %vm10573, %v10459, %v10607
      %v10642 = vsel %vm10574, %v10464, %v10608
      %v10643 = vsel %vm10575, %v10467, %v10609
      %v10644 = vsel %vm10576, %v10472, %v10610
      %v10645 = vsel %vm10577, %v10475, %v10611
      %v10646 = vsel %vm10578, %v10480, %v10612
      %v10647 = vsel %vm10579, %v10483, %v10613
      %v10648 = vsel %vm10580, %v10488, %v10614
      %v10649 = vsel %vm10581, %v10491, %v10615
      %v10650 = vsel %vm10582, %v10496, %v10616
      %v10651 = vsel %vm10583, %v10499, %v10617
      %v10652 = vsel %vm10584, %v10504, %v10618
      %v10653 = vsel %vm10585, %v10507, %v10619
      %v10654 = vsel %vm10586, %v10512, %v10620
      %v10655 = vsel %vm10587, %v10515, %v10621
      %v10656 = vsel %vm10588, %v10520, %v10622
      %v10657 = vsel %vm10589, %v10523, %v10623
      %v10658 = vsel %vm10590, %v10528, %v10624
      %v10659 = vsel %vm10591, %v10531, %v10625
      %v10660 = vsel %vm10592, %v10536, %v10626
      %v10661 = vsel %vm10593, %v10539, %v10627
      %v10662 = vsel %vm10594, %v10544, %v10628
      %v10663 = vsel %vm10595, %v10547, %v10629
      %v10664 = vsel %vm10596, %v10552, %v10630
      %v10665 = vsel %vm10597, %v10555, %v10631
      %v10666 = vsel %vm10598, %v10560, %v10632
      %v10667 = vsel %vm10599, %v10563, %v10633
      %s10668 = scalar_lea.vmem %s359, 2176
      %10669 = vst.msk [vmem:[%s10668] sm:$0xff] %vm3343, %v10634
      %10670 = vst.msk [vmem:[%s10668 + $0x8] sm:$0xff] %vm3343, %v10635
      %10671 = vst.msk [vmem:[%s10668 + $0x10] sm:$0xff] %vm3343, %v10636
      %10672 = vst.msk [vmem:[%s10668 + $0x18] sm:$0xff] %vm3343, %v10637
      %10673 = vst.msk [vmem:[%s10668 + $0x20] sm:$0xff] %vm3343, %v10638
      %10674 = vst.msk [vmem:[%s10668 + $0x28] sm:$0xff] %vm3343, %v10639
      %10675 = vst.msk [vmem:[%s10668 + $0x30] sm:$0xff] %vm3343, %v10640
      %10676 = vst.msk [vmem:[%s10668 + $0x38] sm:$0xff] %vm3343, %v10641
      %10677 = vst.msk [vmem:[%s10668 + $0x40] sm:$0xff] %vm3343, %v10642
      %10678 = vst.msk [vmem:[%s10668 + $0x48] sm:$0xff] %vm3343, %v10643
      %10679 = vst.msk [vmem:[%s10668 + $0x50] sm:$0xff] %vm3343, %v10644
      %10680 = vst.msk [vmem:[%s10668 + $0x58] sm:$0xff] %vm3343, %v10645
      %10681 = vst.msk [vmem:[%s10668 + $0x60] sm:$0xff] %vm3343, %v10646
      %10682 = vst.msk [vmem:[%s10668 + $0x68] sm:$0xff] %vm3343, %v10647
      %10683 = vst.msk [vmem:[%s10668 + $0x70] sm:$0xff] %vm3343, %v10648
      %10684 = vst.msk [vmem:[%s10668 + $0x78] sm:$0xff] %vm3343, %v10649
      %10685 = vst.msk [vmem:[%s10668 + $0x80] sm:$0xff] %vm3343, %v10650
      %10686 = vst.msk [vmem:[%s10668 + $0x88] sm:$0xff] %vm3343, %v10651
      %10687 = vst.msk [vmem:[%s10668 + $0x90] sm:$0xff] %vm3343, %v10652
      %10688 = vst.msk [vmem:[%s10668 + $0x98] sm:$0xff] %vm3343, %v10653
      %10689 = vst.msk [vmem:[%s10668 + $0xa0] sm:$0xff] %vm3343, %v10654
      %10690 = vst.msk [vmem:[%s10668 + $0xa8] sm:$0xff] %vm3343, %v10655
      %10691 = vst.msk [vmem:[%s10668 + $0xb0] sm:$0xff] %vm3343, %v10656
      %10692 = vst.msk [vmem:[%s10668 + $0xb8] sm:$0xff] %vm3343, %v10657
      %10693 = vst.msk [vmem:[%s10668 + $0xc0] sm:$0xff] %vm3343, %v10658
      %10694 = vst.msk [vmem:[%s10668 + $0xc8] sm:$0xff] %vm3343, %v10659
      %10695 = vst.msk [vmem:[%s10668 + $0xd0] sm:$0xff] %vm3343, %v10660
      %10696 = vst.msk [vmem:[%s10668 + $0xd8] sm:$0xff] %vm3343, %v10661
      %10697 = vst.msk [vmem:[%s10668 + $0xe0] sm:$0xff] %vm3343, %v10662
      %10698 = vst.msk [vmem:[%s10668 + $0xe8] sm:$0xff] %vm3343, %v10663
      %10699 = vst.msk [vmem:[%s10668 + $0xf0] sm:$0xff] %vm3343, %v10664
      %10700 = vst.msk [vmem:[%s10668 + $0xf8] sm:$0xff] %vm3343, %v10665
      %10701 = vst.msk [vmem:[%s10668 + $0x100] sm:$0xff] %vm3343, %v10666
      %10702 = vst.msk [vmem:[%s10668 + $0x108] sm:$0xff] %vm3343, %v10667
      %p10703 = scmp.lt.s32.totalorder %s21, 1
      %s10704 = scalar_select %p10703, %s21, 1
      %s10705 = smul.addr %s10704, 306
      %s10706 = smul.addr %s10705, 8
      %s10707 = scalar_lea.vmem %s10, %s10706
      // Predicated region
      $region61: #{model_forward.1} parent=59 // pred_check
        %p10708 = pneg %p254
      $region62: #{model_forward.1} parent=59 // pred_check_branch
        %10710 = sbr.rel (%p10708) target = $region64
      $region63: #{model_forward.1} parent=59 // pred_region
        _
      $region64: #{model_forward.1} parent=59 // pred_fallthru
        _
    $region60: #{model_forward.1} parent=5 // pred_fallthru
      _
    %p10711 = scmp.le.s32.totalorder 2, %s16
    // Predicated region
    $region65: #{model_forward.1} parent=5 // pred_check
      %p10712 = pneg %p10711
    $region66: #{model_forward.1} parent=5 // pred_check_branch
      %10714 = sbr.rel (%p10712) target = $region68
    $region67: #{model_forward.1} parent=5 // pred_region
      %s10715 = ssub.s32 %s16, 2
      // Predicated region
      $region69: #{model_forward.1} parent=67 // pred_check
        %p10716 = pneg %p260
      $region70: #{model_forward.1} parent=67 // pred_check_branch
        %10718 = sbr.rel (%p10716) target = $region72
      $region71: #{model_forward.1} parent=67 // pred_region
        %p10719 = scmp.lt.s32.totalorder %s22, 1
        %s10720 = scalar_select %p10719, %s22, 1
        %s10721 = smul.addr %s10720, 306
        %s10722 = smul.addr %s10721, 8
        %s10723 = scalar_lea.vmem %s10, %s10722
      $region72: #{model_forward.1} parent=67 // pred_fallthru
        _
    $region68: #{model_forward.1} parent=5 // pred_fallthru
      _
  $region6: #{model_forward.1} parent=0 // loop_footer
    %s20 = sadd.s32 1, %s16
  $region7: #{model_forward.1} parent=0 // loop_footer_branch
    %15 = sbr.rel target = $region3
  $region8: #{model_forward.1} parent=0 // loop_exit
    _

</llo_original>
